<compile_context>
chip_gen: v7x
topology: tpu7x:2x2x1
jax: 0.10.0
libtpu: 0.0.40
codegen_flags: <defaults>
</compile_context>

<pallas_src>
import functools

import jax
import jax.numpy as jnp
from jax import lax
from jax.experimental import pallas as pl
from jax.experimental.pallas import tpu as pltpu

H = 128            # LSTM hidden size (as in the PyTorch module)
NUM_CLASSES = 10   # stand-in for len(mlb.classes_)


def _round_up(x, m):
    return ((x + m - 1) // m) * m


def _pad2(a, rows, cols):
    r, c = a.shape
    if r == rows and c == cols:
        return a
    return jnp.pad(a, ((0, rows - r), (0, cols - c)))


def _largest_divisor_leq(n, cap):
    for d in range(max(1, min(n, cap)), 0, -1):
        if n % d == 0:
            return d
    return 1


def _pick_row_tile(m, cap=512):
    """Largest row tile <= cap that divides m and satisfies the (8,128) sublane rule."""
    for d in range(min(m, cap), 0, -1):
        if m % d == 0 and (d % 8 == 0 or d == m):
            return d
    return None


# --------------------- fused conv1 -> conv2 -> maxpool kernel ---------------------

def _conv_pool_kernel(x_ref, w1_ref, b1_ref, w2_ref, b2_ref, o_ref, *, Lo1, Lo2, T, K):
    x = x_ref[0]                                                # (L, Cin) f32
    c1 = w1_ref.shape[2]
    c2 = w2_ref.shape[2]
    # TODO(synk): the tap-unfold could use pltpu.roll + one K=3*Cin matmul (small win).
    y1 = jnp.zeros((Lo1, c1), jnp.float32)
    for dk in range(K):
        y1 = y1 + jnp.dot(x[dk:dk + Lo1, :].astype(jnp.bfloat16), w1_ref[dk],
                          preferred_element_type=jnp.float32)
    y1 = jnp.maximum(y1 + b1_ref[...], 0.0).astype(jnp.bfloat16)   # (Lo1, 64)
    y2 = jnp.zeros((Lo2, c2), jnp.float32)
    for dk in range(K):
        y2 = y2 + jnp.dot(y1[dk:dk + Lo2, :], w2_ref[dk],
                          preferred_element_type=jnp.float32)
    y2 = jnp.maximum(y2 + b2_ref[...], 0.0)                     # (Lo2, 128) f32
    # MaxPool1d(2, 2) over time fused in the epilogue; emit bf16 (consumers cast anyway).
    o_ref[0] = jnp.max(y2.reshape(T, 2, c2), axis=1).astype(o_ref.dtype)


def conv_pool_stage(x, p):
    """x: (B, L, Cin) channels-last f32 -> (B, T, 128) bf16, T = (L-4)//2."""
    B, L, Cin = x.shape
    K = 3
    Lo1 = L - (K - 1)
    Lo2 = Lo1 - (K - 1)
    assert Lo2 % 2 == 0, "MaxPool1d(2,2) expects an even conv2 output length"
    T = Lo2 // 2
    C1 = p["conv1_w"].shape[2]
    C2 = p["conv2_w"].shape[2]
    return pl.pallas_call(
        functools.partial(_conv_pool_kernel, Lo1=Lo1, Lo2=Lo2, T=T, K=K),
        out_shape=jax.ShapeDtypeStruct((B, T, C2), jnp.bfloat16),
        grid=(B,),
        in_specs=[
            pl.BlockSpec((1, L, Cin), lambda b: (b, 0, 0)),
            pl.BlockSpec((K, Cin, C1), lambda b: (0, 0, 0)),
            pl.BlockSpec((1, C1), lambda b: (0, 0)),
            pl.BlockSpec((K, C1, C2), lambda b: (0, 0, 0)),
            pl.BlockSpec((1, C2), lambda b: (0, 0)),
        ],
        out_specs=pl.BlockSpec((1, T, C2), lambda b: (b, 0, 0)),
        compiler_params=pltpu.CompilerParams(dimension_semantics=("parallel",)),
    )(x, p["conv1_w"], p["conv1_b"], p["conv2_w"], p["conv2_b"])


# --------------------- LSTM input projection (both directions) ---------------------

def _proj_kernel(*refs, n_in):
    x_refs = refs[:n_in]
    w_refs = refs[n_in:2 * n_in]
    b_ref = refs[2 * n_in]
    o_ref = refs[2 * n_in + 1]
    acc = jnp.zeros(o_ref.shape, jnp.float32)
    for xr, wr in zip(x_refs, w_refs):
        acc = acc + jnp.dot(xr[...], wr[...], preferred_element_type=jnp.float32)
    o_ref[...] = acc + b_ref[...]


def input_projection(xs, ws, bias):
    """gx = sum_i xs[i] @ ws[i] + bias, lane-dense N = 8H in one tile.

    xs: list of (M, Ki) bf16, ws: list of (Ki, 8H) bf16, bias: (8H,) f32 -> (M, 8H) f32.
    Accepting the (x_fwd, x_bwd) pair directly avoids an HBM concat between LSTM layers.
    """
    n_in = len(xs)
    M = xs[0].shape[0]
    N = ws[0].shape[1]
    tm = _pick_row_tile(M, cap=512)
    if tm is None:
        tm = min(512, _round_up(M, 8))
    Mp = _round_up(M, tm)
    xs_p = [jnp.pad(xv, ((0, Mp - M), (0, 0))) if Mp != M else xv for xv in xs]
    b2 = bias.reshape(1, N).astype(jnp.float32)
    in_specs = ([pl.BlockSpec((tm, xv.shape[1]), lambda i: (i, 0)) for xv in xs_p]
                + [pl.BlockSpec((wv.shape[0], N), lambda i: (0, 0)) for wv in ws]
                + [pl.BlockSpec((1, N), lambda i: (0, 0))])
    out = pl.pallas_call(
        functools.partial(_proj_kernel, n_in=n_in),
        out_shape=jax.ShapeDtypeStruct((Mp, N), jnp.float32),
        grid=(Mp // tm,),
        in_specs=in_specs,
        out_specs=pl.BlockSpec((tm, N), lambda i: (i, 0)),
        compiler_params=pltpu.CompilerParams(dimension_semantics=("parallel",)),
    )(*xs_p, *ws, b2)
    return out[:M] if Mp != M else out


# ------------------- T-chunk streamed bidirectional LSTM recurrence ----------------

def _bilstm_kernel(gx_f_ref, gx_b_ref, whh_f_ref, whh_b_ref, out_f_ref, out_b_ref,
                   h_f, c_f, h_b, c_b, *, hidden, Tc):
    # Reset the recurrent state at the first T-chunk of each batch tile.
    @pl.when(pl.program_id(1) == 0)
    def _():
        h_f[...] = jnp.zeros_like(h_f)
        c_f[...] = jnp.zeros_like(c_f)
        h_b[...] = jnp.zeros_like(h_b)
        c_b[...] = jnp.zeros_like(c_b)

    def cell(gates, c_prev):
        # PyTorch gate order: input, forget, cell(g), output.  f32 gate math (EUP/VPU).
        i_g = jax.nn.sigmoid(gates[:, 0 * hidden:1 * hidden])
        f_g = jax.nn.sigmoid(gates[:, 1 * hidden:2 * hidden])
        g_g = jnp.tanh(gates[:, 2 * hidden:3 * hidden])
        o_g = jax.nn.sigmoid(gates[:, 3 * hidden:4 * hidden])
        c_new = f_g * c_prev + i_g * g_g
        h_new = o_g * jnp.tanh(c_new)
        return h_new, c_new

    def step(i, carry):
        tb = Tc - 1 - i
        # TODO(synk): on v6e/v7x (256-deep MXU) the two recurrent matmuls could be merged
        # into one block-diagonal (Bb,256)@(256,1024) push; kept separate (and interleaved,
        # the directions are independent) so the same code is also right-sized for v5e.
        gates_f = gx_f_ref[i] + jnp.dot(h_f[...].astype(jnp.bfloat16), whh_f_ref[...],
                                        preferred_element_type=jnp.float32)
        gates_b = gx_b_ref[tb] + jnp.dot(h_b[...].astype(jnp.bfloat16), whh_b_ref[...],
                                         preferred_element_type=jnp.float32)
        hf_new, cf_new = cell(gates_f, c_f[...])
        hb_new, cb_new = cell(gates_b, c_b[...])
        h_f[...] = hf_new
        c_f[...] = cf_new
        h_b[...] = hb_new
        c_b[...] = cb_new
        out_f_ref[i] = hf_new.astype(out_f_ref.dtype)
        out_b_ref[tb] = hb_new.astype(out_b_ref.dtype)
        return carry

    lax.fori_loop(0, Tc, step, 0)


def bilstm_layer(gx, whh_f_t, whh_b_t):
    """Fused fwd+bwd LSTM recurrence, streamed over T chunks.

    gx: (T, B, 8H) f32 precomputed x@W_ih^T + (b_ih+b_hh) for [fwd | bwd].
    whh_*_t: (H, 4H) bf16.  Returns (h_fwd, h_bwd), each (T, B, H) bf16.
    """
    T, B, G = gx.shape
    hidden = whh_f_t.shape[0]
    assert G == 8 * hidden
    # One batch tile = whole batch (maximal MXU rows, minimal serial passes).  Split into
    # two "parallel" tiles only when B is large enough, so v7x's two TensorCores each run
    # half of the serial recurrence; on 1-TC chips the single tile is preferred anyway.
    nb = 2 if (B >= 16 and B % 16 == 0) else 1
    Bb = B // nb
    # T-chunk size: keep the double-buffered gx/out chunk buffers within ~20 MiB of VMEM.
    per_step = Bb * (2 * 4 * hidden * 4 + 2 * hidden * 2)      # f32 gx halves + bf16 out halves
    cap = max(1, (20 << 20) // (2 * per_step))
    Tc = _largest_divisor_leq(T, cap)
    NC = T // Tc

    return pl.pallas_call(
        functools.partial(_bilstm_kernel, hidden=hidden, Tc=Tc),
        out_shape=[jax.ShapeDtypeStruct((T, B, hidden), jnp.bfloat16),
                   jax.ShapeDtypeStruct((T, B, hidden), jnp.bfloat16)],
        grid=(nb, NC),
        in_specs=[
            # fwd gates: chunks ascending, lane-block 0 (columns [0:4H])
            pl.BlockSpec((Tc, Bb, 4 * hidden), lambda b, c: (c, b, 0)),
            # bwd gates: chunks descending, lane-block 1 (columns [4H:8H])
            pl.BlockSpec((Tc, Bb, 4 * hidden), lambda b, c: (NC - 1 - c, b, 1)),
            pl.BlockSpec((hidden, 4 * hidden), lambda b, c: (0, 0)),
            pl.BlockSpec((hidden, 4 * hidden), lambda b, c: (0, 0)),
        ],
        out_specs=[
            pl.BlockSpec((Tc, Bb, hidden), lambda b, c: (c, b, 0)),
            pl.BlockSpec((Tc, Bb, hidden), lambda b, c: (NC - 1 - c, b, 0)),
        ],
        scratch_shapes=[pltpu.VMEM((Bb, hidden), jnp.float32) for _ in range(4)],
        compiler_params=pltpu.CompilerParams(
            dimension_semantics=("parallel", "arbitrary"),
            vmem_limit_bytes=48 * 1024 * 1024),
    )(gx, gx, whh_f_t, whh_b_t)


# ------------------------- fused fc1 -> fc2 -> fc3 head kernel ---------------------

def _fc_head_kernel(xf_ref, xb_ref, w1f_ref, w1b_ref, b1_ref, w2_ref, b2_ref,
                    w3_ref, b3_ref, o_ref, acc_ref, *, Tk):
    @pl.when(pl.program_id(0) == 0)
    def _():
        acc_ref[...] = jnp.zeros_like(acc_ref)

    acc = acc_ref[...]
    for t in range(Tk):                                   # static unroll over the T chunk
        acc = acc + jnp.dot(xf_ref[t], w1f_ref[t], preferred_element_type=jnp.float32)
        acc = acc + jnp.dot(xb_ref[t], w1b_ref[t], preferred_element_type=jnp.float32)
    acc_ref[...] = acc

    @pl.when(pl.program_id(0) == pl.num_programs(0) - 1)
    def _():
        h1 = jnp.maximum(acc_ref[...] + b1_ref[...], 0.0)
        # TODO(synk): nn.Dropout(0.5) is identity at inference; training dropout not implemented.
        h2 = jnp.maximum(
            jnp.dot(h1.astype(jnp.bfloat16), w2_ref[...],
                    preferred_element_type=jnp.float32) + b2_ref[...], 0.0)
        o_ref[...] = (jnp.dot(h2.astype(jnp.bfloat16), w3_ref[...],
                              preferred_element_type=jnp.float32)
                      + b3_ref[...]).astype(o_ref.dtype)


def fc_head(x_f, x_b, p, num_classes):
    """fc1(ReLU)->fc2(ReLU)->fc3, with fc1's K reduction streamed over time-major chunks.

    x_f, x_b: (T, B, H) bf16 straight from the bilstm kernel (no transpose/concat);
    fc1 weight arrives pre-permuted as (T, H, 512) per direction (PyTorch flatten order).
    """
    T, B, hidden = x_f.shape
    N1 = p["fc1_b"].shape[1]
    N2 = p["fc2_b"].shape[1]
    Ncp = p["fc3_b"].shape[1]
    per_t = 2 * hidden * N1 * 2                       # bf16 fc1-weight bytes per time step
    cap = max(1, (12 << 20) // (2 * per_t))           # double-buffered chunk <= ~12 MiB
    Tk = _largest_divisor_leq(T, cap)
    NKC = T // Tk

    out = pl.pallas_call(
        functools.partial(_fc_head_kernel, Tk=Tk),
        out_shape=jax.ShapeDtypeStruct((B, Ncp), jnp.float32),
        grid=(NKC,),
        in_specs=[
            pl.BlockSpec((Tk, B, hidden), lambda k: (k, 0, 0)),
            pl.BlockSpec((Tk, B, hidden), lambda k: (k, 0, 0)),
            pl.BlockSpec((Tk, hidden, N1), lambda k: (k, 0, 0)),
            pl.BlockSpec((Tk, hidden, N1), lambda k: (k, 0, 0)),
            pl.BlockSpec((1, N1), lambda k: (0, 0)),
            pl.BlockSpec((N1, N2), lambda k: (0, 0)),
            pl.BlockSpec((1, N2), lambda k: (0, 0)),
            pl.BlockSpec((N2, Ncp), lambda k: (0, 0)),
            pl.BlockSpec((1, Ncp), lambda k: (0, 0)),
        ],
        out_specs=pl.BlockSpec((B, Ncp), lambda k: (0, 0)),
        scratch_shapes=[pltpu.VMEM((B, N1), jnp.float32)],
        compiler_params=pltpu.CompilerParams(
            dimension_semantics=("arbitrary",),
            vmem_limit_bytes=48 * 1024 * 1024),
    )(x_f, x_b, p["fc1_wf"], p["fc1_wb"], p["fc1_b"], p["fc2_w"], p["fc2_b"],
      p["fc3_w"], p["fc3_b"])
    return out[:, :num_classes]


# ----------------------------------- parameters ------------------------------------

def init_params(key, lstm_out_size, num_classes):
    """PyTorch-layout f32 parameters (packed for the kernels by pack_params)."""
    def uni(k, shape, fan_in):
        s = 1.0 / jnp.sqrt(jnp.float32(fan_in))
        return jax.random.uniform(k, shape, jnp.float32, -s, s)

    keys = iter(jax.random.split(key, 64))
    p = {}
    p["conv1_w"] = uni(next(keys), (64, 12, 3), 12 * 3)
    p["conv1_b"] = uni(next(keys), (64,), 12 * 3)
    p["conv2_w"] = uni(next(keys), (128, 64, 3), 64 * 3)
    p["conv2_b"] = uni(next(keys), (128,), 64 * 3)
    p["lstm"] = []
    for layer in range(2):
        d_in = H if layer == 0 else 2 * H
        layer_p = {}
        for dname in ("fwd", "bwd"):
            layer_p[dname] = dict(
                w_ih=uni(next(keys), (4 * H, d_in), H),
                w_hh=uni(next(keys), (4 * H, H), H),
                b_ih=uni(next(keys), (4 * H,), H),
                b_hh=uni(next(keys), (4 * H,), H),
            )
        p["lstm"].append(layer_p)
    p["fc1_w"] = uni(next(keys), (512, lstm_out_size), lstm_out_size)
    p["fc1_b"] = uni(next(keys), (512,), lstm_out_size)
    p["fc2_w"] = uni(next(keys), (256, 512), 512)
    p["fc2_b"] = uni(next(keys), (256,), 512)
    p["fc3_w"] = uni(next(keys), (num_classes, 256), 256)
    p["fc3_b"] = uni(next(keys), (num_classes,), 256)
    return p


def pack_params(p, T):
    """One-time (outside jit) conversion to kernel layouts: bf16 MXU weights, transposed,
    fc1's K axis permuted to time-major per direction, fc3 padded to 128 lanes."""
    packed = {
        "conv1_w": jnp.transpose(p["conv1_w"], (2, 1, 0)).astype(jnp.bfloat16),  # (3,12,64)
        "conv1_b": p["conv1_b"].reshape(1, -1).astype(jnp.float32),
        "conv2_w": jnp.transpose(p["conv2_w"], (2, 1, 0)).astype(jnp.bfloat16),  # (3,64,128)
        "conv2_b": p["conv2_b"].reshape(1, -1).astype(jnp.float32),
        "lstm": [],
    }
    for layer, lp in enumerate(p["lstm"]):
        # Hoisted input projection for BOTH directions: W_cat^T = [W_ih_fwd^T | W_ih_bwd^T]
        w_cat_t = jnp.concatenate([lp["fwd"]["w_ih"].T, lp["bwd"]["w_ih"].T],
                                  axis=1).astype(jnp.bfloat16)          # (d_in, 8H)
        if layer == 0:
            w_in = [w_cat_t]                              # single (H, 8H) for conv features
        else:
            w_in = [w_cat_t[:H], w_cat_t[H:]]             # rows for x_fwd / x_bwd inputs
        b_cat = jnp.concatenate([lp["fwd"]["b_ih"] + lp["fwd"]["b_hh"],
                                 lp["bwd"]["b_ih"] + lp["bwd"]["b_hh"]]).astype(jnp.float32)
        packed["lstm"].append(dict(
            w_in=w_in, b=b_cat,
            whh_f=lp["fwd"]["w_hh"].T.astype(jnp.bfloat16),
            whh_b=lp["bwd"]["w_hh"].T.astype(jnp.bfloat16)))
    # fc1: PyTorch flatten order is k = t*2H + (fwd h | H + bwd h); permute once to (T, H, 512).
    assert p["fc1_w"].shape[1] == T * 2 * H, "fc1 flatten dim must equal T*2H"
    w1 = p["fc1_w"].reshape(512, T, 2, H)
    packed["fc1_wf"] = jnp.transpose(w1[:, :, 0, :], (1, 2, 0)).astype(jnp.bfloat16)
    packed["fc1_wb"] = jnp.transpose(w1[:, :, 1, :], (1, 2, 0)).astype(jnp.bfloat16)
    packed["fc1_b"] = p["fc1_b"].reshape(1, 512).astype(jnp.float32)
    packed["fc2_w"] = p["fc2_w"].T.astype(jnp.bfloat16)
    packed["fc2_b"] = p["fc2_b"].reshape(1, 256).astype(jnp.float32)
    nc = p["fc3_w"].shape[0]
    ncp = _round_up(nc, 128)
    packed["fc3_w"] = _pad2(p["fc3_w"].T.astype(jnp.bfloat16), 256, ncp)
    packed["fc3_b"] = jnp.pad(p["fc3_b"], (0, ncp - nc)).reshape(1, ncp).astype(jnp.float32)
    return packed


# ------------------------------------ forward --------------------------------------

@functools.partial(jax.jit, static_argnums=(2,))
def crnn_forward(p, x, num_classes):
    # x: (B, L, 12) f32 (same as the PyTorch input before its .transpose(1, 2))
    B = x.shape[0]
    feat = conv_pool_stage(x, p)                             # (B, T, 128) bf16
    T = feat.shape[1]
    # Time-major for the LSTM stage (small bf16 copy; everything downstream stays (T, B, .)).
    xs = [jnp.transpose(feat, (1, 0, 2)).reshape(T * B, -1)]
    x_f = x_b = None
    for layer_p in p["lstm"]:
        gx = input_projection(xs, layer_p["w_in"], layer_p["b"])        # (T*B, 8H) f32
        gx = gx.reshape(T, B, 8 * H)
        x_f, x_b = bilstm_layer(gx, layer_p["whh_f"], layer_p["whh_b"])  # (T,B,H) bf16 each
        xs = [x_f.reshape(T * B, -1), x_b.reshape(T * B, -1)]
    return fc_head(x_f, x_b, p, num_classes)                 # (B, num_classes) f32


if __name__ == "__main__":
    B, L, C_IN = 2, 20, 12              # small stand-in for (B, 1000+4, 12)
    T = (L - 4) // 2                    # time steps after convs + pool
    lstm_out_size = 2 * H * T           # matches the module's 128*2*(1000//2) when L=1004

    key = jax.random.PRNGKey(0)
    pkey, xkey = jax.random.split(key)
    params = init_params(pkey, lstm_out_size, NUM_CLASSES)
    packed = pack_params(params, T)
    x = jax.random.normal(xkey, (B, L, C_IN), dtype=jnp.float32)

    out = crnn_forward(packed, x, NUM_CLASSES)
    out = jax.block_until_ready(out)
    assert out.shape == (B, NUM_CLASSES) and out.dtype == jnp.float32
    print("KERNEL_OK")
</pallas_src>

<mosaic_0001>
module attributes {stable_mosaic.version = 11 : i64} {
  func.func @_proj_kernel(%arg0: i32, %arg1: memref<16x128xbf16, #tpu.memory_space<vmem>>, %arg2: memref<128x1024xbf16, #tpu.memory_space<vmem>>, %arg3: memref<1x1024xf32, #tpu.memory_space<vmem>>, %arg4: memref<16x1024xf32, #tpu.memory_space<vmem>>) attributes {dimension_semantics = [#tpu.dimension_semantics<parallel>], iteration_bounds = array<i64: 1>, scalar_prefetch = 0 : i64, scratch_operands = 0 : i64, tpu.core_type = #tpu.core_type<tc>, window_params = [{transform_indices = @transform_0, window_bounds = array<i64: 16, 128>}, {pipeline_mode = #tpu.pipeline_mode<synchronous>, transform_indices = @transform_1, window_bounds = array<i64: 128, 1024>}, {pipeline_mode = #tpu.pipeline_mode<synchronous>, transform_indices = @transform_2, window_bounds = array<i64: 1, 1024>}, {transform_indices = @transform_3, window_bounds = array<i64: 16, 1024>}]} {
    %cst = arith.constant 0.000000e+00 : f32
    %0 = vector.broadcast %cst : f32 to vector<16x1024xf32>
    %c0 = arith.constant 0 : index
    %c0_0 = arith.constant 0 : index
    %1 = vector.load %arg1[%c0, %c0_0] : memref<16x128xbf16, #tpu.memory_space<vmem>>, vector<16x128xbf16>
    %c0_1 = arith.constant 0 : index
    %c0_2 = arith.constant 0 : index
    %2 = vector.load %arg2[%c0_1, %c0_2] : memref<128x1024xbf16, #tpu.memory_space<vmem>>, vector<128x1024xbf16>
    %cst_3 = arith.constant dense<0.000000e+00> : vector<16x1024xf32>
    %3 = tpu.matmul %1, %2, %cst_3 {dimension_numbers = #tpu.dot_dimension_numbers<[1], [0], [0], [1], [0, 0, 1, 1], [], []>} : vector<16x128xbf16>, vector<128x1024xbf16>, vector<16x1024xf32> -> vector<16x1024xf32>
    %4 = arith.addf %0, %3 : vector<16x1024xf32>
    %c0_4 = arith.constant 0 : index
    %c0_5 = arith.constant 0 : index
    %5 = vector.load %arg3[%c0_4, %c0_5] : memref<1x1024xf32, #tpu.memory_space<vmem>>, vector<1x1024xf32>
    %6 = vector.broadcast %5 : vector<1x1024xf32> to vector<16x1024xf32>
    %7 = arith.addf %4, %6 : vector<16x1024xf32>
    %c0_6 = arith.constant 0 : index
    %c0_7 = arith.constant 0 : index
    %8 = vector.load %arg4[%c0_6, %c0_7] : memref<16x1024xf32, #tpu.memory_space<vmem>>, vector<16x1024xf32>
    tpu.vector_store %arg4[%c0_6, %c0_7], %7 {strides = array<i32>} : memref<16x1024xf32, #tpu.memory_space<vmem>>, vector<16x1024xf32>,
    return
  }
  func.func @transform_0(%arg0: i32) -> (i32, i32) {
    %c0_i32 = arith.constant 0 : i32
    %c0_i32_0 = arith.constant 0 : i32
    return %arg0, %c0_i32 : i32, i32
  }
  func.func @transform_1(%arg0: i32) -> (i32, i32) {
    %c0_i32 = arith.constant 0 : i32
    %c0_i32_0 = arith.constant 0 : i32
    %c0_i32_1 = arith.constant 0 : i32
    return %c0_i32, %c0_i32_0 : i32, i32
  }
  func.func @transform_2(%arg0: i32) -> (i32, i32) {
    %c0_i32 = arith.constant 0 : i32
    %c0_i32_0 = arith.constant 0 : i32
    %c0_i32_1 = arith.constant 0 : i32
    return %c0_i32, %c0_i32_0 : i32, i32
  }
  func.func @transform_3(%arg0: i32) -> (i32, i32) {
    %c0_i32 = arith.constant 0 : i32
    %c0_i32_0 = arith.constant 0 : i32
    return %arg0, %c0_i32 : i32, i32
  }
}

module attributes {stable_mosaic.version = 11 : i64} {
  func.func @_conv_pool_kernel(%arg0: i32, %arg1: memref<1x20x12xf32, #tpu.memory_space<vmem>>, %arg2: memref<3x12x64xbf16, #tpu.memory_space<vmem>>, %arg3: memref<1x64xf32, #tpu.memory_space<vmem>>, %arg4: memref<3x64x128xbf16, #tpu.memory_space<vmem>>, %arg5: memref<1x128xf32, #tpu.memory_space<vmem>>, %arg6: memref<1x8x128xbf16, #tpu.memory_space<vmem>>) attributes {dimension_semantics = [#tpu.dimension_semantics<parallel>], iteration_bounds = array<i64: 2>, scalar_prefetch = 0 : i64, scratch_operands = 0 : i64, tpu.core_type = #tpu.core_type<tc>, window_params = [{transform_indices = @transform_0, window_bounds = array<i64: 1, 20, 12>}, {pipeline_mode = #tpu.pipeline_mode<synchronous>, transform_indices = @transform_1, window_bounds = array<i64: 3, 12, 64>}, {pipeline_mode = #tpu.pipeline_mode<synchronous>, transform_indices = @transform_2, window_bounds = array<i64: 1, 64>}, {pipeline_mode = #tpu.pipeline_mode<synchronous>, transform_indices = @transform_3, window_bounds = array<i64: 3, 64, 128>}, {pipeline_mode = #tpu.pipeline_mode<synchronous>, transform_indices = @transform_4, window_bounds = array<i64: 1, 128>}, {transform_indices = @transform_5, window_bounds = array<i64: 1, 8, 128>}]} {
    %c0 = arith.constant 0 : index
    %c0_0 = arith.constant 0 : index
    %c0_1 = arith.constant 0 : index
    %0 = vector.load %arg1[%c0, %c0_0, %c0_1] : memref<1x20x12xf32, #tpu.memory_space<vmem>>, vector<1x20x12xf32>
    %1 = vector.shape_cast %0 : vector<1x20x12xf32> to vector<20x12xf32>
    %cst = arith.constant 0.000000e+00 : f32
    %2 = vector.broadcast %cst : f32 to vector<18x64xf32>
    %3 = vector.extract_strided_slice %1 {offsets = [0, 0], sizes = [18, 12], strides = [1, 1]} : vector<20x12xf32> to vector<18x12xf32>
    %4 = arith.truncf %3 : vector<18x12xf32> to vector<18x12xbf16>
    %c0_2 = arith.constant 0 : index
    %c0_3 = arith.constant 0 : index
    %c0_4 = arith.constant 0 : index
    %5 = vector.load %arg2[%c0_2, %c0_3, %c0_4] : memref<3x12x64xbf16, #tpu.memory_space<vmem>>, vector<1x12x64xbf16>
    %6 = vector.shape_cast %5 : vector<1x12x64xbf16> to vector<12x64xbf16>
    %cst_5 = arith.constant dense<0.000000e+00> : vector<18x64xf32>
    %7 = tpu.matmul %4, %6, %cst_5 {dimension_numbers = #tpu.dot_dimension_numbers<[1], [0], [0], [1], [0, 0, 1, 1], [], []>} : vector<18x12xbf16>, vector<12x64xbf16>, vector<18x64xf32> -> vector<18x64xf32>
    %8 = arith.addf %2, %7 : vector<18x64xf32>
    %9 = vector.extract_strided_slice %1 {offsets = [1, 0], sizes = [18, 12], strides = [1, 1]} : vector<20x12xf32> to vector<18x12xf32>
    %10 = arith.truncf %9 : vector<18x12xf32> to vector<18x12xbf16>
    %c1 = arith.constant 1 : index
    %c0_6 = arith.constant 0 : index
    %c0_7 = arith.constant 0 : index
    %11 = vector.load %arg2[%c1, %c0_6, %c0_7] : memref<3x12x64xbf16, #tpu.memory_space<vmem>>, vector<1x12x64xbf16>
    %12 = vector.shape_cast %11 : vector<1x12x64xbf16> to vector<12x64xbf16>
    %cst_8 = arith.constant dense<0.000000e+00> : vector<18x64xf32>
    %13 = tpu.matmul %10, %12, %cst_8 {dimension_numbers = #tpu.dot_dimension_numbers<[1], [0], [0], [1], [0, 0, 1, 1], [], []>} : vector<18x12xbf16>, vector<12x64xbf16>, vector<18x64xf32> -> vector<18x64xf32>
    %14 = arith.addf %8, %13 : vector<18x64xf32>
    %15 = vector.extract_strided_slice %1 {offsets = [2, 0], sizes = [18, 12], strides = [1, 1]} : vector<20x12xf32> to vector<18x12xf32>
    %16 = arith.truncf %15 : vector<18x12xf32> to vector<18x12xbf16>
    %c2 = arith.constant 2 : index
    %c0_9 = arith.constant 0 : index
    %c0_10 = arith.constant 0 : index
    %17 = vector.load %arg2[%c2, %c0_9, %c0_10] : memref<3x12x64xbf16, #tpu.memory_space<vmem>>, vector<1x12x64xbf16>
    %18 = vector.shape_cast %17 : vector<1x12x64xbf16> to vector<12x64xbf16>
    %cst_11 = arith.constant dense<0.000000e+00> : vector<18x64xf32>
    %19 = tpu.matmul %16, %18, %cst_11 {dimension_numbers = #tpu.dot_dimension_numbers<[1], [0], [0], [1], [0, 0, 1, 1], [], []>} : vector<18x12xbf16>, vector<12x64xbf16>, vector<18x64xf32> -> vector<18x64xf32>
    %20 = arith.addf %14, %19 : vector<18x64xf32>
    %c0_12 = arith.constant 0 : index
    %c0_13 = arith.constant 0 : index
    %21 = vector.load %arg3[%c0_12, %c0_13] : memref<1x64xf32, #tpu.memory_space<vmem>>, vector<1x64xf32>
    %22 = vector.broadcast %21 : vector<1x64xf32> to vector<18x64xf32>
    %23 = arith.addf %20, %22 : vector<18x64xf32>
    %cst_14 = arith.constant 0.000000e+00 : f32
    %24 = vector.broadcast %cst_14 : f32 to vector<18x64xf32>
    %25 = arith.maximumf %23, %24 : vector<18x64xf32>
    %26 = arith.truncf %25 : vector<18x64xf32> to vector<18x64xbf16>
    %cst_15 = arith.constant 0.000000e+00 : f32
    %27 = vector.broadcast %cst_15 : f32 to vector<16x128xf32>
    %28 = vector.extract_strided_slice %26 {offsets = [0, 0], sizes = [16, 64], strides = [1, 1]} : vector<18x64xbf16> to vector<16x64xbf16>
    %c0_16 = arith.constant 0 : index
    %c0_17 = arith.constant 0 : index
    %c0_18 = arith.constant 0 : index
    %29 = vector.load %arg4[%c0_16, %c0_17, %c0_18] : memref<3x64x128xbf16, #tpu.memory_space<vmem>>, vector<1x64x128xbf16>
    %30 = vector.shape_cast %29 : vector<1x64x128xbf16> to vector<64x128xbf16>
    %cst_19 = arith.constant dense<0.000000e+00> : vector<16x128xf32>
    %31 = tpu.matmul %28, %30, %cst_19 {dimension_numbers = #tpu.dot_dimension_numbers<[1], [0], [0], [1], [0, 0, 1, 1], [], []>} : vector<16x64xbf16>, vector<64x128xbf16>, vector<16x128xf32> -> vector<16x128xf32>
    %32 = arith.addf %27, %31 : vector<16x128xf32>
    %33 = vector.extract_strided_slice %26 {offsets = [1, 0], sizes = [16, 64], strides = [1, 1]} : vector<18x64xbf16> to vector<16x64xbf16>
    %c1_20 = arith.constant 1 : index
    %c0_21 = arith.constant 0 : index
    %c0_22 = arith.constant 0 : index
    %34 = vector.load %arg4[%c1_20, %c0_21, %c0_22] : memref<3x64x128xbf16, #tpu.memory_space<vmem>>, vector<1x64x128xbf16>
    %35 = vector.shape_cast %34 : vector<1x64x128xbf16> to vector<64x128xbf16>
    %cst_23 = arith.constant dense<0.000000e+00> : vector<16x128xf32>
    %36 = tpu.matmul %33, %35, %cst_23 {dimension_numbers = #tpu.dot_dimension_numbers<[1], [0], [0], [1], [0, 0, 1, 1], [], []>} : vector<16x64xbf16>, vector<64x128xbf16>, vector<16x128xf32> -> vector<16x128xf32>
    %37 = arith.addf %32, %36 : vector<16x128xf32>
    %38 = vector.extract_strided_slice %26 {offsets = [2, 0], sizes = [16, 64], strides = [1, 1]} : vector<18x64xbf16> to vector<16x64xbf16>
    %c2_24 = arith.constant 2 : index
    %c0_25 = arith.constant 0 : index
    %c0_26 = arith.constant 0 : index
    %39 = vector.load %arg4[%c2_24, %c0_25, %c0_26] : memref<3x64x128xbf16, #tpu.memory_space<vmem>>, vector<1x64x128xbf16>
    %40 = vector.shape_cast %39 : vector<1x64x128xbf16> to vector<64x128xbf16>
    %cst_27 = arith.constant dense<0.000000e+00> : vector<16x128xf32>
    %41 = tpu.matmul %38, %40, %cst_27 {dimension_numbers = #tpu.dot_dimension_numbers<[1], [0], [0], [1], [0, 0, 1, 1], [], []>} : vector<16x64xbf16>, vector<64x128xbf16>, vector<16x128xf32> -> vector<16x128xf32>
    %42 = arith.addf %37, %41 : vector<16x128xf32>
    %c0_28 = arith.constant 0 : index
    %c0_29 = arith.constant 0 : index
    %43 = vector.load %arg5[%c0_28, %c0_29] : memref<1x128xf32, #tpu.memory_space<vmem>>, vector<1x128xf32>
    %44 = vector.broadcast %43 : vector<1x128xf32> to vector<16x128xf32>
    %45 = arith.addf %42, %44 : vector<16x128xf32>
    %cst_30 = arith.constant 0.000000e+00 : f32
    %46 = vector.broadcast %cst_30 : f32 to vector<16x128xf32>
    %47 = arith.maximumf %45, %46 : vector<16x128xf32>
    %48 = vector.shape_cast %47 : vector<16x128xf32> to vector<8x2x128xf32>
    %cst_31 = arith.constant dense<0xFF800000> : vector<8x128xf32>
    %49 = vector.multi_reduction <maximumf>, %48, %cst_31 [1] : vector<8x2x128xf32> to vector<8x128xf32>
    %50 = arith.truncf %49 : vector<8x128xf32> to vector<8x128xbf16>
    %c0_32 = arith.constant 0 : index
    %c0_33 = arith.constant 0 : index
    %c0_34 = arith.constant 0 : index
    %51 = vector.load %arg6[%c0_32, %c0_33, %c0_34] : memref<1x8x128xbf16, #tpu.memory_space<vmem>>, vector<1x8x128xbf16>
    %52 = vector.shape_cast %51 : vector<1x8x128xbf16> to vector<8x128xbf16>
    %53 = vector.shape_cast %50 : vector<8x128xbf16> to vector<1x8x128xbf16>
    tpu.vector_store %arg6[%c0_32, %c0_33, %c0_34], %53 {strides = array<i32>} : memref<1x8x128xbf16, #tpu.memory_space<vmem>>, vector<1x8x128xbf16>,
    return
  }
  func.func @transform_0(%arg0: i32) -> (i32, i32, i32) {
    %c0_i32 = arith.constant 0 : i32
    %c0_i32_0 = arith.constant 0 : i32
    %c0_i32_1 = arith.constant 0 : i32
    return %arg0, %c0_i32, %c0_i32_0 : i32, i32, i32
  }
  func.func @transform_1(%arg0: i32) -> (i32, i32, i32) {
    %c0_i32 = arith.constant 0 : i32
    %c0_i32_0 = arith.constant 0 : i32
    %c0_i32_1 = arith.constant 0 : i32
    %c0_i32_2 = arith.constant 0 : i32
    return %c0_i32, %c0_i32_0, %c0_i32_1 : i32, i32, i32
  }
  func.func @transform_2(%arg0: i32) -> (i32, i32) {
    %c0_i32 = arith.constant 0 : i32
    %c0_i32_0 = arith.constant 0 : i32
    %c0_i32_1 = arith.constant 0 : i32
    return %c0_i32, %c0_i32_0 : i32, i32
  }
  func.func @transform_3(%arg0: i32) -> (i32, i32, i32) {
    %c0_i32 = arith.constant 0 : i32
    %c0_i32_0 = arith.constant 0 : i32
    %c0_i32_1 = arith.constant 0 : i32
    %c0_i32_2 = arith.constant 0 : i32
    return %c0_i32, %c0_i32_0, %c0_i32_1 : i32, i32, i32
  }
  func.func @transform_4(%arg0: i32) -> (i32, i32) {
    %c0_i32 = arith.constant 0 : i32
    %c0_i32_0 = arith.constant 0 : i32
    %c0_i32_1 = arith.constant 0 : i32
    return %c0_i32, %c0_i32_0 : i32, i32
  }
  func.func @transform_5(%arg0: i32) -> (i32, i32, i32) {
    %c0_i32 = arith.constant 0 : i32
    %c0_i32_0 = arith.constant 0 : i32
    %c0_i32_1 = arith.constant 0 : i32
    return %arg0, %c0_i32, %c0_i32_0 : i32, i32, i32
  }
}

module attributes {stable_mosaic.version = 11 : i64} {
  func.func @_bilstm_kernel(%arg0: i32, %arg1: i32, %arg2: memref<8x2x512xf32, #tpu.memory_space<vmem>>, %arg3: memref<8x2x512xf32, #tpu.memory_space<vmem>>, %arg4: memref<128x512xbf16, #tpu.memory_space<vmem>>, %arg5: memref<128x512xbf16, #tpu.memory_space<vmem>>, %arg6: memref<8x2x128xbf16, #tpu.memory_space<vmem>>, %arg7: memref<8x2x128xbf16, #tpu.memory_space<vmem>>, %arg8: memref<2x128xf32, #tpu.memory_space<vmem>>, %arg9: memref<2x128xf32, #tpu.memory_space<vmem>>, %arg10: memref<2x128xf32, #tpu.memory_space<vmem>>, %arg11: memref<2x128xf32, #tpu.memory_space<vmem>>) attributes {dimension_semantics = [#tpu.dimension_semantics<parallel>, #tpu.dimension_semantics<arbitrary>], iteration_bounds = array<i64: 1, 1>, scalar_prefetch = 0 : i64, scratch_operands = 4 : i64, tpu.core_type = #tpu.core_type<tc>, window_params = [{transform_indices = @transform_0, window_bounds = array<i64: 8, 2, 512>}, {transform_indices = @transform_1, window_bounds = array<i64: 8, 2, 512>}, {pipeline_mode = #tpu.pipeline_mode<synchronous>, transform_indices = @transform_2, window_bounds = array<i64: 128, 512>}, {pipeline_mode = #tpu.pipeline_mode<synchronous>, transform_indices = @transform_3, window_bounds = array<i64: 128, 512>}, {transform_indices = @transform_4, window_bounds = array<i64: 8, 2, 128>}, {transform_indices = @transform_5, window_bounds = array<i64: 8, 2, 128>}]} {
    %c0_i32 = arith.constant 0 : i32
    %0 = arith.cmpi eq, %arg1, %c0_i32 : i32
    %1 = arith.extui %0 : i1 to i32
    %c0_i32_0 = arith.constant 0 : i32
    %2 = arith.cmpi ne, %1, %c0_i32_0 : i32
    scf.if %2 {
      %cst = arith.constant 0.000000e+00 : f32
      %4 = vector.broadcast %cst : f32 to vector<2x128xf32>
      %c0 = arith.constant 0 : index
      %c0_3 = arith.constant 0 : index
      %5 = vector.load %arg8[%c0, %c0_3] : memref<2x128xf32, #tpu.memory_space<vmem>>, vector<2x128xf32>
      tpu.vector_store %arg8[%c0, %c0_3], %4 {strides = array<i32>} : memref<2x128xf32, #tpu.memory_space<vmem>>, vector<2x128xf32>,
      %cst_4 = arith.constant 0.000000e+00 : f32
      %6 = vector.broadcast %cst_4 : f32 to vector<2x128xf32>
      %c0_5 = arith.constant 0 : index
      %c0_6 = arith.constant 0 : index
      %7 = vector.load %arg9[%c0_5, %c0_6] : memref<2x128xf32, #tpu.memory_space<vmem>>, vector<2x128xf32>
      tpu.vector_store %arg9[%c0_5, %c0_6], %6 {strides = array<i32>} : memref<2x128xf32, #tpu.memory_space<vmem>>, vector<2x128xf32>,
      %cst_7 = arith.constant 0.000000e+00 : f32
      %8 = vector.broadcast %cst_7 : f32 to vector<2x128xf32>
      %c0_8 = arith.constant 0 : index
      %c0_9 = arith.constant 0 : index
      %9 = vector.load %arg10[%c0_8, %c0_9] : memref<2x128xf32, #tpu.memory_space<vmem>>, vector<2x128xf32>
      tpu.vector_store %arg10[%c0_8, %c0_9], %8 {strides = array<i32>} : memref<2x128xf32, #tpu.memory_space<vmem>>, vector<2x128xf32>,
      %cst_10 = arith.constant 0.000000e+00 : f32
      %10 = vector.broadcast %cst_10 : f32 to vector<2x128xf32>
      %c0_11 = arith.constant 0 : index
      %c0_12 = arith.constant 0 : index
      %11 = vector.load %arg11[%c0_11, %c0_12] : memref<2x128xf32, #tpu.memory_space<vmem>>, vector<2x128xf32>
      tpu.vector_store %arg11[%c0_11, %c0_12], %10 {strides = array<i32>} : memref<2x128xf32, #tpu.memory_space<vmem>>, vector<2x128xf32>,
    } else {
    }
    %c0_i32_1 = arith.constant 0 : i32
    %c8_i32 = arith.constant 8 : i32
    %3 = arith.addi %c0_i32_1, %c8_i32 : i32
    %c1_i32 = arith.constant 1 : i32
    scf.for %arg12 = %c0_i32_1 to %3 step %c1_i32  : i32 {
      %c7_i32 = arith.constant 7 : i32
      %4 = arith.subi %c7_i32, %arg12 : i32
      %5 = arith.index_cast %arg12 : i32 to index
      %c0 = arith.constant 0 : index
      %c0_3 = arith.constant 0 : index
      %6 = vector.load %arg2[%5, %c0, %c0_3] : memref<8x2x512xf32, #tpu.memory_space<vmem>>, vector<1x2x512xf32>
      %7 = vector.shape_cast %6 : vector<1x2x512xf32> to vector<2x512xf32>
      %c0_4 = arith.constant 0 : index
      %c0_5 = arith.constant 0 : index
      %8 = vector.load %arg8[%c0_4, %c0_5] : memref<2x128xf32, #tpu.memory_space<vmem>>, vector<2x128xf32>
      %9 = arith.truncf %8 : vector<2x128xf32> to vector<2x128xbf16>
      %c0_6 = arith.constant 0 : index
      %c0_7 = arith.constant 0 : index
      %10 = vector.load %arg4[%c0_6, %c0_7] : memref<128x512xbf16, #tpu.memory_space<vmem>>, vector<128x512xbf16>
      %cst = arith.constant dense<0.000000e+00> : vector<2x512xf32>
      %11 = tpu.matmul %9, %10, %cst {dimension_numbers = #tpu.dot_dimension_numbers<[1], [0], [0], [1], [0, 0, 1, 1], [], []>} : vector<2x128xbf16>, vector<128x512xbf16>, vector<2x512xf32> -> vector<2x512xf32>
      %12 = arith.addf %7, %11 : vector<2x512xf32>
      %13 = arith.index_cast %4 : i32 to index
      %c0_8 = arith.constant 0 : index
      %c0_9 = arith.constant 0 : index
      %14 = vector.load %arg3[%13, %c0_8, %c0_9] : memref<8x2x512xf32, #tpu.memory_space<vmem>>, vector<1x2x512xf32>
      %15 = vector.shape_cast %14 : vector<1x2x512xf32> to vector<2x512xf32>
      %c0_10 = arith.constant 0 : index
      %c0_11 = arith.constant 0 : index
      %16 = vector.load %arg10[%c0_10, %c0_11] : memref<2x128xf32, #tpu.memory_space<vmem>>, vector<2x128xf32>
      %17 = arith.truncf %16 : vector<2x128xf32> to vector<2x128xbf16>
      %c0_12 = arith.constant 0 : index
      %c0_13 = arith.constant 0 : index
      %18 = vector.load %arg5[%c0_12, %c0_13] : memref<128x512xbf16, #tpu.memory_space<vmem>>, vector<128x512xbf16>
      %cst_14 = arith.constant dense<0.000000e+00> : vector<2x512xf32>
      %19 = tpu.matmul %17, %18, %cst_14 {dimension_numbers = #tpu.dot_dimension_numbers<[1], [0], [0], [1], [0, 0, 1, 1], [], []>} : vector<2x128xbf16>, vector<128x512xbf16>, vector<2x512xf32> -> vector<2x512xf32>
      %20 = arith.addf %15, %19 : vector<2x512xf32>
      %c0_15 = arith.constant 0 : index
      %c0_16 = arith.constant 0 : index
      %21 = vector.load %arg9[%c0_15, %c0_16] : memref<2x128xf32, #tpu.memory_space<vmem>>, vector<2x128xf32>
      %22 = vector.extract_strided_slice %12 {offsets = [0, 0], sizes = [2, 128], strides = [1, 1]} : vector<2x512xf32> to vector<2x128xf32>
      %23 = arith.negf %22 : vector<2x128xf32>
      %24 = math.exp %23 : vector<2x128xf32>
      %cst_17 = arith.constant 1.000000e+00 : f32
      %25 = vector.broadcast %cst_17 : f32 to vector<2x128xf32>
      %26 = arith.addf %25, %24 : vector<2x128xf32>
      %27 = arith.divf %25, %26 : vector<2x128xf32>
      %28 = vector.extract_strided_slice %12 {offsets = [0, 128], sizes = [2, 128], strides = [1, 1]} : vector<2x512xf32> to vector<2x128xf32>
      %29 = arith.negf %28 : vector<2x128xf32>
      %30 = math.exp %29 : vector<2x128xf32>
      %cst_18 = arith.constant 1.000000e+00 : f32
      %31 = vector.broadcast %cst_18 : f32 to vector<2x128xf32>
      %32 = arith.addf %31, %30 : vector<2x128xf32>
      %33 = arith.divf %31, %32 : vector<2x128xf32>
      %34 = vector.extract_strided_slice %12 {offsets = [0, 256], sizes = [2, 128], strides = [1, 1]} : vector<2x512xf32> to vector<2x128xf32>
      %35 = math.tanh %34 : vector<2x128xf32>
      %36 = vector.extract_strided_slice %12 {offsets = [0, 384], sizes = [2, 128], strides = [1, 1]} : vector<2x512xf32> to vector<2x128xf32>
      %37 = arith.negf %36 : vector<2x128xf32>
      %38 = math.exp %37 : vector<2x128xf32>
      %cst_19 = arith.constant 1.000000e+00 : f32
      %39 = vector.broadcast %cst_19 : f32 to vector<2x128xf32>
      %40 = arith.addf %39, %38 : vector<2x128xf32>
      %41 = arith.divf %39, %40 : vector<2x128xf32>
      %42 = arith.mulf %33, %21 : vector<2x128xf32>
      %43 = arith.mulf %27, %35 : vector<2x128xf32>
      %44 = arith.addf %42, %43 : vector<2x128xf32>
      %45 = math.tanh %44 : vector<2x128xf32>
      %46 = arith.mulf %41, %45 : vector<2x128xf32>
      %c0_20 = arith.constant 0 : index
      %c0_21 = arith.constant 0 : index
      %47 = vector.load %arg11[%c0_20, %c0_21] : memref<2x128xf32, #tpu.memory_space<vmem>>, vector<2x128xf32>
      %48 = vector.extract_strided_slice %20 {offsets = [0, 0], sizes = [2, 128], strides = [1, 1]} : vector<2x512xf32> to vector<2x128xf32>
      %49 = arith.negf %48 : vector<2x128xf32>
      %50 = math.exp %49 : vector<2x128xf32>
      %cst_22 = arith.constant 1.000000e+00 : f32
      %51 = vector.broadcast %cst_22 : f32 to vector<2x128xf32>
      %52 = arith.addf %51, %50 : vector<2x128xf32>
      %53 = arith.divf %51, %52 : vector<2x128xf32>
      %54 = vector.extract_strided_slice %20 {offsets = [0, 128], sizes = [2, 128], strides = [1, 1]} : vector<2x512xf32> to vector<2x128xf32>
      %55 = arith.negf %54 : vector<2x128xf32>
      %56 = math.exp %55 : vector<2x128xf32>
      %cst_23 = arith.constant 1.000000e+00 : f32
      %57 = vector.broadcast %cst_23 : f32 to vector<2x128xf32>
      %58 = arith.addf %57, %56 : vector<2x128xf32>
      %59 = arith.divf %57, %58 : vector<2x128xf32>
      %60 = vector.extract_strided_slice %20 {offsets = [0, 256], sizes = [2, 128], strides = [1, 1]} : vector<2x512xf32> to vector<2x128xf32>
      %61 = math.tanh %60 : vector<2x128xf32>
      %62 = vector.extract_strided_slice %20 {offsets = [0, 384], sizes = [2, 128], strides = [1, 1]} : vector<2x512xf32> to vector<2x128xf32>
      %63 = arith.negf %62 : vector<2x128xf32>
      %64 = math.exp %63 : vector<2x128xf32>
      %cst_24 = arith.constant 1.000000e+00 : f32
      %65 = vector.broadcast %cst_24 : f32 to vector<2x128xf32>
      %66 = arith.addf %65, %64 : vector<2x128xf32>
      %67 = arith.divf %65, %66 : vector<2x128xf32>
      %68 = arith.mulf %59, %47 : vector<2x128xf32>
      %69 = arith.mulf %53, %61 : vector<2x128xf32>
      %70 = arith.addf %68, %69 : vector<2x128xf32>
      %71 = math.tanh %70 : vector<2x128xf32>
      %72 = arith.mulf %67, %71 : vector<2x128xf32>
      %c0_25 = arith.constant 0 : index
      %c0_26 = arith.constant 0 : index
      %73 = vector.load %arg8[%c0_25, %c0_26] : memref<2x128xf32, #tpu.memory_space<vmem>>, vector<2x128xf32>
      tpu.vector_store %arg8[%c0_25, %c0_26], %46 {strides = array<i32>} : memref<2x128xf32, #tpu.memory_space<vmem>>, vector<2x128xf32>,
      %c0_27 = arith.constant 0 : index
      %c0_28 = arith.constant 0 : index
      %74 = vector.load %arg9[%c0_27, %c0_28] : memref<2x128xf32, #tpu.memory_space<vmem>>, vector<2x128xf32>
      tpu.vector_store %arg9[%c0_27, %c0_28], %44 {strides = array<i32>} : memref<2x128xf32, #tpu.memory_space<vmem>>, vector<2x128xf32>,
      %c0_29 = arith.constant 0 : index
      %c0_30 = arith.constant 0 : index
      %75 = vector.load %arg10[%c0_29, %c0_30] : memref<2x128xf32, #tpu.memory_space<vmem>>, vector<2x128xf32>
      tpu.vector_store %arg10[%c0_29, %c0_30], %72 {strides = array<i32>} : memref<2x128xf32, #tpu.memory_space<vmem>>, vector<2x128xf32>,
      %c0_31 = arith.constant 0 : index
      %c0_32 = arith.constant 0 : index
      %76 = vector.load %arg11[%c0_31, %c0_32] : memref<2x128xf32, #tpu.memory_space<vmem>>, vector<2x128xf32>
      tpu.vector_store %arg11[%c0_31, %c0_32], %70 {strides = array<i32>} : memref<2x128xf32, #tpu.memory_space<vmem>>, vector<2x128xf32>,
      %77 = arith.truncf %46 : vector<2x128xf32> to vector<2x128xbf16>
      %78 = arith.index_cast %arg12 : i32 to index
      %c0_33 = arith.constant 0 : index
      %c0_34 = arith.constant 0 : index
      %79 = vector.load %arg6[%78, %c0_33, %c0_34] : memref<8x2x128xbf16, #tpu.memory_space<vmem>>, vector<1x2x128xbf16>
      %80 = vector.shape_cast %79 : vector<1x2x128xbf16> to vector<2x128xbf16>
      %81 = vector.shape_cast %77 : vector<2x128xbf16> to vector<1x2x128xbf16>
      tpu.vector_store %arg6[%78, %c0_33, %c0_34], %81 {strides = array<i32>} : memref<8x2x128xbf16, #tpu.memory_space<vmem>>, vector<1x2x128xbf16>,
      %82 = arith.truncf %72 : vector<2x128xf32> to vector<2x128xbf16>
      %83 = arith.index_cast %4 : i32 to index
      %c0_35 = arith.constant 0 : index
      %c0_36 = arith.constant 0 : index
      %84 = vector.load %arg7[%83, %c0_35, %c0_36] : memref<8x2x128xbf16, #tpu.memory_space<vmem>>, vector<1x2x128xbf16>
      %85 = vector.shape_cast %84 : vector<1x2x128xbf16> to vector<2x128xbf16>
      %86 = vector.shape_cast %82 : vector<2x128xbf16> to vector<1x2x128xbf16>
      tpu.vector_store %arg7[%83, %c0_35, %c0_36], %86 {strides = array<i32>} : memref<8x2x128xbf16, #tpu.memory_space<vmem>>, vector<1x2x128xbf16>,
    }
    %c8_i32_2 = arith.constant 8 : i32
    return
  }
  func.func @transform_0(%arg0: i32, %arg1: i32) -> (i32, i32, i32) {
    %c0_i32 = arith.constant 0 : i32
    %c0_i32_0 = arith.constant 0 : i32
    return %arg1, %arg0, %c0_i32 : i32, i32, i32
  }
  func.func @transform_1(%arg0: i32, %arg1: i32) -> (i32, i32, i32) {
    %c0_i32 = arith.constant 0 : i32
    %0 = arith.subi %c0_i32, %arg1 : i32
    %c1_i32 = arith.constant 1 : i32
    %c0_i32_0 = arith.constant 0 : i32
    return %0, %arg0, %c1_i32 : i32, i32, i32
  }
  func.func @transform_2(%arg0: i32, %arg1: i32) -> (i32, i32) {
    %c0_i32 = arith.constant 0 : i32
    %c0_i32_0 = arith.constant 0 : i32
    %c0_i32_1 = arith.constant 0 : i32
    return %c0_i32, %c0_i32_0 : i32, i32
  }
  func.func @transform_3(%arg0: i32, %arg1: i32) -> (i32, i32) {
    %c0_i32 = arith.constant 0 : i32
    %c0_i32_0 = arith.constant 0 : i32
    %c0_i32_1 = arith.constant 0 : i32
    return %c0_i32, %c0_i32_0 : i32, i32
  }
  func.func @transform_4(%arg0: i32, %arg1: i32) -> (i32, i32, i32) {
    %c0_i32 = arith.constant 0 : i32
    %c0_i32_0 = arith.constant 0 : i32
    return %arg1, %arg0, %c0_i32 : i32, i32, i32
  }
  func.func @transform_5(%arg0: i32, %arg1: i32) -> (i32, i32, i32) {
    %c0_i32 = arith.constant 0 : i32
    %0 = arith.subi %c0_i32, %arg1 : i32
    %c0_i32_0 = arith.constant 0 : i32
    %c0_i32_1 = arith.constant 0 : i32
    return %0, %arg0, %c0_i32_0 : i32, i32, i32
  }
}

module attributes {stable_mosaic.version = 11 : i64} {
  func.func @_proj_kernel(%arg0: i32, %arg1: memref<16x128xbf16, #tpu.memory_space<vmem>>, %arg2: memref<16x128xbf16, #tpu.memory_space<vmem>>, %arg3: memref<128x1024xbf16, #tpu.memory_space<vmem>>, %arg4: memref<128x1024xbf16, #tpu.memory_space<vmem>>, %arg5: memref<1x1024xf32, #tpu.memory_space<vmem>>, %arg6: memref<16x1024xf32, #tpu.memory_space<vmem>>) attributes {dimension_semantics = [#tpu.dimension_semantics<parallel>], iteration_bounds = array<i64: 1>, scalar_prefetch = 0 : i64, scratch_operands = 0 : i64, tpu.core_type = #tpu.core_type<tc>, window_params = [{transform_indices = @transform_0, window_bounds = array<i64: 16, 128>}, {transform_indices = @transform_1, window_bounds = array<i64: 16, 128>}, {pipeline_mode = #tpu.pipeline_mode<synchronous>, transform_indices = @transform_2, window_bounds = array<i64: 128, 1024>}, {pipeline_mode = #tpu.pipeline_mode<synchronous>, transform_indices = @transform_3, window_bounds = array<i64: 128, 1024>}, {pipeline_mode = #tpu.pipeline_mode<synchronous>, transform_indices = @transform_4, window_bounds = array<i64: 1, 1024>}, {transform_indices = @transform_5, window_bounds = array<i64: 16, 1024>}]} {
    %cst = arith.constant 0.000000e+00 : f32
    %0 = vector.broadcast %cst : f32 to vector<16x1024xf32>
    %c0 = arith.constant 0 : index
    %c0_0 = arith.constant 0 : index
    %1 = vector.load %arg1[%c0, %c0_0] : memref<16x128xbf16, #tpu.memory_space<vmem>>, vector<16x128xbf16>
    %c0_1 = arith.constant 0 : index
    %c0_2 = arith.constant 0 : index
    %2 = vector.load %arg3[%c0_1, %c0_2] : memref<128x1024xbf16, #tpu.memory_space<vmem>>, vector<128x1024xbf16>
    %cst_3 = arith.constant dense<0.000000e+00> : vector<16x1024xf32>
    %3 = tpu.matmul %1, %2, %cst_3 {dimension_numbers = #tpu.dot_dimension_numbers<[1], [0], [0], [1], [0, 0, 1, 1], [], []>} : vector<16x128xbf16>, vector<128x1024xbf16>, vector<16x1024xf32> -> vector<16x1024xf32>
    %4 = arith.addf %0, %3 : vector<16x1024xf32>
    %c0_4 = arith.constant 0 : index
    %c0_5 = arith.constant 0 : index
    %5 = vector.load %arg2[%c0_4, %c0_5] : memref<16x128xbf16, #tpu.memory_space<vmem>>, vector<16x128xbf16>
    %c0_6 = arith.constant 0 : index
    %c0_7 = arith.constant 0 : index
    %6 = vector.load %arg4[%c0_6, %c0_7] : memref<128x1024xbf16, #tpu.memory_space<vmem>>, vector<128x1024xbf16>
    %cst_8 = arith.constant dense<0.000000e+00> : vector<16x1024xf32>
    %7 = tpu.matmul %5, %6, %cst_8 {dimension_numbers = #tpu.dot_dimension_numbers<[1], [0], [0], [1], [0, 0, 1, 1], [], []>} : vector<16x128xbf16>, vector<128x1024xbf16>, vector<16x1024xf32> -> vector<16x1024xf32>
    %8 = arith.addf %4, %7 : vector<16x1024xf32>
    %c0_9 = arith.constant 0 : index
    %c0_10 = arith.constant 0 : index
    %9 = vector.load %arg5[%c0_9, %c0_10] : memref<1x1024xf32, #tpu.memory_space<vmem>>, vector<1x1024xf32>
    %10 = vector.broadcast %9 : vector<1x1024xf32> to vector<16x1024xf32>
    %11 = arith.addf %8, %10 : vector<16x1024xf32>
    %c0_11 = arith.constant 0 : index
    %c0_12 = arith.constant 0 : index
    %12 = vector.load %arg6[%c0_11, %c0_12] : memref<16x1024xf32, #tpu.memory_space<vmem>>, vector<16x1024xf32>
    tpu.vector_store %arg6[%c0_11, %c0_12], %11 {strides = array<i32>} : memref<16x1024xf32, #tpu.memory_space<vmem>>, vector<16x1024xf32>,
    return
  }
  func.func @transform_0(%arg0: i32) -> (i32, i32) {
    %c0_i32 = arith.constant 0 : i32
    %c0_i32_0 = arith.constant 0 : i32
    return %arg0, %c0_i32 : i32, i32
  }
  func.func @transform_1(%arg0: i32) -> (i32, i32) {
    %c0_i32 = arith.constant 0 : i32
    %c0_i32_0 = arith.constant 0 : i32
    return %arg0, %c0_i32 : i32, i32
  }
  func.func @transform_2(%arg0: i32) -> (i32, i32) {
    %c0_i32 = arith.constant 0 : i32
    %c0_i32_0 = arith.constant 0 : i32
    %c0_i32_1 = arith.constant 0 : i32
    return %c0_i32, %c0_i32_0 : i32, i32
  }
  func.func @transform_3(%arg0: i32) -> (i32, i32) {
    %c0_i32 = arith.constant 0 : i32
    %c0_i32_0 = arith.constant 0 : i32
    %c0_i32_1 = arith.constant 0 : i32
    return %c0_i32, %c0_i32_0 : i32, i32
  }
  func.func @transform_4(%arg0: i32) -> (i32, i32) {
    %c0_i32 = arith.constant 0 : i32
    %c0_i32_0 = arith.constant 0 : i32
    %c0_i32_1 = arith.constant 0 : i32
    return %c0_i32, %c0_i32_0 : i32, i32
  }
  func.func @transform_5(%arg0: i32) -> (i32, i32) {
    %c0_i32 = arith.constant 0 : i32
    %c0_i32_0 = arith.constant 0 : i32
    return %arg0, %c0_i32 : i32, i32
  }
}

module attributes {stable_mosaic.version = 11 : i64} {
  func.func @_fc_head_kernel(%arg0: i32, %arg1: memref<8x2x128xbf16, #tpu.memory_space<vmem>>, %arg2: memref<8x2x128xbf16, #tpu.memory_space<vmem>>, %arg3: memref<8x128x512xbf16, #tpu.memory_space<vmem>>, %arg4: memref<8x128x512xbf16, #tpu.memory_space<vmem>>, %arg5: memref<1x512xf32, #tpu.memory_space<vmem>>, %arg6: memref<512x256xbf16, #tpu.memory_space<vmem>>, %arg7: memref<1x256xf32, #tpu.memory_space<vmem>>, %arg8: memref<256x128xbf16, #tpu.memory_space<vmem>>, %arg9: memref<1x128xf32, #tpu.memory_space<vmem>>, %arg10: memref<2x128xf32, #tpu.memory_space<vmem>>, %arg11: memref<2x512xf32, #tpu.memory_space<vmem>>) attributes {dimension_semantics = [#tpu.dimension_semantics<arbitrary>], iteration_bounds = array<i64: 1>, scalar_prefetch = 0 : i64, scratch_operands = 1 : i64, tpu.core_type = #tpu.core_type<tc>, window_params = [{transform_indices = @transform_0, window_bounds = array<i64: 8, 2, 128>}, {transform_indices = @transform_1, window_bounds = array<i64: 8, 2, 128>}, {transform_indices = @transform_2, window_bounds = array<i64: 8, 128, 512>}, {transform_indices = @transform_3, window_bounds = array<i64: 8, 128, 512>}, {pipeline_mode = #tpu.pipeline_mode<synchronous>, transform_indices = @transform_4, window_bounds = array<i64: 1, 512>}, {pipeline_mode = #tpu.pipeline_mode<synchronous>, transform_indices = @transform_5, window_bounds = array<i64: 512, 256>}, {pipeline_mode = #tpu.pipeline_mode<synchronous>, transform_indices = @transform_6, window_bounds = array<i64: 1, 256>}, {pipeline_mode = #tpu.pipeline_mode<synchronous>, transform_indices = @transform_7, window_bounds = array<i64: 256, 128>}, {pipeline_mode = #tpu.pipeline_mode<synchronous>, transform_indices = @transform_8, window_bounds = array<i64: 1, 128>}, {pipeline_mode = #tpu.pipeline_mode<synchronous>, transform_indices = @transform_9, window_bounds = array<i64: 2, 128>}]} {
    %c0_i32 = arith.constant 0 : i32
    %0 = arith.cmpi eq, %arg0, %c0_i32 : i32
    %1 = arith.extui %0 : i1 to i32
    %c0_i32_0 = arith.constant 0 : i32
    %2 = arith.cmpi ne, %1, %c0_i32_0 : i32
    scf.if %2 {
      %cst_110 = arith.constant 0.000000e+00 : f32
      %104 = vector.broadcast %cst_110 : f32 to vector<2x512xf32>
      %c0_111 = arith.constant 0 : index
      %c0_112 = arith.constant 0 : index
      %105 = vector.load %arg11[%c0_111, %c0_112] : memref<2x512xf32, #tpu.memory_space<vmem>>, vector<2x512xf32>
      tpu.vector_store %arg11[%c0_111, %c0_112], %104 {strides = array<i32>} : memref<2x512xf32, #tpu.memory_space<vmem>>, vector<2x512xf32>,
    } else {
    }
    %c0 = arith.constant 0 : index
    %c0_1 = arith.constant 0 : index
    %3 = vector.load %arg11[%c0, %c0_1] : memref<2x512xf32, #tpu.memory_space<vmem>>, vector<2x512xf32>
    %c0_2 = arith.constant 0 : index
    %c0_3 = arith.constant 0 : index
    %c0_4 = arith.constant 0 : index
    %4 = vector.load %arg1[%c0_2, %c0_3, %c0_4] : memref<8x2x128xbf16, #tpu.memory_space<vmem>>, vector<1x2x128xbf16>
    %5 = vector.shape_cast %4 : vector<1x2x128xbf16> to vector<2x128xbf16>
    %c0_5 = arith.constant 0 : index
    %c0_6 = arith.constant 0 : index
    %c0_7 = arith.constant 0 : index
    %6 = vector.load %arg3[%c0_5, %c0_6, %c0_7] : memref<8x128x512xbf16, #tpu.memory_space<vmem>>, vector<1x128x512xbf16>
    %7 = vector.shape_cast %6 : vector<1x128x512xbf16> to vector<128x512xbf16>
    %cst = arith.constant dense<0.000000e+00> : vector<2x512xf32>
    %8 = tpu.matmul %5, %7, %cst {dimension_numbers = #tpu.dot_dimension_numbers<[1], [0], [0], [1], [0, 0, 1, 1], [], []>} : vector<2x128xbf16>, vector<128x512xbf16>, vector<2x512xf32> -> vector<2x512xf32>
    %9 = arith.addf %3, %8 : vector<2x512xf32>
    %c0_8 = arith.constant 0 : index
    %c0_9 = arith.constant 0 : index
    %c0_10 = arith.constant 0 : index
    %10 = vector.load %arg2[%c0_8, %c0_9, %c0_10] : memref<8x2x128xbf16, #tpu.memory_space<vmem>>, vector<1x2x128xbf16>
    %11 = vector.shape_cast %10 : vector<1x2x128xbf16> to vector<2x128xbf16>
    %c0_11 = arith.constant 0 : index
    %c0_12 = arith.constant 0 : index
    %c0_13 = arith.constant 0 : index
    %12 = vector.load %arg4[%c0_11, %c0_12, %c0_13] : memref<8x128x512xbf16, #tpu.memory_space<vmem>>, vector<1x128x512xbf16>
    %13 = vector.shape_cast %12 : vector<1x128x512xbf16> to vector<128x512xbf16>
    %cst_14 = arith.constant dense<0.000000e+00> : vector<2x512xf32>
    %14 = tpu.matmul %11, %13, %cst_14 {dimension_numbers = #tpu.dot_dimension_numbers<[1], [0], [0], [1], [0, 0, 1, 1], [], []>} : vector<2x128xbf16>, vector<128x512xbf16>, vector<2x512xf32> -> vector<2x512xf32>
    %15 = arith.addf %9, %14 : vector<2x512xf32>
    %c1 = arith.constant 1 : index
    %c0_15 = arith.constant 0 : index
    %c0_16 = arith.constant 0 : index
    %16 = vector.load %arg1[%c1, %c0_15, %c0_16] : memref<8x2x128xbf16, #tpu.memory_space<vmem>>, vector<1x2x128xbf16>
    %17 = vector.shape_cast %16 : vector<1x2x128xbf16> to vector<2x128xbf16>
    %c1_17 = arith.constant 1 : index
    %c0_18 = arith.constant 0 : index
    %c0_19 = arith.constant 0 : index
    %18 = vector.load %arg3[%c1_17, %c0_18, %c0_19] : memref<8x128x512xbf16, #tpu.memory_space<vmem>>, vector<1x128x512xbf16>
    %19 = vector.shape_cast %18 : vector<1x128x512xbf16> to vector<128x512xbf16>
    %cst_20 = arith.constant dense<0.000000e+00> : vector<2x512xf32>
    %20 = tpu.matmul %17, %19, %cst_20 {dimension_numbers = #tpu.dot_dimension_numbers<[1], [0], [0], [1], [0, 0, 1, 1], [], []>} : vector<2x128xbf16>, vector<128x512xbf16>, vector<2x512xf32> -> vector<2x512xf32>
    %21 = arith.addf %15, %20 : vector<2x512xf32>
    %c1_21 = arith.constant 1 : index
    %c0_22 = arith.constant 0 : index
    %c0_23 = arith.constant 0 : index
    %22 = vector.load %arg2[%c1_21, %c0_22, %c0_23] : memref<8x2x128xbf16, #tpu.memory_space<vmem>>, vector<1x2x128xbf16>
    %23 = vector.shape_cast %22 : vector<1x2x128xbf16> to vector<2x128xbf16>
    %c1_24 = arith.constant 1 : index
    %c0_25 = arith.constant 0 : index
    %c0_26 = arith.constant 0 : index
    %24 = vector.load %arg4[%c1_24, %c0_25, %c0_26] : memref<8x128x512xbf16, #tpu.memory_space<vmem>>, vector<1x128x512xbf16>
    %25 = vector.shape_cast %24 : vector<1x128x512xbf16> to vector<128x512xbf16>
    %cst_27 = arith.constant dense<0.000000e+00> : vector<2x512xf32>
    %26 = tpu.matmul %23, %25, %cst_27 {dimension_numbers = #tpu.dot_dimension_numbers<[1], [0], [0], [1], [0, 0, 1, 1], [], []>} : vector<2x128xbf16>, vector<128x512xbf16>, vector<2x512xf32> -> vector<2x512xf32>
    %27 = arith.addf %21, %26 : vector<2x512xf32>
    %c2 = arith.constant 2 : index
    %c0_28 = arith.constant 0 : index
    %c0_29 = arith.constant 0 : index
    %28 = vector.load %arg1[%c2, %c0_28, %c0_29] : memref<8x2x128xbf16, #tpu.memory_space<vmem>>, vector<1x2x128xbf16>
    %29 = vector.shape_cast %28 : vector<1x2x128xbf16> to vector<2x128xbf16>
    %c2_30 = arith.constant 2 : index
    %c0_31 = arith.constant 0 : index
    %c0_32 = arith.constant 0 : index
    %30 = vector.load %arg3[%c2_30, %c0_31, %c0_32] : memref<8x128x512xbf16, #tpu.memory_space<vmem>>, vector<1x128x512xbf16>
    %31 = vector.shape_cast %30 : vector<1x128x512xbf16> to vector<128x512xbf16>
    %cst_33 = arith.constant dense<0.000000e+00> : vector<2x512xf32>
    %32 = tpu.matmul %29, %31, %cst_33 {dimension_numbers = #tpu.dot_dimension_numbers<[1], [0], [0], [1], [0, 0, 1, 1], [], []>} : vector<2x128xbf16>, vector<128x512xbf16>, vector<2x512xf32> -> vector<2x512xf32>
    %33 = arith.addf %27, %32 : vector<2x512xf32>
    %c2_34 = arith.constant 2 : index
    %c0_35 = arith.constant 0 : index
    %c0_36 = arith.constant 0 : index
    %34 = vector.load %arg2[%c2_34, %c0_35, %c0_36] : memref<8x2x128xbf16, #tpu.memory_space<vmem>>, vector<1x2x128xbf16>
    %35 = vector.shape_cast %34 : vector<1x2x128xbf16> to vector<2x128xbf16>
    %c2_37 = arith.constant 2 : index
    %c0_38 = arith.constant 0 : index
    %c0_39 = arith.constant 0 : index
    %36 = vector.load %arg4[%c2_37, %c0_38, %c0_39] : memref<8x128x512xbf16, #tpu.memory_space<vmem>>, vector<1x128x512xbf16>
    %37 = vector.shape_cast %36 : vector<1x128x512xbf16> to vector<128x512xbf16>
    %cst_40 = arith.constant dense<0.000000e+00> : vector<2x512xf32>
    %38 = tpu.matmul %35, %37, %cst_40 {dimension_numbers = #tpu.dot_dimension_numbers<[1], [0], [0], [1], [0, 0, 1, 1], [], []>} : vector<2x128xbf16>, vector<128x512xbf16>, vector<2x512xf32> -> vector<2x512xf32>
    %39 = arith.addf %33, %38 : vector<2x512xf32>
    %c3 = arith.constant 3 : index
    %c0_41 = arith.constant 0 : index
    %c0_42 = arith.constant 0 : index
    %40 = vector.load %arg1[%c3, %c0_41, %c0_42] : memref<8x2x128xbf16, #tpu.memory_space<vmem>>, vector<1x2x128xbf16>
    %41 = vector.shape_cast %40 : vector<1x2x128xbf16> to vector<2x128xbf16>
    %c3_43 = arith.constant 3 : index
    %c0_44 = arith.constant 0 : index
    %c0_45 = arith.constant 0 : index
    %42 = vector.load %arg3[%c3_43, %c0_44, %c0_45] : memref<8x128x512xbf16, #tpu.memory_space<vmem>>, vector<1x128x512xbf16>
    %43 = vector.shape_cast %42 : vector<1x128x512xbf16> to vector<128x512xbf16>
    %cst_46 = arith.constant dense<0.000000e+00> : vector<2x512xf32>
    %44 = tpu.matmul %41, %43, %cst_46 {dimension_numbers = #tpu.dot_dimension_numbers<[1], [0], [0], [1], [0, 0, 1, 1], [], []>} : vector<2x128xbf16>, vector<128x512xbf16>, vector<2x512xf32> -> vector<2x512xf32>
    %45 = arith.addf %39, %44 : vector<2x512xf32>
    %c3_47 = arith.constant 3 : index
    %c0_48 = arith.constant 0 : index
    %c0_49 = arith.constant 0 : index
    %46 = vector.load %arg2[%c3_47, %c0_48, %c0_49] : memref<8x2x128xbf16, #tpu.memory_space<vmem>>, vector<1x2x128xbf16>
    %47 = vector.shape_cast %46 : vector<1x2x128xbf16> to vector<2x128xbf16>
    %c3_50 = arith.constant 3 : index
    %c0_51 = arith.constant 0 : index
    %c0_52 = arith.constant 0 : index
    %48 = vector.load %arg4[%c3_50, %c0_51, %c0_52] : memref<8x128x512xbf16, #tpu.memory_space<vmem>>, vector<1x128x512xbf16>
    %49 = vector.shape_cast %48 : vector<1x128x512xbf16> to vector<128x512xbf16>
    %cst_53 = arith.constant dense<0.000000e+00> : vector<2x512xf32>
    %50 = tpu.matmul %47, %49, %cst_53 {dimension_numbers = #tpu.dot_dimension_numbers<[1], [0], [0], [1], [0, 0, 1, 1], [], []>} : vector<2x128xbf16>, vector<128x512xbf16>, vector<2x512xf32> -> vector<2x512xf32>
    %51 = arith.addf %45, %50 : vector<2x512xf32>
    %c4 = arith.constant 4 : index
    %c0_54 = arith.constant 0 : index
    %c0_55 = arith.constant 0 : index
    %52 = vector.load %arg1[%c4, %c0_54, %c0_55] : memref<8x2x128xbf16, #tpu.memory_space<vmem>>, vector<1x2x128xbf16>
    %53 = vector.shape_cast %52 : vector<1x2x128xbf16> to vector<2x128xbf16>
    %c4_56 = arith.constant 4 : index
    %c0_57 = arith.constant 0 : index
    %c0_58 = arith.constant 0 : index
    %54 = vector.load %arg3[%c4_56, %c0_57, %c0_58] : memref<8x128x512xbf16, #tpu.memory_space<vmem>>, vector<1x128x512xbf16>
    %55 = vector.shape_cast %54 : vector<1x128x512xbf16> to vector<128x512xbf16>
    %cst_59 = arith.constant dense<0.000000e+00> : vector<2x512xf32>
    %56 = tpu.matmul %53, %55, %cst_59 {dimension_numbers = #tpu.dot_dimension_numbers<[1], [0], [0], [1], [0, 0, 1, 1], [], []>} : vector<2x128xbf16>, vector<128x512xbf16>, vector<2x512xf32> -> vector<2x512xf32>
    %57 = arith.addf %51, %56 : vector<2x512xf32>
    %c4_60 = arith.constant 4 : index
    %c0_61 = arith.constant 0 : index
    %c0_62 = arith.constant 0 : index
    %58 = vector.load %arg2[%c4_60, %c0_61, %c0_62] : memref<8x2x128xbf16, #tpu.memory_space<vmem>>, vector<1x2x128xbf16>
    %59 = vector.shape_cast %58 : vector<1x2x128xbf16> to vector<2x128xbf16>
    %c4_63 = arith.constant 4 : index
    %c0_64 = arith.constant 0 : index
    %c0_65 = arith.constant 0 : index
    %60 = vector.load %arg4[%c4_63, %c0_64, %c0_65] : memref<8x128x512xbf16, #tpu.memory_space<vmem>>, vector<1x128x512xbf16>
    %61 = vector.shape_cast %60 : vector<1x128x512xbf16> to vector<128x512xbf16>
    %cst_66 = arith.constant dense<0.000000e+00> : vector<2x512xf32>
    %62 = tpu.matmul %59, %61, %cst_66 {dimension_numbers = #tpu.dot_dimension_numbers<[1], [0], [0], [1], [0, 0, 1, 1], [], []>} : vector<2x128xbf16>, vector<128x512xbf16>, vector<2x512xf32> -> vector<2x512xf32>
    %63 = arith.addf %57, %62 : vector<2x512xf32>
    %c5 = arith.constant 5 : index
    %c0_67 = arith.constant 0 : index
    %c0_68 = arith.constant 0 : index
    %64 = vector.load %arg1[%c5, %c0_67, %c0_68] : memref<8x2x128xbf16, #tpu.memory_space<vmem>>, vector<1x2x128xbf16>
    %65 = vector.shape_cast %64 : vector<1x2x128xbf16> to vector<2x128xbf16>
    %c5_69 = arith.constant 5 : index
    %c0_70 = arith.constant 0 : index
    %c0_71 = arith.constant 0 : index
    %66 = vector.load %arg3[%c5_69, %c0_70, %c0_71] : memref<8x128x512xbf16, #tpu.memory_space<vmem>>, vector<1x128x512xbf16>
    %67 = vector.shape_cast %66 : vector<1x128x512xbf16> to vector<128x512xbf16>
    %cst_72 = arith.constant dense<0.000000e+00> : vector<2x512xf32>
    %68 = tpu.matmul %65, %67, %cst_72 {dimension_numbers = #tpu.dot_dimension_numbers<[1], [0], [0], [1], [0, 0, 1, 1], [], []>} : vector<2x128xbf16>, vector<128x512xbf16>, vector<2x512xf32> -> vector<2x512xf32>
    %69 = arith.addf %63, %68 : vector<2x512xf32>
    %c5_73 = arith.constant 5 : index
    %c0_74 = arith.constant 0 : index
    %c0_75 = arith.constant 0 : index
    %70 = vector.load %arg2[%c5_73, %c0_74, %c0_75] : memref<8x2x128xbf16, #tpu.memory_space<vmem>>, vector<1x2x128xbf16>
    %71 = vector.shape_cast %70 : vector<1x2x128xbf16> to vector<2x128xbf16>
    %c5_76 = arith.constant 5 : index
    %c0_77 = arith.constant 0 : index
    %c0_78 = arith.constant 0 : index
    %72 = vector.load %arg4[%c5_76, %c0_77, %c0_78] : memref<8x128x512xbf16, #tpu.memory_space<vmem>>, vector<1x128x512xbf16>
    %73 = vector.shape_cast %72 : vector<1x128x512xbf16> to vector<128x512xbf16>
    %cst_79 = arith.constant dense<0.000000e+00> : vector<2x512xf32>
    %74 = tpu.matmul %71, %73, %cst_79 {dimension_numbers = #tpu.dot_dimension_numbers<[1], [0], [0], [1], [0, 0, 1, 1], [], []>} : vector<2x128xbf16>, vector<128x512xbf16>, vector<2x512xf32> -> vector<2x512xf32>
    %75 = arith.addf %69, %74 : vector<2x512xf32>
    %c6 = arith.constant 6 : index
    %c0_80 = arith.constant 0 : index
    %c0_81 = arith.constant 0 : index
    %76 = vector.load %arg1[%c6, %c0_80, %c0_81] : memref<8x2x128xbf16, #tpu.memory_space<vmem>>, vector<1x2x128xbf16>
    %77 = vector.shape_cast %76 : vector<1x2x128xbf16> to vector<2x128xbf16>
    %c6_82 = arith.constant 6 : index
    %c0_83 = arith.constant 0 : index
    %c0_84 = arith.constant 0 : index
    %78 = vector.load %arg3[%c6_82, %c0_83, %c0_84] : memref<8x128x512xbf16, #tpu.memory_space<vmem>>, vector<1x128x512xbf16>
    %79 = vector.shape_cast %78 : vector<1x128x512xbf16> to vector<128x512xbf16>
    %cst_85 = arith.constant dense<0.000000e+00> : vector<2x512xf32>
    %80 = tpu.matmul %77, %79, %cst_85 {dimension_numbers = #tpu.dot_dimension_numbers<[1], [0], [0], [1], [0, 0, 1, 1], [], []>} : vector<2x128xbf16>, vector<128x512xbf16>, vector<2x512xf32> -> vector<2x512xf32>
    %81 = arith.addf %75, %80 : vector<2x512xf32>
    %c6_86 = arith.constant 6 : index
    %c0_87 = arith.constant 0 : index
    %c0_88 = arith.constant 0 : index
    %82 = vector.load %arg2[%c6_86, %c0_87, %c0_88] : memref<8x2x128xbf16, #tpu.memory_space<vmem>>, vector<1x2x128xbf16>
    %83 = vector.shape_cast %82 : vector<1x2x128xbf16> to vector<2x128xbf16>
    %c6_89 = arith.constant 6 : index
    %c0_90 = arith.constant 0 : index
    %c0_91 = arith.constant 0 : index
    %84 = vector.load %arg4[%c6_89, %c0_90, %c0_91] : memref<8x128x512xbf16, #tpu.memory_space<vmem>>, vector<1x128x512xbf16>
    %85 = vector.shape_cast %84 : vector<1x128x512xbf16> to vector<128x512xbf16>
    %cst_92 = arith.constant dense<0.000000e+00> : vector<2x512xf32>
    %86 = tpu.matmul %83, %85, %cst_92 {dimension_numbers = #tpu.dot_dimension_numbers<[1], [0], [0], [1], [0, 0, 1, 1], [], []>} : vector<2x128xbf16>, vector<128x512xbf16>, vector<2x512xf32> -> vector<2x512xf32>
    %87 = arith.addf %81, %86 : vector<2x512xf32>
    %c7 = arith.constant 7 : index
    %c0_93 = arith.constant 0 : index
    %c0_94 = arith.constant 0 : index
    %88 = vector.load %arg1[%c7, %c0_93, %c0_94] : memref<8x2x128xbf16, #tpu.memory_space<vmem>>, vector<1x2x128xbf16>
    %89 = vector.shape_cast %88 : vector<1x2x128xbf16> to vector<2x128xbf16>
    %c7_95 = arith.constant 7 : index
    %c0_96 = arith.constant 0 : index
    %c0_97 = arith.constant 0 : index
    %90 = vector.load %arg3[%c7_95, %c0_96, %c0_97] : memref<8x128x512xbf16, #tpu.memory_space<vmem>>, vector<1x128x512xbf16>
    %91 = vector.shape_cast %90 : vector<1x128x512xbf16> to vector<128x512xbf16>
    %cst_98 = arith.constant dense<0.000000e+00> : vector<2x512xf32>
    %92 = tpu.matmul %89, %91, %cst_98 {dimension_numbers = #tpu.dot_dimension_numbers<[1], [0], [0], [1], [0, 0, 1, 1], [], []>} : vector<2x128xbf16>, vector<128x512xbf16>, vector<2x512xf32> -> vector<2x512xf32>
    %93 = arith.addf %87, %92 : vector<2x512xf32>
    %c7_99 = arith.constant 7 : index
    %c0_100 = arith.constant 0 : index
    %c0_101 = arith.constant 0 : index
    %94 = vector.load %arg2[%c7_99, %c0_100, %c0_101] : memref<8x2x128xbf16, #tpu.memory_space<vmem>>, vector<1x2x128xbf16>
    %95 = vector.shape_cast %94 : vector<1x2x128xbf16> to vector<2x128xbf16>
    %c7_102 = arith.constant 7 : index
    %c0_103 = arith.constant 0 : index
    %c0_104 = arith.constant 0 : index
    %96 = vector.load %arg4[%c7_102, %c0_103, %c0_104] : memref<8x128x512xbf16, #tpu.memory_space<vmem>>, vector<1x128x512xbf16>
    %97 = vector.shape_cast %96 : vector<1x128x512xbf16> to vector<128x512xbf16>
    %cst_105 = arith.constant dense<0.000000e+00> : vector<2x512xf32>
    %98 = tpu.matmul %95, %97, %cst_105 {dimension_numbers = #tpu.dot_dimension_numbers<[1], [0], [0], [1], [0, 0, 1, 1], [], []>} : vector<2x128xbf16>, vector<128x512xbf16>, vector<2x512xf32> -> vector<2x512xf32>
    %99 = arith.addf %93, %98 : vector<2x512xf32>
    %c0_106 = arith.constant 0 : index
    %c0_107 = arith.constant 0 : index
    %100 = vector.load %arg11[%c0_106, %c0_107] : memref<2x512xf32, #tpu.memory_space<vmem>>, vector<2x512xf32>
    tpu.vector_store %arg11[%c0_106, %c0_107], %99 {strides = array<i32>} : memref<2x512xf32, #tpu.memory_space<vmem>>, vector<2x512xf32>,
    %c0_i32_108 = arith.constant 0 : i32
    %101 = arith.cmpi eq, %arg0, %c0_i32_108 : i32
    %102 = arith.extui %101 : i1 to i32
    %c0_i32_109 = arith.constant 0 : i32
    %103 = arith.cmpi ne, %102, %c0_i32_109 : i32
    scf.if %103 {
      %c0_110 = arith.constant 0 : index
      %c0_111 = arith.constant 0 : index
      %104 = vector.load %arg11[%c0_110, %c0_111] : memref<2x512xf32, #tpu.memory_space<vmem>>, vector<2x512xf32>
      %c0_112 = arith.constant 0 : index
      %c0_113 = arith.constant 0 : index
      %105 = vector.load %arg5[%c0_112, %c0_113] : memref<1x512xf32, #tpu.memory_space<vmem>>, vector<1x512xf32>
      %106 = vector.broadcast %105 : vector<1x512xf32> to vector<2x512xf32>
      %107 = arith.addf %104, %106 : vector<2x512xf32>
      %cst_114 = arith.constant 0.000000e+00 : f32
      %108 = vector.broadcast %cst_114 : f32 to vector<2x512xf32>
      %109 = arith.maximumf %107, %108 : vector<2x512xf32>
      %110 = arith.truncf %109 : vector<2x512xf32> to vector<2x512xbf16>
      %c0_115 = arith.constant 0 : index
      %c0_116 = arith.constant 0 : index
      %111 = vector.load %arg6[%c0_115, %c0_116] : memref<512x256xbf16, #tpu.memory_space<vmem>>, vector<512x256xbf16>
      %cst_117 = arith.constant dense<0.000000e+00> : vector<2x256xf32>
      %112 = tpu.matmul %110, %111, %cst_117 {dimension_numbers = #tpu.dot_dimension_numbers<[1], [0], [0], [1], [0, 0, 1, 1], [], []>} : vector<2x512xbf16>, vector<512x256xbf16>, vector<2x256xf32> -> vector<2x256xf32>
      %c0_118 = arith.constant 0 : index
      %c0_119 = arith.constant 0 : index
      %113 = vector.load %arg7[%c0_118, %c0_119] : memref<1x256xf32, #tpu.memory_space<vmem>>, vector<1x256xf32>
      %114 = vector.broadcast %113 : vector<1x256xf32> to vector<2x256xf32>
      %115 = arith.addf %112, %114 : vector<2x256xf32>
      %cst_120 = arith.constant 0.000000e+00 : f32
      %116 = vector.broadcast %cst_120 : f32 to vector<2x256xf32>
      %117 = arith.maximumf %115, %116 : vector<2x256xf32>
      %118 = arith.truncf %117 : vector<2x256xf32> to vector<2x256xbf16>
      %c0_121 = arith.constant 0 : index
      %c0_122 = arith.constant 0 : index
      %119 = vector.load %arg8[%c0_121, %c0_122] : memref<256x128xbf16, #tpu.memory_space<vmem>>, vector<256x128xbf16>
      %cst_123 = arith.constant dense<0.000000e+00> : vector<2x128xf32>
      %120 = tpu.matmul %118, %119, %cst_123 {dimension_numbers = #tpu.dot_dimension_numbers<[1], [0], [0], [1], [0, 0, 1, 1], [], []>} : vector<2x256xbf16>, vector<256x128xbf16>, vector<2x128xf32> -> vector<2x128xf32>
      %c0_124 = arith.constant 0 : index
      %c0_125 = arith.constant 0 : index
      %121 = vector.load %arg9[%c0_124, %c0_125] : memref<1x128xf32, #tpu.memory_space<vmem>>, vector<1x128xf32>
      %122 = vector.broadcast %121 : vector<1x128xf32> to vector<2x128xf32>
      %123 = arith.addf %120, %122 : vector<2x128xf32>
      %c0_126 = arith.constant 0 : index
      %c0_127 = arith.constant 0 : index
      %124 = vector.load %arg10[%c0_126, %c0_127] : memref<2x128xf32, #tpu.memory_space<vmem>>, vector<2x128xf32>
      tpu.vector_store %arg10[%c0_126, %c0_127], %123 {strides = array<i32>} : memref<2x128xf32, #tpu.memory_space<vmem>>, vector<2x128xf32>,
    } else {
    }
    return
  }
  func.func @transform_0(%arg0: i32) -> (i32, i32, i32) {
    %c0_i32 = arith.constant 0 : i32
    %c0_i32_0 = arith.constant 0 : i32
    %c0_i32_1 = arith.constant 0 : i32
    return %arg0, %c0_i32, %c0_i32_0 : i32, i32, i32
  }
  func.func @transform_1(%arg0: i32) -> (i32, i32, i32) {
    %c0_i32 = arith.constant 0 : i32
    %c0_i32_0 = arith.constant 0 : i32
    %c0_i32_1 = arith.constant 0 : i32
    return %arg0, %c0_i32, %c0_i32_0 : i32, i32, i32
  }
  func.func @transform_2(%arg0: i32) -> (i32, i32, i32) {
    %c0_i32 = arith.constant 0 : i32
    %c0_i32_0 = arith.constant 0 : i32
    %c0_i32_1 = arith.constant 0 : i32
    return %arg0, %c0_i32, %c0_i32_0 : i32, i32, i32
  }
  func.func @transform_3(%arg0: i32) -> (i32, i32, i32) {
    %c0_i32 = arith.constant 0 : i32
    %c0_i32_0 = arith.constant 0 : i32
    %c0_i32_1 = arith.constant 0 : i32
    return %arg0, %c0_i32, %c0_i32_0 : i32, i32, i32
  }
  func.func @transform_4(%arg0: i32) -> (i32, i32) {
    %c0_i32 = arith.constant 0 : i32
    %c0_i32_0 = arith.constant 0 : i32
    %c0_i32_1 = arith.constant 0 : i32
    return %c0_i32, %c0_i32_0 : i32, i32
  }
  func.func @transform_5(%arg0: i32) -> (i32, i32) {
    %c0_i32 = arith.constant 0 : i32
    %c0_i32_0 = arith.constant 0 : i32
    %c0_i32_1 = arith.constant 0 : i32
    return %c0_i32, %c0_i32_0 : i32, i32
  }
  func.func @transform_6(%arg0: i32) -> (i32, i32) {
    %c0_i32 = arith.constant 0 : i32
    %c0_i32_0 = arith.constant 0 : i32
    %c0_i32_1 = arith.constant 0 : i32
    return %c0_i32, %c0_i32_0 : i32, i32
  }
  func.func @transform_7(%arg0: i32) -> (i32, i32) {
    %c0_i32 = arith.constant 0 : i32
    %c0_i32_0 = arith.constant 0 : i32
    %c0_i32_1 = arith.constant 0 : i32
    return %c0_i32, %c0_i32_0 : i32, i32
  }
  func.func @transform_8(%arg0: i32) -> (i32, i32) {
    %c0_i32 = arith.constant 0 : i32
    %c0_i32_0 = arith.constant 0 : i32
    %c0_i32_1 = arith.constant 0 : i32
    return %c0_i32, %c0_i32_0 : i32, i32
  }
  func.func @transform_9(%arg0: i32) -> (i32, i32) {
    %c0_i32 = arith.constant 0 : i32
    %c0_i32_0 = arith.constant 0 : i32
    %c0_i32_1 = arith.constant 0 : i32
    return %c0_i32, %c0_i32_0 : i32, i32
  }
}

</mosaic_0001>

<llo_original>
// kernel: crnn_forward.6
$region0: #{crnn_forward.6}
  #allocation0 [shape = 'u32[]', space=smem, size = 0x4, offset = 0x4, fixed_abs, tag = 'smem constant byte address 0x4 - core index']
  #allocation1 [shape = 'u32[144,128]{1,0:T(1,128)}', space=vmem, size = 0x12000, scoped, tag = 'internal scratch']
  %s0 = inlined_call_operand.vmem [shape: f32[2,20,12], index: 0, kind: input, shape index: {}]
  %s1 = inlined_call_operand.vmem [shape: bf16[3,12,64], index: 1, kind: input, shape index: {}]
  %s2 = inlined_call_operand.vmem [shape: f32[1,64], index: 2, kind: input, shape index: {}]
  %s3 = inlined_call_operand.hbm [shape: bf16[3,64,128], index: 3, kind: input, shape index: {}]
  %s4 = inlined_call_operand.vmem [shape: f32[1,128], index: 4, kind: input, shape index: {}]
  %s5 = inlined_call_operand.vmem [shape: bf16[2,8,128], index: 5, kind: output, shape index: {}]
  %s6 = sld [smem:[#allocation0]]
  $region57: #{crnn_forward.6} parent=0
    _
  %s8 = ssub.s32 1, %s6
  %s9 = scalar_select 0, %s8, %s6
  $region1: #{crnn_forward.6} parent=0
    #allocation2 [shape = 'u8[49152]{0}', space=vmem, size = 0xc000, scoped, tag = 'input window, operand 3, single buffered']
    #allocation3 [shape = 's32[2]{0}', space=sflag, size = 0x8, scoped, tag = 'scoped memory for crnn_forward.6']
    %10 = vsyncpa [#allocation3], 0
    loop: start=0, step=1, limit=4
    $region2: #{crnn_forward.6} parent=1 // loop_pre_header
      _
    $region3: #{crnn_forward.6} parent=1 // loop_header
      %s12 = sphi 0, %s16
      %p13 = scmp.ge.s32.totalorder %s12, 4
      %s22 = sphi 0, %s24
      %s25 = sphi 0, %s22
      %s26 = sphi 0, %s25
      %s42 = sphi 0, %s26
      %s46 = sphi 0, %s46
      %s48 = sphi 0, %s46
      %s49 = sphi 0, %s48
      %s63 = sphi 0, %s49
      %s67 = sphi 0, %s67
      %s69 = sphi 0, %s67
      %s70 = sphi 0, %s69
      %s84 = sphi 0, %s70
      %s88 = sphi 0, %s88
      %s90 = sphi 0, %s88
      %s91 = sphi 0, %s90
      %s105 = sphi 0, %s91
      %s109 = sphi 0, %s109
      %s111 = sphi 0, %s109
      %s112 = sphi 0, %s111
      %s126 = sphi 0, %s112
      %s132 = sphi 0, %s134
      %s135 = sphi 0, %s132
      %s136 = sphi 0, %s135
      %s152 = sphi 0, %s136
    $region4: #{crnn_forward.6} parent=1 // loop_header_branch
      %15 = sbr.rel (%p13) target = $region8
    $region5: #{crnn_forward.6} parent=1 // loop_body
      %s17 = ssub.s32 %s12, 1
      %s18 = ssub.s32 %s12, 2
      %s19 = sadd.s32 %s12, 1
      %s20 = ssub.s32 %s12, %s19
      %p21 = scmp.eq.s32.totalorder %s20, 0
      %s23 = sadd.s32 %s22, 1
      %s24 = scalar_select %p21, %s22, %s23
      %p27 = pneg %p21
      %p28 = scmp.eq.s32.totalorder %s12, 1
      %p29 = por %p27, %p28
      %p30 = scmp.ne.s32.totalorder %s22, %s25
      %p31 = scmp.eq.s32.totalorder %s12, 0
      %p32 = por %p30, %p31
      %p33 = scmp.ne.s32.totalorder %s22, %s25
      %p34 = scmp.eq.s32.totalorder %s17, 1
      %p35 = por %p33, %p34
      %p36 = scmp.ne.s32.totalorder %s25, %s26
      %p37 = scmp.eq.s32.totalorder %s17, 0
      %p38 = por %p36, %p37
      %p39 = scmp.ne.s32.totalorder %s25, %s26
      %p40 = scmp.eq.s32.totalorder %s18, 1
      %p41 = por %p39, %p40
      %p43 = scmp.ne.s32.totalorder %s26, %s42
      %p44 = scmp.eq.s32.totalorder %s18, 0
      %p45 = por %p43, %p44
      %s47 = sadd.s32 %s46, 1
      %p50 = scmp.eq.s32.totalorder %s12, 1
      %p51 = scmp.ne.s32.totalorder %s46, %s48
      %p52 = scmp.eq.s32.totalorder %s12, 0
      %p53 = por %p51, %p52
      %p54 = scmp.ne.s32.totalorder %s46, %s48
      %p55 = scmp.eq.s32.totalorder %s17, 1
      %p56 = por %p54, %p55
      %p57 = scmp.ne.s32.totalorder %s48, %s49
      %p58 = scmp.eq.s32.totalorder %s17, 0
      %p59 = por %p57, %p58
      %p60 = scmp.ne.s32.totalorder %s48, %s49
      %p61 = scmp.eq.s32.totalorder %s18, 1
      %p62 = por %p60, %p61
      %p64 = scmp.ne.s32.totalorder %s49, %s63
      %p65 = scmp.eq.s32.totalorder %s18, 0
      %p66 = por %p64, %p65
      %s68 = sadd.s32 %s67, 1
      %p71 = scmp.eq.s32.totalorder %s12, 1
      %p72 = scmp.ne.s32.totalorder %s67, %s69
      %p73 = scmp.eq.s32.totalorder %s12, 0
      %p74 = por %p72, %p73
      %p75 = scmp.ne.s32.totalorder %s67, %s69
      %p76 = scmp.eq.s32.totalorder %s17, 1
      %p77 = por %p75, %p76
      %p78 = scmp.ne.s32.totalorder %s69, %s70
      %p79 = scmp.eq.s32.totalorder %s17, 0
      %p80 = por %p78, %p79
      %p81 = scmp.ne.s32.totalorder %s69, %s70
      %p82 = scmp.eq.s32.totalorder %s18, 1
      %p83 = por %p81, %p82
      %p85 = scmp.ne.s32.totalorder %s70, %s84
      %p86 = scmp.eq.s32.totalorder %s18, 0
      %p87 = por %p85, %p86
      %s89 = sadd.s32 %s88, 1
      %p92 = scmp.eq.s32.totalorder %s12, 1
      %p93 = scmp.ne.s32.totalorder %s88, %s90
      %p94 = scmp.eq.s32.totalorder %s12, 0
      %p95 = por %p93, %p94
      %p96 = scmp.ne.s32.totalorder %s88, %s90
      %p97 = scmp.eq.s32.totalorder %s17, 1
      %p98 = por %p96, %p97
      %p99 = scmp.ne.s32.totalorder %s90, %s91
      %p100 = scmp.eq.s32.totalorder %s17, 0
      %p101 = por %p99, %p100
      %p102 = scmp.ne.s32.totalorder %s90, %s91
      %p103 = scmp.eq.s32.totalorder %s18, 1
      %p104 = por %p102, %p103
      %p106 = scmp.ne.s32.totalorder %s91, %s105
      %p107 = scmp.eq.s32.totalorder %s18, 0
      %p108 = por %p106, %p107
      %s110 = sadd.s32 %s109, 1
      %p113 = scmp.eq.s32.totalorder %s12, 1
      %p114 = scmp.ne.s32.totalorder %s109, %s111
      %p115 = scmp.eq.s32.totalorder %s12, 0
      %p116 = por %p114, %p115
      %p117 = scmp.ne.s32.totalorder %s109, %s111
      %p118 = scmp.eq.s32.totalorder %s17, 1
      %p119 = por %p117, %p118
      %p120 = scmp.ne.s32.totalorder %s111, %s112
      %p121 = scmp.eq.s32.totalorder %s17, 0
      %p122 = por %p120, %p121
      %p123 = scmp.ne.s32.totalorder %s111, %s112
      %p124 = scmp.eq.s32.totalorder %s18, 1
      %p125 = por %p123, %p124
      %p127 = scmp.ne.s32.totalorder %s112, %s126
      %p128 = scmp.eq.s32.totalorder %s18, 0
      %p129 = por %p127, %p128
      %s130 = ssub.s32 %s12, %s19
      %p131 = scmp.eq.s32.totalorder %s130, 0
      %s133 = sadd.s32 %s132, 1
      %s134 = scalar_select %p131, %s132, %s133
      %p137 = pneg %p131
      %p138 = scmp.eq.s32.totalorder %s12, 1
      %p139 = por %p137, %p138
      %p140 = scmp.ne.s32.totalorder %s132, %s135
      %p141 = scmp.eq.s32.totalorder %s12, 0
      %p142 = por %p140, %p141
      %p143 = scmp.ne.s32.totalorder %s132, %s135
      %p144 = scmp.eq.s32.totalorder %s17, 1
      %p145 = por %p143, %p144
      %p146 = scmp.ne.s32.totalorder %s135, %s136
      %p147 = scmp.eq.s32.totalorder %s17, 0
      %p148 = por %p146, %p147
      %p149 = scmp.ne.s32.totalorder %s135, %s136
      %p150 = scmp.eq.s32.totalorder %s18, 1
      %p151 = por %p149, %p150
      %p153 = scmp.ne.s32.totalorder %s136, %s152
      %p154 = scmp.eq.s32.totalorder %s18, 0
      %p155 = por %p153, %p154
      %p156 = scmp.le.s32.totalorder 1, %s12
      %p157 = scmp.lt.s32.totalorder %s12, 3
      %p158 = pnand %p156, %p157
      %p159 = pneg %p158
      // Predicated region
      $region9: #{crnn_forward.6} parent=5 // pred_check
        _
      $region10: #{crnn_forward.6} parent=5 // pred_check_branch
        %161 = sbr.rel (%p158) target = $region12
      $region11: #{crnn_forward.6} parent=5 // pred_region
        %s162 = ssub.s32 %s12, 1
        // Predicated region
        $region13: #{crnn_forward.6} parent=11 // pred_check
          %p163 = pneg %p59
        $region14: #{crnn_forward.6} parent=11 // pred_check_branch
          %165 = sbr.rel (%p163) target = $region16
        $region15: #{crnn_forward.6} parent=11 // pred_region
          _
        $region16: #{crnn_forward.6} parent=11 // pred_fallthru
          _
        // Predicated region
        $region17: #{crnn_forward.6} parent=11 // pred_check
          %p166 = pneg %p80
        $region18: #{crnn_forward.6} parent=11 // pred_check_branch
          %168 = sbr.rel (%p166) target = $region20
        $region19: #{crnn_forward.6} parent=11 // pred_region
          _
        $region20: #{crnn_forward.6} parent=11 // pred_fallthru
          _
        // Predicated region
        $region21: #{crnn_forward.6} parent=11 // pred_check
          %p169 = pneg %p101
        $region22: #{crnn_forward.6} parent=11 // pred_check_branch
          %171 = sbr.rel (%p169) target = $region24
        $region23: #{crnn_forward.6} parent=11 // pred_region
          %s173 = ssub.s32 1536, 1536
          %174 = vsyncadd [#allocation3], %s173
          %s175 = sshll.u32 [#allocation2], 4
          %s176 = int_to_ptr.vmem [resolvable:$true] %s175
          %181 = dma.hbm_to_vmem [thread:$0]  %s3, 1536, %s176, [#allocation3], 64, 64, 4
        $region24: #{crnn_forward.6} parent=11 // pred_fallthru
          _
        // Predicated region
        $region25: #{crnn_forward.6} parent=11 // pred_check
          %p182 = pneg %p122
        $region26: #{crnn_forward.6} parent=11 // pred_check_branch
          %184 = sbr.rel (%p182) target = $region28
        $region27: #{crnn_forward.6} parent=11 // pred_region
          _
        $region28: #{crnn_forward.6} parent=11 // pred_fallthru
          _
      $region12: #{crnn_forward.6} parent=5 // pred_fallthru
        _
      %p185 = scmp.lt.s32.totalorder %s12, 2
      // Predicated region
      $region29: #{crnn_forward.6} parent=5 // pred_check
        %p186 = pneg %p185
      $region30: #{crnn_forward.6} parent=5 // pred_check_branch
        %188 = sbr.rel (%p186) target = $region32
      $region31: #{crnn_forward.6} parent=5 // pred_region
        // Predicated region
        $region33: #{crnn_forward.6} parent=31 // pred_check
          %p189 = pneg %p32
        $region34: #{crnn_forward.6} parent=31 // pred_check_branch
          %191 = sbr.rel (%p189) target = $region36
        $region35: #{crnn_forward.6} parent=31 // pred_region
          %p192 = scmp.lt.s32.totalorder %s12, 1
          %s193 = scalar_select %p192, %s12, 1
          %s194 = smul.addr %s193, 3
          %s195 = smul.addr %s194, 8
          %s196 = scalar_lea.vmem %s0, %s195
        $region36: #{crnn_forward.6} parent=31 // pred_fallthru
          _
      $region32: #{crnn_forward.6} parent=5 // pred_fallthru
        _
      %p197 = scmp.le.s32.totalorder 1, %s12
      %p198 = scmp.lt.s32.totalorder %s12, 3
      %p199 = pnand %p197, %p198
      %p200 = pneg %p199
      // Predicated region
      $region37: #{crnn_forward.6} parent=5 // pred_check
        _
      $region38: #{crnn_forward.6} parent=5 // pred_check_branch
        %202 = sbr.rel (%p199) target = $region40
      $region39: #{crnn_forward.6} parent=5 // pred_region
        %s203 = ssub.s32 %s12, 1
        // Predicated region
        $region41: #{crnn_forward.6} parent=39 // pred_check
          %p204 = pneg %p101
        $region42: #{crnn_forward.6} parent=39 // pred_check_branch
          %206 = sbr.rel (%p204) target = $region44
        $region43: #{crnn_forward.6} parent=39 // pred_region
          %207 = dma.done [#allocation3], 1536
        $region44: #{crnn_forward.6} parent=39 // pred_fallthru
          _
        %p208 = scmp.lt.s32.totalorder %s17, 1
        %s209 = scalar_select %p208, %s17, 1
        %s210 = smul.addr %s209, 3
        %s211 = smul.addr %s210, 8
        %s212 = scalar_lea.vmem %s0, %s211
        %p213 = pneg %p38
        %p214 = pneg %p35
        %p215 = pneg %p59
        %p216 = pneg %p56
        %p217 = pneg %p80
        %p218 = pneg %p77
        %p219 = pneg %p101
        %p220 = pneg %p98
        %p221 = pneg %p122
        %p222 = pneg %p119
        %p223 = pneg %p148
        %p224 = pneg %p145
        %p225 = scmp.lt.s32.totalorder %s17, 1
        %s226 = scalar_select %p225, %s17, 1
        %s227 = smul.addr %s226, 4
        %s228 = scalar_lea.vmem %s5, %s227
        %p229 = scmp.lt.s32.totalorder %s17, 1
        %s230 = scalar_select %p229, %s17, 1
        %s231 = smul.addr %s230, 3
        %s232 = smul.addr %s231, 8
        %s233 = scalar_lea.vmem %s0, %s232
        %p234 = scmp.lt.s32.totalorder %s17, 1
        %s235 = scalar_select %p234, %s17, 1
        %s236 = smul.addr %s235, 4
        %s237 = scalar_lea.vmem %s5, %s236
        %v239 = vld [vmem:[%s233] sm:$0xff]
        %v240 = vld [vmem:[%s233 + $0x8] sm:$0xff]
        %v241 = vld [vmem:[%s233 + $0x10] sm:$0xf]
        %v242 = vpack.c.bf16 %v240, %v239
        %v243 = vpack.c.bf16 %v241, %v241
        %v244 = vld [vmem:[%s1] sm:$0xf]
        %v245 = vld [vmem:[%s1 + $0x4] sm:$0x3]
        %s246 = scalar_lea.vmem %s1, 8
        %v247 = vld [vmem:[%s246] sm:$0xf]
        %v248 = vld [vmem:[%s246 + $0x4] sm:$0x3]
        %vm249 = vsmask.f32 7424
        %v251 = vshrl.u32 %v242, 16
        %v253 = vshll.u32 %v242, 16
        %v255 = vrot.slane %v253, 1
        %v256 = vor.u32 %v251, %v255
        %v258 = vshll.u32 %v243, 16
        %v260 = vrot.slane %v258, 1
        %v261 = vsel %vm249, %v256, %v260
        %v262 = vshrl.u32 %v243, 16
        %v264 = vor.u32 %v262, %v260
        %v267 = vunpack.c.l.b16 %v247
        %v268 = vunpack.c.l.b16 %v248
        %v269 = vpack.c.b16 %v268, %v267
        %vm270 = vcmask 97280
        %v272 = vsel %vm270, %v261, 0
        %v275 = vsel %vm270, %v264, 0
        %vm277 = vcmask 1045504
        %v279 = vsel %vm277, %v269, 0
        %281 = vmatprep.subr.bf16.mxu0 0
        %282 = vmatpush1.bf16.msra.mxu0 %v279
        %283 = vmatprep.subr.bf16.mxu0 0
        %284 = vmatpush1.bf16.msra.mxu0 0
        %285 = vmatprep.subr.bf16.mxu0 0
        %286 = vmatpush1.bf16.msra.mxu0 0
        %287 = vmatprep.subr.bf16.mxu0 0
        %288 = vmatpush1.bf16.msra.mxu0 0
        %289 = vmatprep.subr.bf16.mxu0 0
        %290 = vmatpush1.bf16.msra.mxu0 0
        %291 = vmatprep.subr.bf16.mxu0 0
        %292 = vmatpush1.bf16.msra.mxu0 0
        %293 = vmatprep.subr.bf16.mxu0 0
        %294 = vmatpush1.bf16.msra.mxu0 0
        %295 = vmatprep.subr.bf16.mxu0 0
        %296 = vmatpush1.bf16.msra.mxu0 0
        %297 = vmatprep.subr.bf16.mxu0 0
        %298 = vmatpush1.bf16.msra.mxu0 0
        %299 = vmatprep.subr.bf16.mxu0 0
        %300 = vmatpush1.bf16.msra.mxu0 0
        %301 = vmatprep.subr.bf16.mxu0 0
        %302 = vmatpush1.bf16.msra.mxu0 0
        %303 = vmatprep.subr.bf16.mxu0 0
        %304 = vmatpush1.bf16.msra.mxu0 0
        %305 = vmatprep.subr.bf16.mxu0 0
        %306 = vmatpush1.bf16.msra.mxu0 0
        %307 = vmatprep.subr.bf16.mxu0 0
        %308 = vmatpush1.bf16.msra.mxu0 0
        %309 = vmatprep.subr.bf16.mxu0 0
        %310 = vmatpush1.bf16.msra.mxu0 0
        %311 = vmatprep.subr.bf16.mxu0 0
        %312 = vmatpush1.bf16.msra.mxu0 0
        %313 = vmatprep.mubr.bf16.mxu0 0
        %314 = vmatmul.mubr.bf16.gmra.mrb[0].mxu0 %v272
        %v315 = vpop.f32.mrb[0].mxu0
        %v316 = vadd.f32 0.0, %v315
        %v317 = vpop.f32.mrb[0].mxu0
        %v318 = vpop.f32.mrb[0].mxu0
        %v319 = vadd.f32 0.0, %v318
        %v320 = vpop.f32.mrb[0].mxu0
        %321 = vmatprep.mubr.bf16.mxu0 0
        %322 = vmatmul.mubr.bf16.gmra.mrb[0].mxu0 %v275
        %v323 = vpop.f32.mrb[0].mxu0
        %v324 = vadd.f32 0.0, %v323
        %v325 = vpop.f32.mrb[0].mxu0
        %v326 = vpop.f32.mrb[0].mxu0
        %v327 = vpop.f32.mrb[0].mxu0
        %328 = vdwg.mxu0
        %v331 = vunpack.c.l.b16 %v244
        %v332 = vunpack.c.l.b16 %v245
        %v333 = vpack.c.b16 %v332, %v331
        %v334 = vsel %vm270, %v242, 0
        %v336 = vsel %vm270, %v243, 0
        %v339 = vsel %vm277, %v333, 0
        %341 = vmatprep.subr.bf16.mxu0 0
        %342 = vmatpush1.bf16.msra.mxu0 %v339
        %343 = vmatprep.subr.bf16.mxu0 0
        %344 = vmatpush1.bf16.msra.mxu0 0
        %345 = vmatprep.subr.bf16.mxu0 0
        %346 = vmatpush1.bf16.msra.mxu0 0
        %347 = vmatprep.subr.bf16.mxu0 0
        %348 = vmatpush1.bf16.msra.mxu0 0
        %349 = vmatprep.subr.bf16.mxu0 0
        %350 = vmatpush1.bf16.msra.mxu0 0
        %351 = vmatprep.subr.bf16.mxu0 0
        %352 = vmatpush1.bf16.msra.mxu0 0
        %353 = vmatprep.subr.bf16.mxu0 0
        %354 = vmatpush1.bf16.msra.mxu0 0
        %355 = vmatprep.subr.bf16.mxu0 0
        %356 = vmatpush1.bf16.msra.mxu0 0
        %357 = vmatprep.subr.bf16.mxu0 0
        %358 = vmatpush1.bf16.msra.mxu0 0
        %359 = vmatprep.subr.bf16.mxu0 0
        %360 = vmatpush1.bf16.msra.mxu0 0
        %361 = vmatprep.subr.bf16.mxu0 0
        %362 = vmatpush1.bf16.msra.mxu0 0
        %363 = vmatprep.subr.bf16.mxu0 0
        %364 = vmatpush1.bf16.msra.mxu0 0
        %365 = vmatprep.subr.bf16.mxu0 0
        %366 = vmatpush1.bf16.msra.mxu0 0
        %367 = vmatprep.subr.bf16.mxu0 0
        %368 = vmatpush1.bf16.msra.mxu0 0
        %369 = vmatprep.subr.bf16.mxu0 0
        %370 = vmatpush1.bf16.msra.mxu0 0
        %371 = vmatprep.subr.bf16.mxu0 0
        %372 = vmatpush1.bf16.msra.mxu0 0
        %373 = vmatprep.mubr.bf16.mxu0 0
        %374 = vmatmul.mubr.bf16.gmra.mrb[0].mxu0 %v334
        %v375 = vpop.f32.mrb[0].mxu0
        %v376 = vadd.f32 %v316, %v375
        %v377 = vpop.f32.mrb[0].mxu0
        %v378 = vpop.f32.mrb[0].mxu0
        %v379 = vadd.f32 %v319, %v378
        %v380 = vpop.f32.mrb[0].mxu0
        %381 = vmatprep.mubr.bf16.mxu0 0
        %382 = vmatmul.mubr.bf16.gmra.mrb[0].mxu0 %v336
        %v383 = vpop.f32.mrb[0].mxu0
        %v384 = vadd.f32 %v324, %v383
        %v385 = vpop.f32.mrb[0].mxu0
        %v386 = vpop.f32.mrb[0].mxu0
        %v387 = vpop.f32.mrb[0].mxu0
        %388 = vdwg.mxu0
        %s389 = scalar_lea.vmem %s1, 16
        %v390 = vld [vmem:[%s389] sm:$0xf]
        %v391 = vld [vmem:[%s389 + $0x4] sm:$0x3]
        %vm394 = vcmask 1046528
        %v395 = vrot.slane %v242, 1
        %v396 = vrot.slane %v243, 1
        %v397 = vsel %vm394, %v395, %v396
        %v400 = vunpack.c.l.b16 %v390
        %v401 = vunpack.c.l.b16 %v391
        %v402 = vpack.c.b16 %v401, %v400
        %v404 = vsel %vm270, %v397, 0
        %v407 = vsel %vm270, %v396, 0
        %v410 = vsel %vm277, %v402, 0
        %412 = vmatprep.subr.bf16.mxu0 0
        %413 = vmatpush1.bf16.msra.mxu0 %v410
        %414 = vmatprep.subr.bf16.mxu0 0
        %415 = vmatpush1.bf16.msra.mxu0 0
        %416 = vmatprep.subr.bf16.mxu0 0
        %417 = vmatpush1.bf16.msra.mxu0 0
        %418 = vmatprep.subr.bf16.mxu0 0
        %419 = vmatpush1.bf16.msra.mxu0 0
        %420 = vmatprep.subr.bf16.mxu0 0
        %421 = vmatpush1.bf16.msra.mxu0 0
        %422 = vmatprep.subr.bf16.mxu0 0
        %423 = vmatpush1.bf16.msra.mxu0 0
        %424 = vmatprep.subr.bf16.mxu0 0
        %425 = vmatpush1.bf16.msra.mxu0 0
        %426 = vmatprep.subr.bf16.mxu0 0
        %427 = vmatpush1.bf16.msra.mxu0 0
        %428 = vmatprep.subr.bf16.mxu0 0
        %429 = vmatpush1.bf16.msra.mxu0 0
        %430 = vmatprep.subr.bf16.mxu0 0
        %431 = vmatpush1.bf16.msra.mxu0 0
        %432 = vmatprep.subr.bf16.mxu0 0
        %433 = vmatpush1.bf16.msra.mxu0 0
        %434 = vmatprep.subr.bf16.mxu0 0
        %435 = vmatpush1.bf16.msra.mxu0 0
        %436 = vmatprep.subr.bf16.mxu0 0
        %437 = vmatpush1.bf16.msra.mxu0 0
        %438 = vmatprep.subr.bf16.mxu0 0
        %439 = vmatpush1.bf16.msra.mxu0 0
        %440 = vmatprep.subr.bf16.mxu0 0
        %441 = vmatpush1.bf16.msra.mxu0 0
        %442 = vmatprep.subr.bf16.mxu0 0
        %443 = vmatpush1.bf16.msra.mxu0 0
        %444 = vmatprep.mubr.bf16.mxu0 0
        %445 = vmatmul.mubr.bf16.gmra.mrb[0].mxu0 %v404
        %v446 = vpop.f32.mrb[0].mxu0
        %v447 = vadd.f32 0.0, %v446
        %v448 = vpop.f32.mrb[0].mxu0
        %v449 = vpop.f32.mrb[0].mxu0
        %v450 = vadd.f32 0.0, %v449
        %v451 = vpop.f32.mrb[0].mxu0
        %452 = vmatprep.mubr.bf16.mxu0 0
        %453 = vmatmul.mubr.bf16.gmra.mrb[0].mxu0 %v407
        %v454 = vpop.f32.mrb[0].mxu0
        %v455 = vadd.f32 0.0, %v454
        %v456 = vpop.f32.mrb[0].mxu0
        %v457 = vpop.f32.mrb[0].mxu0
        %v458 = vpop.f32.mrb[0].mxu0
        %459 = vdwg.mxu0
        %v460 = vadd.f32 %v376, %v447
        %v461 = vadd.f32 %v379, %v450
        %v462 = vadd.f32 %v384, %v455
        %v463 = vld [vmem:[%s2] sm:$0x1]
        %v465 = vlaneseq
        %v466 = vshrl.u32 %v465, 7
        %v467 = vsub.s32 0, %v466
        %v468 = vrot.slane %v463, %v467
        %v470 = vadd.f32 %v460, %v468
        %v471 = vadd.f32 %v461, %v468
        %v472 = vadd.f32 %v462, %v468
        %v473 = vmax.f32 %v470, 0.0
        %v474 = vmax.f32 %v471, 0.0
        %v475 = vmax.f32 %v472, 0.0
        %v476 = vpack.c.bf16 %v474, %v473
        %v477 = vpack.c.bf16 %v475, %v475
        %v478 = vld [vmem:[#allocation2] sm:$0xf]
        %v479 = vld [vmem:[#allocation2 + $0x4] sm:$0xf]
        %v480 = vld [vmem:[#allocation2 + $0x8] sm:$0xf]
        %v481 = vld [vmem:[#allocation2 + $0xc] sm:$0xf]
        %v482 = vld [vmem:[#allocation2 + $0x10] sm:$0xf]
        %v483 = vld [vmem:[#allocation2 + $0x14] sm:$0xf]
        %v484 = vld [vmem:[#allocation2 + $0x18] sm:$0xf]
        %v485 = vld [vmem:[#allocation2 + $0x1c] sm:$0xf]
        %s486 = scalar_lea.vmem [#allocation2], 32
        %v487 = vld [vmem:[%s486] sm:$0xf]
        %v488 = vld [vmem:[%s486 + $0x4] sm:$0xf]
        %v489 = vld [vmem:[%s486 + $0x8] sm:$0xf]
        %v490 = vld [vmem:[%s486 + $0xc] sm:$0xf]
        %v491 = vld [vmem:[%s486 + $0x10] sm:$0xf]
        %v492 = vld [vmem:[%s486 + $0x14] sm:$0xf]
        %v493 = vld [vmem:[%s486 + $0x18] sm:$0xf]
        %v494 = vld [vmem:[%s486 + $0x1c] sm:$0xf]
        %v496 = vshrl.u32 %v476, 16
        %v498 = vshll.u32 %v476, 16
        %v500 = vrot.slane %v498, 1
        %v501 = vor.u32 %v496, %v500
        %v503 = vshll.u32 %v477, 16
        %v505 = vrot.slane %v503, 1
        %v506 = vsel %vm249, %v501, %v505
        %v515 = vunpack.c.l.b16 %v487
        %v516 = vunpack.c.l.b16 %v488
        %v517 = vunpack.c.l.b16 %v489
        %v518 = vunpack.c.l.b16 %v490
        %v519 = vunpack.c.l.b16 %v491
        %v520 = vunpack.c.l.b16 %v492
        %v521 = vunpack.c.l.b16 %v493
        %v522 = vunpack.c.l.b16 %v494
        %v523 = vpack.c.b16 %v516, %v515
        %v524 = vpack.c.b16 %v518, %v517
        %v525 = vpack.c.b16 %v520, %v519
        %v526 = vpack.c.b16 %v522, %v521
        %vm531 = vcmask 523264
        %v533 = vsel %vm531, %v506, 0
        %535 = vmatprep.subr.bf16.mxu0 0
        %536 = vmatpush1.bf16.msra.mxu0 %v523
        %537 = vmatprep.subr.bf16.mxu0 0
        %538 = vmatpush1.bf16.msra.mxu0 %v524
        %539 = vmatprep.subr.bf16.mxu0 0
        %540 = vmatpush1.bf16.msra.mxu0 %v525
        %541 = vmatprep.subr.bf16.mxu0 0
        %542 = vmatpush1.bf16.msra.mxu0 %v526
        %543 = vmatprep.subr.bf16.mxu0 0
        %544 = vmatpush1.bf16.msra.mxu0 0
        %545 = vmatprep.subr.bf16.mxu0 0
        %546 = vmatpush1.bf16.msra.mxu0 0
        %547 = vmatprep.subr.bf16.mxu0 0
        %548 = vmatpush1.bf16.msra.mxu0 0
        %549 = vmatprep.subr.bf16.mxu0 0
        %550 = vmatpush1.bf16.msra.mxu0 0
        %551 = vmatprep.subr.bf16.mxu0 0
        %552 = vmatpush1.bf16.msra.mxu0 0
        %553 = vmatprep.subr.bf16.mxu0 0
        %554 = vmatpush1.bf16.msra.mxu0 0
        %555 = vmatprep.subr.bf16.mxu0 0
        %556 = vmatpush1.bf16.msra.mxu0 0
        %557 = vmatprep.subr.bf16.mxu0 0
        %558 = vmatpush1.bf16.msra.mxu0 0
        %559 = vmatprep.subr.bf16.mxu0 0
        %560 = vmatpush1.bf16.msra.mxu0 0
        %561 = vmatprep.subr.bf16.mxu0 0
        %562 = vmatpush1.bf16.msra.mxu0 0
        %563 = vmatprep.subr.bf16.mxu0 0
        %564 = vmatpush1.bf16.msra.mxu0 0
        %565 = vmatprep.subr.bf16.mxu0 0
        %566 = vmatpush1.bf16.msra.mxu0 0
        %567 = vmatprep.mubr.bf16.mxu0 0
        %568 = vmatmul.mubr.bf16.gmra.mrb[0].mxu0 %v533
        %v569 = vpop.f32.mrb[0].mxu0
        %v570 = vadd.f32 0.0, %v569
        %v571 = vpop.f32.mrb[0].mxu0
        %v572 = vpop.f32.mrb[0].mxu0
        %v573 = vadd.f32 0.0, %v572
        %v574 = vpop.f32.mrb[0].mxu0
        %575 = vdwg.mxu0
        %v584 = vunpack.c.l.b16 %v478
        %v585 = vunpack.c.l.b16 %v479
        %v586 = vunpack.c.l.b16 %v480
        %v587 = vunpack.c.l.b16 %v481
        %v588 = vunpack.c.l.b16 %v482
        %v589 = vunpack.c.l.b16 %v483
        %v590 = vunpack.c.l.b16 %v484
        %v591 = vunpack.c.l.b16 %v485
        %v592 = vpack.c.b16 %v585, %v584
        %v593 = vpack.c.b16 %v587, %v586
        %v594 = vpack.c.b16 %v589, %v588
        %v595 = vpack.c.b16 %v591, %v590
        %v600 = vsel %vm531, %v476, 0
        %602 = vmatprep.subr.bf16.mxu0 0
        %603 = vmatpush1.bf16.msra.mxu0 %v592
        %604 = vmatprep.subr.bf16.mxu0 0
        %605 = vmatpush1.bf16.msra.mxu0 %v593
        %606 = vmatprep.subr.bf16.mxu0 0
        %607 = vmatpush1.bf16.msra.mxu0 %v594
        %608 = vmatprep.subr.bf16.mxu0 0
        %609 = vmatpush1.bf16.msra.mxu0 %v595
        %610 = vmatprep.subr.bf16.mxu0 0
        %611 = vmatpush1.bf16.msra.mxu0 0
        %612 = vmatprep.subr.bf16.mxu0 0
        %613 = vmatpush1.bf16.msra.mxu0 0
        %614 = vmatprep.subr.bf16.mxu0 0
        %615 = vmatpush1.bf16.msra.mxu0 0
        %616 = vmatprep.subr.bf16.mxu0 0
        %617 = vmatpush1.bf16.msra.mxu0 0
        %618 = vmatprep.subr.bf16.mxu0 0
        %619 = vmatpush1.bf16.msra.mxu0 0
        %620 = vmatprep.subr.bf16.mxu0 0
        %621 = vmatpush1.bf16.msra.mxu0 0
        %622 = vmatprep.subr.bf16.mxu0 0
        %623 = vmatpush1.bf16.msra.mxu0 0
        %624 = vmatprep.subr.bf16.mxu0 0
        %625 = vmatpush1.bf16.msra.mxu0 0
        %626 = vmatprep.subr.bf16.mxu0 0
        %627 = vmatpush1.bf16.msra.mxu0 0
        %628 = vmatprep.subr.bf16.mxu0 0
        %629 = vmatpush1.bf16.msra.mxu0 0
        %630 = vmatprep.subr.bf16.mxu0 0
        %631 = vmatpush1.bf16.msra.mxu0 0
        %632 = vmatprep.subr.bf16.mxu0 0
        %633 = vmatpush1.bf16.msra.mxu0 0
        %634 = vmatprep.mubr.bf16.mxu0 0
        %635 = vmatmul.mubr.bf16.gmra.mrb[0].mxu0 %v600
        %v636 = vpop.f32.mrb[0].mxu0
        %v637 = vadd.f32 %v570, %v636
        %v638 = vpop.f32.mrb[0].mxu0
        %v639 = vpop.f32.mrb[0].mxu0
        %v640 = vadd.f32 %v573, %v639
        %v641 = vpop.f32.mrb[0].mxu0
        %642 = vdwg.mxu0
        %s643 = scalar_lea.vmem [#allocation2], 64
        %v644 = vld [vmem:[%s643] sm:$0xf]
        %v645 = vld [vmem:[%s643 + $0x4] sm:$0xf]
        %v646 = vld [vmem:[%s643 + $0x8] sm:$0xf]
        %v647 = vld [vmem:[%s643 + $0xc] sm:$0xf]
        %v648 = vld [vmem:[%s643 + $0x10] sm:$0xf]
        %v649 = vld [vmem:[%s643 + $0x14] sm:$0xf]
        %v650 = vld [vmem:[%s643 + $0x18] sm:$0xf]
        %v651 = vld [vmem:[%s643 + $0x1c] sm:$0xf]
        %v654 = vrot.slane %v476, 1
        %v655 = vrot.slane %v477, 1
        %v656 = vsel %vm394, %v654, %v655
        %v665 = vunpack.c.l.b16 %v644
        %v666 = vunpack.c.l.b16 %v645
        %v667 = vunpack.c.l.b16 %v646
        %v668 = vunpack.c.l.b16 %v647
        %v669 = vunpack.c.l.b16 %v648
        %v670 = vunpack.c.l.b16 %v649
        %v671 = vunpack.c.l.b16 %v650
        %v672 = vunpack.c.l.b16 %v651
        %v673 = vpack.c.b16 %v666, %v665
        %v674 = vpack.c.b16 %v668, %v667
        %v675 = vpack.c.b16 %v670, %v669
        %v676 = vpack.c.b16 %v672, %v671
        %v682 = vsel %vm531, %v656, 0
        %684 = vmatprep.subr.bf16.mxu0 0
        %685 = vmatpush1.bf16.msra.mxu0 %v673
        %686 = vmatprep.subr.bf16.mxu0 0
        %687 = vmatpush1.bf16.msra.mxu0 %v674
        %688 = vmatprep.subr.bf16.mxu0 0
        %689 = vmatpush1.bf16.msra.mxu0 %v675
        %690 = vmatprep.subr.bf16.mxu0 0
        %691 = vmatpush1.bf16.msra.mxu0 %v676
        %692 = vmatprep.subr.bf16.mxu0 0
        %693 = vmatpush1.bf16.msra.mxu0 0
        %694 = vmatprep.subr.bf16.mxu0 0
        %695 = vmatpush1.bf16.msra.mxu0 0
        %696 = vmatprep.subr.bf16.mxu0 0
        %697 = vmatpush1.bf16.msra.mxu0 0
        %698 = vmatprep.subr.bf16.mxu0 0
        %699 = vmatpush1.bf16.msra.mxu0 0
        %700 = vmatprep.subr.bf16.mxu0 0
        %701 = vmatpush1.bf16.msra.mxu0 0
        %702 = vmatprep.subr.bf16.mxu0 0
        %703 = vmatpush1.bf16.msra.mxu0 0
        %704 = vmatprep.subr.bf16.mxu0 0
        %705 = vmatpush1.bf16.msra.mxu0 0
        %706 = vmatprep.subr.bf16.mxu0 0
        %707 = vmatpush1.bf16.msra.mxu0 0
        %708 = vmatprep.subr.bf16.mxu0 0
        %709 = vmatpush1.bf16.msra.mxu0 0
        %710 = vmatprep.subr.bf16.mxu0 0
        %711 = vmatpush1.bf16.msra.mxu0 0
        %712 = vmatprep.subr.bf16.mxu0 0
        %713 = vmatpush1.bf16.msra.mxu0 0
        %714 = vmatprep.subr.bf16.mxu0 0
        %715 = vmatpush1.bf16.msra.mxu0 0
        %716 = vmatprep.mubr.bf16.mxu0 0
        %717 = vmatmul.mubr.bf16.gmra.mrb[0].mxu0 %v682
        %v718 = vpop.f32.mrb[0].mxu0
        %v719 = vadd.f32 0.0, %v718
        %v720 = vpop.f32.mrb[0].mxu0
        %v721 = vpop.f32.mrb[0].mxu0
        %v722 = vadd.f32 0.0, %v721
        %v723 = vpop.f32.mrb[0].mxu0
        %724 = vdwg.mxu0
        %v725 = vadd.f32 %v637, %v719
        %v726 = vadd.f32 %v640, %v722
        %v727 = vld [vmem:[%s4] sm:$0x1]
        %v729 = vlaneseq
        %v730 = vshrl.u32 %v729, 7
        %v731 = vsub.s32 0, %v730
        %v732 = vrot.slane %v727, %v731
        %v734 = vadd.f32 %v725, %v732
        %v735 = vadd.f32 %v726, %v732
        %v736 = vmax.f32 %v734, 0.0
        %v737 = vmax.f32 %v735, 0.0
        %v740 = vcombine.high %v736, %v736
        %v742 = vunpack.c.l.s4 1983009808
        %v743 = vunpack.c.0.s8 %v742
        %v744 = vlaneseq
        %v745 = vshrl.u32 %v744, 7
        %v746 = vsub.s32 %v743, %v745
        %v747 = vrot.slane %v736, %v746
        %v749 = vunpack.c.l.s4 1983009808
        %v750 = vunpack.c.0.s8 %v749
        %v751 = vlaneseq
        %v752 = vshrl.u32 %v751, 7
        %v753 = vsub.s32 %v750, %v752
        %v754 = vrot.slane %v740, %v753
        %v755 = vcombine.high %v747, %v747
        %v756 = vcombine.high %v754, %v754
        %v757 = vcombine.high %v737, %v737
        %v759 = vunpack.c.l.s4 1983009808
        %v760 = vunpack.c.0.s8 %v759
        %v761 = vlaneseq
        %v762 = vshrl.u32 %v761, 7
        %v763 = vsub.s32 %v760, %v762
        %v764 = vrot.slane %v737, %v763
        %v766 = vunpack.c.l.s4 1983009808
        %v767 = vunpack.c.0.s8 %v766
        %v768 = vlaneseq
        %v769 = vshrl.u32 %v768, 7
        %v770 = vsub.s32 %v767, %v769
        %v771 = vrot.slane %v757, %v770
        %v772 = vcombine.high %v764, %v764
        %v773 = vcombine.high %v771, %v771
        %vm782 = vcmask 1041408
        %v783 = vsel %vm782, %v747, -inf
        %v784 = vrot.slane %v783, 4
        %v785 = vmax.f32 %v783, %v784
        %v786 = vrot.slane %v785, 2
        %v787 = vmax.f32 %v785, %v786
        %v788 = vrot.slane %v787, 1
        %v789 = vmax.f32 %v787, %v788
        %v790 = vsel %vm782, %v755, -inf
        %v791 = vrot.slane %v790, 4
        %v792 = vmax.f32 %v790, %v791
        %v793 = vrot.slane %v792, 2
        %v794 = vmax.f32 %v792, %v793
        %v795 = vrot.slane %v794, 1
        %v796 = vmax.f32 %v794, %v795
        %v797 = vsel %vm782, %v754, -inf
        %v798 = vrot.slane %v797, 4
        %v799 = vmax.f32 %v797, %v798
        %v800 = vrot.slane %v799, 2
        %v801 = vmax.f32 %v799, %v800
        %v802 = vrot.slane %v801, 1
        %v803 = vmax.f32 %v801, %v802
        %v804 = vsel %vm782, %v756, -inf
        %v805 = vrot.slane %v804, 4
        %v806 = vmax.f32 %v804, %v805
        %v807 = vrot.slane %v806, 2
        %v808 = vmax.f32 %v806, %v807
        %v809 = vrot.slane %v808, 1
        %v810 = vmax.f32 %v808, %v809
        %v811 = vsel %vm782, %v764, -inf
        %v812 = vrot.slane %v811, 4
        %v813 = vmax.f32 %v811, %v812
        %v814 = vrot.slane %v813, 2
        %v815 = vmax.f32 %v813, %v814
        %v816 = vrot.slane %v815, 1
        %v817 = vmax.f32 %v815, %v816
        %v818 = vsel %vm782, %v772, -inf
        %v819 = vrot.slane %v818, 4
        %v820 = vmax.f32 %v818, %v819
        %v821 = vrot.slane %v820, 2
        %v822 = vmax.f32 %v820, %v821
        %v823 = vrot.slane %v822, 1
        %v824 = vmax.f32 %v822, %v823
        %v825 = vsel %vm782, %v771, -inf
        %v826 = vrot.slane %v825, 4
        %v827 = vmax.f32 %v825, %v826
        %v828 = vrot.slane %v827, 2
        %v829 = vmax.f32 %v827, %v828
        %v830 = vrot.slane %v829, 1
        %v831 = vmax.f32 %v829, %v830
        %v832 = vsel %vm782, %v773, -inf
        %v833 = vrot.slane %v832, 4
        %v834 = vmax.f32 %v832, %v833
        %v835 = vrot.slane %v834, 2
        %v836 = vmax.f32 %v834, %v835
        %v837 = vrot.slane %v836, 1
        %v838 = vmax.f32 %v836, %v837
        %v839 = vpack.c.bf16 %v789, %v789
        %v840 = vpack.c.bf16 %v796, %v796
        %v841 = vpack.c.bf16 %v803, %v803
        %v842 = vpack.c.bf16 %v810, %v810
        %v843 = vpack.c.bf16 %v817, %v817
        %v844 = vpack.c.bf16 %v824, %v824
        %v845 = vpack.c.bf16 %v831, %v831
        %v846 = vpack.c.bf16 %v838, %v838
        %v855 = vunpack.c.l.b16 %v839
        %v856 = vunpack.c.l.b16 %v840
        %v857 = vunpack.c.l.b16 %v841
        %v858 = vunpack.c.l.b16 %v842
        %v859 = vunpack.c.l.b16 %v843
        %v860 = vunpack.c.l.b16 %v844
        %v861 = vunpack.c.l.b16 %v845
        %v862 = vunpack.c.l.b16 %v846
        %v863 = vpack.c.b16 %v855, %v855
        %v864 = vpack.c.b16 %v856, %v856
        %v865 = vpack.c.b16 %v857, %v857
        %v866 = vpack.c.b16 %v858, %v858
        %v867 = vpack.c.b16 %v859, %v859
        %v868 = vpack.c.b16 %v860, %v860
        %v869 = vpack.c.b16 %v861, %v861
        %v870 = vpack.c.b16 %v862, %v862
        %v871 = vunpack.c.l.b16 %v863
        %v872 = vunpack.c.l.b16 %v864
        %v873 = vunpack.c.l.b16 %v865
        %v874 = vunpack.c.l.b16 %v866
        %v875 = vunpack.c.l.b16 %v867
        %v876 = vunpack.c.l.b16 %v868
        %v877 = vunpack.c.l.b16 %v869
        %v878 = vunpack.c.l.b16 %v870
        %vm879 = vcmask 1041409
        %v880 = vsel %vm879, %v872, %v871
        %vm881 = vcmask 1042434
        %v882 = vsel %vm881, %v873, %v880
        %vm883 = vcmask 1043459
        %v884 = vsel %vm883, %v874, %v882
        %vm885 = vcmask 1044484
        %v886 = vsel %vm885, %v875, %v884
        %vm887 = vcmask 1045509
        %v888 = vsel %vm887, %v876, %v886
        %vm889 = vcmask 1046534
        %v890 = vsel %vm889, %v877, %v888
        %vm891 = vcmask 1047559
        %v892 = vsel %vm891, %v878, %v890
        %v893 = vpack.c.b16 %v892, %v892
        %895 = vst [vmem:[%s237] sm:$0xf] %v893
        %p896 = scmp.lt.s32.totalorder %s17, 1
        %s897 = scalar_select %p896, %s17, 1
        %s898 = smul.addr %s897, 4
        %s899 = scalar_lea.vmem %s5, %s898
        // Predicated region
        $region45: #{crnn_forward.6} parent=39 // pred_check
          %p900 = pneg %p145
        $region46: #{crnn_forward.6} parent=39 // pred_check_branch
          %902 = sbr.rel (%p900) target = $region48
        $region47: #{crnn_forward.6} parent=39 // pred_region
          _
        $region48: #{crnn_forward.6} parent=39 // pred_fallthru
          _
      $region40: #{crnn_forward.6} parent=5 // pred_fallthru
        _
      %p903 = scmp.le.s32.totalorder 2, %s12
      // Predicated region
      $region49: #{crnn_forward.6} parent=5 // pred_check
        %p904 = pneg %p903
      $region50: #{crnn_forward.6} parent=5 // pred_check_branch
        %906 = sbr.rel (%p904) target = $region52
      $region51: #{crnn_forward.6} parent=5 // pred_region
        %s907 = ssub.s32 %s12, 2
        // Predicated region
        $region53: #{crnn_forward.6} parent=51 // pred_check
          %p908 = pneg %p151
        $region54: #{crnn_forward.6} parent=51 // pred_check_branch
          %910 = sbr.rel (%p908) target = $region56
        $region55: #{crnn_forward.6} parent=51 // pred_region
          %p911 = scmp.lt.s32.totalorder %s18, 1
          %s912 = scalar_select %p911, %s18, 1
          %s913 = smul.addr %s912, 4
          %s914 = scalar_lea.vmem %s5, %s913
        $region56: #{crnn_forward.6} parent=51 // pred_fallthru
          _
      $region52: #{crnn_forward.6} parent=5 // pred_fallthru
        _
    $region6: #{crnn_forward.6} parent=1 // loop_footer
      %s16 = sadd.s32 1, %s12
    $region7: #{crnn_forward.6} parent=1 // loop_footer_branch
      %11 = sbr.rel target = $region3
    $region8: #{crnn_forward.6} parent=1 // loop_exit
      _
    %915 = vsyncpa [#allocation3], 1
    %s916 = scalar_lea.sflag [#allocation3], 1
    %917 = vsyncpa %s916, 1

// kernel: crnn_forward.7
$region0: #{crnn_forward.7}
  #allocation0 [shape = 'u32[]', space=smem, size = 0x4, offset = 0x4, fixed_abs, tag = 'smem constant byte address 0x4 - core index']
  #allocation1 [shape = 'u32[144,128]{1,0:T(1,128)}', space=vmem, size = 0x12000, scoped, tag = 'internal scratch']
  %s0 = inlined_call_operand.vmem [shape: bf16[16,128], index: 0, kind: input, shape index: {}]
  %s1 = inlined_call_operand.hbm [shape: bf16[128,1024], index: 1, kind: input, shape index: {}]
  %s2 = inlined_call_operand.vmem [shape: f32[1,1024], index: 2, kind: input, shape index: {}]
  %s3 = inlined_call_operand.vmem [shape: f32[16,1024], index: 3, kind: output, shape index: {}]
  %s4 = sld [smem:[#allocation0]]
  $region26: #{crnn_forward.7} parent=0
    _
  %s6 = ssub.s32 1, %s4
  %s7 = scalar_select 0, %s6, %s4
  $region1: #{crnn_forward.7} parent=0
    #allocation2 [shape = 'u8[262144]{0}', space=vmem, size = 0x40000, scoped, tag = 'input window, operand 1, single buffered']
    #allocation3 [shape = 's32[1]{0}', space=sflag, size = 0x4, scoped, tag = 'scoped memory for crnn_forward.7']
    %8 = vsyncpa [#allocation3], 0
    // Predicated region
    $region2: #{crnn_forward.7} parent=1 // pred_check
      _
    $region3: #{crnn_forward.7} parent=1 // pred_check_branch
      %10 = sbr.rel (0) target = $region5
    $region4: #{crnn_forward.7} parent=1 // pred_region
      _
    $region5: #{crnn_forward.7} parent=1 // pred_fallthru
      _
    // Predicated region
    $region6: #{crnn_forward.7} parent=1 // pred_check
      _
    $region7: #{crnn_forward.7} parent=1 // pred_check_branch
      %12 = sbr.rel (0) target = $region9
    $region8: #{crnn_forward.7} parent=1 // pred_region
      %s14 = ssub.s32 8192, 8192
      %15 = vsyncadd [#allocation3], %s14
      %s16 = sshll.u32 [#allocation2], 4
      %s17 = int_to_ptr.vmem [resolvable:$true] %s16
      %22 = dma.hbm_to_vmem [thread:$0]  %s1, 8192, %s17, [#allocation3], 512, 512, 32
    $region9: #{crnn_forward.7} parent=1 // pred_fallthru
      _
    // Predicated region
    $region10: #{crnn_forward.7} parent=1 // pred_check
      _
    $region11: #{crnn_forward.7} parent=1 // pred_check_branch
      %24 = sbr.rel (0) target = $region13
    $region12: #{crnn_forward.7} parent=1 // pred_region
      _
    $region13: #{crnn_forward.7} parent=1 // pred_fallthru
      _
    // Predicated region
    $region14: #{crnn_forward.7} parent=1 // pred_check
      _
    $region15: #{crnn_forward.7} parent=1 // pred_check_branch
      %26 = sbr.rel (0) target = $region17
    $region16: #{crnn_forward.7} parent=1 // pred_region
      %27 = dma.done [#allocation3], 8192
    $region17: #{crnn_forward.7} parent=1 // pred_fallthru
      _
    %v29 = vld [vmem:[%s0] sm:$0xf]
    %v30 = vld [vmem:[%s0 + $0x4] sm:$0xf]
    %v31 = vld [vmem:[#allocation2] sm:$0xff]
    %v32 = vld [vmem:[#allocation2 + $0x8] sm:$0xff]
    %v33 = vld [vmem:[#allocation2 + $0x10] sm:$0xff]
    %v34 = vld [vmem:[#allocation2 + $0x18] sm:$0xff]
    %v35 = vld [vmem:[#allocation2 + $0x20] sm:$0xff]
    %v36 = vld [vmem:[#allocation2 + $0x28] sm:$0xff]
    %v37 = vld [vmem:[#allocation2 + $0x30] sm:$0xff]
    %v38 = vld [vmem:[#allocation2 + $0x38] sm:$0xff]
    %v39 = vld [vmem:[#allocation2 + $0x40] sm:$0xff]
    %v40 = vld [vmem:[#allocation2 + $0x48] sm:$0xff]
    %v41 = vld [vmem:[#allocation2 + $0x50] sm:$0xff]
    %v42 = vld [vmem:[#allocation2 + $0x58] sm:$0xff]
    %v43 = vld [vmem:[#allocation2 + $0x60] sm:$0xff]
    %v44 = vld [vmem:[#allocation2 + $0x68] sm:$0xff]
    %v45 = vld [vmem:[#allocation2 + $0x70] sm:$0xff]
    %v46 = vld [vmem:[#allocation2 + $0x78] sm:$0xff]
    %v47 = vld [vmem:[#allocation2 + $0x80] sm:$0xff]
    %v48 = vld [vmem:[#allocation2 + $0x88] sm:$0xff]
    %v49 = vld [vmem:[#allocation2 + $0x90] sm:$0xff]
    %v50 = vld [vmem:[#allocation2 + $0x98] sm:$0xff]
    %v51 = vld [vmem:[#allocation2 + $0xa0] sm:$0xff]
    %v52 = vld [vmem:[#allocation2 + $0xa8] sm:$0xff]
    %v53 = vld [vmem:[#allocation2 + $0xb0] sm:$0xff]
    %v54 = vld [vmem:[#allocation2 + $0xb8] sm:$0xff]
    %v55 = vld [vmem:[#allocation2 + $0xc0] sm:$0xff]
    %v56 = vld [vmem:[#allocation2 + $0xc8] sm:$0xff]
    %v57 = vld [vmem:[#allocation2 + $0xd0] sm:$0xff]
    %v58 = vld [vmem:[#allocation2 + $0xd8] sm:$0xff]
    %v59 = vld [vmem:[#allocation2 + $0xe0] sm:$0xff]
    %v60 = vld [vmem:[#allocation2 + $0xe8] sm:$0xff]
    %v61 = vld [vmem:[#allocation2 + $0xf0] sm:$0xff]
    %v62 = vld [vmem:[#allocation2 + $0xf8] sm:$0xff]
    %v63 = vld [vmem:[#allocation2 + $0x100] sm:$0xff]
    %v64 = vld [vmem:[#allocation2 + $0x108] sm:$0xff]
    %v65 = vld [vmem:[#allocation2 + $0x110] sm:$0xff]
    %v66 = vld [vmem:[#allocation2 + $0x118] sm:$0xff]
    %v67 = vld [vmem:[#allocation2 + $0x120] sm:$0xff]
    %v68 = vld [vmem:[#allocation2 + $0x128] sm:$0xff]
    %v69 = vld [vmem:[#allocation2 + $0x130] sm:$0xff]
    %v70 = vld [vmem:[#allocation2 + $0x138] sm:$0xff]
    %v71 = vld [vmem:[#allocation2 + $0x140] sm:$0xff]
    %v72 = vld [vmem:[#allocation2 + $0x148] sm:$0xff]
    %v73 = vld [vmem:[#allocation2 + $0x150] sm:$0xff]
    %v74 = vld [vmem:[#allocation2 + $0x158] sm:$0xff]
    %v75 = vld [vmem:[#allocation2 + $0x160] sm:$0xff]
    %v76 = vld [vmem:[#allocation2 + $0x168] sm:$0xff]
    %v77 = vld [vmem:[#allocation2 + $0x170] sm:$0xff]
    %v78 = vld [vmem:[#allocation2 + $0x178] sm:$0xff]
    %v79 = vld [vmem:[#allocation2 + $0x180] sm:$0xff]
    %v80 = vld [vmem:[#allocation2 + $0x188] sm:$0xff]
    %v81 = vld [vmem:[#allocation2 + $0x190] sm:$0xff]
    %v82 = vld [vmem:[#allocation2 + $0x198] sm:$0xff]
    %v83 = vld [vmem:[#allocation2 + $0x1a0] sm:$0xff]
    %v84 = vld [vmem:[#allocation2 + $0x1a8] sm:$0xff]
    %v85 = vld [vmem:[#allocation2 + $0x1b0] sm:$0xff]
    %v86 = vld [vmem:[#allocation2 + $0x1b8] sm:$0xff]
    %v87 = vld [vmem:[#allocation2 + $0x1c0] sm:$0xff]
    %v88 = vld [vmem:[#allocation2 + $0x1c8] sm:$0xff]
    %v89 = vld [vmem:[#allocation2 + $0x1d0] sm:$0xff]
    %v90 = vld [vmem:[#allocation2 + $0x1d8] sm:$0xff]
    %v91 = vld [vmem:[#allocation2 + $0x1e0] sm:$0xff]
    %v92 = vld [vmem:[#allocation2 + $0x1e8] sm:$0xff]
    %v93 = vld [vmem:[#allocation2 + $0x1f0] sm:$0xff]
    %v94 = vld [vmem:[#allocation2 + $0x1f8] sm:$0xff]
    %v95 = vld [vmem:[%s2] sm:$0xff]
    %v97 = vlaneseq
    %v98 = vshrl.u32 %v97, 7
    %v99 = vsub.s32 0, %v98
    %v100 = vrot.slane %v95, %v99
    %v101 = vlaneseq
    %v102 = vshrl.u32 %v101, 7
    %v103 = vsub.s32 1, %v102
    %v104 = vrot.slane %v95, %v103
    %v105 = vlaneseq
    %v106 = vshrl.u32 %v105, 7
    %v107 = vsub.s32 2, %v106
    %v108 = vrot.slane %v95, %v107
    %v109 = vlaneseq
    %v110 = vshrl.u32 %v109, 7
    %v111 = vsub.s32 3, %v110
    %v112 = vrot.slane %v95, %v111
    %v113 = vlaneseq
    %v114 = vshrl.u32 %v113, 7
    %v115 = vsub.s32 4, %v114
    %v116 = vrot.slane %v95, %v115
    %v117 = vlaneseq
    %v118 = vshrl.u32 %v117, 7
    %v119 = vsub.s32 5, %v118
    %v120 = vrot.slane %v95, %v119
    %v121 = vlaneseq
    %v122 = vshrl.u32 %v121, 7
    %v123 = vsub.s32 6, %v122
    %v124 = vrot.slane %v95, %v123
    %v125 = vlaneseq
    %v126 = vshrl.u32 %v125, 7
    %v127 = vsub.s32 7, %v126
    %v128 = vrot.slane %v95, %v127
    %v139 = vunpack.c.l.b16 %v29
    %v140 = vunpack.c.l.b16 %v30
    %v141 = vpack.c.b16 %v140, %v139
    %v207 = vunpack.c.l.b16 %v31
    %v208 = vunpack.c.h.b16 %v31
    %v209 = vunpack.c.l.b16 %v32
    %v210 = vunpack.c.h.b16 %v32
    %v211 = vunpack.c.l.b16 %v33
    %v212 = vunpack.c.h.b16 %v33
    %v213 = vunpack.c.l.b16 %v34
    %v214 = vunpack.c.h.b16 %v34
    %v215 = vunpack.c.l.b16 %v35
    %v216 = vunpack.c.h.b16 %v35
    %v217 = vunpack.c.l.b16 %v36
    %v218 = vunpack.c.h.b16 %v36
    %v219 = vunpack.c.l.b16 %v37
    %v220 = vunpack.c.h.b16 %v37
    %v221 = vunpack.c.l.b16 %v38
    %v222 = vunpack.c.h.b16 %v38
    %v223 = vunpack.c.l.b16 %v39
    %v224 = vunpack.c.h.b16 %v39
    %v225 = vunpack.c.l.b16 %v40
    %v226 = vunpack.c.h.b16 %v40
    %v227 = vunpack.c.l.b16 %v41
    %v228 = vunpack.c.h.b16 %v41
    %v229 = vunpack.c.l.b16 %v42
    %v230 = vunpack.c.h.b16 %v42
    %v231 = vunpack.c.l.b16 %v43
    %v232 = vunpack.c.h.b16 %v43
    %v233 = vunpack.c.l.b16 %v44
    %v234 = vunpack.c.h.b16 %v44
    %v235 = vunpack.c.l.b16 %v45
    %v236 = vunpack.c.h.b16 %v45
    %v237 = vunpack.c.l.b16 %v46
    %v238 = vunpack.c.h.b16 %v46
    %v239 = vunpack.c.l.b16 %v47
    %v240 = vunpack.c.h.b16 %v47
    %v241 = vunpack.c.l.b16 %v48
    %v242 = vunpack.c.h.b16 %v48
    %v243 = vunpack.c.l.b16 %v49
    %v244 = vunpack.c.h.b16 %v49
    %v245 = vunpack.c.l.b16 %v50
    %v246 = vunpack.c.h.b16 %v50
    %v247 = vunpack.c.l.b16 %v51
    %v248 = vunpack.c.h.b16 %v51
    %v249 = vunpack.c.l.b16 %v52
    %v250 = vunpack.c.h.b16 %v52
    %v251 = vunpack.c.l.b16 %v53
    %v252 = vunpack.c.h.b16 %v53
    %v253 = vunpack.c.l.b16 %v54
    %v254 = vunpack.c.h.b16 %v54
    %v255 = vunpack.c.l.b16 %v55
    %v256 = vunpack.c.h.b16 %v55
    %v257 = vunpack.c.l.b16 %v56
    %v258 = vunpack.c.h.b16 %v56
    %v259 = vunpack.c.l.b16 %v57
    %v260 = vunpack.c.h.b16 %v57
    %v261 = vunpack.c.l.b16 %v58
    %v262 = vunpack.c.h.b16 %v58
    %v263 = vunpack.c.l.b16 %v59
    %v264 = vunpack.c.h.b16 %v59
    %v265 = vunpack.c.l.b16 %v60
    %v266 = vunpack.c.h.b16 %v60
    %v267 = vunpack.c.l.b16 %v61
    %v268 = vunpack.c.h.b16 %v61
    %v269 = vunpack.c.l.b16 %v62
    %v270 = vunpack.c.h.b16 %v62
    %v271 = vunpack.c.l.b16 %v63
    %v272 = vunpack.c.h.b16 %v63
    %v273 = vunpack.c.l.b16 %v64
    %v274 = vunpack.c.h.b16 %v64
    %v275 = vunpack.c.l.b16 %v65
    %v276 = vunpack.c.h.b16 %v65
    %v277 = vunpack.c.l.b16 %v66
    %v278 = vunpack.c.h.b16 %v66
    %v279 = vunpack.c.l.b16 %v67
    %v280 = vunpack.c.h.b16 %v67
    %v281 = vunpack.c.l.b16 %v68
    %v282 = vunpack.c.h.b16 %v68
    %v283 = vunpack.c.l.b16 %v69
    %v284 = vunpack.c.h.b16 %v69
    %v285 = vunpack.c.l.b16 %v70
    %v286 = vunpack.c.h.b16 %v70
    %v287 = vunpack.c.l.b16 %v71
    %v288 = vunpack.c.h.b16 %v71
    %v289 = vunpack.c.l.b16 %v72
    %v290 = vunpack.c.h.b16 %v72
    %v291 = vunpack.c.l.b16 %v73
    %v292 = vunpack.c.h.b16 %v73
    %v293 = vunpack.c.l.b16 %v74
    %v294 = vunpack.c.h.b16 %v74
    %v295 = vunpack.c.l.b16 %v75
    %v296 = vunpack.c.h.b16 %v75
    %v297 = vunpack.c.l.b16 %v76
    %v298 = vunpack.c.h.b16 %v76
    %v299 = vunpack.c.l.b16 %v77
    %v300 = vunpack.c.h.b16 %v77
    %v301 = vunpack.c.l.b16 %v78
    %v302 = vunpack.c.h.b16 %v78
    %v303 = vunpack.c.l.b16 %v79
    %v304 = vunpack.c.h.b16 %v79
    %v305 = vunpack.c.l.b16 %v80
    %v306 = vunpack.c.h.b16 %v80
    %v307 = vunpack.c.l.b16 %v81
    %v308 = vunpack.c.h.b16 %v81
    %v309 = vunpack.c.l.b16 %v82
    %v310 = vunpack.c.h.b16 %v82
    %v311 = vunpack.c.l.b16 %v83
    %v312 = vunpack.c.h.b16 %v83
    %v313 = vunpack.c.l.b16 %v84
    %v314 = vunpack.c.h.b16 %v84
    %v315 = vunpack.c.l.b16 %v85
    %v316 = vunpack.c.h.b16 %v85
    %v317 = vunpack.c.l.b16 %v86
    %v318 = vunpack.c.h.b16 %v86
    %v319 = vunpack.c.l.b16 %v87
    %v320 = vunpack.c.h.b16 %v87
    %v321 = vunpack.c.l.b16 %v88
    %v322 = vunpack.c.h.b16 %v88
    %v323 = vunpack.c.l.b16 %v89
    %v324 = vunpack.c.h.b16 %v89
    %v325 = vunpack.c.l.b16 %v90
    %v326 = vunpack.c.h.b16 %v90
    %v327 = vunpack.c.l.b16 %v91
    %v328 = vunpack.c.h.b16 %v91
    %v329 = vunpack.c.l.b16 %v92
    %v330 = vunpack.c.h.b16 %v92
    %v331 = vunpack.c.l.b16 %v93
    %v332 = vunpack.c.h.b16 %v93
    %v333 = vunpack.c.l.b16 %v94
    %v334 = vunpack.c.h.b16 %v94
    %v335 = vpack.c.b16 %v215, %v207
    %v336 = vpack.c.b16 %v216, %v208
    %v337 = vpack.c.b16 %v217, %v209
    %v338 = vpack.c.b16 %v218, %v210
    %v339 = vpack.c.b16 %v219, %v211
    %v340 = vpack.c.b16 %v220, %v212
    %v341 = vpack.c.b16 %v221, %v213
    %v342 = vpack.c.b16 %v222, %v214
    %v343 = vpack.c.b16 %v231, %v223
    %v344 = vpack.c.b16 %v232, %v224
    %v345 = vpack.c.b16 %v233, %v225
    %v346 = vpack.c.b16 %v234, %v226
    %v347 = vpack.c.b16 %v235, %v227
    %v348 = vpack.c.b16 %v236, %v228
    %v349 = vpack.c.b16 %v237, %v229
    %v350 = vpack.c.b16 %v238, %v230
    %v351 = vpack.c.b16 %v247, %v239
    %v352 = vpack.c.b16 %v248, %v240
    %v353 = vpack.c.b16 %v249, %v241
    %v354 = vpack.c.b16 %v250, %v242
    %v355 = vpack.c.b16 %v251, %v243
    %v356 = vpack.c.b16 %v252, %v244
    %v357 = vpack.c.b16 %v253, %v245
    %v358 = vpack.c.b16 %v254, %v246
    %v359 = vpack.c.b16 %v263, %v255
    %v360 = vpack.c.b16 %v264, %v256
    %v361 = vpack.c.b16 %v265, %v257
    %v362 = vpack.c.b16 %v266, %v258
    %v363 = vpack.c.b16 %v267, %v259
    %v364 = vpack.c.b16 %v268, %v260
    %v365 = vpack.c.b16 %v269, %v261
    %v366 = vpack.c.b16 %v270, %v262
    %v367 = vpack.c.b16 %v279, %v271
    %v368 = vpack.c.b16 %v280, %v272
    %v369 = vpack.c.b16 %v281, %v273
    %v370 = vpack.c.b16 %v282, %v274
    %v371 = vpack.c.b16 %v283, %v275
    %v372 = vpack.c.b16 %v284, %v276
    %v373 = vpack.c.b16 %v285, %v277
    %v374 = vpack.c.b16 %v286, %v278
    %v375 = vpack.c.b16 %v295, %v287
    %v376 = vpack.c.b16 %v296, %v288
    %v377 = vpack.c.b16 %v297, %v289
    %v378 = vpack.c.b16 %v298, %v290
    %v379 = vpack.c.b16 %v299, %v291
    %v380 = vpack.c.b16 %v300, %v292
    %v381 = vpack.c.b16 %v301, %v293
    %v382 = vpack.c.b16 %v302, %v294
    %v383 = vpack.c.b16 %v311, %v303
    %v384 = vpack.c.b16 %v312, %v304
    %v385 = vpack.c.b16 %v313, %v305
    %v386 = vpack.c.b16 %v314, %v306
    %v387 = vpack.c.b16 %v315, %v307
    %v388 = vpack.c.b16 %v316, %v308
    %v389 = vpack.c.b16 %v317, %v309
    %v390 = vpack.c.b16 %v318, %v310
    %v391 = vpack.c.b16 %v327, %v319
    %v392 = vpack.c.b16 %v328, %v320
    %v393 = vpack.c.b16 %v329, %v321
    %v394 = vpack.c.b16 %v330, %v322
    %v395 = vpack.c.b16 %v331, %v323
    %v396 = vpack.c.b16 %v332, %v324
    %v397 = vpack.c.b16 %v333, %v325
    %v398 = vpack.c.b16 %v334, %v326
    %463 = vmatprep.subr.bf16.mxu0 %v336
    %464 = vmatpush1.bf16.msra.mxu0 %v335
    %465 = vmatprep.subr.bf16.mxu0 %v344
    %466 = vmatpush1.bf16.msra.mxu0 %v343
    %467 = vmatprep.subr.bf16.mxu0 %v352
    %468 = vmatpush1.bf16.msra.mxu0 %v351
    %469 = vmatprep.subr.bf16.mxu0 %v360
    %470 = vmatpush1.bf16.msra.mxu0 %v359
    %471 = vmatprep.subr.bf16.mxu0 %v368
    %472 = vmatpush1.bf16.msra.mxu0 %v367
    %473 = vmatprep.subr.bf16.mxu0 %v376
    %474 = vmatpush1.bf16.msra.mxu0 %v375
    %475 = vmatprep.subr.bf16.mxu0 %v384
    %476 = vmatpush1.bf16.msra.mxu0 %v383
    %477 = vmatprep.subr.bf16.mxu0 %v392
    %478 = vmatpush1.bf16.msra.mxu0 %v391
    %479 = vmatprep.subr.bf16.mxu0 0
    %480 = vmatpush1.bf16.msra.mxu0 0
    %481 = vmatprep.subr.bf16.mxu0 0
    %482 = vmatpush1.bf16.msra.mxu0 0
    %483 = vmatprep.subr.bf16.mxu0 0
    %484 = vmatpush1.bf16.msra.mxu0 0
    %485 = vmatprep.subr.bf16.mxu0 0
    %486 = vmatpush1.bf16.msra.mxu0 0
    %487 = vmatprep.subr.bf16.mxu0 0
    %488 = vmatpush1.bf16.msra.mxu0 0
    %489 = vmatprep.subr.bf16.mxu0 0
    %490 = vmatpush1.bf16.msra.mxu0 0
    %491 = vmatprep.subr.bf16.mxu0 0
    %492 = vmatpush1.bf16.msra.mxu0 0
    %493 = vmatprep.subr.bf16.mxu0 0
    %494 = vmatpush1.bf16.msra.mxu0 0
    %495 = vmatprep.mubr.bf16.mxu0 0
    %496 = vmatmul.mubr.bf16.gmra.mrb[0].mxu0 %v141
    %v497 = vpop.f32.mrb[0].mxu0
    %v498 = vadd.f32 %v100, %v497
    %v499 = vpop.f32.mrb[0].mxu0
    %v500 = vadd.f32 %v104, %v499
    %v501 = vpop.f32.mrb[0].mxu0
    %v502 = vadd.f32 %v100, %v501
    %v503 = vpop.f32.mrb[0].mxu0
    %v504 = vadd.f32 %v104, %v503
    %505 = vdwg.mxu0
    %506 = vmatprep.subr.bf16.mxu0 %v338
    %507 = vmatpush1.bf16.msra.mxu0 %v337
    %508 = vmatprep.subr.bf16.mxu0 %v346
    %509 = vmatpush1.bf16.msra.mxu0 %v345
    %510 = vmatprep.subr.bf16.mxu0 %v354
    %511 = vmatpush1.bf16.msra.mxu0 %v353
    %512 = vmatprep.subr.bf16.mxu0 %v362
    %513 = vmatpush1.bf16.msra.mxu0 %v361
    %514 = vmatprep.subr.bf16.mxu0 %v370
    %515 = vmatpush1.bf16.msra.mxu0 %v369
    %516 = vmatprep.subr.bf16.mxu0 %v378
    %517 = vmatpush1.bf16.msra.mxu0 %v377
    %518 = vmatprep.subr.bf16.mxu0 %v386
    %519 = vmatpush1.bf16.msra.mxu0 %v385
    %520 = vmatprep.subr.bf16.mxu0 %v394
    %521 = vmatpush1.bf16.msra.mxu0 %v393
    %522 = vmatprep.subr.bf16.mxu0 0
    %523 = vmatpush1.bf16.msra.mxu0 0
    %524 = vmatprep.subr.bf16.mxu0 0
    %525 = vmatpush1.bf16.msra.mxu0 0
    %526 = vmatprep.subr.bf16.mxu0 0
    %527 = vmatpush1.bf16.msra.mxu0 0
    %528 = vmatprep.subr.bf16.mxu0 0
    %529 = vmatpush1.bf16.msra.mxu0 0
    %530 = vmatprep.subr.bf16.mxu0 0
    %531 = vmatpush1.bf16.msra.mxu0 0
    %532 = vmatprep.subr.bf16.mxu0 0
    %533 = vmatpush1.bf16.msra.mxu0 0
    %534 = vmatprep.subr.bf16.mxu0 0
    %535 = vmatpush1.bf16.msra.mxu0 0
    %536 = vmatprep.subr.bf16.mxu0 0
    %537 = vmatpush1.bf16.msra.mxu0 0
    %538 = vmatprep.mubr.bf16.mxu0 0
    %539 = vmatmul.mubr.bf16.gmra.mrb[0].mxu0 %v141
    %v540 = vpop.f32.mrb[0].mxu0
    %v541 = vadd.f32 %v108, %v540
    %v542 = vpop.f32.mrb[0].mxu0
    %v543 = vadd.f32 %v112, %v542
    %v544 = vpop.f32.mrb[0].mxu0
    %v545 = vadd.f32 %v108, %v544
    %v546 = vpop.f32.mrb[0].mxu0
    %v547 = vadd.f32 %v112, %v546
    %548 = vdwg.mxu0
    %549 = vmatprep.subr.bf16.mxu0 %v340
    %550 = vmatpush1.bf16.msra.mxu0 %v339
    %551 = vmatprep.subr.bf16.mxu0 %v348
    %552 = vmatpush1.bf16.msra.mxu0 %v347
    %553 = vmatprep.subr.bf16.mxu0 %v356
    %554 = vmatpush1.bf16.msra.mxu0 %v355
    %555 = vmatprep.subr.bf16.mxu0 %v364
    %556 = vmatpush1.bf16.msra.mxu0 %v363
    %557 = vmatprep.subr.bf16.mxu0 %v372
    %558 = vmatpush1.bf16.msra.mxu0 %v371
    %559 = vmatprep.subr.bf16.mxu0 %v380
    %560 = vmatpush1.bf16.msra.mxu0 %v379
    %561 = vmatprep.subr.bf16.mxu0 %v388
    %562 = vmatpush1.bf16.msra.mxu0 %v387
    %563 = vmatprep.subr.bf16.mxu0 %v396
    %564 = vmatpush1.bf16.msra.mxu0 %v395
    %565 = vmatprep.subr.bf16.mxu0 0
    %566 = vmatpush1.bf16.msra.mxu0 0
    %567 = vmatprep.subr.bf16.mxu0 0
    %568 = vmatpush1.bf16.msra.mxu0 0
    %569 = vmatprep.subr.bf16.mxu0 0
    %570 = vmatpush1.bf16.msra.mxu0 0
    %571 = vmatprep.subr.bf16.mxu0 0
    %572 = vmatpush1.bf16.msra.mxu0 0
    %573 = vmatprep.subr.bf16.mxu0 0
    %574 = vmatpush1.bf16.msra.mxu0 0
    %575 = vmatprep.subr.bf16.mxu0 0
    %576 = vmatpush1.bf16.msra.mxu0 0
    %577 = vmatprep.subr.bf16.mxu0 0
    %578 = vmatpush1.bf16.msra.mxu0 0
    %579 = vmatprep.subr.bf16.mxu0 0
    %580 = vmatpush1.bf16.msra.mxu0 0
    %581 = vmatprep.mubr.bf16.mxu0 0
    %582 = vmatmul.mubr.bf16.gmra.mrb[0].mxu0 %v141
    %v583 = vpop.f32.mrb[0].mxu0
    %v584 = vadd.f32 %v116, %v583
    %v585 = vpop.f32.mrb[0].mxu0
    %v586 = vadd.f32 %v120, %v585
    %v587 = vpop.f32.mrb[0].mxu0
    %v588 = vadd.f32 %v116, %v587
    %v589 = vpop.f32.mrb[0].mxu0
    %v590 = vadd.f32 %v120, %v589
    %591 = vdwg.mxu0
    %592 = vmatprep.subr.bf16.mxu0 %v342
    %593 = vmatpush1.bf16.msra.mxu0 %v341
    %594 = vmatprep.subr.bf16.mxu0 %v350
    %595 = vmatpush1.bf16.msra.mxu0 %v349
    %596 = vmatprep.subr.bf16.mxu0 %v358
    %597 = vmatpush1.bf16.msra.mxu0 %v357
    %598 = vmatprep.subr.bf16.mxu0 %v366
    %599 = vmatpush1.bf16.msra.mxu0 %v365
    %600 = vmatprep.subr.bf16.mxu0 %v374
    %601 = vmatpush1.bf16.msra.mxu0 %v373
    %602 = vmatprep.subr.bf16.mxu0 %v382
    %603 = vmatpush1.bf16.msra.mxu0 %v381
    %604 = vmatprep.subr.bf16.mxu0 %v390
    %605 = vmatpush1.bf16.msra.mxu0 %v389
    %606 = vmatprep.subr.bf16.mxu0 %v398
    %607 = vmatpush1.bf16.msra.mxu0 %v397
    %608 = vmatprep.subr.bf16.mxu0 0
    %609 = vmatpush1.bf16.msra.mxu0 0
    %610 = vmatprep.subr.bf16.mxu0 0
    %611 = vmatpush1.bf16.msra.mxu0 0
    %612 = vmatprep.subr.bf16.mxu0 0
    %613 = vmatpush1.bf16.msra.mxu0 0
    %614 = vmatprep.subr.bf16.mxu0 0
    %615 = vmatpush1.bf16.msra.mxu0 0
    %616 = vmatprep.subr.bf16.mxu0 0
    %617 = vmatpush1.bf16.msra.mxu0 0
    %618 = vmatprep.subr.bf16.mxu0 0
    %619 = vmatpush1.bf16.msra.mxu0 0
    %620 = vmatprep.subr.bf16.mxu0 0
    %621 = vmatpush1.bf16.msra.mxu0 0
    %622 = vmatprep.subr.bf16.mxu0 0
    %623 = vmatpush1.bf16.msra.mxu0 0
    %624 = vmatprep.mubr.bf16.mxu0 0
    %625 = vmatmul.mubr.bf16.gmra.mrb[0].mxu0 %v141
    %v626 = vpop.f32.mrb[0].mxu0
    %v627 = vadd.f32 %v124, %v626
    %v628 = vpop.f32.mrb[0].mxu0
    %v629 = vadd.f32 %v128, %v628
    %v630 = vpop.f32.mrb[0].mxu0
    %v631 = vadd.f32 %v124, %v630
    %v632 = vpop.f32.mrb[0].mxu0
    %v633 = vadd.f32 %v128, %v632
    %634 = vdwg.mxu0
    %635 = vst [vmem:[%s3] sm:$0xff] %v498
    %636 = vst [vmem:[%s3 + $0x8] sm:$0xff] %v500
    %637 = vst [vmem:[%s3 + $0x10] sm:$0xff] %v541
    %638 = vst [vmem:[%s3 + $0x18] sm:$0xff] %v543
    %639 = vst [vmem:[%s3 + $0x20] sm:$0xff] %v584
    %640 = vst [vmem:[%s3 + $0x28] sm:$0xff] %v586
    %641 = vst [vmem:[%s3 + $0x30] sm:$0xff] %v627
    %642 = vst [vmem:[%s3 + $0x38] sm:$0xff] %v629
    %643 = vst [vmem:[%s3 + $0x40] sm:$0xff] %v502
    %644 = vst [vmem:[%s3 + $0x48] sm:$0xff] %v504
    %645 = vst [vmem:[%s3 + $0x50] sm:$0xff] %v545
    %646 = vst [vmem:[%s3 + $0x58] sm:$0xff] %v547
    %647 = vst [vmem:[%s3 + $0x60] sm:$0xff] %v588
    %648 = vst [vmem:[%s3 + $0x68] sm:$0xff] %v590
    %649 = vst [vmem:[%s3 + $0x70] sm:$0xff] %v631
    %650 = vst [vmem:[%s3 + $0x78] sm:$0xff] %v633
    // Predicated region
    $region18: #{crnn_forward.7} parent=1 // pred_check
      _
    $region19: #{crnn_forward.7} parent=1 // pred_check_branch
      %652 = sbr.rel (0) target = $region21
    $region20: #{crnn_forward.7} parent=1 // pred_region
      _
    $region21: #{crnn_forward.7} parent=1 // pred_fallthru
      _
    // Predicated region
    $region22: #{crnn_forward.7} parent=1 // pred_check
      _
    $region23: #{crnn_forward.7} parent=1 // pred_check_branch
      %654 = sbr.rel (0) target = $region25
    $region24: #{crnn_forward.7} parent=1 // pred_region
      _
    $region25: #{crnn_forward.7} parent=1 // pred_fallthru
      _
    %655 = vsyncpa [#allocation3], 1

// kernel: crnn_forward.8
$region0: #{crnn_forward.8}
  #allocation0 [shape = 'u32[]', space=smem, size = 0x4, offset = 0x4, fixed_abs, tag = 'smem constant byte address 0x4 - core index']
  #allocation1 [shape = 'u32[144,128]{1,0:T(1,128)}', space=vmem, size = 0x12000, scoped, tag = 'internal scratch']
  #allocation2 [shape = 'f32[2,128]{1,0:T(2,128)}', space=vmem, size = 0x400, scoped, tag = 'scratch operand']
  #allocation3 [shape = 'f32[2,128]{1,0:T(2,128)}', space=vmem, size = 0x400, scoped, tag = 'scratch operand']
  #allocation4 [shape = 'f32[2,128]{1,0:T(2,128)}', space=vmem, size = 0x400, scoped, tag = 'scratch operand']
  #allocation5 [shape = 'f32[2,128]{1,0:T(2,128)}', space=vmem, size = 0x400, scoped, tag = 'scratch operand']
  %s0 = inlined_call_operand.vmem [shape: f32[8,2,1024], index: 0, kind: input, shape index: {}, may-alias: {0,1}]
  %s1 = inlined_call_operand.vmem [shape: f32[8,2,1024], index: 1, kind: input, shape index: {}, may-alias: {0,1}]
  %s2 = inlined_call_operand.hbm [shape: bf16[128,512], index: 2, kind: input, shape index: {}]
  %s3 = inlined_call_operand.hbm [shape: bf16[128,512], index: 3, kind: input, shape index: {}]
  %s4 = inlined_call_operand.vmem [shape: bf16[8,2,128], index: 4, kind: output, shape index: {0}]
  %s5 = inlined_call_operand.vmem [shape: bf16[8,2,128], index: 5, kind: output, shape index: {1}]
  %6 = xla_tuple %s4, %s5
  %s7 = sld [smem:[#allocation0]]
  $region129: #{crnn_forward.8} parent=0
    _
  %s9 = ssub.s32 1, %s7
  %s10 = scalar_select 0, %s9, %s7
  $region1: #{crnn_forward.8} parent=0
    #allocation6 [shape = 'u8[32768]{0}', space=vmem, size = 0x8000, scoped, tag = 'input window, operand 0, single buffered']
    #allocation7 [shape = 'u8[32768]{0}', space=vmem, size = 0x8000, scoped, tag = 'input window, operand 1, single buffered']
    #allocation8 [shape = 'u8[131072]{0}', space=vmem, size = 0x20000, scoped, tag = 'input window, operand 2, single buffered']
    #allocation9 [shape = 's32[1]{0}', space=sflag, size = 0x4, scoped, tag = 'scoped memory for crnn_forward.8']
    #allocation10 [shape = 'u8[131072]{0}', space=vmem, size = 0x20000, scoped, tag = 'input window, operand 3, single buffered']
    #allocation11 [shape = 's32[1]{0}', space=sflag, size = 0x4, scoped, tag = 'scoped memory for crnn_forward.8']
    %11 = vsyncpa [#allocation9], 0
    %12 = vsyncpa [#allocation11], 0
    // Predicated region
    $region2: #{crnn_forward.8} parent=1 // pred_check
      _
    $region3: #{crnn_forward.8} parent=1 // pred_check_branch
      %14 = sbr.rel (0) target = $region5
    $region4: #{crnn_forward.8} parent=1 // pred_region
      // Predicated region
      $region6: #{crnn_forward.8} parent=4 // pred_check
        _
      $region7: #{crnn_forward.8} parent=4 // pred_check_branch
        %16 = sbr.rel (0) target = $region9
      $region8: #{crnn_forward.8} parent=4 // pred_region
        // Predicated region
        $region10: #{crnn_forward.8} parent=8 // pred_check
          _
        $region11: #{crnn_forward.8} parent=8 // pred_check_branch
          %18 = sbr.rel (0) target = $region13
        $region12: #{crnn_forward.8} parent=8 // pred_region
          // Predicated region
          $region25: #{crnn_forward.8} parent=12 // pred_check
            _
          $region26: #{crnn_forward.8} parent=12 // pred_check_branch
            %47 = sbr.rel (0) target = $region28
          $region27: #{crnn_forward.8} parent=12 // pred_region
            loop: start=0, step=1, limit=1
            $region29: #{crnn_forward.8} parent=27 // loop_pre_header
              _
            $region30: #{crnn_forward.8} parent=27 // loop_header
              %s49 = sphi 0, %s53
              %p50 = scmp.ge.s32.totalorder %s49, 1
              %s54 = sphi %s0, %s0
              %s55 = sphi [#allocation6], [#allocation6]
            $region31: #{crnn_forward.8} parent=27 // loop_header_branch
              %52 = sbr.rel (%p50) target = $region35
            $region32: #{crnn_forward.8} parent=27 // loop_body
              %v56 = vld [vmem:[%s54] sm:$0xff]
              %57 = vst [vmem:[%s55] sm:$0xff] %v56
              %v58 = vld [vmem:[%s54 + $0x10] sm:$0xff]
              %59 = vst [vmem:[%s55 + $0x8] sm:$0xff] %v58
              %v60 = vld [vmem:[%s54 + $0x20] sm:$0xff]
              %61 = vst [vmem:[%s55 + $0x10] sm:$0xff] %v60
              %v62 = vld [vmem:[%s54 + $0x30] sm:$0xff]
              %63 = vst [vmem:[%s55 + $0x18] sm:$0xff] %v62
              %v64 = vld [vmem:[%s54 + $0x40] sm:$0xff]
              %65 = vst [vmem:[%s55 + $0x20] sm:$0xff] %v64
              %v66 = vld [vmem:[%s54 + $0x50] sm:$0xff]
              %67 = vst [vmem:[%s55 + $0x28] sm:$0xff] %v66
              %v68 = vld [vmem:[%s54 + $0x60] sm:$0xff]
              %69 = vst [vmem:[%s55 + $0x30] sm:$0xff] %v68
              %v70 = vld [vmem:[%s54 + $0x70] sm:$0xff]
              %71 = vst [vmem:[%s55 + $0x38] sm:$0xff] %v70
            $region33: #{crnn_forward.8} parent=27 // loop_footer
              %s53 = sadd.s32 1, %s49
            $region34: #{crnn_forward.8} parent=27 // loop_footer_branch
              %48 = sbr.rel target = $region30
            $region35: #{crnn_forward.8} parent=27 // loop_exit
              _
          $region28: #{crnn_forward.8} parent=12 // pred_fallthru
            _
          // Predicated region
          $region36: #{crnn_forward.8} parent=12 // pred_check
            _
          $region37: #{crnn_forward.8} parent=12 // pred_check_branch
            %73 = sbr.rel target = $region39
          $region38: #{crnn_forward.8} parent=12 // pred_region
            _
          $region39: #{crnn_forward.8} parent=12 // pred_fallthru
            _
        $region13: #{crnn_forward.8} parent=8 // pred_fallthru
          _
        // Predicated region
        $region14: #{crnn_forward.8} parent=8 // pred_check
          _
        $region15: #{crnn_forward.8} parent=8 // pred_check_branch
          %20 = sbr.rel target = $region17
        $region16: #{crnn_forward.8} parent=8 // pred_region
          loop: start=0, step=1, limit=1
          $region18: #{crnn_forward.8} parent=16 // loop_pre_header
            _
          $region19: #{crnn_forward.8} parent=16 // loop_header
            %s23 = sphi 0, %s27
            %p24 = scmp.ge.s32.totalorder %s23, 1
            %s28 = sphi %s0, %s0
            %s29 = sphi [#allocation6], [#allocation6]
          $region20: #{crnn_forward.8} parent=16 // loop_header_branch
            %26 = sbr.rel (%p24) target = $region24
          $region21: #{crnn_forward.8} parent=16 // loop_body
            %v30 = vld [vmem:[%s28] sm:$0xff]
            %31 = vst [vmem:[%s29] sm:$0xff] %v30
            %v32 = vld [vmem:[%s28 + $0x10] sm:$0xff]
            %33 = vst [vmem:[%s29 + $0x8] sm:$0xff] %v32
            %v34 = vld [vmem:[%s28 + $0x20] sm:$0xff]
            %35 = vst [vmem:[%s29 + $0x10] sm:$0xff] %v34
            %v36 = vld [vmem:[%s28 + $0x30] sm:$0xff]
            %37 = vst [vmem:[%s29 + $0x18] sm:$0xff] %v36
            %v38 = vld [vmem:[%s28 + $0x40] sm:$0xff]
            %39 = vst [vmem:[%s29 + $0x20] sm:$0xff] %v38
            %v40 = vld [vmem:[%s28 + $0x50] sm:$0xff]
            %41 = vst [vmem:[%s29 + $0x28] sm:$0xff] %v40
            %v42 = vld [vmem:[%s28 + $0x60] sm:$0xff]
            %43 = vst [vmem:[%s29 + $0x30] sm:$0xff] %v42
            %v44 = vld [vmem:[%s28 + $0x70] sm:$0xff]
            %45 = vst [vmem:[%s29 + $0x38] sm:$0xff] %v44
          $region22: #{crnn_forward.8} parent=16 // loop_footer
            %s27 = sadd.s32 1, %s23
          $region23: #{crnn_forward.8} parent=16 // loop_footer_branch
            %22 = sbr.rel target = $region19
          $region24: #{crnn_forward.8} parent=16 // loop_exit
            _
        $region17: #{crnn_forward.8} parent=8 // pred_fallthru
          _
      $region9: #{crnn_forward.8} parent=4 // pred_fallthru
        _
      %74 = vnop
    $region5: #{crnn_forward.8} parent=1 // pred_fallthru
      _
    // Predicated region
    $region40: #{crnn_forward.8} parent=1 // pred_check
      _
    $region41: #{crnn_forward.8} parent=1 // pred_check_branch
      %76 = sbr.rel (0) target = $region43
    $region42: #{crnn_forward.8} parent=1 // pred_region
      %s77 = ssub.s32 0, 0
      %s78 = smul.u32 8, %s77
      %s79 = smul.addr %s78, 8
      %s80 = sadd.s32 4, %s79
      %s81 = smul.addr %s80, 2
      %s82 = scalar_lea.vmem %s1, %s81
      // Predicated region
      $region44: #{crnn_forward.8} parent=42 // pred_check
        _
      $region45: #{crnn_forward.8} parent=42 // pred_check_branch
        %84 = sbr.rel (0) target = $region47
      $region46: #{crnn_forward.8} parent=42 // pred_region
        // Predicated region
        $region48: #{crnn_forward.8} parent=46 // pred_check
          _
        $region49: #{crnn_forward.8} parent=46 // pred_check_branch
          %86 = sbr.rel (0) target = $region51
        $region50: #{crnn_forward.8} parent=46 // pred_region
          // Predicated region
          $region63: #{crnn_forward.8} parent=50 // pred_check
            _
          $region64: #{crnn_forward.8} parent=50 // pred_check_branch
            %115 = sbr.rel (0) target = $region66
          $region65: #{crnn_forward.8} parent=50 // pred_region
            loop: start=0, step=1, limit=1
            $region67: #{crnn_forward.8} parent=65 // loop_pre_header
              _
            $region68: #{crnn_forward.8} parent=65 // loop_header
              %s117 = sphi 0, %s121
              %p118 = scmp.ge.s32.totalorder %s117, 1
              %s122 = sphi %s82, %s82
              %s123 = sphi [#allocation7], [#allocation7]
            $region69: #{crnn_forward.8} parent=65 // loop_header_branch
              %120 = sbr.rel (%p118) target = $region73
            $region70: #{crnn_forward.8} parent=65 // loop_body
              %v124 = vld [vmem:[%s122] sm:$0xff]
              %125 = vst [vmem:[%s123] sm:$0xff] %v124
              %v126 = vld [vmem:[%s122 + $0x10] sm:$0xff]
              %127 = vst [vmem:[%s123 + $0x8] sm:$0xff] %v126
              %v128 = vld [vmem:[%s122 + $0x20] sm:$0xff]
              %129 = vst [vmem:[%s123 + $0x10] sm:$0xff] %v128
              %v130 = vld [vmem:[%s122 + $0x30] sm:$0xff]
              %131 = vst [vmem:[%s123 + $0x18] sm:$0xff] %v130
              %v132 = vld [vmem:[%s122 + $0x40] sm:$0xff]
              %133 = vst [vmem:[%s123 + $0x20] sm:$0xff] %v132
              %v134 = vld [vmem:[%s122 + $0x50] sm:$0xff]
              %135 = vst [vmem:[%s123 + $0x28] sm:$0xff] %v134
              %v136 = vld [vmem:[%s122 + $0x60] sm:$0xff]
              %137 = vst [vmem:[%s123 + $0x30] sm:$0xff] %v136
              %v138 = vld [vmem:[%s122 + $0x70] sm:$0xff]
              %139 = vst [vmem:[%s123 + $0x38] sm:$0xff] %v138
            $region71: #{crnn_forward.8} parent=65 // loop_footer
              %s121 = sadd.s32 1, %s117
            $region72: #{crnn_forward.8} parent=65 // loop_footer_branch
              %116 = sbr.rel target = $region68
            $region73: #{crnn_forward.8} parent=65 // loop_exit
              _
          $region66: #{crnn_forward.8} parent=50 // pred_fallthru
            _
          // Predicated region
          $region74: #{crnn_forward.8} parent=50 // pred_check
            _
          $region75: #{crnn_forward.8} parent=50 // pred_check_branch
            %141 = sbr.rel target = $region77
          $region76: #{crnn_forward.8} parent=50 // pred_region
            _
          $region77: #{crnn_forward.8} parent=50 // pred_fallthru
            _
        $region51: #{crnn_forward.8} parent=46 // pred_fallthru
          _
        // Predicated region
        $region52: #{crnn_forward.8} parent=46 // pred_check
          _
        $region53: #{crnn_forward.8} parent=46 // pred_check_branch
          %88 = sbr.rel target = $region55
        $region54: #{crnn_forward.8} parent=46 // pred_region
          loop: start=0, step=1, limit=1
          $region56: #{crnn_forward.8} parent=54 // loop_pre_header
            _
          $region57: #{crnn_forward.8} parent=54 // loop_header
            %s91 = sphi 0, %s95
            %p92 = scmp.ge.s32.totalorder %s91, 1
            %s96 = sphi %s82, %s82
            %s97 = sphi [#allocation7], [#allocation7]
          $region58: #{crnn_forward.8} parent=54 // loop_header_branch
            %94 = sbr.rel (%p92) target = $region62
          $region59: #{crnn_forward.8} parent=54 // loop_body
            %v98 = vld [vmem:[%s96] sm:$0xff]
            %99 = vst [vmem:[%s97] sm:$0xff] %v98
            %v100 = vld [vmem:[%s96 + $0x10] sm:$0xff]
            %101 = vst [vmem:[%s97 + $0x8] sm:$0xff] %v100
            %v102 = vld [vmem:[%s96 + $0x20] sm:$0xff]
            %103 = vst [vmem:[%s97 + $0x10] sm:$0xff] %v102
            %v104 = vld [vmem:[%s96 + $0x30] sm:$0xff]
            %105 = vst [vmem:[%s97 + $0x18] sm:$0xff] %v104
            %v106 = vld [vmem:[%s96 + $0x40] sm:$0xff]
            %107 = vst [vmem:[%s97 + $0x20] sm:$0xff] %v106
            %v108 = vld [vmem:[%s96 + $0x50] sm:$0xff]
            %109 = vst [vmem:[%s97 + $0x28] sm:$0xff] %v108
            %v110 = vld [vmem:[%s96 + $0x60] sm:$0xff]
            %111 = vst [vmem:[%s97 + $0x30] sm:$0xff] %v110
            %v112 = vld [vmem:[%s96 + $0x70] sm:$0xff]
            %113 = vst [vmem:[%s97 + $0x38] sm:$0xff] %v112
          $region60: #{crnn_forward.8} parent=54 // loop_footer
            %s95 = sadd.s32 1, %s91
          $region61: #{crnn_forward.8} parent=54 // loop_footer_branch
            %90 = sbr.rel target = $region57
          $region62: #{crnn_forward.8} parent=54 // loop_exit
            _
        $region55: #{crnn_forward.8} parent=46 // pred_fallthru
          _
      $region47: #{crnn_forward.8} parent=42 // pred_fallthru
        _
      %142 = vnop
    $region43: #{crnn_forward.8} parent=1 // pred_fallthru
      _
    // Predicated region
    $region78: #{crnn_forward.8} parent=1 // pred_check
      _
    $region79: #{crnn_forward.8} parent=1 // pred_check_branch
      %144 = sbr.rel (0) target = $region81
    $region80: #{crnn_forward.8} parent=1 // pred_region
      %s146 = ssub.s32 4096, 4096
      %147 = vsyncadd [#allocation9], %s146
      %s148 = sshll.u32 [#allocation8], 4
      %s149 = int_to_ptr.vmem [resolvable:$true] %s148
      %154 = dma.hbm_to_vmem [thread:$0]  %s2, 4096, %s149, [#allocation9], 256, 256, 16
    $region81: #{crnn_forward.8} parent=1 // pred_fallthru
      _
    // Predicated region
    $region82: #{crnn_forward.8} parent=1 // pred_check
      _
    $region83: #{crnn_forward.8} parent=1 // pred_check_branch
      %156 = sbr.rel (0) target = $region85
    $region84: #{crnn_forward.8} parent=1 // pred_region
      %s158 = ssub.s32 4096, 4096
      %159 = vsyncadd [#allocation11], %s158
      %s160 = sshll.u32 [#allocation10], 4
      %s161 = int_to_ptr.vmem [resolvable:$true] %s160
      %166 = dma.hbm_to_vmem [thread:$0]  %s3, 4096, %s161, [#allocation11], 256, 256, 16
    $region85: #{crnn_forward.8} parent=1 // pred_fallthru
      _
    // Predicated region
    $region86: #{crnn_forward.8} parent=1 // pred_check
      _
    $region87: #{crnn_forward.8} parent=1 // pred_check_branch
      %168 = sbr.rel (0) target = $region89
    $region88: #{crnn_forward.8} parent=1 // pred_region
      _
    $region89: #{crnn_forward.8} parent=1 // pred_fallthru
      _
    // Predicated region
    $region90: #{crnn_forward.8} parent=1 // pred_check
      _
    $region91: #{crnn_forward.8} parent=1 // pred_check_branch
      %170 = sbr.rel (0) target = $region93
    $region92: #{crnn_forward.8} parent=1 // pred_region
      _
    $region93: #{crnn_forward.8} parent=1 // pred_fallthru
      _
    // Predicated region
    $region94: #{crnn_forward.8} parent=1 // pred_check
      _
    $region95: #{crnn_forward.8} parent=1 // pred_check_branch
      %172 = sbr.rel (0) target = $region97
    $region96: #{crnn_forward.8} parent=1 // pred_region
      %173 = dma.done [#allocation9], 4096
    $region97: #{crnn_forward.8} parent=1 // pred_fallthru
      _
    // Predicated region
    $region98: #{crnn_forward.8} parent=1 // pred_check
      _
    $region99: #{crnn_forward.8} parent=1 // pred_check_branch
      %175 = sbr.rel (0) target = $region101
    $region100: #{crnn_forward.8} parent=1 // pred_region
      %176 = dma.done [#allocation11], 4096
    $region101: #{crnn_forward.8} parent=1 // pred_fallthru
      _
    %s177 = ssub.s32 0, 0
    %s178 = smul.u32 8, %s177
    %p179 = scmp.lt.s32.totalorder %s178, 7
    %s180 = scalar_select %p179, %s178, 7
    %s181 = scalar_lea.vmem %s5, %s180
    %s182 = ssub.s32 0, 0
    %s183 = smul.u32 8, %s182
    %s184 = ssub.s32 0, 0
    %s185 = smul.u32 8, %s184
    %p186 = scmp.lt.s32.totalorder %s185, 7
    %s187 = scalar_select %p186, %s185, 7
    %s188 = scalar_lea.vmem %s5, %s187
    %s189 = ssub.s32 0, 0
    %s190 = smul.u32 8, %s189
    %p192 = scmp.eq.s32.totalorder 0, 0
    // Predicated region
    $region102: #{crnn_forward.8} parent=1 // pred_check
      %p193 = pneg %p192
    $region103: #{crnn_forward.8} parent=1 // pred_check_branch
      %195 = sbr.rel (%p193) target = $region105
    $region104: #{crnn_forward.8} parent=1 // pred_region
      %196 = vst [vmem:[#allocation2] sm:$0x3] 0.0
      %197 = vst [vmem:[#allocation3] sm:$0x3] 0.0
      %198 = vst [vmem:[#allocation4] sm:$0x3] 0.0
      %199 = vst [vmem:[#allocation5] sm:$0x3] 0.0
    $region105: #{crnn_forward.8} parent=1 // pred_fallthru
      _
    loop: start=0, step=1, limit=8
    $region106: #{crnn_forward.8} parent=1 // loop_pre_header
      _
    $region107: #{crnn_forward.8} parent=1 // loop_header
      %s201 = sphi 0, %s205
      %p202 = scmp.ge.s32.totalorder %s201, 8
    $region108: #{crnn_forward.8} parent=1 // loop_header_branch
      %204 = sbr.rel (%p202) target = $region112
    $region109: #{crnn_forward.8} parent=1 // loop_body
      %s206 = ssub.s32 7, %s201
      %s207 = smul.u32 %s201, 4
      %s208 = smul.addr %s207, 2
      %s209 = scalar_lea.vmem [#allocation6], %s208
      %v210 = vld [vmem:[%s209] sm:$0xff]
      %v211 = vld [vmem:[#allocation2] sm:$0x3]
      %v212 = vpack.c.bf16 %v211, %v211
      %v213 = vld [vmem:[#allocation8] sm:$0xff]
      %v214 = vld [vmem:[#allocation8 + $0x8] sm:$0xff]
      %v215 = vld [vmem:[#allocation8 + $0x10] sm:$0xff]
      %v216 = vld [vmem:[#allocation8 + $0x18] sm:$0xff]
      %v217 = vld [vmem:[#allocation8 + $0x20] sm:$0xff]
      %v218 = vld [vmem:[#allocation8 + $0x28] sm:$0xff]
      %v219 = vld [vmem:[#allocation8 + $0x30] sm:$0xff]
      %v220 = vld [vmem:[#allocation8 + $0x38] sm:$0xff]
      %v221 = vld [vmem:[#allocation8 + $0x40] sm:$0xff]
      %v222 = vld [vmem:[#allocation8 + $0x48] sm:$0xff]
      %v223 = vld [vmem:[#allocation8 + $0x50] sm:$0xff]
      %v224 = vld [vmem:[#allocation8 + $0x58] sm:$0xff]
      %v225 = vld [vmem:[#allocation8 + $0x60] sm:$0xff]
      %v226 = vld [vmem:[#allocation8 + $0x68] sm:$0xff]
      %v227 = vld [vmem:[#allocation8 + $0x70] sm:$0xff]
      %v228 = vld [vmem:[#allocation8 + $0x78] sm:$0xff]
      %v229 = vld [vmem:[#allocation8 + $0x80] sm:$0xff]
      %v230 = vld [vmem:[#allocation8 + $0x88] sm:$0xff]
      %v231 = vld [vmem:[#allocation8 + $0x90] sm:$0xff]
      %v232 = vld [vmem:[#allocation8 + $0x98] sm:$0xff]
      %v233 = vld [vmem:[#allocation8 + $0xa0] sm:$0xff]
      %v234 = vld [vmem:[#allocation8 + $0xa8] sm:$0xff]
      %v235 = vld [vmem:[#allocation8 + $0xb0] sm:$0xff]
      %v236 = vld [vmem:[#allocation8 + $0xb8] sm:$0xff]
      %v237 = vld [vmem:[#allocation8 + $0xc0] sm:$0xff]
      %v238 = vld [vmem:[#allocation8 + $0xc8] sm:$0xff]
      %v239 = vld [vmem:[#allocation8 + $0xd0] sm:$0xff]
      %v240 = vld [vmem:[#allocation8 + $0xd8] sm:$0xff]
      %v241 = vld [vmem:[#allocation8 + $0xe0] sm:$0xff]
      %v242 = vld [vmem:[#allocation8 + $0xe8] sm:$0xff]
      %v243 = vld [vmem:[#allocation8 + $0xf0] sm:$0xff]
      %v244 = vld [vmem:[#allocation8 + $0xf8] sm:$0xff]
      %v277 = vunpack.c.l.b16 %v213
      %v278 = vunpack.c.h.b16 %v213
      %v279 = vunpack.c.l.b16 %v214
      %v280 = vunpack.c.h.b16 %v214
      %v281 = vunpack.c.l.b16 %v215
      %v282 = vunpack.c.h.b16 %v215
      %v283 = vunpack.c.l.b16 %v216
      %v284 = vunpack.c.h.b16 %v216
      %v285 = vunpack.c.l.b16 %v217
      %v286 = vunpack.c.h.b16 %v217
      %v287 = vunpack.c.l.b16 %v218
      %v288 = vunpack.c.h.b16 %v218
      %v289 = vunpack.c.l.b16 %v219
      %v290 = vunpack.c.h.b16 %v219
      %v291 = vunpack.c.l.b16 %v220
      %v292 = vunpack.c.h.b16 %v220
      %v293 = vunpack.c.l.b16 %v221
      %v294 = vunpack.c.h.b16 %v221
      %v295 = vunpack.c.l.b16 %v222
      %v296 = vunpack.c.h.b16 %v222
      %v297 = vunpack.c.l.b16 %v223
      %v298 = vunpack.c.h.b16 %v223
      %v299 = vunpack.c.l.b16 %v224
      %v300 = vunpack.c.h.b16 %v224
      %v301 = vunpack.c.l.b16 %v225
      %v302 = vunpack.c.h.b16 %v225
      %v303 = vunpack.c.l.b16 %v226
      %v304 = vunpack.c.h.b16 %v226
      %v305 = vunpack.c.l.b16 %v227
      %v306 = vunpack.c.h.b16 %v227
      %v307 = vunpack.c.l.b16 %v228
      %v308 = vunpack.c.h.b16 %v228
      %v309 = vunpack.c.l.b16 %v229
      %v310 = vunpack.c.h.b16 %v229
      %v311 = vunpack.c.l.b16 %v230
      %v312 = vunpack.c.h.b16 %v230
      %v313 = vunpack.c.l.b16 %v231
      %v314 = vunpack.c.h.b16 %v231
      %v315 = vunpack.c.l.b16 %v232
      %v316 = vunpack.c.h.b16 %v232
      %v317 = vunpack.c.l.b16 %v233
      %v318 = vunpack.c.h.b16 %v233
      %v319 = vunpack.c.l.b16 %v234
      %v320 = vunpack.c.h.b16 %v234
      %v321 = vunpack.c.l.b16 %v235
      %v322 = vunpack.c.h.b16 %v235
      %v323 = vunpack.c.l.b16 %v236
      %v324 = vunpack.c.h.b16 %v236
      %v325 = vunpack.c.l.b16 %v237
      %v326 = vunpack.c.h.b16 %v237
      %v327 = vunpack.c.l.b16 %v238
      %v328 = vunpack.c.h.b16 %v238
      %v329 = vunpack.c.l.b16 %v239
      %v330 = vunpack.c.h.b16 %v239
      %v331 = vunpack.c.l.b16 %v240
      %v332 = vunpack.c.h.b16 %v240
      %v333 = vunpack.c.l.b16 %v241
      %v334 = vunpack.c.h.b16 %v241
      %v335 = vunpack.c.l.b16 %v242
      %v336 = vunpack.c.h.b16 %v242
      %v337 = vunpack.c.l.b16 %v243
      %v338 = vunpack.c.h.b16 %v243
      %v339 = vunpack.c.l.b16 %v244
      %v340 = vunpack.c.h.b16 %v244
      %v341 = vpack.c.b16 %v281, %v277
      %v342 = vpack.c.b16 %v282, %v278
      %v343 = vpack.c.b16 %v283, %v279
      %v344 = vpack.c.b16 %v284, %v280
      %v345 = vpack.c.b16 %v289, %v285
      %v346 = vpack.c.b16 %v290, %v286
      %v347 = vpack.c.b16 %v291, %v287
      %v348 = vpack.c.b16 %v292, %v288
      %v349 = vpack.c.b16 %v297, %v293
      %v350 = vpack.c.b16 %v298, %v294
      %v351 = vpack.c.b16 %v299, %v295
      %v352 = vpack.c.b16 %v300, %v296
      %v353 = vpack.c.b16 %v305, %v301
      %v354 = vpack.c.b16 %v306, %v302
      %v355 = vpack.c.b16 %v307, %v303
      %v356 = vpack.c.b16 %v308, %v304
      %v357 = vpack.c.b16 %v313, %v309
      %v358 = vpack.c.b16 %v314, %v310
      %v359 = vpack.c.b16 %v315, %v311
      %v360 = vpack.c.b16 %v316, %v312
      %v361 = vpack.c.b16 %v321, %v317
      %v362 = vpack.c.b16 %v322, %v318
      %v363 = vpack.c.b16 %v323, %v319
      %v364 = vpack.c.b16 %v324, %v320
      %v365 = vpack.c.b16 %v329, %v325
      %v366 = vpack.c.b16 %v330, %v326
      %v367 = vpack.c.b16 %v331, %v327
      %v368 = vpack.c.b16 %v332, %v328
      %v369 = vpack.c.b16 %v337, %v333
      %v370 = vpack.c.b16 %v338, %v334
      %v371 = vpack.c.b16 %v339, %v335
      %v372 = vpack.c.b16 %v340, %v336
      %405 = vmatprep.subr.bf16.mxu0 %v342
      %406 = vmatpush1.bf16.msra.mxu0 %v341
      %407 = vmatprep.subr.bf16.mxu0 %v346
      %408 = vmatpush1.bf16.msra.mxu0 %v345
      %409 = vmatprep.subr.bf16.mxu0 %v350
      %410 = vmatpush1.bf16.msra.mxu0 %v349
      %411 = vmatprep.subr.bf16.mxu0 %v354
      %412 = vmatpush1.bf16.msra.mxu0 %v353
      %413 = vmatprep.subr.bf16.mxu0 %v358
      %414 = vmatpush1.bf16.msra.mxu0 %v357
      %415 = vmatprep.subr.bf16.mxu0 %v362
      %416 = vmatpush1.bf16.msra.mxu0 %v361
      %417 = vmatprep.subr.bf16.mxu0 %v366
      %418 = vmatpush1.bf16.msra.mxu0 %v365
      %419 = vmatprep.subr.bf16.mxu0 %v370
      %420 = vmatpush1.bf16.msra.mxu0 %v369
      %421 = vmatprep.subr.bf16.mxu0 0
      %422 = vmatpush1.bf16.msra.mxu0 0
      %423 = vmatprep.subr.bf16.mxu0 0
      %424 = vmatpush1.bf16.msra.mxu0 0
      %425 = vmatprep.subr.bf16.mxu0 0
      %426 = vmatpush1.bf16.msra.mxu0 0
      %427 = vmatprep.subr.bf16.mxu0 0
      %428 = vmatpush1.bf16.msra.mxu0 0
      %429 = vmatprep.subr.bf16.mxu0 0
      %430 = vmatpush1.bf16.msra.mxu0 0
      %431 = vmatprep.subr.bf16.mxu0 0
      %432 = vmatpush1.bf16.msra.mxu0 0
      %433 = vmatprep.subr.bf16.mxu0 0
      %434 = vmatpush1.bf16.msra.mxu0 0
      %435 = vmatprep.subr.bf16.mxu0 0
      %436 = vmatpush1.bf16.msra.mxu0 0
      %437 = vmatprep.mubr.bf16.mxu0 0
      %438 = vmatmul.mubr.bf16.gmra.mrb[0].mxu0 %v212
      %v439 = vpop.f32.mrb[0].mxu0
      %v440 = vadd.f32 0.0, %v439
      %v441 = vpop.f32.mrb[0].mxu0
      %v442 = vadd.f32 0.0, %v441
      %v443 = vpop.f32.mrb[0].mxu0
      %v444 = vpop.f32.mrb[0].mxu0
      %445 = vdwg.mxu0
      %446 = vmatprep.subr.bf16.mxu0 %v344
      %447 = vmatpush1.bf16.msra.mxu0 %v343
      %448 = vmatprep.subr.bf16.mxu0 %v348
      %449 = vmatpush1.bf16.msra.mxu0 %v347
      %450 = vmatprep.subr.bf16.mxu0 %v352
      %451 = vmatpush1.bf16.msra.mxu0 %v351
      %452 = vmatprep.subr.bf16.mxu0 %v356
      %453 = vmatpush1.bf16.msra.mxu0 %v355
      %454 = vmatprep.subr.bf16.mxu0 %v360
      %455 = vmatpush1.bf16.msra.mxu0 %v359
      %456 = vmatprep.subr.bf16.mxu0 %v364
      %457 = vmatpush1.bf16.msra.mxu0 %v363
      %458 = vmatprep.subr.bf16.mxu0 %v368
      %459 = vmatpush1.bf16.msra.mxu0 %v367
      %460 = vmatprep.subr.bf16.mxu0 %v372
      %461 = vmatpush1.bf16.msra.mxu0 %v371
      %462 = vmatprep.subr.bf16.mxu0 0
      %463 = vmatpush1.bf16.msra.mxu0 0
      %464 = vmatprep.subr.bf16.mxu0 0
      %465 = vmatpush1.bf16.msra.mxu0 0
      %466 = vmatprep.subr.bf16.mxu0 0
      %467 = vmatpush1.bf16.msra.mxu0 0
      %468 = vmatprep.subr.bf16.mxu0 0
      %469 = vmatpush1.bf16.msra.mxu0 0
      %470 = vmatprep.subr.bf16.mxu0 0
      %471 = vmatpush1.bf16.msra.mxu0 0
      %472 = vmatprep.subr.bf16.mxu0 0
      %473 = vmatpush1.bf16.msra.mxu0 0
      %474 = vmatprep.subr.bf16.mxu0 0
      %475 = vmatpush1.bf16.msra.mxu0 0
      %476 = vmatprep.subr.bf16.mxu0 0
      %477 = vmatpush1.bf16.msra.mxu0 0
      %478 = vmatprep.mubr.bf16.mxu0 0
      %479 = vmatmul.mubr.bf16.gmra.mrb[0].mxu0 %v212
      %v480 = vpop.f32.mrb[0].mxu0
      %v481 = vadd.f32 0.0, %v480
      %v482 = vpop.f32.mrb[0].mxu0
      %v483 = vadd.f32 0.0, %v482
      %v484 = vpop.f32.mrb[0].mxu0
      %v485 = vpop.f32.mrb[0].mxu0
      %486 = vdwg.mxu0
      %v491 = vcombine.low %v440, %v442
      %v492 = vcombine.low %v481, %v483
      %v494 = vunpack.c.l.s4 1983009808
      %v495 = vunpack.c.0.s8 %v494
      %v496 = vlaneseq
      %v497 = vshrl.u32 %v496, 7
      %v498 = vsub.s32 %v495, %v497
      %v499 = vrot.slane %v491, %v498
      %v501 = vunpack.c.l.s4 1983009808
      %v502 = vunpack.c.0.s8 %v501
      %v503 = vlaneseq
      %v504 = vshrl.u32 %v503, 7
      %v505 = vsub.s32 %v502, %v504
      %v506 = vrot.slane %v492, %v505
      %v507 = vcombine.low %v499, %v506
      %v509 = vadd.f32 %v210, %v507
      %s510 = smul.u32 %s206, 4
      %s511 = smul.addr %s510, 2
      %s512 = scalar_lea.vmem [#allocation7], %s511
      %v513 = vld [vmem:[%s512] sm:$0xff]
      %v514 = vld [vmem:[#allocation4] sm:$0x3]
      %v515 = vpack.c.bf16 %v514, %v514
      %v516 = vld [vmem:[#allocation10] sm:$0xff]
      %v517 = vld [vmem:[#allocation10 + $0x8] sm:$0xff]
      %v518 = vld [vmem:[#allocation10 + $0x10] sm:$0xff]
      %v519 = vld [vmem:[#allocation10 + $0x18] sm:$0xff]
      %v520 = vld [vmem:[#allocation10 + $0x20] sm:$0xff]
      %v521 = vld [vmem:[#allocation10 + $0x28] sm:$0xff]
      %v522 = vld [vmem:[#allocation10 + $0x30] sm:$0xff]
      %v523 = vld [vmem:[#allocation10 + $0x38] sm:$0xff]
      %v524 = vld [vmem:[#allocation10 + $0x40] sm:$0xff]
      %v525 = vld [vmem:[#allocation10 + $0x48] sm:$0xff]
      %v526 = vld [vmem:[#allocation10 + $0x50] sm:$0xff]
      %v527 = vld [vmem:[#allocation10 + $0x58] sm:$0xff]
      %v528 = vld [vmem:[#allocation10 + $0x60] sm:$0xff]
      %v529 = vld [vmem:[#allocation10 + $0x68] sm:$0xff]
      %v530 = vld [vmem:[#allocation10 + $0x70] sm:$0xff]
      %v531 = vld [vmem:[#allocation10 + $0x78] sm:$0xff]
      %v532 = vld [vmem:[#allocation10 + $0x80] sm:$0xff]
      %v533 = vld [vmem:[#allocation10 + $0x88] sm:$0xff]
      %v534 = vld [vmem:[#allocation10 + $0x90] sm:$0xff]
      %v535 = vld [vmem:[#allocation10 + $0x98] sm:$0xff]
      %v536 = vld [vmem:[#allocation10 + $0xa0] sm:$0xff]
      %v537 = vld [vmem:[#allocation10 + $0xa8] sm:$0xff]
      %v538 = vld [vmem:[#allocation10 + $0xb0] sm:$0xff]
      %v539 = vld [vmem:[#allocation10 + $0xb8] sm:$0xff]
      %v540 = vld [vmem:[#allocation10 + $0xc0] sm:$0xff]
      %v541 = vld [vmem:[#allocation10 + $0xc8] sm:$0xff]
      %v542 = vld [vmem:[#allocation10 + $0xd0] sm:$0xff]
      %v543 = vld [vmem:[#allocation10 + $0xd8] sm:$0xff]
      %v544 = vld [vmem:[#allocation10 + $0xe0] sm:$0xff]
      %v545 = vld [vmem:[#allocation10 + $0xe8] sm:$0xff]
      %v546 = vld [vmem:[#allocation10 + $0xf0] sm:$0xff]
      %v547 = vld [vmem:[#allocation10 + $0xf8] sm:$0xff]
      %v580 = vunpack.c.l.b16 %v516
      %v581 = vunpack.c.h.b16 %v516
      %v582 = vunpack.c.l.b16 %v517
      %v583 = vunpack.c.h.b16 %v517
      %v584 = vunpack.c.l.b16 %v518
      %v585 = vunpack.c.h.b16 %v518
      %v586 = vunpack.c.l.b16 %v519
      %v587 = vunpack.c.h.b16 %v519
      %v588 = vunpack.c.l.b16 %v520
      %v589 = vunpack.c.h.b16 %v520
      %v590 = vunpack.c.l.b16 %v521
      %v591 = vunpack.c.h.b16 %v521
      %v592 = vunpack.c.l.b16 %v522
      %v593 = vunpack.c.h.b16 %v522
      %v594 = vunpack.c.l.b16 %v523
      %v595 = vunpack.c.h.b16 %v523
      %v596 = vunpack.c.l.b16 %v524
      %v597 = vunpack.c.h.b16 %v524
      %v598 = vunpack.c.l.b16 %v525
      %v599 = vunpack.c.h.b16 %v525
      %v600 = vunpack.c.l.b16 %v526
      %v601 = vunpack.c.h.b16 %v526
      %v602 = vunpack.c.l.b16 %v527
      %v603 = vunpack.c.h.b16 %v527
      %v604 = vunpack.c.l.b16 %v528
      %v605 = vunpack.c.h.b16 %v528
      %v606 = vunpack.c.l.b16 %v529
      %v607 = vunpack.c.h.b16 %v529
      %v608 = vunpack.c.l.b16 %v530
      %v609 = vunpack.c.h.b16 %v530
      %v610 = vunpack.c.l.b16 %v531
      %v611 = vunpack.c.h.b16 %v531
      %v612 = vunpack.c.l.b16 %v532
      %v613 = vunpack.c.h.b16 %v532
      %v614 = vunpack.c.l.b16 %v533
      %v615 = vunpack.c.h.b16 %v533
      %v616 = vunpack.c.l.b16 %v534
      %v617 = vunpack.c.h.b16 %v534
      %v618 = vunpack.c.l.b16 %v535
      %v619 = vunpack.c.h.b16 %v535
      %v620 = vunpack.c.l.b16 %v536
      %v621 = vunpack.c.h.b16 %v536
      %v622 = vunpack.c.l.b16 %v537
      %v623 = vunpack.c.h.b16 %v537
      %v624 = vunpack.c.l.b16 %v538
      %v625 = vunpack.c.h.b16 %v538
      %v626 = vunpack.c.l.b16 %v539
      %v627 = vunpack.c.h.b16 %v539
      %v628 = vunpack.c.l.b16 %v540
      %v629 = vunpack.c.h.b16 %v540
      %v630 = vunpack.c.l.b16 %v541
      %v631 = vunpack.c.h.b16 %v541
      %v632 = vunpack.c.l.b16 %v542
      %v633 = vunpack.c.h.b16 %v542
      %v634 = vunpack.c.l.b16 %v543
      %v635 = vunpack.c.h.b16 %v543
      %v636 = vunpack.c.l.b16 %v544
      %v637 = vunpack.c.h.b16 %v544
      %v638 = vunpack.c.l.b16 %v545
      %v639 = vunpack.c.h.b16 %v545
      %v640 = vunpack.c.l.b16 %v546
      %v641 = vunpack.c.h.b16 %v546
      %v642 = vunpack.c.l.b16 %v547
      %v643 = vunpack.c.h.b16 %v547
      %v644 = vpack.c.b16 %v584, %v580
      %v645 = vpack.c.b16 %v585, %v581
      %v646 = vpack.c.b16 %v586, %v582
      %v647 = vpack.c.b16 %v587, %v583
      %v648 = vpack.c.b16 %v592, %v588
      %v649 = vpack.c.b16 %v593, %v589
      %v650 = vpack.c.b16 %v594, %v590
      %v651 = vpack.c.b16 %v595, %v591
      %v652 = vpack.c.b16 %v600, %v596
      %v653 = vpack.c.b16 %v601, %v597
      %v654 = vpack.c.b16 %v602, %v598
      %v655 = vpack.c.b16 %v603, %v599
      %v656 = vpack.c.b16 %v608, %v604
      %v657 = vpack.c.b16 %v609, %v605
      %v658 = vpack.c.b16 %v610, %v606
      %v659 = vpack.c.b16 %v611, %v607
      %v660 = vpack.c.b16 %v616, %v612
      %v661 = vpack.c.b16 %v617, %v613
      %v662 = vpack.c.b16 %v618, %v614
      %v663 = vpack.c.b16 %v619, %v615
      %v664 = vpack.c.b16 %v624, %v620
      %v665 = vpack.c.b16 %v625, %v621
      %v666 = vpack.c.b16 %v626, %v622
      %v667 = vpack.c.b16 %v627, %v623
      %v668 = vpack.c.b16 %v632, %v628
      %v669 = vpack.c.b16 %v633, %v629
      %v670 = vpack.c.b16 %v634, %v630
      %v671 = vpack.c.b16 %v635, %v631
      %v672 = vpack.c.b16 %v640, %v636
      %v673 = vpack.c.b16 %v641, %v637
      %v674 = vpack.c.b16 %v642, %v638
      %v675 = vpack.c.b16 %v643, %v639
      %708 = vmatprep.subr.bf16.mxu0 %v645
      %709 = vmatpush1.bf16.msra.mxu0 %v644
      %710 = vmatprep.subr.bf16.mxu0 %v649
      %711 = vmatpush1.bf16.msra.mxu0 %v648
      %712 = vmatprep.subr.bf16.mxu0 %v653
      %713 = vmatpush1.bf16.msra.mxu0 %v652
      %714 = vmatprep.subr.bf16.mxu0 %v657
      %715 = vmatpush1.bf16.msra.mxu0 %v656
      %716 = vmatprep.subr.bf16.mxu0 %v661
      %717 = vmatpush1.bf16.msra.mxu0 %v660
      %718 = vmatprep.subr.bf16.mxu0 %v665
      %719 = vmatpush1.bf16.msra.mxu0 %v664
      %720 = vmatprep.subr.bf16.mxu0 %v669
      %721 = vmatpush1.bf16.msra.mxu0 %v668
      %722 = vmatprep.subr.bf16.mxu0 %v673
      %723 = vmatpush1.bf16.msra.mxu0 %v672
      %724 = vmatprep.subr.bf16.mxu0 0
      %725 = vmatpush1.bf16.msra.mxu0 0
      %726 = vmatprep.subr.bf16.mxu0 0
      %727 = vmatpush1.bf16.msra.mxu0 0
      %728 = vmatprep.subr.bf16.mxu0 0
      %729 = vmatpush1.bf16.msra.mxu0 0
      %730 = vmatprep.subr.bf16.mxu0 0
      %731 = vmatpush1.bf16.msra.mxu0 0
      %732 = vmatprep.subr.bf16.mxu0 0
      %733 = vmatpush1.bf16.msra.mxu0 0
      %734 = vmatprep.subr.bf16.mxu0 0
      %735 = vmatpush1.bf16.msra.mxu0 0
      %736 = vmatprep.subr.bf16.mxu0 0
      %737 = vmatpush1.bf16.msra.mxu0 0
      %738 = vmatprep.subr.bf16.mxu0 0
      %739 = vmatpush1.bf16.msra.mxu0 0
      %740 = vmatprep.mubr.bf16.mxu0 0
      %741 = vmatmul.mubr.bf16.gmra.mrb[0].mxu0 %v515
      %v742 = vpop.f32.mrb[0].mxu0
      %v743 = vadd.f32 0.0, %v742
      %v744 = vpop.f32.mrb[0].mxu0
      %v745 = vadd.f32 0.0, %v744
      %v746 = vpop.f32.mrb[0].mxu0
      %v747 = vpop.f32.mrb[0].mxu0
      %748 = vdwg.mxu0
      %749 = vmatprep.subr.bf16.mxu0 %v647
      %750 = vmatpush1.bf16.msra.mxu0 %v646
      %751 = vmatprep.subr.bf16.mxu0 %v651
      %752 = vmatpush1.bf16.msra.mxu0 %v650
      %753 = vmatprep.subr.bf16.mxu0 %v655
      %754 = vmatpush1.bf16.msra.mxu0 %v654
      %755 = vmatprep.subr.bf16.mxu0 %v659
      %756 = vmatpush1.bf16.msra.mxu0 %v658
      %757 = vmatprep.subr.bf16.mxu0 %v663
      %758 = vmatpush1.bf16.msra.mxu0 %v662
      %759 = vmatprep.subr.bf16.mxu0 %v667
      %760 = vmatpush1.bf16.msra.mxu0 %v666
      %761 = vmatprep.subr.bf16.mxu0 %v671
      %762 = vmatpush1.bf16.msra.mxu0 %v670
      %763 = vmatprep.subr.bf16.mxu0 %v675
      %764 = vmatpush1.bf16.msra.mxu0 %v674
      %765 = vmatprep.subr.bf16.mxu0 0
      %766 = vmatpush1.bf16.msra.mxu0 0
      %767 = vmatprep.subr.bf16.mxu0 0
      %768 = vmatpush1.bf16.msra.mxu0 0
      %769 = vmatprep.subr.bf16.mxu0 0
      %770 = vmatpush1.bf16.msra.mxu0 0
      %771 = vmatprep.subr.bf16.mxu0 0
      %772 = vmatpush1.bf16.msra.mxu0 0
      %773 = vmatprep.subr.bf16.mxu0 0
      %774 = vmatpush1.bf16.msra.mxu0 0
      %775 = vmatprep.subr.bf16.mxu0 0
      %776 = vmatpush1.bf16.msra.mxu0 0
      %777 = vmatprep.subr.bf16.mxu0 0
      %778 = vmatpush1.bf16.msra.mxu0 0
      %779 = vmatprep.subr.bf16.mxu0 0
      %780 = vmatpush1.bf16.msra.mxu0 0
      %781 = vmatprep.mubr.bf16.mxu0 0
      %782 = vmatmul.mubr.bf16.gmra.mrb[0].mxu0 %v515
      %v783 = vpop.f32.mrb[0].mxu0
      %v784 = vadd.f32 0.0, %v783
      %v785 = vpop.f32.mrb[0].mxu0
      %v786 = vadd.f32 0.0, %v785
      %v787 = vpop.f32.mrb[0].mxu0
      %v788 = vpop.f32.mrb[0].mxu0
      %789 = vdwg.mxu0
      %v794 = vcombine.low %v743, %v745
      %v795 = vcombine.low %v784, %v786
      %v797 = vunpack.c.l.s4 1983009808
      %v798 = vunpack.c.0.s8 %v797
      %v799 = vlaneseq
      %v800 = vshrl.u32 %v799, 7
      %v801 = vsub.s32 %v798, %v800
      %v802 = vrot.slane %v794, %v801
      %v804 = vunpack.c.l.s4 1983009808
      %v805 = vunpack.c.0.s8 %v804
      %v806 = vlaneseq
      %v807 = vshrl.u32 %v806, 7
      %v808 = vsub.s32 %v805, %v807
      %v809 = vrot.slane %v795, %v808
      %v810 = vcombine.low %v802, %v809
      %v812 = vadd.f32 %v513, %v810
      %v813 = vld [vmem:[#allocation3] sm:$0x3]
      %v814 = vxor.u32 %v509, 2147483648
      %v815 = vmul.f32 %v814, 1.442695
      %v816 = vpow.pop %v815
      %v817 = vadd.f32 %v816, 1.0
      %v818 = vrcp.pop %v817
      %v819 = vmul.f32 1.0, %v818
      %v821 = vrot.slane %v509, 2
      %v823 = vxor.u32 %v821, 2147483648
      %v824 = vmul.f32 %v823, 1.442695
      %v825 = vpow.pop %v824
      %v826 = vadd.f32 %v825, 1.0
      %v827 = vrcp.pop %v826
      %v828 = vmul.f32 1.0, %v827
      %v829 = vrot.slane %v509, 4
      %v831 = vtanh.pop %v829
      %v832 = vrot.slane %v509, 6
      %v834 = vxor.u32 %v832, 2147483648
      %v835 = vmul.f32 %v834, 1.442695
      %v836 = vpow.pop %v835
      %v837 = vadd.f32 %v836, 1.0
      %v838 = vrcp.pop %v837
      %v839 = vmul.f32 1.0, %v838
      %v840 = vmul.f32 %v828, %v813
      %v841 = vmul.f32 %v819, %v831
      %v842 = vadd.f32 %v840, %v841
      %v843 = vtanh.pop %v842
      %v844 = vmul.f32 %v839, %v843
      %v845 = vld [vmem:[#allocation5] sm:$0x3]
      %v846 = vxor.u32 %v812, 2147483648
      %v847 = vmul.f32 %v846, 1.442695
      %v848 = vpow.pop %v847
      %v849 = vadd.f32 %v848, 1.0
      %v850 = vrcp.pop %v849
      %v851 = vmul.f32 1.0, %v850
      %v853 = vrot.slane %v812, 2
      %v855 = vxor.u32 %v853, 2147483648
      %v856 = vmul.f32 %v855, 1.442695
      %v857 = vpow.pop %v856
      %v858 = vadd.f32 %v857, 1.0
      %v859 = vrcp.pop %v858
      %v860 = vmul.f32 1.0, %v859
      %v861 = vrot.slane %v812, 4
      %v863 = vtanh.pop %v861
      %v864 = vrot.slane %v812, 6
      %v866 = vxor.u32 %v864, 2147483648
      %v867 = vmul.f32 %v866, 1.442695
      %v868 = vpow.pop %v867
      %v869 = vadd.f32 %v868, 1.0
      %v870 = vrcp.pop %v869
      %v871 = vmul.f32 1.0, %v870
      %v872 = vmul.f32 %v860, %v845
      %v873 = vmul.f32 %v851, %v863
      %v874 = vadd.f32 %v872, %v873
      %v875 = vtanh.pop %v874
      %v876 = vmul.f32 %v871, %v875
      %877 = vst [vmem:[#allocation2] sm:$0x3] %v844
      %878 = vst [vmem:[#allocation3] sm:$0x3] %v842
      %879 = vst [vmem:[#allocation4] sm:$0x3] %v876
      %880 = vst [vmem:[#allocation5] sm:$0x3] %v874
      %v881 = vpack.c.bf16 %v844, %v844
      %s882 = scalar_lea.vmem %s4, %s201
      %883 = vst [vmem:[%s882] sm:$0x1] %v881
      %v884 = vpack.c.bf16 %v876, %v876
      %s885 = scalar_lea.vmem %s188, %s206
      %886 = vst [vmem:[%s885] sm:$0x1] %v884
    $region110: #{crnn_forward.8} parent=1 // loop_footer
      %s205 = sadd.s32 1, %s201
    $region111: #{crnn_forward.8} parent=1 // loop_footer_branch
      %200 = sbr.rel target = $region107
    $region112: #{crnn_forward.8} parent=1 // loop_exit
      _
    %s887 = ssub.s32 0, 0
    %s888 = smul.u32 8, %s887
    %p889 = scmp.lt.s32.totalorder %s888, 7
    %s890 = scalar_select %p889, %s888, 7
    %s891 = scalar_lea.vmem %s5, %s890
    // Predicated region
    $region113: #{crnn_forward.8} parent=1 // pred_check
      _
    $region114: #{crnn_forward.8} parent=1 // pred_check_branch
      %893 = sbr.rel (0) target = $region116
    $region115: #{crnn_forward.8} parent=1 // pred_region
      _
    $region116: #{crnn_forward.8} parent=1 // pred_fallthru
      _
    // Predicated region
    $region117: #{crnn_forward.8} parent=1 // pred_check
      _
    $region118: #{crnn_forward.8} parent=1 // pred_check_branch
      %895 = sbr.rel (0) target = $region120
    $region119: #{crnn_forward.8} parent=1 // pred_region
      %s896 = ssub.s32 0, 0
      %s897 = smul.u32 8, %s896
    $region120: #{crnn_forward.8} parent=1 // pred_fallthru
      _
    // Predicated region
    $region121: #{crnn_forward.8} parent=1 // pred_check
      _
    $region122: #{crnn_forward.8} parent=1 // pred_check_branch
      %899 = sbr.rel (0) target = $region124
    $region123: #{crnn_forward.8} parent=1 // pred_region
      _
    $region124: #{crnn_forward.8} parent=1 // pred_fallthru
      _
    // Predicated region
    $region125: #{crnn_forward.8} parent=1 // pred_check
      _
    $region126: #{crnn_forward.8} parent=1 // pred_check_branch
      %901 = sbr.rel (0) target = $region128
    $region127: #{crnn_forward.8} parent=1 // pred_region
      %s902 = ssub.s32 0, 0
      %s903 = smul.u32 8, %s902
      %p904 = scmp.lt.s32.totalorder %s903, 7
      %s905 = scalar_select %p904, %s903, 7
      %s906 = scalar_lea.vmem %s5, %s905
    $region128: #{crnn_forward.8} parent=1 // pred_fallthru
      _
    %907 = vsyncpa [#allocation9], 1
    %908 = vsyncpa [#allocation11], 1

// kernel: crnn_forward.9
$region0: #{crnn_forward.9}
  #allocation0 [shape = 'u32[]', space=smem, size = 0x4, offset = 0x4, fixed_abs, tag = 'smem constant byte address 0x4 - core index']
  #allocation1 [shape = 'u32[144,128]{1,0:T(1,128)}', space=vmem, size = 0x12000, scoped, tag = 'internal scratch']
  %s0 = inlined_call_operand.vmem [shape: bf16[16,128], index: 0, kind: input, shape index: {}]
  %s1 = inlined_call_operand.vmem [shape: bf16[16,128], index: 1, kind: input, shape index: {}]
  %s2 = inlined_call_operand.hbm [shape: bf16[128,1024], index: 2, kind: input, shape index: {}]
  %s3 = inlined_call_operand.hbm [shape: bf16[128,1024], index: 3, kind: input, shape index: {}]
  %s4 = inlined_call_operand.vmem [shape: f32[1,1024], index: 4, kind: input, shape index: {}]
  %s5 = inlined_call_operand.vmem [shape: f32[16,1024], index: 5, kind: output, shape index: {}]
  %s6 = sld [smem:[#allocation0]]
  $region38: #{crnn_forward.9} parent=0
    _
  %s8 = ssub.s32 1, %s6
  %s9 = scalar_select 0, %s8, %s6
  $region1: #{crnn_forward.9} parent=0
    #allocation2 [shape = 'u8[262144]{0}', space=vmem, size = 0x40000, scoped, tag = 'input window, operand 2, single buffered']
    #allocation3 [shape = 's32[1]{0}', space=sflag, size = 0x4, scoped, tag = 'scoped memory for crnn_forward.9']
    #allocation4 [shape = 'u8[262144]{0}', space=vmem, size = 0x40000, scoped, tag = 'input window, operand 3, single buffered']
    #allocation5 [shape = 's32[1]{0}', space=sflag, size = 0x4, scoped, tag = 'scoped memory for crnn_forward.9']
    %10 = vsyncpa [#allocation3], 0
    %11 = vsyncpa [#allocation5], 0
    // Predicated region
    $region2: #{crnn_forward.9} parent=1 // pred_check
      _
    $region3: #{crnn_forward.9} parent=1 // pred_check_branch
      %13 = sbr.rel (0) target = $region5
    $region4: #{crnn_forward.9} parent=1 // pred_region
      _
    $region5: #{crnn_forward.9} parent=1 // pred_fallthru
      _
    // Predicated region
    $region6: #{crnn_forward.9} parent=1 // pred_check
      _
    $region7: #{crnn_forward.9} parent=1 // pred_check_branch
      %15 = sbr.rel (0) target = $region9
    $region8: #{crnn_forward.9} parent=1 // pred_region
      _
    $region9: #{crnn_forward.9} parent=1 // pred_fallthru
      _
    // Predicated region
    $region10: #{crnn_forward.9} parent=1 // pred_check
      _
    $region11: #{crnn_forward.9} parent=1 // pred_check_branch
      %17 = sbr.rel (0) target = $region13
    $region12: #{crnn_forward.9} parent=1 // pred_region
      %s19 = ssub.s32 8192, 8192
      %20 = vsyncadd [#allocation3], %s19
      %s21 = sshll.u32 [#allocation2], 4
      %s22 = int_to_ptr.vmem [resolvable:$true] %s21
      %27 = dma.hbm_to_vmem [thread:$0]  %s2, 8192, %s22, [#allocation3], 512, 512, 32
    $region13: #{crnn_forward.9} parent=1 // pred_fallthru
      _
    // Predicated region
    $region14: #{crnn_forward.9} parent=1 // pred_check
      _
    $region15: #{crnn_forward.9} parent=1 // pred_check_branch
      %29 = sbr.rel (0) target = $region17
    $region16: #{crnn_forward.9} parent=1 // pred_region
      %s31 = ssub.s32 8192, 8192
      %32 = vsyncadd [#allocation5], %s31
      %s33 = sshll.u32 [#allocation4], 4
      %s34 = int_to_ptr.vmem [resolvable:$true] %s33
      %39 = dma.hbm_to_vmem [thread:$0]  %s3, 8192, %s34, [#allocation5], 512, 512, 32
    $region17: #{crnn_forward.9} parent=1 // pred_fallthru
      _
    // Predicated region
    $region18: #{crnn_forward.9} parent=1 // pred_check
      _
    $region19: #{crnn_forward.9} parent=1 // pred_check_branch
      %41 = sbr.rel (0) target = $region21
    $region20: #{crnn_forward.9} parent=1 // pred_region
      _
    $region21: #{crnn_forward.9} parent=1 // pred_fallthru
      _
    // Predicated region
    $region22: #{crnn_forward.9} parent=1 // pred_check
      _
    $region23: #{crnn_forward.9} parent=1 // pred_check_branch
      %43 = sbr.rel (0) target = $region25
    $region24: #{crnn_forward.9} parent=1 // pred_region
      %44 = dma.done [#allocation3], 8192
    $region25: #{crnn_forward.9} parent=1 // pred_fallthru
      _
    // Predicated region
    $region26: #{crnn_forward.9} parent=1 // pred_check
      _
    $region27: #{crnn_forward.9} parent=1 // pred_check_branch
      %46 = sbr.rel (0) target = $region29
    $region28: #{crnn_forward.9} parent=1 // pred_region
      %47 = dma.done [#allocation5], 8192
    $region29: #{crnn_forward.9} parent=1 // pred_fallthru
      _
    %v49 = vld [vmem:[%s0] sm:$0xf]
    %v50 = vld [vmem:[%s0 + $0x4] sm:$0xf]
    %v51 = vld [vmem:[#allocation2] sm:$0xff]
    %v52 = vld [vmem:[#allocation2 + $0x8] sm:$0xff]
    %v53 = vld [vmem:[#allocation2 + $0x10] sm:$0xff]
    %v54 = vld [vmem:[#allocation2 + $0x18] sm:$0xff]
    %v55 = vld [vmem:[#allocation2 + $0x20] sm:$0xff]
    %v56 = vld [vmem:[#allocation2 + $0x28] sm:$0xff]
    %v57 = vld [vmem:[#allocation2 + $0x30] sm:$0xff]
    %v58 = vld [vmem:[#allocation2 + $0x38] sm:$0xff]
    %v59 = vld [vmem:[#allocation2 + $0x40] sm:$0xff]
    %v60 = vld [vmem:[#allocation2 + $0x48] sm:$0xff]
    %v61 = vld [vmem:[#allocation2 + $0x50] sm:$0xff]
    %v62 = vld [vmem:[#allocation2 + $0x58] sm:$0xff]
    %v63 = vld [vmem:[#allocation2 + $0x60] sm:$0xff]
    %v64 = vld [vmem:[#allocation2 + $0x68] sm:$0xff]
    %v65 = vld [vmem:[#allocation2 + $0x70] sm:$0xff]
    %v66 = vld [vmem:[#allocation2 + $0x78] sm:$0xff]
    %v67 = vld [vmem:[#allocation2 + $0x80] sm:$0xff]
    %v68 = vld [vmem:[#allocation2 + $0x88] sm:$0xff]
    %v69 = vld [vmem:[#allocation2 + $0x90] sm:$0xff]
    %v70 = vld [vmem:[#allocation2 + $0x98] sm:$0xff]
    %v71 = vld [vmem:[#allocation2 + $0xa0] sm:$0xff]
    %v72 = vld [vmem:[#allocation2 + $0xa8] sm:$0xff]
    %v73 = vld [vmem:[#allocation2 + $0xb0] sm:$0xff]
    %v74 = vld [vmem:[#allocation2 + $0xb8] sm:$0xff]
    %v75 = vld [vmem:[#allocation2 + $0xc0] sm:$0xff]
    %v76 = vld [vmem:[#allocation2 + $0xc8] sm:$0xff]
    %v77 = vld [vmem:[#allocation2 + $0xd0] sm:$0xff]
    %v78 = vld [vmem:[#allocation2 + $0xd8] sm:$0xff]
    %v79 = vld [vmem:[#allocation2 + $0xe0] sm:$0xff]
    %v80 = vld [vmem:[#allocation2 + $0xe8] sm:$0xff]
    %v81 = vld [vmem:[#allocation2 + $0xf0] sm:$0xff]
    %v82 = vld [vmem:[#allocation2 + $0xf8] sm:$0xff]
    %v83 = vld [vmem:[#allocation2 + $0x100] sm:$0xff]
    %v84 = vld [vmem:[#allocation2 + $0x108] sm:$0xff]
    %v85 = vld [vmem:[#allocation2 + $0x110] sm:$0xff]
    %v86 = vld [vmem:[#allocation2 + $0x118] sm:$0xff]
    %v87 = vld [vmem:[#allocation2 + $0x120] sm:$0xff]
    %v88 = vld [vmem:[#allocation2 + $0x128] sm:$0xff]
    %v89 = vld [vmem:[#allocation2 + $0x130] sm:$0xff]
    %v90 = vld [vmem:[#allocation2 + $0x138] sm:$0xff]
    %v91 = vld [vmem:[#allocation2 + $0x140] sm:$0xff]
    %v92 = vld [vmem:[#allocation2 + $0x148] sm:$0xff]
    %v93 = vld [vmem:[#allocation2 + $0x150] sm:$0xff]
    %v94 = vld [vmem:[#allocation2 + $0x158] sm:$0xff]
    %v95 = vld [vmem:[#allocation2 + $0x160] sm:$0xff]
    %v96 = vld [vmem:[#allocation2 + $0x168] sm:$0xff]
    %v97 = vld [vmem:[#allocation2 + $0x170] sm:$0xff]
    %v98 = vld [vmem:[#allocation2 + $0x178] sm:$0xff]
    %v99 = vld [vmem:[#allocation2 + $0x180] sm:$0xff]
    %v100 = vld [vmem:[#allocation2 + $0x188] sm:$0xff]
    %v101 = vld [vmem:[#allocation2 + $0x190] sm:$0xff]
    %v102 = vld [vmem:[#allocation2 + $0x198] sm:$0xff]
    %v103 = vld [vmem:[#allocation2 + $0x1a0] sm:$0xff]
    %v104 = vld [vmem:[#allocation2 + $0x1a8] sm:$0xff]
    %v105 = vld [vmem:[#allocation2 + $0x1b0] sm:$0xff]
    %v106 = vld [vmem:[#allocation2 + $0x1b8] sm:$0xff]
    %v107 = vld [vmem:[#allocation2 + $0x1c0] sm:$0xff]
    %v108 = vld [vmem:[#allocation2 + $0x1c8] sm:$0xff]
    %v109 = vld [vmem:[#allocation2 + $0x1d0] sm:$0xff]
    %v110 = vld [vmem:[#allocation2 + $0x1d8] sm:$0xff]
    %v111 = vld [vmem:[#allocation2 + $0x1e0] sm:$0xff]
    %v112 = vld [vmem:[#allocation2 + $0x1e8] sm:$0xff]
    %v113 = vld [vmem:[#allocation2 + $0x1f0] sm:$0xff]
    %v114 = vld [vmem:[#allocation2 + $0x1f8] sm:$0xff]
    %v115 = vld [vmem:[%s1] sm:$0xf]
    %v116 = vld [vmem:[%s1 + $0x4] sm:$0xf]
    %v117 = vld [vmem:[#allocation4] sm:$0xff]
    %v118 = vld [vmem:[#allocation4 + $0x8] sm:$0xff]
    %v119 = vld [vmem:[#allocation4 + $0x10] sm:$0xff]
    %v120 = vld [vmem:[#allocation4 + $0x18] sm:$0xff]
    %v121 = vld [vmem:[#allocation4 + $0x20] sm:$0xff]
    %v122 = vld [vmem:[#allocation4 + $0x28] sm:$0xff]
    %v123 = vld [vmem:[#allocation4 + $0x30] sm:$0xff]
    %v124 = vld [vmem:[#allocation4 + $0x38] sm:$0xff]
    %v125 = vld [vmem:[#allocation4 + $0x40] sm:$0xff]
    %v126 = vld [vmem:[#allocation4 + $0x48] sm:$0xff]
    %v127 = vld [vmem:[#allocation4 + $0x50] sm:$0xff]
    %v128 = vld [vmem:[#allocation4 + $0x58] sm:$0xff]
    %v129 = vld [vmem:[#allocation4 + $0x60] sm:$0xff]
    %v130 = vld [vmem:[#allocation4 + $0x68] sm:$0xff]
    %v131 = vld [vmem:[#allocation4 + $0x70] sm:$0xff]
    %v132 = vld [vmem:[#allocation4 + $0x78] sm:$0xff]
    %v133 = vld [vmem:[#allocation4 + $0x80] sm:$0xff]
    %v134 = vld [vmem:[#allocation4 + $0x88] sm:$0xff]
    %v135 = vld [vmem:[#allocation4 + $0x90] sm:$0xff]
    %v136 = vld [vmem:[#allocation4 + $0x98] sm:$0xff]
    %v137 = vld [vmem:[#allocation4 + $0xa0] sm:$0xff]
    %v138 = vld [vmem:[#allocation4 + $0xa8] sm:$0xff]
    %v139 = vld [vmem:[#allocation4 + $0xb0] sm:$0xff]
    %v140 = vld [vmem:[#allocation4 + $0xb8] sm:$0xff]
    %v141 = vld [vmem:[#allocation4 + $0xc0] sm:$0xff]
    %v142 = vld [vmem:[#allocation4 + $0xc8] sm:$0xff]
    %v143 = vld [vmem:[#allocation4 + $0xd0] sm:$0xff]
    %v144 = vld [vmem:[#allocation4 + $0xd8] sm:$0xff]
    %v145 = vld [vmem:[#allocation4 + $0xe0] sm:$0xff]
    %v146 = vld [vmem:[#allocation4 + $0xe8] sm:$0xff]
    %v147 = vld [vmem:[#allocation4 + $0xf0] sm:$0xff]
    %v148 = vld [vmem:[#allocation4 + $0xf8] sm:$0xff]
    %v149 = vld [vmem:[#allocation4 + $0x100] sm:$0xff]
    %v150 = vld [vmem:[#allocation4 + $0x108] sm:$0xff]
    %v151 = vld [vmem:[#allocation4 + $0x110] sm:$0xff]
    %v152 = vld [vmem:[#allocation4 + $0x118] sm:$0xff]
    %v153 = vld [vmem:[#allocation4 + $0x120] sm:$0xff]
    %v154 = vld [vmem:[#allocation4 + $0x128] sm:$0xff]
    %v155 = vld [vmem:[#allocation4 + $0x130] sm:$0xff]
    %v156 = vld [vmem:[#allocation4 + $0x138] sm:$0xff]
    %v157 = vld [vmem:[#allocation4 + $0x140] sm:$0xff]
    %v158 = vld [vmem:[#allocation4 + $0x148] sm:$0xff]
    %v159 = vld [vmem:[#allocation4 + $0x150] sm:$0xff]
    %v160 = vld [vmem:[#allocation4 + $0x158] sm:$0xff]
    %v161 = vld [vmem:[#allocation4 + $0x160] sm:$0xff]
    %v162 = vld [vmem:[#allocation4 + $0x168] sm:$0xff]
    %v163 = vld [vmem:[#allocation4 + $0x170] sm:$0xff]
    %v164 = vld [vmem:[#allocation4 + $0x178] sm:$0xff]
    %v165 = vld [vmem:[#allocation4 + $0x180] sm:$0xff]
    %v166 = vld [vmem:[#allocation4 + $0x188] sm:$0xff]
    %v167 = vld [vmem:[#allocation4 + $0x190] sm:$0xff]
    %v168 = vld [vmem:[#allocation4 + $0x198] sm:$0xff]
    %v169 = vld [vmem:[#allocation4 + $0x1a0] sm:$0xff]
    %v170 = vld [vmem:[#allocation4 + $0x1a8] sm:$0xff]
    %v171 = vld [vmem:[#allocation4 + $0x1b0] sm:$0xff]
    %v172 = vld [vmem:[#allocation4 + $0x1b8] sm:$0xff]
    %v173 = vld [vmem:[#allocation4 + $0x1c0] sm:$0xff]
    %v174 = vld [vmem:[#allocation4 + $0x1c8] sm:$0xff]
    %v175 = vld [vmem:[#allocation4 + $0x1d0] sm:$0xff]
    %v176 = vld [vmem:[#allocation4 + $0x1d8] sm:$0xff]
    %v177 = vld [vmem:[#allocation4 + $0x1e0] sm:$0xff]
    %v178 = vld [vmem:[#allocation4 + $0x1e8] sm:$0xff]
    %v179 = vld [vmem:[#allocation4 + $0x1f0] sm:$0xff]
    %v180 = vld [vmem:[#allocation4 + $0x1f8] sm:$0xff]
    %v183 = vunpack.c.l.b16 %v115
    %v184 = vunpack.c.l.b16 %v116
    %v185 = vpack.c.b16 %v184, %v183
    %v251 = vunpack.c.l.b16 %v117
    %v252 = vunpack.c.h.b16 %v117
    %v253 = vunpack.c.l.b16 %v118
    %v254 = vunpack.c.h.b16 %v118
    %v255 = vunpack.c.l.b16 %v119
    %v256 = vunpack.c.h.b16 %v119
    %v257 = vunpack.c.l.b16 %v120
    %v258 = vunpack.c.h.b16 %v120
    %v259 = vunpack.c.l.b16 %v121
    %v260 = vunpack.c.h.b16 %v121
    %v261 = vunpack.c.l.b16 %v122
    %v262 = vunpack.c.h.b16 %v122
    %v263 = vunpack.c.l.b16 %v123
    %v264 = vunpack.c.h.b16 %v123
    %v265 = vunpack.c.l.b16 %v124
    %v266 = vunpack.c.h.b16 %v124
    %v267 = vunpack.c.l.b16 %v125
    %v268 = vunpack.c.h.b16 %v125
    %v269 = vunpack.c.l.b16 %v126
    %v270 = vunpack.c.h.b16 %v126
    %v271 = vunpack.c.l.b16 %v127
    %v272 = vunpack.c.h.b16 %v127
    %v273 = vunpack.c.l.b16 %v128
    %v274 = vunpack.c.h.b16 %v128
    %v275 = vunpack.c.l.b16 %v129
    %v276 = vunpack.c.h.b16 %v129
    %v277 = vunpack.c.l.b16 %v130
    %v278 = vunpack.c.h.b16 %v130
    %v279 = vunpack.c.l.b16 %v131
    %v280 = vunpack.c.h.b16 %v131
    %v281 = vunpack.c.l.b16 %v132
    %v282 = vunpack.c.h.b16 %v132
    %v283 = vunpack.c.l.b16 %v133
    %v284 = vunpack.c.h.b16 %v133
    %v285 = vunpack.c.l.b16 %v134
    %v286 = vunpack.c.h.b16 %v134
    %v287 = vunpack.c.l.b16 %v135
    %v288 = vunpack.c.h.b16 %v135
    %v289 = vunpack.c.l.b16 %v136
    %v290 = vunpack.c.h.b16 %v136
    %v291 = vunpack.c.l.b16 %v137
    %v292 = vunpack.c.h.b16 %v137
    %v293 = vunpack.c.l.b16 %v138
    %v294 = vunpack.c.h.b16 %v138
    %v295 = vunpack.c.l.b16 %v139
    %v296 = vunpack.c.h.b16 %v139
    %v297 = vunpack.c.l.b16 %v140
    %v298 = vunpack.c.h.b16 %v140
    %v299 = vunpack.c.l.b16 %v141
    %v300 = vunpack.c.h.b16 %v141
    %v301 = vunpack.c.l.b16 %v142
    %v302 = vunpack.c.h.b16 %v142
    %v303 = vunpack.c.l.b16 %v143
    %v304 = vunpack.c.h.b16 %v143
    %v305 = vunpack.c.l.b16 %v144
    %v306 = vunpack.c.h.b16 %v144
    %v307 = vunpack.c.l.b16 %v145
    %v308 = vunpack.c.h.b16 %v145
    %v309 = vunpack.c.l.b16 %v146
    %v310 = vunpack.c.h.b16 %v146
    %v311 = vunpack.c.l.b16 %v147
    %v312 = vunpack.c.h.b16 %v147
    %v313 = vunpack.c.l.b16 %v148
    %v314 = vunpack.c.h.b16 %v148
    %v315 = vunpack.c.l.b16 %v149
    %v316 = vunpack.c.h.b16 %v149
    %v317 = vunpack.c.l.b16 %v150
    %v318 = vunpack.c.h.b16 %v150
    %v319 = vunpack.c.l.b16 %v151
    %v320 = vunpack.c.h.b16 %v151
    %v321 = vunpack.c.l.b16 %v152
    %v322 = vunpack.c.h.b16 %v152
    %v323 = vunpack.c.l.b16 %v153
    %v324 = vunpack.c.h.b16 %v153
    %v325 = vunpack.c.l.b16 %v154
    %v326 = vunpack.c.h.b16 %v154
    %v327 = vunpack.c.l.b16 %v155
    %v328 = vunpack.c.h.b16 %v155
    %v329 = vunpack.c.l.b16 %v156
    %v330 = vunpack.c.h.b16 %v156
    %v331 = vunpack.c.l.b16 %v157
    %v332 = vunpack.c.h.b16 %v157
    %v333 = vunpack.c.l.b16 %v158
    %v334 = vunpack.c.h.b16 %v158
    %v335 = vunpack.c.l.b16 %v159
    %v336 = vunpack.c.h.b16 %v159
    %v337 = vunpack.c.l.b16 %v160
    %v338 = vunpack.c.h.b16 %v160
    %v339 = vunpack.c.l.b16 %v161
    %v340 = vunpack.c.h.b16 %v161
    %v341 = vunpack.c.l.b16 %v162
    %v342 = vunpack.c.h.b16 %v162
    %v343 = vunpack.c.l.b16 %v163
    %v344 = vunpack.c.h.b16 %v163
    %v345 = vunpack.c.l.b16 %v164
    %v346 = vunpack.c.h.b16 %v164
    %v347 = vunpack.c.l.b16 %v165
    %v348 = vunpack.c.h.b16 %v165
    %v349 = vunpack.c.l.b16 %v166
    %v350 = vunpack.c.h.b16 %v166
    %v351 = vunpack.c.l.b16 %v167
    %v352 = vunpack.c.h.b16 %v167
    %v353 = vunpack.c.l.b16 %v168
    %v354 = vunpack.c.h.b16 %v168
    %v355 = vunpack.c.l.b16 %v169
    %v356 = vunpack.c.h.b16 %v169
    %v357 = vunpack.c.l.b16 %v170
    %v358 = vunpack.c.h.b16 %v170
    %v359 = vunpack.c.l.b16 %v171
    %v360 = vunpack.c.h.b16 %v171
    %v361 = vunpack.c.l.b16 %v172
    %v362 = vunpack.c.h.b16 %v172
    %v363 = vunpack.c.l.b16 %v173
    %v364 = vunpack.c.h.b16 %v173
    %v365 = vunpack.c.l.b16 %v174
    %v366 = vunpack.c.h.b16 %v174
    %v367 = vunpack.c.l.b16 %v175
    %v368 = vunpack.c.h.b16 %v175
    %v369 = vunpack.c.l.b16 %v176
    %v370 = vunpack.c.h.b16 %v176
    %v371 = vunpack.c.l.b16 %v177
    %v372 = vunpack.c.h.b16 %v177
    %v373 = vunpack.c.l.b16 %v178
    %v374 = vunpack.c.h.b16 %v178
    %v375 = vunpack.c.l.b16 %v179
    %v376 = vunpack.c.h.b16 %v179
    %v377 = vunpack.c.l.b16 %v180
    %v378 = vunpack.c.h.b16 %v180
    %v379 = vpack.c.b16 %v259, %v251
    %v380 = vpack.c.b16 %v260, %v252
    %v381 = vpack.c.b16 %v261, %v253
    %v382 = vpack.c.b16 %v262, %v254
    %v383 = vpack.c.b16 %v263, %v255
    %v384 = vpack.c.b16 %v264, %v256
    %v385 = vpack.c.b16 %v265, %v257
    %v386 = vpack.c.b16 %v266, %v258
    %v387 = vpack.c.b16 %v275, %v267
    %v388 = vpack.c.b16 %v276, %v268
    %v389 = vpack.c.b16 %v277, %v269
    %v390 = vpack.c.b16 %v278, %v270
    %v391 = vpack.c.b16 %v279, %v271
    %v392 = vpack.c.b16 %v280, %v272
    %v393 = vpack.c.b16 %v281, %v273
    %v394 = vpack.c.b16 %v282, %v274
    %v395 = vpack.c.b16 %v291, %v283
    %v396 = vpack.c.b16 %v292, %v284
    %v397 = vpack.c.b16 %v293, %v285
    %v398 = vpack.c.b16 %v294, %v286
    %v399 = vpack.c.b16 %v295, %v287
    %v400 = vpack.c.b16 %v296, %v288
    %v401 = vpack.c.b16 %v297, %v289
    %v402 = vpack.c.b16 %v298, %v290
    %v403 = vpack.c.b16 %v307, %v299
    %v404 = vpack.c.b16 %v308, %v300
    %v405 = vpack.c.b16 %v309, %v301
    %v406 = vpack.c.b16 %v310, %v302
    %v407 = vpack.c.b16 %v311, %v303
    %v408 = vpack.c.b16 %v312, %v304
    %v409 = vpack.c.b16 %v313, %v305
    %v410 = vpack.c.b16 %v314, %v306
    %v411 = vpack.c.b16 %v323, %v315
    %v412 = vpack.c.b16 %v324, %v316
    %v413 = vpack.c.b16 %v325, %v317
    %v414 = vpack.c.b16 %v326, %v318
    %v415 = vpack.c.b16 %v327, %v319
    %v416 = vpack.c.b16 %v328, %v320
    %v417 = vpack.c.b16 %v329, %v321
    %v418 = vpack.c.b16 %v330, %v322
    %v419 = vpack.c.b16 %v339, %v331
    %v420 = vpack.c.b16 %v340, %v332
    %v421 = vpack.c.b16 %v341, %v333
    %v422 = vpack.c.b16 %v342, %v334
    %v423 = vpack.c.b16 %v343, %v335
    %v424 = vpack.c.b16 %v344, %v336
    %v425 = vpack.c.b16 %v345, %v337
    %v426 = vpack.c.b16 %v346, %v338
    %v427 = vpack.c.b16 %v355, %v347
    %v428 = vpack.c.b16 %v356, %v348
    %v429 = vpack.c.b16 %v357, %v349
    %v430 = vpack.c.b16 %v358, %v350
    %v431 = vpack.c.b16 %v359, %v351
    %v432 = vpack.c.b16 %v360, %v352
    %v433 = vpack.c.b16 %v361, %v353
    %v434 = vpack.c.b16 %v362, %v354
    %v435 = vpack.c.b16 %v371, %v363
    %v436 = vpack.c.b16 %v372, %v364
    %v437 = vpack.c.b16 %v373, %v365
    %v438 = vpack.c.b16 %v374, %v366
    %v439 = vpack.c.b16 %v375, %v367
    %v440 = vpack.c.b16 %v376, %v368
    %v441 = vpack.c.b16 %v377, %v369
    %v442 = vpack.c.b16 %v378, %v370
    %507 = vmatprep.subr.bf16.mxu0 %v380
    %508 = vmatpush1.bf16.msra.mxu0 %v379
    %509 = vmatprep.subr.bf16.mxu0 %v388
    %510 = vmatpush1.bf16.msra.mxu0 %v387
    %511 = vmatprep.subr.bf16.mxu0 %v396
    %512 = vmatpush1.bf16.msra.mxu0 %v395
    %513 = vmatprep.subr.bf16.mxu0 %v404
    %514 = vmatpush1.bf16.msra.mxu0 %v403
    %515 = vmatprep.subr.bf16.mxu0 %v412
    %516 = vmatpush1.bf16.msra.mxu0 %v411
    %517 = vmatprep.subr.bf16.mxu0 %v420
    %518 = vmatpush1.bf16.msra.mxu0 %v419
    %519 = vmatprep.subr.bf16.mxu0 %v428
    %520 = vmatpush1.bf16.msra.mxu0 %v427
    %521 = vmatprep.subr.bf16.mxu0 %v436
    %522 = vmatpush1.bf16.msra.mxu0 %v435
    %523 = vmatprep.subr.bf16.mxu0 0
    %524 = vmatpush1.bf16.msra.mxu0 0
    %525 = vmatprep.subr.bf16.mxu0 0
    %526 = vmatpush1.bf16.msra.mxu0 0
    %527 = vmatprep.subr.bf16.mxu0 0
    %528 = vmatpush1.bf16.msra.mxu0 0
    %529 = vmatprep.subr.bf16.mxu0 0
    %530 = vmatpush1.bf16.msra.mxu0 0
    %531 = vmatprep.subr.bf16.mxu0 0
    %532 = vmatpush1.bf16.msra.mxu0 0
    %533 = vmatprep.subr.bf16.mxu0 0
    %534 = vmatpush1.bf16.msra.mxu0 0
    %535 = vmatprep.subr.bf16.mxu0 0
    %536 = vmatpush1.bf16.msra.mxu0 0
    %537 = vmatprep.subr.bf16.mxu0 0
    %538 = vmatpush1.bf16.msra.mxu0 0
    %539 = vmatprep.mubr.bf16.mxu0 0
    %540 = vmatmul.mubr.bf16.gmra.mrb[0].mxu0 %v185
    %v541 = vpop.f32.mrb[0].mxu0
    %v542 = vadd.f32 0.0, %v541
    %v543 = vpop.f32.mrb[0].mxu0
    %v544 = vadd.f32 0.0, %v543
    %v545 = vpop.f32.mrb[0].mxu0
    %v546 = vadd.f32 0.0, %v545
    %v547 = vpop.f32.mrb[0].mxu0
    %v548 = vadd.f32 0.0, %v547
    %549 = vdwg.mxu0
    %550 = vmatprep.subr.bf16.mxu0 %v382
    %551 = vmatpush1.bf16.msra.mxu0 %v381
    %552 = vmatprep.subr.bf16.mxu0 %v390
    %553 = vmatpush1.bf16.msra.mxu0 %v389
    %554 = vmatprep.subr.bf16.mxu0 %v398
    %555 = vmatpush1.bf16.msra.mxu0 %v397
    %556 = vmatprep.subr.bf16.mxu0 %v406
    %557 = vmatpush1.bf16.msra.mxu0 %v405
    %558 = vmatprep.subr.bf16.mxu0 %v414
    %559 = vmatpush1.bf16.msra.mxu0 %v413
    %560 = vmatprep.subr.bf16.mxu0 %v422
    %561 = vmatpush1.bf16.msra.mxu0 %v421
    %562 = vmatprep.subr.bf16.mxu0 %v430
    %563 = vmatpush1.bf16.msra.mxu0 %v429
    %564 = vmatprep.subr.bf16.mxu0 %v438
    %565 = vmatpush1.bf16.msra.mxu0 %v437
    %566 = vmatprep.subr.bf16.mxu0 0
    %567 = vmatpush1.bf16.msra.mxu0 0
    %568 = vmatprep.subr.bf16.mxu0 0
    %569 = vmatpush1.bf16.msra.mxu0 0
    %570 = vmatprep.subr.bf16.mxu0 0
    %571 = vmatpush1.bf16.msra.mxu0 0
    %572 = vmatprep.subr.bf16.mxu0 0
    %573 = vmatpush1.bf16.msra.mxu0 0
    %574 = vmatprep.subr.bf16.mxu0 0
    %575 = vmatpush1.bf16.msra.mxu0 0
    %576 = vmatprep.subr.bf16.mxu0 0
    %577 = vmatpush1.bf16.msra.mxu0 0
    %578 = vmatprep.subr.bf16.mxu0 0
    %579 = vmatpush1.bf16.msra.mxu0 0
    %580 = vmatprep.subr.bf16.mxu0 0
    %581 = vmatpush1.bf16.msra.mxu0 0
    %582 = vmatprep.mubr.bf16.mxu0 0
    %583 = vmatmul.mubr.bf16.gmra.mrb[0].mxu0 %v185
    %v584 = vpop.f32.mrb[0].mxu0
    %v585 = vadd.f32 0.0, %v584
    %v586 = vpop.f32.mrb[0].mxu0
    %v587 = vadd.f32 0.0, %v586
    %v588 = vpop.f32.mrb[0].mxu0
    %v589 = vadd.f32 0.0, %v588
    %v590 = vpop.f32.mrb[0].mxu0
    %v591 = vadd.f32 0.0, %v590
    %592 = vdwg.mxu0
    %593 = vmatprep.subr.bf16.mxu0 %v384
    %594 = vmatpush1.bf16.msra.mxu0 %v383
    %595 = vmatprep.subr.bf16.mxu0 %v392
    %596 = vmatpush1.bf16.msra.mxu0 %v391
    %597 = vmatprep.subr.bf16.mxu0 %v400
    %598 = vmatpush1.bf16.msra.mxu0 %v399
    %599 = vmatprep.subr.bf16.mxu0 %v408
    %600 = vmatpush1.bf16.msra.mxu0 %v407
    %601 = vmatprep.subr.bf16.mxu0 %v416
    %602 = vmatpush1.bf16.msra.mxu0 %v415
    %603 = vmatprep.subr.bf16.mxu0 %v424
    %604 = vmatpush1.bf16.msra.mxu0 %v423
    %605 = vmatprep.subr.bf16.mxu0 %v432
    %606 = vmatpush1.bf16.msra.mxu0 %v431
    %607 = vmatprep.subr.bf16.mxu0 %v440
    %608 = vmatpush1.bf16.msra.mxu0 %v439
    %609 = vmatprep.subr.bf16.mxu0 0
    %610 = vmatpush1.bf16.msra.mxu0 0
    %611 = vmatprep.subr.bf16.mxu0 0
    %612 = vmatpush1.bf16.msra.mxu0 0
    %613 = vmatprep.subr.bf16.mxu0 0
    %614 = vmatpush1.bf16.msra.mxu0 0
    %615 = vmatprep.subr.bf16.mxu0 0
    %616 = vmatpush1.bf16.msra.mxu0 0
    %617 = vmatprep.subr.bf16.mxu0 0
    %618 = vmatpush1.bf16.msra.mxu0 0
    %619 = vmatprep.subr.bf16.mxu0 0
    %620 = vmatpush1.bf16.msra.mxu0 0
    %621 = vmatprep.subr.bf16.mxu0 0
    %622 = vmatpush1.bf16.msra.mxu0 0
    %623 = vmatprep.subr.bf16.mxu0 0
    %624 = vmatpush1.bf16.msra.mxu0 0
    %625 = vmatprep.mubr.bf16.mxu0 0
    %626 = vmatmul.mubr.bf16.gmra.mrb[0].mxu0 %v185
    %v627 = vpop.f32.mrb[0].mxu0
    %v628 = vadd.f32 0.0, %v627
    %v629 = vpop.f32.mrb[0].mxu0
    %v630 = vadd.f32 0.0, %v629
    %v631 = vpop.f32.mrb[0].mxu0
    %v632 = vadd.f32 0.0, %v631
    %v633 = vpop.f32.mrb[0].mxu0
    %v634 = vadd.f32 0.0, %v633
    %635 = vdwg.mxu0
    %636 = vmatprep.subr.bf16.mxu0 %v386
    %637 = vmatpush1.bf16.msra.mxu0 %v385
    %638 = vmatprep.subr.bf16.mxu0 %v394
    %639 = vmatpush1.bf16.msra.mxu0 %v393
    %640 = vmatprep.subr.bf16.mxu0 %v402
    %641 = vmatpush1.bf16.msra.mxu0 %v401
    %642 = vmatprep.subr.bf16.mxu0 %v410
    %643 = vmatpush1.bf16.msra.mxu0 %v409
    %644 = vmatprep.subr.bf16.mxu0 %v418
    %645 = vmatpush1.bf16.msra.mxu0 %v417
    %646 = vmatprep.subr.bf16.mxu0 %v426
    %647 = vmatpush1.bf16.msra.mxu0 %v425
    %648 = vmatprep.subr.bf16.mxu0 %v434
    %649 = vmatpush1.bf16.msra.mxu0 %v433
    %650 = vmatprep.subr.bf16.mxu0 %v442
    %651 = vmatpush1.bf16.msra.mxu0 %v441
    %652 = vmatprep.subr.bf16.mxu0 0
    %653 = vmatpush1.bf16.msra.mxu0 0
    %654 = vmatprep.subr.bf16.mxu0 0
    %655 = vmatpush1.bf16.msra.mxu0 0
    %656 = vmatprep.subr.bf16.mxu0 0
    %657 = vmatpush1.bf16.msra.mxu0 0
    %658 = vmatprep.subr.bf16.mxu0 0
    %659 = vmatpush1.bf16.msra.mxu0 0
    %660 = vmatprep.subr.bf16.mxu0 0
    %661 = vmatpush1.bf16.msra.mxu0 0
    %662 = vmatprep.subr.bf16.mxu0 0
    %663 = vmatpush1.bf16.msra.mxu0 0
    %664 = vmatprep.subr.bf16.mxu0 0
    %665 = vmatpush1.bf16.msra.mxu0 0
    %666 = vmatprep.subr.bf16.mxu0 0
    %667 = vmatpush1.bf16.msra.mxu0 0
    %668 = vmatprep.mubr.bf16.mxu0 0
    %669 = vmatmul.mubr.bf16.gmra.mrb[0].mxu0 %v185
    %v670 = vpop.f32.mrb[0].mxu0
    %v671 = vadd.f32 0.0, %v670
    %v672 = vpop.f32.mrb[0].mxu0
    %v673 = vadd.f32 0.0, %v672
    %v674 = vpop.f32.mrb[0].mxu0
    %v675 = vadd.f32 0.0, %v674
    %v676 = vpop.f32.mrb[0].mxu0
    %v677 = vadd.f32 0.0, %v676
    %678 = vdwg.mxu0
    %v681 = vunpack.c.l.b16 %v49
    %v682 = vunpack.c.l.b16 %v50
    %v683 = vpack.c.b16 %v682, %v681
    %v749 = vunpack.c.l.b16 %v51
    %v750 = vunpack.c.h.b16 %v51
    %v751 = vunpack.c.l.b16 %v52
    %v752 = vunpack.c.h.b16 %v52
    %v753 = vunpack.c.l.b16 %v53
    %v754 = vunpack.c.h.b16 %v53
    %v755 = vunpack.c.l.b16 %v54
    %v756 = vunpack.c.h.b16 %v54
    %v757 = vunpack.c.l.b16 %v55
    %v758 = vunpack.c.h.b16 %v55
    %v759 = vunpack.c.l.b16 %v56
    %v760 = vunpack.c.h.b16 %v56
    %v761 = vunpack.c.l.b16 %v57
    %v762 = vunpack.c.h.b16 %v57
    %v763 = vunpack.c.l.b16 %v58
    %v764 = vunpack.c.h.b16 %v58
    %v765 = vunpack.c.l.b16 %v59
    %v766 = vunpack.c.h.b16 %v59
    %v767 = vunpack.c.l.b16 %v60
    %v768 = vunpack.c.h.b16 %v60
    %v769 = vunpack.c.l.b16 %v61
    %v770 = vunpack.c.h.b16 %v61
    %v771 = vunpack.c.l.b16 %v62
    %v772 = vunpack.c.h.b16 %v62
    %v773 = vunpack.c.l.b16 %v63
    %v774 = vunpack.c.h.b16 %v63
    %v775 = vunpack.c.l.b16 %v64
    %v776 = vunpack.c.h.b16 %v64
    %v777 = vunpack.c.l.b16 %v65
    %v778 = vunpack.c.h.b16 %v65
    %v779 = vunpack.c.l.b16 %v66
    %v780 = vunpack.c.h.b16 %v66
    %v781 = vunpack.c.l.b16 %v67
    %v782 = vunpack.c.h.b16 %v67
    %v783 = vunpack.c.l.b16 %v68
    %v784 = vunpack.c.h.b16 %v68
    %v785 = vunpack.c.l.b16 %v69
    %v786 = vunpack.c.h.b16 %v69
    %v787 = vunpack.c.l.b16 %v70
    %v788 = vunpack.c.h.b16 %v70
    %v789 = vunpack.c.l.b16 %v71
    %v790 = vunpack.c.h.b16 %v71
    %v791 = vunpack.c.l.b16 %v72
    %v792 = vunpack.c.h.b16 %v72
    %v793 = vunpack.c.l.b16 %v73
    %v794 = vunpack.c.h.b16 %v73
    %v795 = vunpack.c.l.b16 %v74
    %v796 = vunpack.c.h.b16 %v74
    %v797 = vunpack.c.l.b16 %v75
    %v798 = vunpack.c.h.b16 %v75
    %v799 = vunpack.c.l.b16 %v76
    %v800 = vunpack.c.h.b16 %v76
    %v801 = vunpack.c.l.b16 %v77
    %v802 = vunpack.c.h.b16 %v77
    %v803 = vunpack.c.l.b16 %v78
    %v804 = vunpack.c.h.b16 %v78
    %v805 = vunpack.c.l.b16 %v79
    %v806 = vunpack.c.h.b16 %v79
    %v807 = vunpack.c.l.b16 %v80
    %v808 = vunpack.c.h.b16 %v80
    %v809 = vunpack.c.l.b16 %v81
    %v810 = vunpack.c.h.b16 %v81
    %v811 = vunpack.c.l.b16 %v82
    %v812 = vunpack.c.h.b16 %v82
    %v813 = vunpack.c.l.b16 %v83
    %v814 = vunpack.c.h.b16 %v83
    %v815 = vunpack.c.l.b16 %v84
    %v816 = vunpack.c.h.b16 %v84
    %v817 = vunpack.c.l.b16 %v85
    %v818 = vunpack.c.h.b16 %v85
    %v819 = vunpack.c.l.b16 %v86
    %v820 = vunpack.c.h.b16 %v86
    %v821 = vunpack.c.l.b16 %v87
    %v822 = vunpack.c.h.b16 %v87
    %v823 = vunpack.c.l.b16 %v88
    %v824 = vunpack.c.h.b16 %v88
    %v825 = vunpack.c.l.b16 %v89
    %v826 = vunpack.c.h.b16 %v89
    %v827 = vunpack.c.l.b16 %v90
    %v828 = vunpack.c.h.b16 %v90
    %v829 = vunpack.c.l.b16 %v91
    %v830 = vunpack.c.h.b16 %v91
    %v831 = vunpack.c.l.b16 %v92
    %v832 = vunpack.c.h.b16 %v92
    %v833 = vunpack.c.l.b16 %v93
    %v834 = vunpack.c.h.b16 %v93
    %v835 = vunpack.c.l.b16 %v94
    %v836 = vunpack.c.h.b16 %v94
    %v837 = vunpack.c.l.b16 %v95
    %v838 = vunpack.c.h.b16 %v95
    %v839 = vunpack.c.l.b16 %v96
    %v840 = vunpack.c.h.b16 %v96
    %v841 = vunpack.c.l.b16 %v97
    %v842 = vunpack.c.h.b16 %v97
    %v843 = vunpack.c.l.b16 %v98
    %v844 = vunpack.c.h.b16 %v98
    %v845 = vunpack.c.l.b16 %v99
    %v846 = vunpack.c.h.b16 %v99
    %v847 = vunpack.c.l.b16 %v100
    %v848 = vunpack.c.h.b16 %v100
    %v849 = vunpack.c.l.b16 %v101
    %v850 = vunpack.c.h.b16 %v101
    %v851 = vunpack.c.l.b16 %v102
    %v852 = vunpack.c.h.b16 %v102
    %v853 = vunpack.c.l.b16 %v103
    %v854 = vunpack.c.h.b16 %v103
    %v855 = vunpack.c.l.b16 %v104
    %v856 = vunpack.c.h.b16 %v104
    %v857 = vunpack.c.l.b16 %v105
    %v858 = vunpack.c.h.b16 %v105
    %v859 = vunpack.c.l.b16 %v106
    %v860 = vunpack.c.h.b16 %v106
    %v861 = vunpack.c.l.b16 %v107
    %v862 = vunpack.c.h.b16 %v107
    %v863 = vunpack.c.l.b16 %v108
    %v864 = vunpack.c.h.b16 %v108
    %v865 = vunpack.c.l.b16 %v109
    %v866 = vunpack.c.h.b16 %v109
    %v867 = vunpack.c.l.b16 %v110
    %v868 = vunpack.c.h.b16 %v110
    %v869 = vunpack.c.l.b16 %v111
    %v870 = vunpack.c.h.b16 %v111
    %v871 = vunpack.c.l.b16 %v112
    %v872 = vunpack.c.h.b16 %v112
    %v873 = vunpack.c.l.b16 %v113
    %v874 = vunpack.c.h.b16 %v113
    %v875 = vunpack.c.l.b16 %v114
    %v876 = vunpack.c.h.b16 %v114
    %v877 = vpack.c.b16 %v757, %v749
    %v878 = vpack.c.b16 %v758, %v750
    %v879 = vpack.c.b16 %v759, %v751
    %v880 = vpack.c.b16 %v760, %v752
    %v881 = vpack.c.b16 %v761, %v753
    %v882 = vpack.c.b16 %v762, %v754
    %v883 = vpack.c.b16 %v763, %v755
    %v884 = vpack.c.b16 %v764, %v756
    %v885 = vpack.c.b16 %v773, %v765
    %v886 = vpack.c.b16 %v774, %v766
    %v887 = vpack.c.b16 %v775, %v767
    %v888 = vpack.c.b16 %v776, %v768
    %v889 = vpack.c.b16 %v777, %v769
    %v890 = vpack.c.b16 %v778, %v770
    %v891 = vpack.c.b16 %v779, %v771
    %v892 = vpack.c.b16 %v780, %v772
    %v893 = vpack.c.b16 %v789, %v781
    %v894 = vpack.c.b16 %v790, %v782
    %v895 = vpack.c.b16 %v791, %v783
    %v896 = vpack.c.b16 %v792, %v784
    %v897 = vpack.c.b16 %v793, %v785
    %v898 = vpack.c.b16 %v794, %v786
    %v899 = vpack.c.b16 %v795, %v787
    %v900 = vpack.c.b16 %v796, %v788
    %v901 = vpack.c.b16 %v805, %v797
    %v902 = vpack.c.b16 %v806, %v798
    %v903 = vpack.c.b16 %v807, %v799
    %v904 = vpack.c.b16 %v808, %v800
    %v905 = vpack.c.b16 %v809, %v801
    %v906 = vpack.c.b16 %v810, %v802
    %v907 = vpack.c.b16 %v811, %v803
    %v908 = vpack.c.b16 %v812, %v804
    %v909 = vpack.c.b16 %v821, %v813
    %v910 = vpack.c.b16 %v822, %v814
    %v911 = vpack.c.b16 %v823, %v815
    %v912 = vpack.c.b16 %v824, %v816
    %v913 = vpack.c.b16 %v825, %v817
    %v914 = vpack.c.b16 %v826, %v818
    %v915 = vpack.c.b16 %v827, %v819
    %v916 = vpack.c.b16 %v828, %v820
    %v917 = vpack.c.b16 %v837, %v829
    %v918 = vpack.c.b16 %v838, %v830
    %v919 = vpack.c.b16 %v839, %v831
    %v920 = vpack.c.b16 %v840, %v832
    %v921 = vpack.c.b16 %v841, %v833
    %v922 = vpack.c.b16 %v842, %v834
    %v923 = vpack.c.b16 %v843, %v835
    %v924 = vpack.c.b16 %v844, %v836
    %v925 = vpack.c.b16 %v853, %v845
    %v926 = vpack.c.b16 %v854, %v846
    %v927 = vpack.c.b16 %v855, %v847
    %v928 = vpack.c.b16 %v856, %v848
    %v929 = vpack.c.b16 %v857, %v849
    %v930 = vpack.c.b16 %v858, %v850
    %v931 = vpack.c.b16 %v859, %v851
    %v932 = vpack.c.b16 %v860, %v852
    %v933 = vpack.c.b16 %v869, %v861
    %v934 = vpack.c.b16 %v870, %v862
    %v935 = vpack.c.b16 %v871, %v863
    %v936 = vpack.c.b16 %v872, %v864
    %v937 = vpack.c.b16 %v873, %v865
    %v938 = vpack.c.b16 %v874, %v866
    %v939 = vpack.c.b16 %v875, %v867
    %v940 = vpack.c.b16 %v876, %v868
    %1005 = vmatprep.subr.bf16.mxu0 %v878
    %1006 = vmatpush1.bf16.msra.mxu0 %v877
    %1007 = vmatprep.subr.bf16.mxu0 %v886
    %1008 = vmatpush1.bf16.msra.mxu0 %v885
    %1009 = vmatprep.subr.bf16.mxu0 %v894
    %1010 = vmatpush1.bf16.msra.mxu0 %v893
    %1011 = vmatprep.subr.bf16.mxu0 %v902
    %1012 = vmatpush1.bf16.msra.mxu0 %v901
    %1013 = vmatprep.subr.bf16.mxu0 %v910
    %1014 = vmatpush1.bf16.msra.mxu0 %v909
    %1015 = vmatprep.subr.bf16.mxu0 %v918
    %1016 = vmatpush1.bf16.msra.mxu0 %v917
    %1017 = vmatprep.subr.bf16.mxu0 %v926
    %1018 = vmatpush1.bf16.msra.mxu0 %v925
    %1019 = vmatprep.subr.bf16.mxu0 %v934
    %1020 = vmatpush1.bf16.msra.mxu0 %v933
    %1021 = vmatprep.subr.bf16.mxu0 0
    %1022 = vmatpush1.bf16.msra.mxu0 0
    %1023 = vmatprep.subr.bf16.mxu0 0
    %1024 = vmatpush1.bf16.msra.mxu0 0
    %1025 = vmatprep.subr.bf16.mxu0 0
    %1026 = vmatpush1.bf16.msra.mxu0 0
    %1027 = vmatprep.subr.bf16.mxu0 0
    %1028 = vmatpush1.bf16.msra.mxu0 0
    %1029 = vmatprep.subr.bf16.mxu0 0
    %1030 = vmatpush1.bf16.msra.mxu0 0
    %1031 = vmatprep.subr.bf16.mxu0 0
    %1032 = vmatpush1.bf16.msra.mxu0 0
    %1033 = vmatprep.subr.bf16.mxu0 0
    %1034 = vmatpush1.bf16.msra.mxu0 0
    %1035 = vmatprep.subr.bf16.mxu0 0
    %1036 = vmatpush1.bf16.msra.mxu0 0
    %1037 = vmatprep.mubr.bf16.mxu0 0
    %1038 = vmatmul.mubr.bf16.gmra.mrb[0].mxu0 %v683
    %v1039 = vpop.f32.mrb[0].mxu0
    %v1040 = vadd.f32 %v542, %v1039
    %v1041 = vpop.f32.mrb[0].mxu0
    %v1042 = vadd.f32 %v544, %v1041
    %v1043 = vpop.f32.mrb[0].mxu0
    %v1044 = vadd.f32 %v546, %v1043
    %v1045 = vpop.f32.mrb[0].mxu0
    %v1046 = vadd.f32 %v548, %v1045
    %1047 = vdwg.mxu0
    %1048 = vmatprep.subr.bf16.mxu0 %v880
    %1049 = vmatpush1.bf16.msra.mxu0 %v879
    %1050 = vmatprep.subr.bf16.mxu0 %v888
    %1051 = vmatpush1.bf16.msra.mxu0 %v887
    %1052 = vmatprep.subr.bf16.mxu0 %v896
    %1053 = vmatpush1.bf16.msra.mxu0 %v895
    %1054 = vmatprep.subr.bf16.mxu0 %v904
    %1055 = vmatpush1.bf16.msra.mxu0 %v903
    %1056 = vmatprep.subr.bf16.mxu0 %v912
    %1057 = vmatpush1.bf16.msra.mxu0 %v911
    %1058 = vmatprep.subr.bf16.mxu0 %v920
    %1059 = vmatpush1.bf16.msra.mxu0 %v919
    %1060 = vmatprep.subr.bf16.mxu0 %v928
    %1061 = vmatpush1.bf16.msra.mxu0 %v927
    %1062 = vmatprep.subr.bf16.mxu0 %v936
    %1063 = vmatpush1.bf16.msra.mxu0 %v935
    %1064 = vmatprep.subr.bf16.mxu0 0
    %1065 = vmatpush1.bf16.msra.mxu0 0
    %1066 = vmatprep.subr.bf16.mxu0 0
    %1067 = vmatpush1.bf16.msra.mxu0 0
    %1068 = vmatprep.subr.bf16.mxu0 0
    %1069 = vmatpush1.bf16.msra.mxu0 0
    %1070 = vmatprep.subr.bf16.mxu0 0
    %1071 = vmatpush1.bf16.msra.mxu0 0
    %1072 = vmatprep.subr.bf16.mxu0 0
    %1073 = vmatpush1.bf16.msra.mxu0 0
    %1074 = vmatprep.subr.bf16.mxu0 0
    %1075 = vmatpush1.bf16.msra.mxu0 0
    %1076 = vmatprep.subr.bf16.mxu0 0
    %1077 = vmatpush1.bf16.msra.mxu0 0
    %1078 = vmatprep.subr.bf16.mxu0 0
    %1079 = vmatpush1.bf16.msra.mxu0 0
    %1080 = vmatprep.mubr.bf16.mxu0 0
    %1081 = vmatmul.mubr.bf16.gmra.mrb[0].mxu0 %v683
    %v1082 = vpop.f32.mrb[0].mxu0
    %v1083 = vadd.f32 %v585, %v1082
    %v1084 = vpop.f32.mrb[0].mxu0
    %v1085 = vadd.f32 %v587, %v1084
    %v1086 = vpop.f32.mrb[0].mxu0
    %v1087 = vadd.f32 %v589, %v1086
    %v1088 = vpop.f32.mrb[0].mxu0
    %v1089 = vadd.f32 %v591, %v1088
    %1090 = vdwg.mxu0
    %1091 = vmatprep.subr.bf16.mxu0 %v882
    %1092 = vmatpush1.bf16.msra.mxu0 %v881
    %1093 = vmatprep.subr.bf16.mxu0 %v890
    %1094 = vmatpush1.bf16.msra.mxu0 %v889
    %1095 = vmatprep.subr.bf16.mxu0 %v898
    %1096 = vmatpush1.bf16.msra.mxu0 %v897
    %1097 = vmatprep.subr.bf16.mxu0 %v906
    %1098 = vmatpush1.bf16.msra.mxu0 %v905
    %1099 = vmatprep.subr.bf16.mxu0 %v914
    %1100 = vmatpush1.bf16.msra.mxu0 %v913
    %1101 = vmatprep.subr.bf16.mxu0 %v922
    %1102 = vmatpush1.bf16.msra.mxu0 %v921
    %1103 = vmatprep.subr.bf16.mxu0 %v930
    %1104 = vmatpush1.bf16.msra.mxu0 %v929
    %1105 = vmatprep.subr.bf16.mxu0 %v938
    %1106 = vmatpush1.bf16.msra.mxu0 %v937
    %1107 = vmatprep.subr.bf16.mxu0 0
    %1108 = vmatpush1.bf16.msra.mxu0 0
    %1109 = vmatprep.subr.bf16.mxu0 0
    %1110 = vmatpush1.bf16.msra.mxu0 0
    %1111 = vmatprep.subr.bf16.mxu0 0
    %1112 = vmatpush1.bf16.msra.mxu0 0
    %1113 = vmatprep.subr.bf16.mxu0 0
    %1114 = vmatpush1.bf16.msra.mxu0 0
    %1115 = vmatprep.subr.bf16.mxu0 0
    %1116 = vmatpush1.bf16.msra.mxu0 0
    %1117 = vmatprep.subr.bf16.mxu0 0
    %1118 = vmatpush1.bf16.msra.mxu0 0
    %1119 = vmatprep.subr.bf16.mxu0 0
    %1120 = vmatpush1.bf16.msra.mxu0 0
    %1121 = vmatprep.subr.bf16.mxu0 0
    %1122 = vmatpush1.bf16.msra.mxu0 0
    %1123 = vmatprep.mubr.bf16.mxu0 0
    %1124 = vmatmul.mubr.bf16.gmra.mrb[0].mxu0 %v683
    %v1125 = vpop.f32.mrb[0].mxu0
    %v1126 = vadd.f32 %v628, %v1125
    %v1127 = vpop.f32.mrb[0].mxu0
    %v1128 = vadd.f32 %v630, %v1127
    %v1129 = vpop.f32.mrb[0].mxu0
    %v1130 = vadd.f32 %v632, %v1129
    %v1131 = vpop.f32.mrb[0].mxu0
    %v1132 = vadd.f32 %v634, %v1131
    %1133 = vdwg.mxu0
    %1134 = vmatprep.subr.bf16.mxu0 %v884
    %1135 = vmatpush1.bf16.msra.mxu0 %v883
    %1136 = vmatprep.subr.bf16.mxu0 %v892
    %1137 = vmatpush1.bf16.msra.mxu0 %v891
    %1138 = vmatprep.subr.bf16.mxu0 %v900
    %1139 = vmatpush1.bf16.msra.mxu0 %v899
    %1140 = vmatprep.subr.bf16.mxu0 %v908
    %1141 = vmatpush1.bf16.msra.mxu0 %v907
    %1142 = vmatprep.subr.bf16.mxu0 %v916
    %1143 = vmatpush1.bf16.msra.mxu0 %v915
    %1144 = vmatprep.subr.bf16.mxu0 %v924
    %1145 = vmatpush1.bf16.msra.mxu0 %v923
    %1146 = vmatprep.subr.bf16.mxu0 %v932
    %1147 = vmatpush1.bf16.msra.mxu0 %v931
    %1148 = vmatprep.subr.bf16.mxu0 %v940
    %1149 = vmatpush1.bf16.msra.mxu0 %v939
    %1150 = vmatprep.subr.bf16.mxu0 0
    %1151 = vmatpush1.bf16.msra.mxu0 0
    %1152 = vmatprep.subr.bf16.mxu0 0
    %1153 = vmatpush1.bf16.msra.mxu0 0
    %1154 = vmatprep.subr.bf16.mxu0 0
    %1155 = vmatpush1.bf16.msra.mxu0 0
    %1156 = vmatprep.subr.bf16.mxu0 0
    %1157 = vmatpush1.bf16.msra.mxu0 0
    %1158 = vmatprep.subr.bf16.mxu0 0
    %1159 = vmatpush1.bf16.msra.mxu0 0
    %1160 = vmatprep.subr.bf16.mxu0 0
    %1161 = vmatpush1.bf16.msra.mxu0 0
    %1162 = vmatprep.subr.bf16.mxu0 0
    %1163 = vmatpush1.bf16.msra.mxu0 0
    %1164 = vmatprep.subr.bf16.mxu0 0
    %1165 = vmatpush1.bf16.msra.mxu0 0
    %1166 = vmatprep.mubr.bf16.mxu0 0
    %1167 = vmatmul.mubr.bf16.gmra.mrb[0].mxu0 %v683
    %v1168 = vpop.f32.mrb[0].mxu0
    %v1169 = vadd.f32 %v671, %v1168
    %v1170 = vpop.f32.mrb[0].mxu0
    %v1171 = vadd.f32 %v673, %v1170
    %v1172 = vpop.f32.mrb[0].mxu0
    %v1173 = vadd.f32 %v675, %v1172
    %v1174 = vpop.f32.mrb[0].mxu0
    %v1175 = vadd.f32 %v677, %v1174
    %1176 = vdwg.mxu0
    %v1177 = vld [vmem:[%s4] sm:$0xff]
    %v1179 = vlaneseq
    %v1180 = vshrl.u32 %v1179, 7
    %v1181 = vsub.s32 0, %v1180
    %v1182 = vrot.slane %v1177, %v1181
    %v1183 = vlaneseq
    %v1184 = vshrl.u32 %v1183, 7
    %v1185 = vsub.s32 1, %v1184
    %v1186 = vrot.slane %v1177, %v1185
    %v1187 = vlaneseq
    %v1188 = vshrl.u32 %v1187, 7
    %v1189 = vsub.s32 2, %v1188
    %v1190 = vrot.slane %v1177, %v1189
    %v1191 = vlaneseq
    %v1192 = vshrl.u32 %v1191, 7
    %v1193 = vsub.s32 3, %v1192
    %v1194 = vrot.slane %v1177, %v1193
    %v1195 = vlaneseq
    %v1196 = vshrl.u32 %v1195, 7
    %v1197 = vsub.s32 4, %v1196
    %v1198 = vrot.slane %v1177, %v1197
    %v1199 = vlaneseq
    %v1200 = vshrl.u32 %v1199, 7
    %v1201 = vsub.s32 5, %v1200
    %v1202 = vrot.slane %v1177, %v1201
    %v1203 = vlaneseq
    %v1204 = vshrl.u32 %v1203, 7
    %v1205 = vsub.s32 6, %v1204
    %v1206 = vrot.slane %v1177, %v1205
    %v1207 = vlaneseq
    %v1208 = vshrl.u32 %v1207, 7
    %v1209 = vsub.s32 7, %v1208
    %v1210 = vrot.slane %v1177, %v1209
    %v1219 = vadd.f32 %v1040, %v1182
    %v1220 = vadd.f32 %v1042, %v1186
    %v1221 = vadd.f32 %v1083, %v1190
    %v1222 = vadd.f32 %v1085, %v1194
    %v1223 = vadd.f32 %v1126, %v1198
    %v1224 = vadd.f32 %v1128, %v1202
    %v1225 = vadd.f32 %v1169, %v1206
    %v1226 = vadd.f32 %v1171, %v1210
    %v1227 = vadd.f32 %v1044, %v1182
    %v1228 = vadd.f32 %v1046, %v1186
    %v1229 = vadd.f32 %v1087, %v1190
    %v1230 = vadd.f32 %v1089, %v1194
    %v1231 = vadd.f32 %v1130, %v1198
    %v1232 = vadd.f32 %v1132, %v1202
    %v1233 = vadd.f32 %v1173, %v1206
    %v1234 = vadd.f32 %v1175, %v1210
    %1235 = vst [vmem:[%s5] sm:$0xff] %v1219
    %1236 = vst [vmem:[%s5 + $0x8] sm:$0xff] %v1220
    %1237 = vst [vmem:[%s5 + $0x10] sm:$0xff] %v1221
    %1238 = vst [vmem:[%s5 + $0x18] sm:$0xff] %v1222
    %1239 = vst [vmem:[%s5 + $0x20] sm:$0xff] %v1223
    %1240 = vst [vmem:[%s5 + $0x28] sm:$0xff] %v1224
    %1241 = vst [vmem:[%s5 + $0x30] sm:$0xff] %v1225
    %1242 = vst [vmem:[%s5 + $0x38] sm:$0xff] %v1226
    %1243 = vst [vmem:[%s5 + $0x40] sm:$0xff] %v1227
    %1244 = vst [vmem:[%s5 + $0x48] sm:$0xff] %v1228
    %1245 = vst [vmem:[%s5 + $0x50] sm:$0xff] %v1229
    %1246 = vst [vmem:[%s5 + $0x58] sm:$0xff] %v1230
    %1247 = vst [vmem:[%s5 + $0x60] sm:$0xff] %v1231
    %1248 = vst [vmem:[%s5 + $0x68] sm:$0xff] %v1232
    %1249 = vst [vmem:[%s5 + $0x70] sm:$0xff] %v1233
    %1250 = vst [vmem:[%s5 + $0x78] sm:$0xff] %v1234
    // Predicated region
    $region30: #{crnn_forward.9} parent=1 // pred_check
      _
    $region31: #{crnn_forward.9} parent=1 // pred_check_branch
      %1252 = sbr.rel (0) target = $region33
    $region32: #{crnn_forward.9} parent=1 // pred_region
      _
    $region33: #{crnn_forward.9} parent=1 // pred_fallthru
      _
    // Predicated region
    $region34: #{crnn_forward.9} parent=1 // pred_check
      _
    $region35: #{crnn_forward.9} parent=1 // pred_check_branch
      %1254 = sbr.rel (0) target = $region37
    $region36: #{crnn_forward.9} parent=1 // pred_region
      _
    $region37: #{crnn_forward.9} parent=1 // pred_fallthru
      _
    %1255 = vsyncpa [#allocation3], 1
    %1256 = vsyncpa [#allocation5], 1

// kernel: crnn_forward.11
$region0: #{crnn_forward.11}
  #allocation0 [shape = 'u32[]', space=smem, size = 0x4, offset = 0x4, fixed_abs, tag = 'smem constant byte address 0x4 - core index']
  #allocation1 [shape = 'u32[144,128]{1,0:T(1,128)}', space=vmem, size = 0x12000, scoped, tag = 'internal scratch']
  #allocation2 [shape = 'f32[2,512]{1,0:T(2,128)}', space=vmem, size = 0x1000, scoped, tag = 'scratch operand']
  %s0 = inlined_call_operand.vmem [shape: bf16[8,2,128], index: 0, kind: input, shape index: {}]
  %s1 = inlined_call_operand.vmem [shape: bf16[8,2,128], index: 1, kind: input, shape index: {}]
  %s2 = inlined_call_operand.vmem [shape: bf16[8,128,512], index: 2, kind: input, shape index: {}]
  %s3 = inlined_call_operand.vmem [shape: bf16[8,128,512], index: 3, kind: input, shape index: {}]
  %s4 = inlined_call_operand.vmem [shape: f32[1,512], index: 4, kind: input, shape index: {}]
  %s5 = inlined_call_operand.hbm [shape: bf16[512,256], index: 5, kind: input, shape index: {}]
  %s6 = inlined_call_operand.vmem [shape: f32[1,256], index: 6, kind: input, shape index: {}]
  %s7 = inlined_call_operand.hbm [shape: bf16[256,128], index: 7, kind: input, shape index: {}]
  %s8 = inlined_call_operand.vmem [shape: f32[1,128], index: 8, kind: input, shape index: {}]
  %s9 = inlined_call_operand.hbm [shape: f32[2,128], index: 9, kind: output, shape index: {}]
  %s10 = sld [smem:[#allocation0]]
  $region62: #{crnn_forward.11} parent=0
    _
  %s12 = ssub.s32 1, %s10
  %s13 = scalar_select 0, %s12, %s10
  $region1: #{crnn_forward.11} parent=0
    #allocation3 [shape = 'u8[262144]{0}', space=vmem, size = 0x40000, scoped, tag = 'input window, operand 5, single buffered']
    #allocation4 [shape = 's32[1]{0}', space=sflag, size = 0x4, scoped, tag = 'scoped memory for crnn_forward.11']
    #allocation5 [shape = 's32[1]{0}', space=sflag, size = 0x4, scoped, tag = 'scoped memory for crnn_forward.11']
    #allocation6 [shape = 'u8[65536]{0}', space=vmem, size = 0x10000, scoped, tag = 'input window, operand 7, single buffered']
    #allocation7 [shape = 's32[1]{0}', space=sflag, size = 0x4, scoped, tag = 'scoped memory for crnn_forward.11']
    #allocation8 [shape = 'u8[1024]{0}', space=vmem, size = 0x400, scoped, tag = 'output window, operand 0, single buffered']
    %14 = vsyncpa [#allocation4], 0
    %15 = vsyncpa [#allocation7], 0
    %16 = vsyncpa [#allocation5], 0
    // Predicated region
    $region2: #{crnn_forward.11} parent=1 // pred_check
      _
    $region3: #{crnn_forward.11} parent=1 // pred_check_branch
      %18 = sbr.rel (0) target = $region5
    $region4: #{crnn_forward.11} parent=1 // pred_region
      _
    $region5: #{crnn_forward.11} parent=1 // pred_fallthru
      _
    // Predicated region
    $region6: #{crnn_forward.11} parent=1 // pred_check
      _
    $region7: #{crnn_forward.11} parent=1 // pred_check_branch
      %20 = sbr.rel (0) target = $region9
    $region8: #{crnn_forward.11} parent=1 // pred_region
      _
    $region9: #{crnn_forward.11} parent=1 // pred_fallthru
      _
    // Predicated region
    $region10: #{crnn_forward.11} parent=1 // pred_check
      _
    $region11: #{crnn_forward.11} parent=1 // pred_check_branch
      %22 = sbr.rel (0) target = $region13
    $region12: #{crnn_forward.11} parent=1 // pred_region
      _
    $region13: #{crnn_forward.11} parent=1 // pred_fallthru
      _
    // Predicated region
    $region14: #{crnn_forward.11} parent=1 // pred_check
      _
    $region15: #{crnn_forward.11} parent=1 // pred_check_branch
      %24 = sbr.rel (0) target = $region17
    $region16: #{crnn_forward.11} parent=1 // pred_region
      _
    $region17: #{crnn_forward.11} parent=1 // pred_fallthru
      _
    // Predicated region
    $region18: #{crnn_forward.11} parent=1 // pred_check
      _
    $region19: #{crnn_forward.11} parent=1 // pred_check_branch
      %26 = sbr.rel (0) target = $region21
    $region20: #{crnn_forward.11} parent=1 // pred_region
      _
    $region21: #{crnn_forward.11} parent=1 // pred_fallthru
      _
    // Predicated region
    $region22: #{crnn_forward.11} parent=1 // pred_check
      _
    $region23: #{crnn_forward.11} parent=1 // pred_check_branch
      %28 = sbr.rel (0) target = $region25
    $region24: #{crnn_forward.11} parent=1 // pred_region
      %s30 = ssub.s32 8192, 8192
      %31 = vsyncadd [#allocation4], %s30
      %s32 = sshll.u32 [#allocation3], 4
      %s33 = int_to_ptr.vmem [resolvable:$true] %s32
      %38 = dma.hbm_to_vmem [thread:$0]  %s5, 8192, %s33, [#allocation4], 128, 128, 8
    $region25: #{crnn_forward.11} parent=1 // pred_fallthru
      _
    // Predicated region
    $region26: #{crnn_forward.11} parent=1 // pred_check
      _
    $region27: #{crnn_forward.11} parent=1 // pred_check_branch
      %40 = sbr.rel (0) target = $region29
    $region28: #{crnn_forward.11} parent=1 // pred_region
      _
    $region29: #{crnn_forward.11} parent=1 // pred_fallthru
      _
    // Predicated region
    $region30: #{crnn_forward.11} parent=1 // pred_check
      _
    $region31: #{crnn_forward.11} parent=1 // pred_check_branch
      %42 = sbr.rel (0) target = $region33
    $region32: #{crnn_forward.11} parent=1 // pred_region
      %s44 = ssub.s32 2048, 2048
      %45 = vsyncadd [#allocation7], %s44
      %s46 = sshll.u32 [#allocation6], 4
      %s47 = int_to_ptr.vmem [resolvable:$true] %s46
      %52 = dma.hbm_to_vmem [thread:$0]  %s7, 2048, %s47, [#allocation7], 64, 64, 4
    $region33: #{crnn_forward.11} parent=1 // pred_fallthru
      _
    // Predicated region
    $region34: #{crnn_forward.11} parent=1 // pred_check
      _
    $region35: #{crnn_forward.11} parent=1 // pred_check_branch
      %54 = sbr.rel (0) target = $region37
    $region36: #{crnn_forward.11} parent=1 // pred_region
      _
    $region37: #{crnn_forward.11} parent=1 // pred_fallthru
      _
    // Predicated region
    $region38: #{crnn_forward.11} parent=1 // pred_check
      _
    $region39: #{crnn_forward.11} parent=1 // pred_check_branch
      %56 = sbr.rel (0) target = $region41
    $region40: #{crnn_forward.11} parent=1 // pred_region
      %57 = dma.done [#allocation4], 8192
    $region41: #{crnn_forward.11} parent=1 // pred_fallthru
      _
    // Predicated region
    $region42: #{crnn_forward.11} parent=1 // pred_check
      _
    $region43: #{crnn_forward.11} parent=1 // pred_check_branch
      %59 = sbr.rel (0) target = $region45
    $region44: #{crnn_forward.11} parent=1 // pred_region
      %60 = dma.done [#allocation7], 2048
    $region45: #{crnn_forward.11} parent=1 // pred_fallthru
      _
    %p62 = scmp.eq.s32.totalorder 0, 0
    // Predicated region
    $region46: #{crnn_forward.11} parent=1 // pred_check
      %p63 = pneg %p62
    $region47: #{crnn_forward.11} parent=1 // pred_check_branch
      %65 = sbr.rel (%p63) target = $region49
    $region48: #{crnn_forward.11} parent=1 // pred_region
      %66 = vst [vmem:[#allocation2] sm:$0xff] 0.0
    $region49: #{crnn_forward.11} parent=1 // pred_fallthru
      _
    %v67 = vld [vmem:[#allocation2] sm:$0xff]
    %v68 = vld [vmem:[%s0] sm:$0x1]
    %v69 = vld [vmem:[%s2] sm:$0xff]
    %v70 = vld [vmem:[%s2 + $0x8] sm:$0xff]
    %v71 = vld [vmem:[%s2 + $0x10] sm:$0xff]
    %v72 = vld [vmem:[%s2 + $0x18] sm:$0xff]
    %v73 = vld [vmem:[%s2 + $0x20] sm:$0xff]
    %v74 = vld [vmem:[%s2 + $0x28] sm:$0xff]
    %v75 = vld [vmem:[%s2 + $0x30] sm:$0xff]
    %v76 = vld [vmem:[%s2 + $0x38] sm:$0xff]
    %v77 = vld [vmem:[%s2 + $0x40] sm:$0xff]
    %v78 = vld [vmem:[%s2 + $0x48] sm:$0xff]
    %v79 = vld [vmem:[%s2 + $0x50] sm:$0xff]
    %v80 = vld [vmem:[%s2 + $0x58] sm:$0xff]
    %v81 = vld [vmem:[%s2 + $0x60] sm:$0xff]
    %v82 = vld [vmem:[%s2 + $0x68] sm:$0xff]
    %v83 = vld [vmem:[%s2 + $0x70] sm:$0xff]
    %v84 = vld [vmem:[%s2 + $0x78] sm:$0xff]
    %v85 = vld [vmem:[%s2 + $0x80] sm:$0xff]
    %v86 = vld [vmem:[%s2 + $0x88] sm:$0xff]
    %v87 = vld [vmem:[%s2 + $0x90] sm:$0xff]
    %v88 = vld [vmem:[%s2 + $0x98] sm:$0xff]
    %v89 = vld [vmem:[%s2 + $0xa0] sm:$0xff]
    %v90 = vld [vmem:[%s2 + $0xa8] sm:$0xff]
    %v91 = vld [vmem:[%s2 + $0xb0] sm:$0xff]
    %v92 = vld [vmem:[%s2 + $0xb8] sm:$0xff]
    %v93 = vld [vmem:[%s2 + $0xc0] sm:$0xff]
    %v94 = vld [vmem:[%s2 + $0xc8] sm:$0xff]
    %v95 = vld [vmem:[%s2 + $0xd0] sm:$0xff]
    %v96 = vld [vmem:[%s2 + $0xd8] sm:$0xff]
    %v97 = vld [vmem:[%s2 + $0xe0] sm:$0xff]
    %v98 = vld [vmem:[%s2 + $0xe8] sm:$0xff]
    %v99 = vld [vmem:[%s2 + $0xf0] sm:$0xff]
    %v100 = vld [vmem:[%s2 + $0xf8] sm:$0xff]
    %v133 = vunpack.c.l.b16 %v69
    %v134 = vunpack.c.h.b16 %v69
    %v135 = vunpack.c.l.b16 %v70
    %v136 = vunpack.c.h.b16 %v70
    %v137 = vunpack.c.l.b16 %v71
    %v138 = vunpack.c.h.b16 %v71
    %v139 = vunpack.c.l.b16 %v72
    %v140 = vunpack.c.h.b16 %v72
    %v141 = vunpack.c.l.b16 %v73
    %v142 = vunpack.c.h.b16 %v73
    %v143 = vunpack.c.l.b16 %v74
    %v144 = vunpack.c.h.b16 %v74
    %v145 = vunpack.c.l.b16 %v75
    %v146 = vunpack.c.h.b16 %v75
    %v147 = vunpack.c.l.b16 %v76
    %v148 = vunpack.c.h.b16 %v76
    %v149 = vunpack.c.l.b16 %v77
    %v150 = vunpack.c.h.b16 %v77
    %v151 = vunpack.c.l.b16 %v78
    %v152 = vunpack.c.h.b16 %v78
    %v153 = vunpack.c.l.b16 %v79
    %v154 = vunpack.c.h.b16 %v79
    %v155 = vunpack.c.l.b16 %v80
    %v156 = vunpack.c.h.b16 %v80
    %v157 = vunpack.c.l.b16 %v81
    %v158 = vunpack.c.h.b16 %v81
    %v159 = vunpack.c.l.b16 %v82
    %v160 = vunpack.c.h.b16 %v82
    %v161 = vunpack.c.l.b16 %v83
    %v162 = vunpack.c.h.b16 %v83
    %v163 = vunpack.c.l.b16 %v84
    %v164 = vunpack.c.h.b16 %v84
    %v165 = vunpack.c.l.b16 %v85
    %v166 = vunpack.c.h.b16 %v85
    %v167 = vunpack.c.l.b16 %v86
    %v168 = vunpack.c.h.b16 %v86
    %v169 = vunpack.c.l.b16 %v87
    %v170 = vunpack.c.h.b16 %v87
    %v171 = vunpack.c.l.b16 %v88
    %v172 = vunpack.c.h.b16 %v88
    %v173 = vunpack.c.l.b16 %v89
    %v174 = vunpack.c.h.b16 %v89
    %v175 = vunpack.c.l.b16 %v90
    %v176 = vunpack.c.h.b16 %v90
    %v177 = vunpack.c.l.b16 %v91
    %v178 = vunpack.c.h.b16 %v91
    %v179 = vunpack.c.l.b16 %v92
    %v180 = vunpack.c.h.b16 %v92
    %v181 = vunpack.c.l.b16 %v93
    %v182 = vunpack.c.h.b16 %v93
    %v183 = vunpack.c.l.b16 %v94
    %v184 = vunpack.c.h.b16 %v94
    %v185 = vunpack.c.l.b16 %v95
    %v186 = vunpack.c.h.b16 %v95
    %v187 = vunpack.c.l.b16 %v96
    %v188 = vunpack.c.h.b16 %v96
    %v189 = vunpack.c.l.b16 %v97
    %v190 = vunpack.c.h.b16 %v97
    %v191 = vunpack.c.l.b16 %v98
    %v192 = vunpack.c.h.b16 %v98
    %v193 = vunpack.c.l.b16 %v99
    %v194 = vunpack.c.h.b16 %v99
    %v195 = vunpack.c.l.b16 %v100
    %v196 = vunpack.c.h.b16 %v100
    %v197 = vpack.c.b16 %v137, %v133
    %v198 = vpack.c.b16 %v138, %v134
    %v199 = vpack.c.b16 %v139, %v135
    %v200 = vpack.c.b16 %v140, %v136
    %v201 = vpack.c.b16 %v145, %v141
    %v202 = vpack.c.b16 %v146, %v142
    %v203 = vpack.c.b16 %v147, %v143
    %v204 = vpack.c.b16 %v148, %v144
    %v205 = vpack.c.b16 %v153, %v149
    %v206 = vpack.c.b16 %v154, %v150
    %v207 = vpack.c.b16 %v155, %v151
    %v208 = vpack.c.b16 %v156, %v152
    %v209 = vpack.c.b16 %v161, %v157
    %v210 = vpack.c.b16 %v162, %v158
    %v211 = vpack.c.b16 %v163, %v159
    %v212 = vpack.c.b16 %v164, %v160
    %v213 = vpack.c.b16 %v169, %v165
    %v214 = vpack.c.b16 %v170, %v166
    %v215 = vpack.c.b16 %v171, %v167
    %v216 = vpack.c.b16 %v172, %v168
    %v217 = vpack.c.b16 %v177, %v173
    %v218 = vpack.c.b16 %v178, %v174
    %v219 = vpack.c.b16 %v179, %v175
    %v220 = vpack.c.b16 %v180, %v176
    %v221 = vpack.c.b16 %v185, %v181
    %v222 = vpack.c.b16 %v186, %v182
    %v223 = vpack.c.b16 %v187, %v183
    %v224 = vpack.c.b16 %v188, %v184
    %v225 = vpack.c.b16 %v193, %v189
    %v226 = vpack.c.b16 %v194, %v190
    %v227 = vpack.c.b16 %v195, %v191
    %v228 = vpack.c.b16 %v196, %v192
    %261 = vmatprep.subr.bf16.mxu0 %v198
    %262 = vmatpush1.bf16.msra.mxu0 %v197
    %263 = vmatprep.subr.bf16.mxu0 %v202
    %264 = vmatpush1.bf16.msra.mxu0 %v201
    %265 = vmatprep.subr.bf16.mxu0 %v206
    %266 = vmatpush1.bf16.msra.mxu0 %v205
    %267 = vmatprep.subr.bf16.mxu0 %v210
    %268 = vmatpush1.bf16.msra.mxu0 %v209
    %269 = vmatprep.subr.bf16.mxu0 %v214
    %270 = vmatpush1.bf16.msra.mxu0 %v213
    %271 = vmatprep.subr.bf16.mxu0 %v218
    %272 = vmatpush1.bf16.msra.mxu0 %v217
    %273 = vmatprep.subr.bf16.mxu0 %v222
    %274 = vmatpush1.bf16.msra.mxu0 %v221
    %275 = vmatprep.subr.bf16.mxu0 %v226
    %276 = vmatpush1.bf16.msra.mxu0 %v225
    %277 = vmatprep.subr.bf16.mxu0 0
    %278 = vmatpush1.bf16.msra.mxu0 0
    %279 = vmatprep.subr.bf16.mxu0 0
    %280 = vmatpush1.bf16.msra.mxu0 0
    %281 = vmatprep.subr.bf16.mxu0 0
    %282 = vmatpush1.bf16.msra.mxu0 0
    %283 = vmatprep.subr.bf16.mxu0 0
    %284 = vmatpush1.bf16.msra.mxu0 0
    %285 = vmatprep.subr.bf16.mxu0 0
    %286 = vmatpush1.bf16.msra.mxu0 0
    %287 = vmatprep.subr.bf16.mxu0 0
    %288 = vmatpush1.bf16.msra.mxu0 0
    %289 = vmatprep.subr.bf16.mxu0 0
    %290 = vmatpush1.bf16.msra.mxu0 0
    %291 = vmatprep.subr.bf16.mxu0 0
    %292 = vmatpush1.bf16.msra.mxu0 0
    %293 = vmatprep.mubr.bf16.mxu0 0
    %294 = vmatmul.mubr.bf16.gmra.mrb[0].mxu0 %v68
    %v295 = vpop.f32.mrb[0].mxu0
    %v296 = vadd.f32 0.0, %v295
    %v297 = vpop.f32.mrb[0].mxu0
    %v298 = vadd.f32 0.0, %v297
    %v299 = vpop.f32.mrb[0].mxu0
    %v300 = vpop.f32.mrb[0].mxu0
    %301 = vdwg.mxu0
    %302 = vmatprep.subr.bf16.mxu0 %v200
    %303 = vmatpush1.bf16.msra.mxu0 %v199
    %304 = vmatprep.subr.bf16.mxu0 %v204
    %305 = vmatpush1.bf16.msra.mxu0 %v203
    %306 = vmatprep.subr.bf16.mxu0 %v208
    %307 = vmatpush1.bf16.msra.mxu0 %v207
    %308 = vmatprep.subr.bf16.mxu0 %v212
    %309 = vmatpush1.bf16.msra.mxu0 %v211
    %310 = vmatprep.subr.bf16.mxu0 %v216
    %311 = vmatpush1.bf16.msra.mxu0 %v215
    %312 = vmatprep.subr.bf16.mxu0 %v220
    %313 = vmatpush1.bf16.msra.mxu0 %v219
    %314 = vmatprep.subr.bf16.mxu0 %v224
    %315 = vmatpush1.bf16.msra.mxu0 %v223
    %316 = vmatprep.subr.bf16.mxu0 %v228
    %317 = vmatpush1.bf16.msra.mxu0 %v227
    %318 = vmatprep.subr.bf16.mxu0 0
    %319 = vmatpush1.bf16.msra.mxu0 0
    %320 = vmatprep.subr.bf16.mxu0 0
    %321 = vmatpush1.bf16.msra.mxu0 0
    %322 = vmatprep.subr.bf16.mxu0 0
    %323 = vmatpush1.bf16.msra.mxu0 0
    %324 = vmatprep.subr.bf16.mxu0 0
    %325 = vmatpush1.bf16.msra.mxu0 0
    %326 = vmatprep.subr.bf16.mxu0 0
    %327 = vmatpush1.bf16.msra.mxu0 0
    %328 = vmatprep.subr.bf16.mxu0 0
    %329 = vmatpush1.bf16.msra.mxu0 0
    %330 = vmatprep.subr.bf16.mxu0 0
    %331 = vmatpush1.bf16.msra.mxu0 0
    %332 = vmatprep.subr.bf16.mxu0 0
    %333 = vmatpush1.bf16.msra.mxu0 0
    %334 = vmatprep.mubr.bf16.mxu0 0
    %335 = vmatmul.mubr.bf16.gmra.mrb[0].mxu0 %v68
    %v336 = vpop.f32.mrb[0].mxu0
    %v337 = vadd.f32 0.0, %v336
    %v338 = vpop.f32.mrb[0].mxu0
    %v339 = vadd.f32 0.0, %v338
    %v340 = vpop.f32.mrb[0].mxu0
    %v341 = vpop.f32.mrb[0].mxu0
    %342 = vdwg.mxu0
    %v347 = vcombine.low %v296, %v298
    %v348 = vcombine.low %v337, %v339
    %v350 = vunpack.c.l.s4 1983009808
    %v351 = vunpack.c.0.s8 %v350
    %v352 = vlaneseq
    %v353 = vshrl.u32 %v352, 7
    %v354 = vsub.s32 %v351, %v353
    %v355 = vrot.slane %v347, %v354
    %v357 = vunpack.c.l.s4 1983009808
    %v358 = vunpack.c.0.s8 %v357
    %v359 = vlaneseq
    %v360 = vshrl.u32 %v359, 7
    %v361 = vsub.s32 %v358, %v360
    %v362 = vrot.slane %v348, %v361
    %v363 = vcombine.low %v355, %v362
    %v365 = vadd.f32 %v67, %v363
    %v366 = vld [vmem:[%s1] sm:$0x1]
    %v367 = vld [vmem:[%s3] sm:$0xff]
    %v368 = vld [vmem:[%s3 + $0x8] sm:$0xff]
    %v369 = vld [vmem:[%s3 + $0x10] sm:$0xff]
    %v370 = vld [vmem:[%s3 + $0x18] sm:$0xff]
    %v371 = vld [vmem:[%s3 + $0x20] sm:$0xff]
    %v372 = vld [vmem:[%s3 + $0x28] sm:$0xff]
    %v373 = vld [vmem:[%s3 + $0x30] sm:$0xff]
    %v374 = vld [vmem:[%s3 + $0x38] sm:$0xff]
    %v375 = vld [vmem:[%s3 + $0x40] sm:$0xff]
    %v376 = vld [vmem:[%s3 + $0x48] sm:$0xff]
    %v377 = vld [vmem:[%s3 + $0x50] sm:$0xff]
    %v378 = vld [vmem:[%s3 + $0x58] sm:$0xff]
    %v379 = vld [vmem:[%s3 + $0x60] sm:$0xff]
    %v380 = vld [vmem:[%s3 + $0x68] sm:$0xff]
    %v381 = vld [vmem:[%s3 + $0x70] sm:$0xff]
    %v382 = vld [vmem:[%s3 + $0x78] sm:$0xff]
    %v383 = vld [vmem:[%s3 + $0x80] sm:$0xff]
    %v384 = vld [vmem:[%s3 + $0x88] sm:$0xff]
    %v385 = vld [vmem:[%s3 + $0x90] sm:$0xff]
    %v386 = vld [vmem:[%s3 + $0x98] sm:$0xff]
    %v387 = vld [vmem:[%s3 + $0xa0] sm:$0xff]
    %v388 = vld [vmem:[%s3 + $0xa8] sm:$0xff]
    %v389 = vld [vmem:[%s3 + $0xb0] sm:$0xff]
    %v390 = vld [vmem:[%s3 + $0xb8] sm:$0xff]
    %v391 = vld [vmem:[%s3 + $0xc0] sm:$0xff]
    %v392 = vld [vmem:[%s3 + $0xc8] sm:$0xff]
    %v393 = vld [vmem:[%s3 + $0xd0] sm:$0xff]
    %v394 = vld [vmem:[%s3 + $0xd8] sm:$0xff]
    %v395 = vld [vmem:[%s3 + $0xe0] sm:$0xff]
    %v396 = vld [vmem:[%s3 + $0xe8] sm:$0xff]
    %v397 = vld [vmem:[%s3 + $0xf0] sm:$0xff]
    %v398 = vld [vmem:[%s3 + $0xf8] sm:$0xff]
    %v431 = vunpack.c.l.b16 %v367
    %v432 = vunpack.c.h.b16 %v367
    %v433 = vunpack.c.l.b16 %v368
    %v434 = vunpack.c.h.b16 %v368
    %v435 = vunpack.c.l.b16 %v369
    %v436 = vunpack.c.h.b16 %v369
    %v437 = vunpack.c.l.b16 %v370
    %v438 = vunpack.c.h.b16 %v370
    %v439 = vunpack.c.l.b16 %v371
    %v440 = vunpack.c.h.b16 %v371
    %v441 = vunpack.c.l.b16 %v372
    %v442 = vunpack.c.h.b16 %v372
    %v443 = vunpack.c.l.b16 %v373
    %v444 = vunpack.c.h.b16 %v373
    %v445 = vunpack.c.l.b16 %v374
    %v446 = vunpack.c.h.b16 %v374
    %v447 = vunpack.c.l.b16 %v375
    %v448 = vunpack.c.h.b16 %v375
    %v449 = vunpack.c.l.b16 %v376
    %v450 = vunpack.c.h.b16 %v376
    %v451 = vunpack.c.l.b16 %v377
    %v452 = vunpack.c.h.b16 %v377
    %v453 = vunpack.c.l.b16 %v378
    %v454 = vunpack.c.h.b16 %v378
    %v455 = vunpack.c.l.b16 %v379
    %v456 = vunpack.c.h.b16 %v379
    %v457 = vunpack.c.l.b16 %v380
    %v458 = vunpack.c.h.b16 %v380
    %v459 = vunpack.c.l.b16 %v381
    %v460 = vunpack.c.h.b16 %v381
    %v461 = vunpack.c.l.b16 %v382
    %v462 = vunpack.c.h.b16 %v382
    %v463 = vunpack.c.l.b16 %v383
    %v464 = vunpack.c.h.b16 %v383
    %v465 = vunpack.c.l.b16 %v384
    %v466 = vunpack.c.h.b16 %v384
    %v467 = vunpack.c.l.b16 %v385
    %v468 = vunpack.c.h.b16 %v385
    %v469 = vunpack.c.l.b16 %v386
    %v470 = vunpack.c.h.b16 %v386
    %v471 = vunpack.c.l.b16 %v387
    %v472 = vunpack.c.h.b16 %v387
    %v473 = vunpack.c.l.b16 %v388
    %v474 = vunpack.c.h.b16 %v388
    %v475 = vunpack.c.l.b16 %v389
    %v476 = vunpack.c.h.b16 %v389
    %v477 = vunpack.c.l.b16 %v390
    %v478 = vunpack.c.h.b16 %v390
    %v479 = vunpack.c.l.b16 %v391
    %v480 = vunpack.c.h.b16 %v391
    %v481 = vunpack.c.l.b16 %v392
    %v482 = vunpack.c.h.b16 %v392
    %v483 = vunpack.c.l.b16 %v393
    %v484 = vunpack.c.h.b16 %v393
    %v485 = vunpack.c.l.b16 %v394
    %v486 = vunpack.c.h.b16 %v394
    %v487 = vunpack.c.l.b16 %v395
    %v488 = vunpack.c.h.b16 %v395
    %v489 = vunpack.c.l.b16 %v396
    %v490 = vunpack.c.h.b16 %v396
    %v491 = vunpack.c.l.b16 %v397
    %v492 = vunpack.c.h.b16 %v397
    %v493 = vunpack.c.l.b16 %v398
    %v494 = vunpack.c.h.b16 %v398
    %v495 = vpack.c.b16 %v435, %v431
    %v496 = vpack.c.b16 %v436, %v432
    %v497 = vpack.c.b16 %v437, %v433
    %v498 = vpack.c.b16 %v438, %v434
    %v499 = vpack.c.b16 %v443, %v439
    %v500 = vpack.c.b16 %v444, %v440
    %v501 = vpack.c.b16 %v445, %v441
    %v502 = vpack.c.b16 %v446, %v442
    %v503 = vpack.c.b16 %v451, %v447
    %v504 = vpack.c.b16 %v452, %v448
    %v505 = vpack.c.b16 %v453, %v449
    %v506 = vpack.c.b16 %v454, %v450
    %v507 = vpack.c.b16 %v459, %v455
    %v508 = vpack.c.b16 %v460, %v456
    %v509 = vpack.c.b16 %v461, %v457
    %v510 = vpack.c.b16 %v462, %v458
    %v511 = vpack.c.b16 %v467, %v463
    %v512 = vpack.c.b16 %v468, %v464
    %v513 = vpack.c.b16 %v469, %v465
    %v514 = vpack.c.b16 %v470, %v466
    %v515 = vpack.c.b16 %v475, %v471
    %v516 = vpack.c.b16 %v476, %v472
    %v517 = vpack.c.b16 %v477, %v473
    %v518 = vpack.c.b16 %v478, %v474
    %v519 = vpack.c.b16 %v483, %v479
    %v520 = vpack.c.b16 %v484, %v480
    %v521 = vpack.c.b16 %v485, %v481
    %v522 = vpack.c.b16 %v486, %v482
    %v523 = vpack.c.b16 %v491, %v487
    %v524 = vpack.c.b16 %v492, %v488
    %v525 = vpack.c.b16 %v493, %v489
    %v526 = vpack.c.b16 %v494, %v490
    %559 = vmatprep.subr.bf16.mxu0 %v496
    %560 = vmatpush1.bf16.msra.mxu0 %v495
    %561 = vmatprep.subr.bf16.mxu0 %v500
    %562 = vmatpush1.bf16.msra.mxu0 %v499
    %563 = vmatprep.subr.bf16.mxu0 %v504
    %564 = vmatpush1.bf16.msra.mxu0 %v503
    %565 = vmatprep.subr.bf16.mxu0 %v508
    %566 = vmatpush1.bf16.msra.mxu0 %v507
    %567 = vmatprep.subr.bf16.mxu0 %v512
    %568 = vmatpush1.bf16.msra.mxu0 %v511
    %569 = vmatprep.subr.bf16.mxu0 %v516
    %570 = vmatpush1.bf16.msra.mxu0 %v515
    %571 = vmatprep.subr.bf16.mxu0 %v520
    %572 = vmatpush1.bf16.msra.mxu0 %v519
    %573 = vmatprep.subr.bf16.mxu0 %v524
    %574 = vmatpush1.bf16.msra.mxu0 %v523
    %575 = vmatprep.subr.bf16.mxu0 0
    %576 = vmatpush1.bf16.msra.mxu0 0
    %577 = vmatprep.subr.bf16.mxu0 0
    %578 = vmatpush1.bf16.msra.mxu0 0
    %579 = vmatprep.subr.bf16.mxu0 0
    %580 = vmatpush1.bf16.msra.mxu0 0
    %581 = vmatprep.subr.bf16.mxu0 0
    %582 = vmatpush1.bf16.msra.mxu0 0
    %583 = vmatprep.subr.bf16.mxu0 0
    %584 = vmatpush1.bf16.msra.mxu0 0
    %585 = vmatprep.subr.bf16.mxu0 0
    %586 = vmatpush1.bf16.msra.mxu0 0
    %587 = vmatprep.subr.bf16.mxu0 0
    %588 = vmatpush1.bf16.msra.mxu0 0
    %589 = vmatprep.subr.bf16.mxu0 0
    %590 = vmatpush1.bf16.msra.mxu0 0
    %591 = vmatprep.mubr.bf16.mxu0 0
    %592 = vmatmul.mubr.bf16.gmra.mrb[0].mxu0 %v366
    %v593 = vpop.f32.mrb[0].mxu0
    %v594 = vadd.f32 0.0, %v593
    %v595 = vpop.f32.mrb[0].mxu0
    %v596 = vadd.f32 0.0, %v595
    %v597 = vpop.f32.mrb[0].mxu0
    %v598 = vpop.f32.mrb[0].mxu0
    %599 = vdwg.mxu0
    %600 = vmatprep.subr.bf16.mxu0 %v498
    %601 = vmatpush1.bf16.msra.mxu0 %v497
    %602 = vmatprep.subr.bf16.mxu0 %v502
    %603 = vmatpush1.bf16.msra.mxu0 %v501
    %604 = vmatprep.subr.bf16.mxu0 %v506
    %605 = vmatpush1.bf16.msra.mxu0 %v505
    %606 = vmatprep.subr.bf16.mxu0 %v510
    %607 = vmatpush1.bf16.msra.mxu0 %v509
    %608 = vmatprep.subr.bf16.mxu0 %v514
    %609 = vmatpush1.bf16.msra.mxu0 %v513
    %610 = vmatprep.subr.bf16.mxu0 %v518
    %611 = vmatpush1.bf16.msra.mxu0 %v517
    %612 = vmatprep.subr.bf16.mxu0 %v522
    %613 = vmatpush1.bf16.msra.mxu0 %v521
    %614 = vmatprep.subr.bf16.mxu0 %v526
    %615 = vmatpush1.bf16.msra.mxu0 %v525
    %616 = vmatprep.subr.bf16.mxu0 0
    %617 = vmatpush1.bf16.msra.mxu0 0
    %618 = vmatprep.subr.bf16.mxu0 0
    %619 = vmatpush1.bf16.msra.mxu0 0
    %620 = vmatprep.subr.bf16.mxu0 0
    %621 = vmatpush1.bf16.msra.mxu0 0
    %622 = vmatprep.subr.bf16.mxu0 0
    %623 = vmatpush1.bf16.msra.mxu0 0
    %624 = vmatprep.subr.bf16.mxu0 0
    %625 = vmatpush1.bf16.msra.mxu0 0
    %626 = vmatprep.subr.bf16.mxu0 0
    %627 = vmatpush1.bf16.msra.mxu0 0
    %628 = vmatprep.subr.bf16.mxu0 0
    %629 = vmatpush1.bf16.msra.mxu0 0
    %630 = vmatprep.subr.bf16.mxu0 0
    %631 = vmatpush1.bf16.msra.mxu0 0
    %632 = vmatprep.mubr.bf16.mxu0 0
    %633 = vmatmul.mubr.bf16.gmra.mrb[0].mxu0 %v366
    %v634 = vpop.f32.mrb[0].mxu0
    %v635 = vadd.f32 0.0, %v634
    %v636 = vpop.f32.mrb[0].mxu0
    %v637 = vadd.f32 0.0, %v636
    %v638 = vpop.f32.mrb[0].mxu0
    %v639 = vpop.f32.mrb[0].mxu0
    %640 = vdwg.mxu0
    %v645 = vcombine.low %v594, %v596
    %v646 = vcombine.low %v635, %v637
    %v648 = vunpack.c.l.s4 1983009808
    %v649 = vunpack.c.0.s8 %v648
    %v650 = vlaneseq
    %v651 = vshrl.u32 %v650, 7
    %v652 = vsub.s32 %v649, %v651
    %v653 = vrot.slane %v645, %v652
    %v655 = vunpack.c.l.s4 1983009808
    %v656 = vunpack.c.0.s8 %v655
    %v657 = vlaneseq
    %v658 = vshrl.u32 %v657, 7
    %v659 = vsub.s32 %v656, %v658
    %v660 = vrot.slane %v646, %v659
    %v661 = vcombine.low %v653, %v660
    %v663 = vadd.f32 %v365, %v661
    %s664 = scalar_lea.vmem %s0, 1
    %v665 = vld [vmem:[%s664] sm:$0x1]
    %s666 = scalar_lea.vmem %s2, 256
    %v667 = vld [vmem:[%s666] sm:$0xff]
    %v668 = vld [vmem:[%s666 + $0x8] sm:$0xff]
    %v669 = vld [vmem:[%s666 + $0x10] sm:$0xff]
    %v670 = vld [vmem:[%s666 + $0x18] sm:$0xff]
    %v671 = vld [vmem:[%s666 + $0x20] sm:$0xff]
    %v672 = vld [vmem:[%s666 + $0x28] sm:$0xff]
    %v673 = vld [vmem:[%s666 + $0x30] sm:$0xff]
    %v674 = vld [vmem:[%s666 + $0x38] sm:$0xff]
    %v675 = vld [vmem:[%s666 + $0x40] sm:$0xff]
    %v676 = vld [vmem:[%s666 + $0x48] sm:$0xff]
    %v677 = vld [vmem:[%s666 + $0x50] sm:$0xff]
    %v678 = vld [vmem:[%s666 + $0x58] sm:$0xff]
    %v679 = vld [vmem:[%s666 + $0x60] sm:$0xff]
    %v680 = vld [vmem:[%s666 + $0x68] sm:$0xff]
    %v681 = vld [vmem:[%s666 + $0x70] sm:$0xff]
    %v682 = vld [vmem:[%s666 + $0x78] sm:$0xff]
    %v683 = vld [vmem:[%s666 + $0x80] sm:$0xff]
    %v684 = vld [vmem:[%s666 + $0x88] sm:$0xff]
    %v685 = vld [vmem:[%s666 + $0x90] sm:$0xff]
    %v686 = vld [vmem:[%s666 + $0x98] sm:$0xff]
    %v687 = vld [vmem:[%s666 + $0xa0] sm:$0xff]
    %v688 = vld [vmem:[%s666 + $0xa8] sm:$0xff]
    %v689 = vld [vmem:[%s666 + $0xb0] sm:$0xff]
    %v690 = vld [vmem:[%s666 + $0xb8] sm:$0xff]
    %v691 = vld [vmem:[%s666 + $0xc0] sm:$0xff]
    %v692 = vld [vmem:[%s666 + $0xc8] sm:$0xff]
    %v693 = vld [vmem:[%s666 + $0xd0] sm:$0xff]
    %v694 = vld [vmem:[%s666 + $0xd8] sm:$0xff]
    %v695 = vld [vmem:[%s666 + $0xe0] sm:$0xff]
    %v696 = vld [vmem:[%s666 + $0xe8] sm:$0xff]
    %v697 = vld [vmem:[%s666 + $0xf0] sm:$0xff]
    %v698 = vld [vmem:[%s666 + $0xf8] sm:$0xff]
    %v731 = vunpack.c.l.b16 %v667
    %v732 = vunpack.c.h.b16 %v667
    %v733 = vunpack.c.l.b16 %v668
    %v734 = vunpack.c.h.b16 %v668
    %v735 = vunpack.c.l.b16 %v669
    %v736 = vunpack.c.h.b16 %v669
    %v737 = vunpack.c.l.b16 %v670
    %v738 = vunpack.c.h.b16 %v670
    %v739 = vunpack.c.l.b16 %v671
    %v740 = vunpack.c.h.b16 %v671
    %v741 = vunpack.c.l.b16 %v672
    %v742 = vunpack.c.h.b16 %v672
    %v743 = vunpack.c.l.b16 %v673
    %v744 = vunpack.c.h.b16 %v673
    %v745 = vunpack.c.l.b16 %v674
    %v746 = vunpack.c.h.b16 %v674
    %v747 = vunpack.c.l.b16 %v675
    %v748 = vunpack.c.h.b16 %v675
    %v749 = vunpack.c.l.b16 %v676
    %v750 = vunpack.c.h.b16 %v676
    %v751 = vunpack.c.l.b16 %v677
    %v752 = vunpack.c.h.b16 %v677
    %v753 = vunpack.c.l.b16 %v678
    %v754 = vunpack.c.h.b16 %v678
    %v755 = vunpack.c.l.b16 %v679
    %v756 = vunpack.c.h.b16 %v679
    %v757 = vunpack.c.l.b16 %v680
    %v758 = vunpack.c.h.b16 %v680
    %v759 = vunpack.c.l.b16 %v681
    %v760 = vunpack.c.h.b16 %v681
    %v761 = vunpack.c.l.b16 %v682
    %v762 = vunpack.c.h.b16 %v682
    %v763 = vunpack.c.l.b16 %v683
    %v764 = vunpack.c.h.b16 %v683
    %v765 = vunpack.c.l.b16 %v684
    %v766 = vunpack.c.h.b16 %v684
    %v767 = vunpack.c.l.b16 %v685
    %v768 = vunpack.c.h.b16 %v685
    %v769 = vunpack.c.l.b16 %v686
    %v770 = vunpack.c.h.b16 %v686
    %v771 = vunpack.c.l.b16 %v687
    %v772 = vunpack.c.h.b16 %v687
    %v773 = vunpack.c.l.b16 %v688
    %v774 = vunpack.c.h.b16 %v688
    %v775 = vunpack.c.l.b16 %v689
    %v776 = vunpack.c.h.b16 %v689
    %v777 = vunpack.c.l.b16 %v690
    %v778 = vunpack.c.h.b16 %v690
    %v779 = vunpack.c.l.b16 %v691
    %v780 = vunpack.c.h.b16 %v691
    %v781 = vunpack.c.l.b16 %v692
    %v782 = vunpack.c.h.b16 %v692
    %v783 = vunpack.c.l.b16 %v693
    %v784 = vunpack.c.h.b16 %v693
    %v785 = vunpack.c.l.b16 %v694
    %v786 = vunpack.c.h.b16 %v694
    %v787 = vunpack.c.l.b16 %v695
    %v788 = vunpack.c.h.b16 %v695
    %v789 = vunpack.c.l.b16 %v696
    %v790 = vunpack.c.h.b16 %v696
    %v791 = vunpack.c.l.b16 %v697
    %v792 = vunpack.c.h.b16 %v697
    %v793 = vunpack.c.l.b16 %v698
    %v794 = vunpack.c.h.b16 %v698
    %v795 = vpack.c.b16 %v735, %v731
    %v796 = vpack.c.b16 %v736, %v732
    %v797 = vpack.c.b16 %v737, %v733
    %v798 = vpack.c.b16 %v738, %v734
    %v799 = vpack.c.b16 %v743, %v739
    %v800 = vpack.c.b16 %v744, %v740
    %v801 = vpack.c.b16 %v745, %v741
    %v802 = vpack.c.b16 %v746, %v742
    %v803 = vpack.c.b16 %v751, %v747
    %v804 = vpack.c.b16 %v752, %v748
    %v805 = vpack.c.b16 %v753, %v749
    %v806 = vpack.c.b16 %v754, %v750
    %v807 = vpack.c.b16 %v759, %v755
    %v808 = vpack.c.b16 %v760, %v756
    %v809 = vpack.c.b16 %v761, %v757
    %v810 = vpack.c.b16 %v762, %v758
    %v811 = vpack.c.b16 %v767, %v763
    %v812 = vpack.c.b16 %v768, %v764
    %v813 = vpack.c.b16 %v769, %v765
    %v814 = vpack.c.b16 %v770, %v766
    %v815 = vpack.c.b16 %v775, %v771
    %v816 = vpack.c.b16 %v776, %v772
    %v817 = vpack.c.b16 %v777, %v773
    %v818 = vpack.c.b16 %v778, %v774
    %v819 = vpack.c.b16 %v783, %v779
    %v820 = vpack.c.b16 %v784, %v780
    %v821 = vpack.c.b16 %v785, %v781
    %v822 = vpack.c.b16 %v786, %v782
    %v823 = vpack.c.b16 %v791, %v787
    %v824 = vpack.c.b16 %v792, %v788
    %v825 = vpack.c.b16 %v793, %v789
    %v826 = vpack.c.b16 %v794, %v790
    %859 = vmatprep.subr.bf16.mxu0 %v796
    %860 = vmatpush1.bf16.msra.mxu0 %v795
    %861 = vmatprep.subr.bf16.mxu0 %v800
    %862 = vmatpush1.bf16.msra.mxu0 %v799
    %863 = vmatprep.subr.bf16.mxu0 %v804
    %864 = vmatpush1.bf16.msra.mxu0 %v803
    %865 = vmatprep.subr.bf16.mxu0 %v808
    %866 = vmatpush1.bf16.msra.mxu0 %v807
    %867 = vmatprep.subr.bf16.mxu0 %v812
    %868 = vmatpush1.bf16.msra.mxu0 %v811
    %869 = vmatprep.subr.bf16.mxu0 %v816
    %870 = vmatpush1.bf16.msra.mxu0 %v815
    %871 = vmatprep.subr.bf16.mxu0 %v820
    %872 = vmatpush1.bf16.msra.mxu0 %v819
    %873 = vmatprep.subr.bf16.mxu0 %v824
    %874 = vmatpush1.bf16.msra.mxu0 %v823
    %875 = vmatprep.subr.bf16.mxu0 0
    %876 = vmatpush1.bf16.msra.mxu0 0
    %877 = vmatprep.subr.bf16.mxu0 0
    %878 = vmatpush1.bf16.msra.mxu0 0
    %879 = vmatprep.subr.bf16.mxu0 0
    %880 = vmatpush1.bf16.msra.mxu0 0
    %881 = vmatprep.subr.bf16.mxu0 0
    %882 = vmatpush1.bf16.msra.mxu0 0
    %883 = vmatprep.subr.bf16.mxu0 0
    %884 = vmatpush1.bf16.msra.mxu0 0
    %885 = vmatprep.subr.bf16.mxu0 0
    %886 = vmatpush1.bf16.msra.mxu0 0
    %887 = vmatprep.subr.bf16.mxu0 0
    %888 = vmatpush1.bf16.msra.mxu0 0
    %889 = vmatprep.subr.bf16.mxu0 0
    %890 = vmatpush1.bf16.msra.mxu0 0
    %891 = vmatprep.mubr.bf16.mxu0 0
    %892 = vmatmul.mubr.bf16.gmra.mrb[0].mxu0 %v665
    %v893 = vpop.f32.mrb[0].mxu0
    %v894 = vadd.f32 0.0, %v893
    %v895 = vpop.f32.mrb[0].mxu0
    %v896 = vadd.f32 0.0, %v895
    %v897 = vpop.f32.mrb[0].mxu0
    %v898 = vpop.f32.mrb[0].mxu0
    %899 = vdwg.mxu0
    %900 = vmatprep.subr.bf16.mxu0 %v798
    %901 = vmatpush1.bf16.msra.mxu0 %v797
    %902 = vmatprep.subr.bf16.mxu0 %v802
    %903 = vmatpush1.bf16.msra.mxu0 %v801
    %904 = vmatprep.subr.bf16.mxu0 %v806
    %905 = vmatpush1.bf16.msra.mxu0 %v805
    %906 = vmatprep.subr.bf16.mxu0 %v810
    %907 = vmatpush1.bf16.msra.mxu0 %v809
    %908 = vmatprep.subr.bf16.mxu0 %v814
    %909 = vmatpush1.bf16.msra.mxu0 %v813
    %910 = vmatprep.subr.bf16.mxu0 %v818
    %911 = vmatpush1.bf16.msra.mxu0 %v817
    %912 = vmatprep.subr.bf16.mxu0 %v822
    %913 = vmatpush1.bf16.msra.mxu0 %v821
    %914 = vmatprep.subr.bf16.mxu0 %v826
    %915 = vmatpush1.bf16.msra.mxu0 %v825
    %916 = vmatprep.subr.bf16.mxu0 0
    %917 = vmatpush1.bf16.msra.mxu0 0
    %918 = vmatprep.subr.bf16.mxu0 0
    %919 = vmatpush1.bf16.msra.mxu0 0
    %920 = vmatprep.subr.bf16.mxu0 0
    %921 = vmatpush1.bf16.msra.mxu0 0
    %922 = vmatprep.subr.bf16.mxu0 0
    %923 = vmatpush1.bf16.msra.mxu0 0
    %924 = vmatprep.subr.bf16.mxu0 0
    %925 = vmatpush1.bf16.msra.mxu0 0
    %926 = vmatprep.subr.bf16.mxu0 0
    %927 = vmatpush1.bf16.msra.mxu0 0
    %928 = vmatprep.subr.bf16.mxu0 0
    %929 = vmatpush1.bf16.msra.mxu0 0
    %930 = vmatprep.subr.bf16.mxu0 0
    %931 = vmatpush1.bf16.msra.mxu0 0
    %932 = vmatprep.mubr.bf16.mxu0 0
    %933 = vmatmul.mubr.bf16.gmra.mrb[0].mxu0 %v665
    %v934 = vpop.f32.mrb[0].mxu0
    %v935 = vadd.f32 0.0, %v934
    %v936 = vpop.f32.mrb[0].mxu0
    %v937 = vadd.f32 0.0, %v936
    %v938 = vpop.f32.mrb[0].mxu0
    %v939 = vpop.f32.mrb[0].mxu0
    %940 = vdwg.mxu0
    %v945 = vcombine.low %v894, %v896
    %v946 = vcombine.low %v935, %v937
    %v948 = vunpack.c.l.s4 1983009808
    %v949 = vunpack.c.0.s8 %v948
    %v950 = vlaneseq
    %v951 = vshrl.u32 %v950, 7
    %v952 = vsub.s32 %v949, %v951
    %v953 = vrot.slane %v945, %v952
    %v955 = vunpack.c.l.s4 1983009808
    %v956 = vunpack.c.0.s8 %v955
    %v957 = vlaneseq
    %v958 = vshrl.u32 %v957, 7
    %v959 = vsub.s32 %v956, %v958
    %v960 = vrot.slane %v946, %v959
    %v961 = vcombine.low %v953, %v960
    %v963 = vadd.f32 %v663, %v961
    %s964 = scalar_lea.vmem %s1, 1
    %v965 = vld [vmem:[%s964] sm:$0x1]
    %s966 = scalar_lea.vmem %s3, 256
    %v967 = vld [vmem:[%s966] sm:$0xff]
    %v968 = vld [vmem:[%s966 + $0x8] sm:$0xff]
    %v969 = vld [vmem:[%s966 + $0x10] sm:$0xff]
    %v970 = vld [vmem:[%s966 + $0x18] sm:$0xff]
    %v971 = vld [vmem:[%s966 + $0x20] sm:$0xff]
    %v972 = vld [vmem:[%s966 + $0x28] sm:$0xff]
    %v973 = vld [vmem:[%s966 + $0x30] sm:$0xff]
    %v974 = vld [vmem:[%s966 + $0x38] sm:$0xff]
    %v975 = vld [vmem:[%s966 + $0x40] sm:$0xff]
    %v976 = vld [vmem:[%s966 + $0x48] sm:$0xff]
    %v977 = vld [vmem:[%s966 + $0x50] sm:$0xff]
    %v978 = vld [vmem:[%s966 + $0x58] sm:$0xff]
    %v979 = vld [vmem:[%s966 + $0x60] sm:$0xff]
    %v980 = vld [vmem:[%s966 + $0x68] sm:$0xff]
    %v981 = vld [vmem:[%s966 + $0x70] sm:$0xff]
    %v982 = vld [vmem:[%s966 + $0x78] sm:$0xff]
    %v983 = vld [vmem:[%s966 + $0x80] sm:$0xff]
    %v984 = vld [vmem:[%s966 + $0x88] sm:$0xff]
    %v985 = vld [vmem:[%s966 + $0x90] sm:$0xff]
    %v986 = vld [vmem:[%s966 + $0x98] sm:$0xff]
    %v987 = vld [vmem:[%s966 + $0xa0] sm:$0xff]
    %v988 = vld [vmem:[%s966 + $0xa8] sm:$0xff]
    %v989 = vld [vmem:[%s966 + $0xb0] sm:$0xff]
    %v990 = vld [vmem:[%s966 + $0xb8] sm:$0xff]
    %v991 = vld [vmem:[%s966 + $0xc0] sm:$0xff]
    %v992 = vld [vmem:[%s966 + $0xc8] sm:$0xff]
    %v993 = vld [vmem:[%s966 + $0xd0] sm:$0xff]
    %v994 = vld [vmem:[%s966 + $0xd8] sm:$0xff]
    %v995 = vld [vmem:[%s966 + $0xe0] sm:$0xff]
    %v996 = vld [vmem:[%s966 + $0xe8] sm:$0xff]
    %v997 = vld [vmem:[%s966 + $0xf0] sm:$0xff]
    %v998 = vld [vmem:[%s966 + $0xf8] sm:$0xff]
    %v1031 = vunpack.c.l.b16 %v967
    %v1032 = vunpack.c.h.b16 %v967
    %v1033 = vunpack.c.l.b16 %v968
    %v1034 = vunpack.c.h.b16 %v968
    %v1035 = vunpack.c.l.b16 %v969
    %v1036 = vunpack.c.h.b16 %v969
    %v1037 = vunpack.c.l.b16 %v970
    %v1038 = vunpack.c.h.b16 %v970
    %v1039 = vunpack.c.l.b16 %v971
    %v1040 = vunpack.c.h.b16 %v971
    %v1041 = vunpack.c.l.b16 %v972
    %v1042 = vunpack.c.h.b16 %v972
    %v1043 = vunpack.c.l.b16 %v973
    %v1044 = vunpack.c.h.b16 %v973
    %v1045 = vunpack.c.l.b16 %v974
    %v1046 = vunpack.c.h.b16 %v974
    %v1047 = vunpack.c.l.b16 %v975
    %v1048 = vunpack.c.h.b16 %v975
    %v1049 = vunpack.c.l.b16 %v976
    %v1050 = vunpack.c.h.b16 %v976
    %v1051 = vunpack.c.l.b16 %v977
    %v1052 = vunpack.c.h.b16 %v977
    %v1053 = vunpack.c.l.b16 %v978
    %v1054 = vunpack.c.h.b16 %v978
    %v1055 = vunpack.c.l.b16 %v979
    %v1056 = vunpack.c.h.b16 %v979
    %v1057 = vunpack.c.l.b16 %v980
    %v1058 = vunpack.c.h.b16 %v980
    %v1059 = vunpack.c.l.b16 %v981
    %v1060 = vunpack.c.h.b16 %v981
    %v1061 = vunpack.c.l.b16 %v982
    %v1062 = vunpack.c.h.b16 %v982
    %v1063 = vunpack.c.l.b16 %v983
    %v1064 = vunpack.c.h.b16 %v983
    %v1065 = vunpack.c.l.b16 %v984
    %v1066 = vunpack.c.h.b16 %v984
    %v1067 = vunpack.c.l.b16 %v985
    %v1068 = vunpack.c.h.b16 %v985
    %v1069 = vunpack.c.l.b16 %v986
    %v1070 = vunpack.c.h.b16 %v986
    %v1071 = vunpack.c.l.b16 %v987
    %v1072 = vunpack.c.h.b16 %v987
    %v1073 = vunpack.c.l.b16 %v988
    %v1074 = vunpack.c.h.b16 %v988
    %v1075 = vunpack.c.l.b16 %v989
    %v1076 = vunpack.c.h.b16 %v989
    %v1077 = vunpack.c.l.b16 %v990
    %v1078 = vunpack.c.h.b16 %v990
    %v1079 = vunpack.c.l.b16 %v991
    %v1080 = vunpack.c.h.b16 %v991
    %v1081 = vunpack.c.l.b16 %v992
    %v1082 = vunpack.c.h.b16 %v992
    %v1083 = vunpack.c.l.b16 %v993
    %v1084 = vunpack.c.h.b16 %v993
    %v1085 = vunpack.c.l.b16 %v994
    %v1086 = vunpack.c.h.b16 %v994
    %v1087 = vunpack.c.l.b16 %v995
    %v1088 = vunpack.c.h.b16 %v995
    %v1089 = vunpack.c.l.b16 %v996
    %v1090 = vunpack.c.h.b16 %v996
    %v1091 = vunpack.c.l.b16 %v997
    %v1092 = vunpack.c.h.b16 %v997
    %v1093 = vunpack.c.l.b16 %v998
    %v1094 = vunpack.c.h.b16 %v998
    %v1095 = vpack.c.b16 %v1035, %v1031
    %v1096 = vpack.c.b16 %v1036, %v1032
    %v1097 = vpack.c.b16 %v1037, %v1033
    %v1098 = vpack.c.b16 %v1038, %v1034
    %v1099 = vpack.c.b16 %v1043, %v1039
    %v1100 = vpack.c.b16 %v1044, %v1040
    %v1101 = vpack.c.b16 %v1045, %v1041
    %v1102 = vpack.c.b16 %v1046, %v1042
    %v1103 = vpack.c.b16 %v1051, %v1047
    %v1104 = vpack.c.b16 %v1052, %v1048
    %v1105 = vpack.c.b16 %v1053, %v1049
    %v1106 = vpack.c.b16 %v1054, %v1050
    %v1107 = vpack.c.b16 %v1059, %v1055
    %v1108 = vpack.c.b16 %v1060, %v1056
    %v1109 = vpack.c.b16 %v1061, %v1057
    %v1110 = vpack.c.b16 %v1062, %v1058
    %v1111 = vpack.c.b16 %v1067, %v1063
    %v1112 = vpack.c.b16 %v1068, %v1064
    %v1113 = vpack.c.b16 %v1069, %v1065
    %v1114 = vpack.c.b16 %v1070, %v1066
    %v1115 = vpack.c.b16 %v1075, %v1071
    %v1116 = vpack.c.b16 %v1076, %v1072
    %v1117 = vpack.c.b16 %v1077, %v1073
    %v1118 = vpack.c.b16 %v1078, %v1074
    %v1119 = vpack.c.b16 %v1083, %v1079
    %v1120 = vpack.c.b16 %v1084, %v1080
    %v1121 = vpack.c.b16 %v1085, %v1081
    %v1122 = vpack.c.b16 %v1086, %v1082
    %v1123 = vpack.c.b16 %v1091, %v1087
    %v1124 = vpack.c.b16 %v1092, %v1088
    %v1125 = vpack.c.b16 %v1093, %v1089
    %v1126 = vpack.c.b16 %v1094, %v1090
    %1159 = vmatprep.subr.bf16.mxu0 %v1096
    %1160 = vmatpush1.bf16.msra.mxu0 %v1095
    %1161 = vmatprep.subr.bf16.mxu0 %v1100
    %1162 = vmatpush1.bf16.msra.mxu0 %v1099
    %1163 = vmatprep.subr.bf16.mxu0 %v1104
    %1164 = vmatpush1.bf16.msra.mxu0 %v1103
    %1165 = vmatprep.subr.bf16.mxu0 %v1108
    %1166 = vmatpush1.bf16.msra.mxu0 %v1107
    %1167 = vmatprep.subr.bf16.mxu0 %v1112
    %1168 = vmatpush1.bf16.msra.mxu0 %v1111
    %1169 = vmatprep.subr.bf16.mxu0 %v1116
    %1170 = vmatpush1.bf16.msra.mxu0 %v1115
    %1171 = vmatprep.subr.bf16.mxu0 %v1120
    %1172 = vmatpush1.bf16.msra.mxu0 %v1119
    %1173 = vmatprep.subr.bf16.mxu0 %v1124
    %1174 = vmatpush1.bf16.msra.mxu0 %v1123
    %1175 = vmatprep.subr.bf16.mxu0 0
    %1176 = vmatpush1.bf16.msra.mxu0 0
    %1177 = vmatprep.subr.bf16.mxu0 0
    %1178 = vmatpush1.bf16.msra.mxu0 0
    %1179 = vmatprep.subr.bf16.mxu0 0
    %1180 = vmatpush1.bf16.msra.mxu0 0
    %1181 = vmatprep.subr.bf16.mxu0 0
    %1182 = vmatpush1.bf16.msra.mxu0 0
    %1183 = vmatprep.subr.bf16.mxu0 0
    %1184 = vmatpush1.bf16.msra.mxu0 0
    %1185 = vmatprep.subr.bf16.mxu0 0
    %1186 = vmatpush1.bf16.msra.mxu0 0
    %1187 = vmatprep.subr.bf16.mxu0 0
    %1188 = vmatpush1.bf16.msra.mxu0 0
    %1189 = vmatprep.subr.bf16.mxu0 0
    %1190 = vmatpush1.bf16.msra.mxu0 0
    %1191 = vmatprep.mubr.bf16.mxu0 0
    %1192 = vmatmul.mubr.bf16.gmra.mrb[0].mxu0 %v965
    %v1193 = vpop.f32.mrb[0].mxu0
    %v1194 = vadd.f32 0.0, %v1193
    %v1195 = vpop.f32.mrb[0].mxu0
    %v1196 = vadd.f32 0.0, %v1195
    %v1197 = vpop.f32.mrb[0].mxu0
    %v1198 = vpop.f32.mrb[0].mxu0
    %1199 = vdwg.mxu0
    %1200 = vmatprep.subr.bf16.mxu0 %v1098
    %1201 = vmatpush1.bf16.msra.mxu0 %v1097
    %1202 = vmatprep.subr.bf16.mxu0 %v1102
    %1203 = vmatpush1.bf16.msra.mxu0 %v1101
    %1204 = vmatprep.subr.bf16.mxu0 %v1106
    %1205 = vmatpush1.bf16.msra.mxu0 %v1105
    %1206 = vmatprep.subr.bf16.mxu0 %v1110
    %1207 = vmatpush1.bf16.msra.mxu0 %v1109
    %1208 = vmatprep.subr.bf16.mxu0 %v1114
    %1209 = vmatpush1.bf16.msra.mxu0 %v1113
    %1210 = vmatprep.subr.bf16.mxu0 %v1118
    %1211 = vmatpush1.bf16.msra.mxu0 %v1117
    %1212 = vmatprep.subr.bf16.mxu0 %v1122
    %1213 = vmatpush1.bf16.msra.mxu0 %v1121
    %1214 = vmatprep.subr.bf16.mxu0 %v1126
    %1215 = vmatpush1.bf16.msra.mxu0 %v1125
    %1216 = vmatprep.subr.bf16.mxu0 0
    %1217 = vmatpush1.bf16.msra.mxu0 0
    %1218 = vmatprep.subr.bf16.mxu0 0
    %1219 = vmatpush1.bf16.msra.mxu0 0
    %1220 = vmatprep.subr.bf16.mxu0 0
    %1221 = vmatpush1.bf16.msra.mxu0 0
    %1222 = vmatprep.subr.bf16.mxu0 0
    %1223 = vmatpush1.bf16.msra.mxu0 0
    %1224 = vmatprep.subr.bf16.mxu0 0
    %1225 = vmatpush1.bf16.msra.mxu0 0
    %1226 = vmatprep.subr.bf16.mxu0 0
    %1227 = vmatpush1.bf16.msra.mxu0 0
    %1228 = vmatprep.subr.bf16.mxu0 0
    %1229 = vmatpush1.bf16.msra.mxu0 0
    %1230 = vmatprep.subr.bf16.mxu0 0
    %1231 = vmatpush1.bf16.msra.mxu0 0
    %1232 = vmatprep.mubr.bf16.mxu0 0
    %1233 = vmatmul.mubr.bf16.gmra.mrb[0].mxu0 %v965
    %v1234 = vpop.f32.mrb[0].mxu0
    %v1235 = vadd.f32 0.0, %v1234
    %v1236 = vpop.f32.mrb[0].mxu0
    %v1237 = vadd.f32 0.0, %v1236
    %v1238 = vpop.f32.mrb[0].mxu0
    %v1239 = vpop.f32.mrb[0].mxu0
    %1240 = vdwg.mxu0
    %v1245 = vcombine.low %v1194, %v1196
    %v1246 = vcombine.low %v1235, %v1237
    %v1248 = vunpack.c.l.s4 1983009808
    %v1249 = vunpack.c.0.s8 %v1248
    %v1250 = vlaneseq
    %v1251 = vshrl.u32 %v1250, 7
    %v1252 = vsub.s32 %v1249, %v1251
    %v1253 = vrot.slane %v1245, %v1252
    %v1255 = vunpack.c.l.s4 1983009808
    %v1256 = vunpack.c.0.s8 %v1255
    %v1257 = vlaneseq
    %v1258 = vshrl.u32 %v1257, 7
    %v1259 = vsub.s32 %v1256, %v1258
    %v1260 = vrot.slane %v1246, %v1259
    %v1261 = vcombine.low %v1253, %v1260
    %v1263 = vadd.f32 %v963, %v1261
    %s1264 = scalar_lea.vmem %s0, 2
    %v1265 = vld [vmem:[%s1264] sm:$0x1]
    %s1266 = scalar_lea.vmem %s2, 512
    %v1267 = vld [vmem:[%s1266] sm:$0xff]
    %v1268 = vld [vmem:[%s1266 + $0x8] sm:$0xff]
    %v1269 = vld [vmem:[%s1266 + $0x10] sm:$0xff]
    %v1270 = vld [vmem:[%s1266 + $0x18] sm:$0xff]
    %v1271 = vld [vmem:[%s1266 + $0x20] sm:$0xff]
    %v1272 = vld [vmem:[%s1266 + $0x28] sm:$0xff]
    %v1273 = vld [vmem:[%s1266 + $0x30] sm:$0xff]
    %v1274 = vld [vmem:[%s1266 + $0x38] sm:$0xff]
    %v1275 = vld [vmem:[%s1266 + $0x40] sm:$0xff]
    %v1276 = vld [vmem:[%s1266 + $0x48] sm:$0xff]
    %v1277 = vld [vmem:[%s1266 + $0x50] sm:$0xff]
    %v1278 = vld [vmem:[%s1266 + $0x58] sm:$0xff]
    %v1279 = vld [vmem:[%s1266 + $0x60] sm:$0xff]
    %v1280 = vld [vmem:[%s1266 + $0x68] sm:$0xff]
    %v1281 = vld [vmem:[%s1266 + $0x70] sm:$0xff]
    %v1282 = vld [vmem:[%s1266 + $0x78] sm:$0xff]
    %v1283 = vld [vmem:[%s1266 + $0x80] sm:$0xff]
    %v1284 = vld [vmem:[%s1266 + $0x88] sm:$0xff]
    %v1285 = vld [vmem:[%s1266 + $0x90] sm:$0xff]
    %v1286 = vld [vmem:[%s1266 + $0x98] sm:$0xff]
    %v1287 = vld [vmem:[%s1266 + $0xa0] sm:$0xff]
    %v1288 = vld [vmem:[%s1266 + $0xa8] sm:$0xff]
    %v1289 = vld [vmem:[%s1266 + $0xb0] sm:$0xff]
    %v1290 = vld [vmem:[%s1266 + $0xb8] sm:$0xff]
    %v1291 = vld [vmem:[%s1266 + $0xc0] sm:$0xff]
    %v1292 = vld [vmem:[%s1266 + $0xc8] sm:$0xff]
    %v1293 = vld [vmem:[%s1266 + $0xd0] sm:$0xff]
    %v1294 = vld [vmem:[%s1266 + $0xd8] sm:$0xff]
    %v1295 = vld [vmem:[%s1266 + $0xe0] sm:$0xff]
    %v1296 = vld [vmem:[%s1266 + $0xe8] sm:$0xff]
    %v1297 = vld [vmem:[%s1266 + $0xf0] sm:$0xff]
    %v1298 = vld [vmem:[%s1266 + $0xf8] sm:$0xff]
    %v1331 = vunpack.c.l.b16 %v1267
    %v1332 = vunpack.c.h.b16 %v1267
    %v1333 = vunpack.c.l.b16 %v1268
    %v1334 = vunpack.c.h.b16 %v1268
    %v1335 = vunpack.c.l.b16 %v1269
    %v1336 = vunpack.c.h.b16 %v1269
    %v1337 = vunpack.c.l.b16 %v1270
    %v1338 = vunpack.c.h.b16 %v1270
    %v1339 = vunpack.c.l.b16 %v1271
    %v1340 = vunpack.c.h.b16 %v1271
    %v1341 = vunpack.c.l.b16 %v1272
    %v1342 = vunpack.c.h.b16 %v1272
    %v1343 = vunpack.c.l.b16 %v1273
    %v1344 = vunpack.c.h.b16 %v1273
    %v1345 = vunpack.c.l.b16 %v1274
    %v1346 = vunpack.c.h.b16 %v1274
    %v1347 = vunpack.c.l.b16 %v1275
    %v1348 = vunpack.c.h.b16 %v1275
    %v1349 = vunpack.c.l.b16 %v1276
    %v1350 = vunpack.c.h.b16 %v1276
    %v1351 = vunpack.c.l.b16 %v1277
    %v1352 = vunpack.c.h.b16 %v1277
    %v1353 = vunpack.c.l.b16 %v1278
    %v1354 = vunpack.c.h.b16 %v1278
    %v1355 = vunpack.c.l.b16 %v1279
    %v1356 = vunpack.c.h.b16 %v1279
    %v1357 = vunpack.c.l.b16 %v1280
    %v1358 = vunpack.c.h.b16 %v1280
    %v1359 = vunpack.c.l.b16 %v1281
    %v1360 = vunpack.c.h.b16 %v1281
    %v1361 = vunpack.c.l.b16 %v1282
    %v1362 = vunpack.c.h.b16 %v1282
    %v1363 = vunpack.c.l.b16 %v1283
    %v1364 = vunpack.c.h.b16 %v1283
    %v1365 = vunpack.c.l.b16 %v1284
    %v1366 = vunpack.c.h.b16 %v1284
    %v1367 = vunpack.c.l.b16 %v1285
    %v1368 = vunpack.c.h.b16 %v1285
    %v1369 = vunpack.c.l.b16 %v1286
    %v1370 = vunpack.c.h.b16 %v1286
    %v1371 = vunpack.c.l.b16 %v1287
    %v1372 = vunpack.c.h.b16 %v1287
    %v1373 = vunpack.c.l.b16 %v1288
    %v1374 = vunpack.c.h.b16 %v1288
    %v1375 = vunpack.c.l.b16 %v1289
    %v1376 = vunpack.c.h.b16 %v1289
    %v1377 = vunpack.c.l.b16 %v1290
    %v1378 = vunpack.c.h.b16 %v1290
    %v1379 = vunpack.c.l.b16 %v1291
    %v1380 = vunpack.c.h.b16 %v1291
    %v1381 = vunpack.c.l.b16 %v1292
    %v1382 = vunpack.c.h.b16 %v1292
    %v1383 = vunpack.c.l.b16 %v1293
    %v1384 = vunpack.c.h.b16 %v1293
    %v1385 = vunpack.c.l.b16 %v1294
    %v1386 = vunpack.c.h.b16 %v1294
    %v1387 = vunpack.c.l.b16 %v1295
    %v1388 = vunpack.c.h.b16 %v1295
    %v1389 = vunpack.c.l.b16 %v1296
    %v1390 = vunpack.c.h.b16 %v1296
    %v1391 = vunpack.c.l.b16 %v1297
    %v1392 = vunpack.c.h.b16 %v1297
    %v1393 = vunpack.c.l.b16 %v1298
    %v1394 = vunpack.c.h.b16 %v1298
    %v1395 = vpack.c.b16 %v1335, %v1331
    %v1396 = vpack.c.b16 %v1336, %v1332
    %v1397 = vpack.c.b16 %v1337, %v1333
    %v1398 = vpack.c.b16 %v1338, %v1334
    %v1399 = vpack.c.b16 %v1343, %v1339
    %v1400 = vpack.c.b16 %v1344, %v1340
    %v1401 = vpack.c.b16 %v1345, %v1341
    %v1402 = vpack.c.b16 %v1346, %v1342
    %v1403 = vpack.c.b16 %v1351, %v1347
    %v1404 = vpack.c.b16 %v1352, %v1348
    %v1405 = vpack.c.b16 %v1353, %v1349
    %v1406 = vpack.c.b16 %v1354, %v1350
    %v1407 = vpack.c.b16 %v1359, %v1355
    %v1408 = vpack.c.b16 %v1360, %v1356
    %v1409 = vpack.c.b16 %v1361, %v1357
    %v1410 = vpack.c.b16 %v1362, %v1358
    %v1411 = vpack.c.b16 %v1367, %v1363
    %v1412 = vpack.c.b16 %v1368, %v1364
    %v1413 = vpack.c.b16 %v1369, %v1365
    %v1414 = vpack.c.b16 %v1370, %v1366
    %v1415 = vpack.c.b16 %v1375, %v1371
    %v1416 = vpack.c.b16 %v1376, %v1372
    %v1417 = vpack.c.b16 %v1377, %v1373
    %v1418 = vpack.c.b16 %v1378, %v1374
    %v1419 = vpack.c.b16 %v1383, %v1379
    %v1420 = vpack.c.b16 %v1384, %v1380
    %v1421 = vpack.c.b16 %v1385, %v1381
    %v1422 = vpack.c.b16 %v1386, %v1382
    %v1423 = vpack.c.b16 %v1391, %v1387
    %v1424 = vpack.c.b16 %v1392, %v1388
    %v1425 = vpack.c.b16 %v1393, %v1389
    %v1426 = vpack.c.b16 %v1394, %v1390
    %1459 = vmatprep.subr.bf16.mxu0 %v1396
    %1460 = vmatpush1.bf16.msra.mxu0 %v1395
    %1461 = vmatprep.subr.bf16.mxu0 %v1400
    %1462 = vmatpush1.bf16.msra.mxu0 %v1399
    %1463 = vmatprep.subr.bf16.mxu0 %v1404
    %1464 = vmatpush1.bf16.msra.mxu0 %v1403
    %1465 = vmatprep.subr.bf16.mxu0 %v1408
    %1466 = vmatpush1.bf16.msra.mxu0 %v1407
    %1467 = vmatprep.subr.bf16.mxu0 %v1412
    %1468 = vmatpush1.bf16.msra.mxu0 %v1411
    %1469 = vmatprep.subr.bf16.mxu0 %v1416
    %1470 = vmatpush1.bf16.msra.mxu0 %v1415
    %1471 = vmatprep.subr.bf16.mxu0 %v1420
    %1472 = vmatpush1.bf16.msra.mxu0 %v1419
    %1473 = vmatprep.subr.bf16.mxu0 %v1424
    %1474 = vmatpush1.bf16.msra.mxu0 %v1423
    %1475 = vmatprep.subr.bf16.mxu0 0
    %1476 = vmatpush1.bf16.msra.mxu0 0
    %1477 = vmatprep.subr.bf16.mxu0 0
    %1478 = vmatpush1.bf16.msra.mxu0 0
    %1479 = vmatprep.subr.bf16.mxu0 0
    %1480 = vmatpush1.bf16.msra.mxu0 0
    %1481 = vmatprep.subr.bf16.mxu0 0
    %1482 = vmatpush1.bf16.msra.mxu0 0
    %1483 = vmatprep.subr.bf16.mxu0 0
    %1484 = vmatpush1.bf16.msra.mxu0 0
    %1485 = vmatprep.subr.bf16.mxu0 0
    %1486 = vmatpush1.bf16.msra.mxu0 0
    %1487 = vmatprep.subr.bf16.mxu0 0
    %1488 = vmatpush1.bf16.msra.mxu0 0
    %1489 = vmatprep.subr.bf16.mxu0 0
    %1490 = vmatpush1.bf16.msra.mxu0 0
    %1491 = vmatprep.mubr.bf16.mxu0 0
    %1492 = vmatmul.mubr.bf16.gmra.mrb[0].mxu0 %v1265
    %v1493 = vpop.f32.mrb[0].mxu0
    %v1494 = vadd.f32 0.0, %v1493
    %v1495 = vpop.f32.mrb[0].mxu0
    %v1496 = vadd.f32 0.0, %v1495
    %v1497 = vpop.f32.mrb[0].mxu0
    %v1498 = vpop.f32.mrb[0].mxu0
    %1499 = vdwg.mxu0
    %1500 = vmatprep.subr.bf16.mxu0 %v1398
    %1501 = vmatpush1.bf16.msra.mxu0 %v1397
    %1502 = vmatprep.subr.bf16.mxu0 %v1402
    %1503 = vmatpush1.bf16.msra.mxu0 %v1401
    %1504 = vmatprep.subr.bf16.mxu0 %v1406
    %1505 = vmatpush1.bf16.msra.mxu0 %v1405
    %1506 = vmatprep.subr.bf16.mxu0 %v1410
    %1507 = vmatpush1.bf16.msra.mxu0 %v1409
    %1508 = vmatprep.subr.bf16.mxu0 %v1414
    %1509 = vmatpush1.bf16.msra.mxu0 %v1413
    %1510 = vmatprep.subr.bf16.mxu0 %v1418
    %1511 = vmatpush1.bf16.msra.mxu0 %v1417
    %1512 = vmatprep.subr.bf16.mxu0 %v1422
    %1513 = vmatpush1.bf16.msra.mxu0 %v1421
    %1514 = vmatprep.subr.bf16.mxu0 %v1426
    %1515 = vmatpush1.bf16.msra.mxu0 %v1425
    %1516 = vmatprep.subr.bf16.mxu0 0
    %1517 = vmatpush1.bf16.msra.mxu0 0
    %1518 = vmatprep.subr.bf16.mxu0 0
    %1519 = vmatpush1.bf16.msra.mxu0 0
    %1520 = vmatprep.subr.bf16.mxu0 0
    %1521 = vmatpush1.bf16.msra.mxu0 0
    %1522 = vmatprep.subr.bf16.mxu0 0
    %1523 = vmatpush1.bf16.msra.mxu0 0
    %1524 = vmatprep.subr.bf16.mxu0 0
    %1525 = vmatpush1.bf16.msra.mxu0 0
    %1526 = vmatprep.subr.bf16.mxu0 0
    %1527 = vmatpush1.bf16.msra.mxu0 0
    %1528 = vmatprep.subr.bf16.mxu0 0
    %1529 = vmatpush1.bf16.msra.mxu0 0
    %1530 = vmatprep.subr.bf16.mxu0 0
    %1531 = vmatpush1.bf16.msra.mxu0 0
    %1532 = vmatprep.mubr.bf16.mxu0 0
    %1533 = vmatmul.mubr.bf16.gmra.mrb[0].mxu0 %v1265
    %v1534 = vpop.f32.mrb[0].mxu0
    %v1535 = vadd.f32 0.0, %v1534
    %v1536 = vpop.f32.mrb[0].mxu0
    %v1537 = vadd.f32 0.0, %v1536
    %v1538 = vpop.f32.mrb[0].mxu0
    %v1539 = vpop.f32.mrb[0].mxu0
    %1540 = vdwg.mxu0
    %v1545 = vcombine.low %v1494, %v1496
    %v1546 = vcombine.low %v1535, %v1537
    %v1548 = vunpack.c.l.s4 1983009808
    %v1549 = vunpack.c.0.s8 %v1548
    %v1550 = vlaneseq
    %v1551 = vshrl.u32 %v1550, 7
    %v1552 = vsub.s32 %v1549, %v1551
    %v1553 = vrot.slane %v1545, %v1552
    %v1555 = vunpack.c.l.s4 1983009808
    %v1556 = vunpack.c.0.s8 %v1555
    %v1557 = vlaneseq
    %v1558 = vshrl.u32 %v1557, 7
    %v1559 = vsub.s32 %v1556, %v1558
    %v1560 = vrot.slane %v1546, %v1559
    %v1561 = vcombine.low %v1553, %v1560
    %v1563 = vadd.f32 %v1263, %v1561
    %s1564 = scalar_lea.vmem %s1, 2
    %v1565 = vld [vmem:[%s1564] sm:$0x1]
    %s1566 = scalar_lea.vmem %s3, 512
    %v1567 = vld [vmem:[%s1566] sm:$0xff]
    %v1568 = vld [vmem:[%s1566 + $0x8] sm:$0xff]
    %v1569 = vld [vmem:[%s1566 + $0x10] sm:$0xff]
    %v1570 = vld [vmem:[%s1566 + $0x18] sm:$0xff]
    %v1571 = vld [vmem:[%s1566 + $0x20] sm:$0xff]
    %v1572 = vld [vmem:[%s1566 + $0x28] sm:$0xff]
    %v1573 = vld [vmem:[%s1566 + $0x30] sm:$0xff]
    %v1574 = vld [vmem:[%s1566 + $0x38] sm:$0xff]
    %v1575 = vld [vmem:[%s1566 + $0x40] sm:$0xff]
    %v1576 = vld [vmem:[%s1566 + $0x48] sm:$0xff]
    %v1577 = vld [vmem:[%s1566 + $0x50] sm:$0xff]
    %v1578 = vld [vmem:[%s1566 + $0x58] sm:$0xff]
    %v1579 = vld [vmem:[%s1566 + $0x60] sm:$0xff]
    %v1580 = vld [vmem:[%s1566 + $0x68] sm:$0xff]
    %v1581 = vld [vmem:[%s1566 + $0x70] sm:$0xff]
    %v1582 = vld [vmem:[%s1566 + $0x78] sm:$0xff]
    %v1583 = vld [vmem:[%s1566 + $0x80] sm:$0xff]
    %v1584 = vld [vmem:[%s1566 + $0x88] sm:$0xff]
    %v1585 = vld [vmem:[%s1566 + $0x90] sm:$0xff]
    %v1586 = vld [vmem:[%s1566 + $0x98] sm:$0xff]
    %v1587 = vld [vmem:[%s1566 + $0xa0] sm:$0xff]
    %v1588 = vld [vmem:[%s1566 + $0xa8] sm:$0xff]
    %v1589 = vld [vmem:[%s1566 + $0xb0] sm:$0xff]
    %v1590 = vld [vmem:[%s1566 + $0xb8] sm:$0xff]
    %v1591 = vld [vmem:[%s1566 + $0xc0] sm:$0xff]
    %v1592 = vld [vmem:[%s1566 + $0xc8] sm:$0xff]
    %v1593 = vld [vmem:[%s1566 + $0xd0] sm:$0xff]
    %v1594 = vld [vmem:[%s1566 + $0xd8] sm:$0xff]
    %v1595 = vld [vmem:[%s1566 + $0xe0] sm:$0xff]
    %v1596 = vld [vmem:[%s1566 + $0xe8] sm:$0xff]
    %v1597 = vld [vmem:[%s1566 + $0xf0] sm:$0xff]
    %v1598 = vld [vmem:[%s1566 + $0xf8] sm:$0xff]
    %v1631 = vunpack.c.l.b16 %v1567
    %v1632 = vunpack.c.h.b16 %v1567
    %v1633 = vunpack.c.l.b16 %v1568
    %v1634 = vunpack.c.h.b16 %v1568
    %v1635 = vunpack.c.l.b16 %v1569
    %v1636 = vunpack.c.h.b16 %v1569
    %v1637 = vunpack.c.l.b16 %v1570
    %v1638 = vunpack.c.h.b16 %v1570
    %v1639 = vunpack.c.l.b16 %v1571
    %v1640 = vunpack.c.h.b16 %v1571
    %v1641 = vunpack.c.l.b16 %v1572
    %v1642 = vunpack.c.h.b16 %v1572
    %v1643 = vunpack.c.l.b16 %v1573
    %v1644 = vunpack.c.h.b16 %v1573
    %v1645 = vunpack.c.l.b16 %v1574
    %v1646 = vunpack.c.h.b16 %v1574
    %v1647 = vunpack.c.l.b16 %v1575
    %v1648 = vunpack.c.h.b16 %v1575
    %v1649 = vunpack.c.l.b16 %v1576
    %v1650 = vunpack.c.h.b16 %v1576
    %v1651 = vunpack.c.l.b16 %v1577
    %v1652 = vunpack.c.h.b16 %v1577
    %v1653 = vunpack.c.l.b16 %v1578
    %v1654 = vunpack.c.h.b16 %v1578
    %v1655 = vunpack.c.l.b16 %v1579
    %v1656 = vunpack.c.h.b16 %v1579
    %v1657 = vunpack.c.l.b16 %v1580
    %v1658 = vunpack.c.h.b16 %v1580
    %v1659 = vunpack.c.l.b16 %v1581
    %v1660 = vunpack.c.h.b16 %v1581
    %v1661 = vunpack.c.l.b16 %v1582
    %v1662 = vunpack.c.h.b16 %v1582
    %v1663 = vunpack.c.l.b16 %v1583
    %v1664 = vunpack.c.h.b16 %v1583
    %v1665 = vunpack.c.l.b16 %v1584
    %v1666 = vunpack.c.h.b16 %v1584
    %v1667 = vunpack.c.l.b16 %v1585
    %v1668 = vunpack.c.h.b16 %v1585
    %v1669 = vunpack.c.l.b16 %v1586
    %v1670 = vunpack.c.h.b16 %v1586
    %v1671 = vunpack.c.l.b16 %v1587
    %v1672 = vunpack.c.h.b16 %v1587
    %v1673 = vunpack.c.l.b16 %v1588
    %v1674 = vunpack.c.h.b16 %v1588
    %v1675 = vunpack.c.l.b16 %v1589
    %v1676 = vunpack.c.h.b16 %v1589
    %v1677 = vunpack.c.l.b16 %v1590
    %v1678 = vunpack.c.h.b16 %v1590
    %v1679 = vunpack.c.l.b16 %v1591
    %v1680 = vunpack.c.h.b16 %v1591
    %v1681 = vunpack.c.l.b16 %v1592
    %v1682 = vunpack.c.h.b16 %v1592
    %v1683 = vunpack.c.l.b16 %v1593
    %v1684 = vunpack.c.h.b16 %v1593
    %v1685 = vunpack.c.l.b16 %v1594
    %v1686 = vunpack.c.h.b16 %v1594
    %v1687 = vunpack.c.l.b16 %v1595
    %v1688 = vunpack.c.h.b16 %v1595
    %v1689 = vunpack.c.l.b16 %v1596
    %v1690 = vunpack.c.h.b16 %v1596
    %v1691 = vunpack.c.l.b16 %v1597
    %v1692 = vunpack.c.h.b16 %v1597
    %v1693 = vunpack.c.l.b16 %v1598
    %v1694 = vunpack.c.h.b16 %v1598
    %v1695 = vpack.c.b16 %v1635, %v1631
    %v1696 = vpack.c.b16 %v1636, %v1632
    %v1697 = vpack.c.b16 %v1637, %v1633
    %v1698 = vpack.c.b16 %v1638, %v1634
    %v1699 = vpack.c.b16 %v1643, %v1639
    %v1700 = vpack.c.b16 %v1644, %v1640
    %v1701 = vpack.c.b16 %v1645, %v1641
    %v1702 = vpack.c.b16 %v1646, %v1642
    %v1703 = vpack.c.b16 %v1651, %v1647
    %v1704 = vpack.c.b16 %v1652, %v1648
    %v1705 = vpack.c.b16 %v1653, %v1649
    %v1706 = vpack.c.b16 %v1654, %v1650
    %v1707 = vpack.c.b16 %v1659, %v1655
    %v1708 = vpack.c.b16 %v1660, %v1656
    %v1709 = vpack.c.b16 %v1661, %v1657
    %v1710 = vpack.c.b16 %v1662, %v1658
    %v1711 = vpack.c.b16 %v1667, %v1663
    %v1712 = vpack.c.b16 %v1668, %v1664
    %v1713 = vpack.c.b16 %v1669, %v1665
    %v1714 = vpack.c.b16 %v1670, %v1666
    %v1715 = vpack.c.b16 %v1675, %v1671
    %v1716 = vpack.c.b16 %v1676, %v1672
    %v1717 = vpack.c.b16 %v1677, %v1673
    %v1718 = vpack.c.b16 %v1678, %v1674
    %v1719 = vpack.c.b16 %v1683, %v1679
    %v1720 = vpack.c.b16 %v1684, %v1680
    %v1721 = vpack.c.b16 %v1685, %v1681
    %v1722 = vpack.c.b16 %v1686, %v1682
    %v1723 = vpack.c.b16 %v1691, %v1687
    %v1724 = vpack.c.b16 %v1692, %v1688
    %v1725 = vpack.c.b16 %v1693, %v1689
    %v1726 = vpack.c.b16 %v1694, %v1690
    %1759 = vmatprep.subr.bf16.mxu0 %v1696
    %1760 = vmatpush1.bf16.msra.mxu0 %v1695
    %1761 = vmatprep.subr.bf16.mxu0 %v1700
    %1762 = vmatpush1.bf16.msra.mxu0 %v1699
    %1763 = vmatprep.subr.bf16.mxu0 %v1704
    %1764 = vmatpush1.bf16.msra.mxu0 %v1703
    %1765 = vmatprep.subr.bf16.mxu0 %v1708
    %1766 = vmatpush1.bf16.msra.mxu0 %v1707
    %1767 = vmatprep.subr.bf16.mxu0 %v1712
    %1768 = vmatpush1.bf16.msra.mxu0 %v1711
    %1769 = vmatprep.subr.bf16.mxu0 %v1716
    %1770 = vmatpush1.bf16.msra.mxu0 %v1715
    %1771 = vmatprep.subr.bf16.mxu0 %v1720
    %1772 = vmatpush1.bf16.msra.mxu0 %v1719
    %1773 = vmatprep.subr.bf16.mxu0 %v1724
    %1774 = vmatpush1.bf16.msra.mxu0 %v1723
    %1775 = vmatprep.subr.bf16.mxu0 0
    %1776 = vmatpush1.bf16.msra.mxu0 0
    %1777 = vmatprep.subr.bf16.mxu0 0
    %1778 = vmatpush1.bf16.msra.mxu0 0
    %1779 = vmatprep.subr.bf16.mxu0 0
    %1780 = vmatpush1.bf16.msra.mxu0 0
    %1781 = vmatprep.subr.bf16.mxu0 0
    %1782 = vmatpush1.bf16.msra.mxu0 0
    %1783 = vmatprep.subr.bf16.mxu0 0
    %1784 = vmatpush1.bf16.msra.mxu0 0
    %1785 = vmatprep.subr.bf16.mxu0 0
    %1786 = vmatpush1.bf16.msra.mxu0 0
    %1787 = vmatprep.subr.bf16.mxu0 0
    %1788 = vmatpush1.bf16.msra.mxu0 0
    %1789 = vmatprep.subr.bf16.mxu0 0
    %1790 = vmatpush1.bf16.msra.mxu0 0
    %1791 = vmatprep.mubr.bf16.mxu0 0
    %1792 = vmatmul.mubr.bf16.gmra.mrb[0].mxu0 %v1565
    %v1793 = vpop.f32.mrb[0].mxu0
    %v1794 = vadd.f32 0.0, %v1793
    %v1795 = vpop.f32.mrb[0].mxu0
    %v1796 = vadd.f32 0.0, %v1795
    %v1797 = vpop.f32.mrb[0].mxu0
    %v1798 = vpop.f32.mrb[0].mxu0
    %1799 = vdwg.mxu0
    %1800 = vmatprep.subr.bf16.mxu0 %v1698
    %1801 = vmatpush1.bf16.msra.mxu0 %v1697
    %1802 = vmatprep.subr.bf16.mxu0 %v1702
    %1803 = vmatpush1.bf16.msra.mxu0 %v1701
    %1804 = vmatprep.subr.bf16.mxu0 %v1706
    %1805 = vmatpush1.bf16.msra.mxu0 %v1705
    %1806 = vmatprep.subr.bf16.mxu0 %v1710
    %1807 = vmatpush1.bf16.msra.mxu0 %v1709
    %1808 = vmatprep.subr.bf16.mxu0 %v1714
    %1809 = vmatpush1.bf16.msra.mxu0 %v1713
    %1810 = vmatprep.subr.bf16.mxu0 %v1718
    %1811 = vmatpush1.bf16.msra.mxu0 %v1717
    %1812 = vmatprep.subr.bf16.mxu0 %v1722
    %1813 = vmatpush1.bf16.msra.mxu0 %v1721
    %1814 = vmatprep.subr.bf16.mxu0 %v1726
    %1815 = vmatpush1.bf16.msra.mxu0 %v1725
    %1816 = vmatprep.subr.bf16.mxu0 0
    %1817 = vmatpush1.bf16.msra.mxu0 0
    %1818 = vmatprep.subr.bf16.mxu0 0
    %1819 = vmatpush1.bf16.msra.mxu0 0
    %1820 = vmatprep.subr.bf16.mxu0 0
    %1821 = vmatpush1.bf16.msra.mxu0 0
    %1822 = vmatprep.subr.bf16.mxu0 0
    %1823 = vmatpush1.bf16.msra.mxu0 0
    %1824 = vmatprep.subr.bf16.mxu0 0
    %1825 = vmatpush1.bf16.msra.mxu0 0
    %1826 = vmatprep.subr.bf16.mxu0 0
    %1827 = vmatpush1.bf16.msra.mxu0 0
    %1828 = vmatprep.subr.bf16.mxu0 0
    %1829 = vmatpush1.bf16.msra.mxu0 0
    %1830 = vmatprep.subr.bf16.mxu0 0
    %1831 = vmatpush1.bf16.msra.mxu0 0
    %1832 = vmatprep.mubr.bf16.mxu0 0
    %1833 = vmatmul.mubr.bf16.gmra.mrb[0].mxu0 %v1565
    %v1834 = vpop.f32.mrb[0].mxu0
    %v1835 = vadd.f32 0.0, %v1834
    %v1836 = vpop.f32.mrb[0].mxu0
    %v1837 = vadd.f32 0.0, %v1836
    %v1838 = vpop.f32.mrb[0].mxu0
    %v1839 = vpop.f32.mrb[0].mxu0
    %1840 = vdwg.mxu0
    %v1845 = vcombine.low %v1794, %v1796
    %v1846 = vcombine.low %v1835, %v1837
    %v1848 = vunpack.c.l.s4 1983009808
    %v1849 = vunpack.c.0.s8 %v1848
    %v1850 = vlaneseq
    %v1851 = vshrl.u32 %v1850, 7
    %v1852 = vsub.s32 %v1849, %v1851
    %v1853 = vrot.slane %v1845, %v1852
    %v1855 = vunpack.c.l.s4 1983009808
    %v1856 = vunpack.c.0.s8 %v1855
    %v1857 = vlaneseq
    %v1858 = vshrl.u32 %v1857, 7
    %v1859 = vsub.s32 %v1856, %v1858
    %v1860 = vrot.slane %v1846, %v1859
    %v1861 = vcombine.low %v1853, %v1860
    %v1863 = vadd.f32 %v1563, %v1861
    %s1864 = scalar_lea.vmem %s0, 3
    %v1865 = vld [vmem:[%s1864] sm:$0x1]
    %s1866 = scalar_lea.vmem %s2, 768
    %v1867 = vld [vmem:[%s1866] sm:$0xff]
    %v1868 = vld [vmem:[%s1866 + $0x8] sm:$0xff]
    %v1869 = vld [vmem:[%s1866 + $0x10] sm:$0xff]
    %v1870 = vld [vmem:[%s1866 + $0x18] sm:$0xff]
    %v1871 = vld [vmem:[%s1866 + $0x20] sm:$0xff]
    %v1872 = vld [vmem:[%s1866 + $0x28] sm:$0xff]
    %v1873 = vld [vmem:[%s1866 + $0x30] sm:$0xff]
    %v1874 = vld [vmem:[%s1866 + $0x38] sm:$0xff]
    %v1875 = vld [vmem:[%s1866 + $0x40] sm:$0xff]
    %v1876 = vld [vmem:[%s1866 + $0x48] sm:$0xff]
    %v1877 = vld [vmem:[%s1866 + $0x50] sm:$0xff]
    %v1878 = vld [vmem:[%s1866 + $0x58] sm:$0xff]
    %v1879 = vld [vmem:[%s1866 + $0x60] sm:$0xff]
    %v1880 = vld [vmem:[%s1866 + $0x68] sm:$0xff]
    %v1881 = vld [vmem:[%s1866 + $0x70] sm:$0xff]
    %v1882 = vld [vmem:[%s1866 + $0x78] sm:$0xff]
    %v1883 = vld [vmem:[%s1866 + $0x80] sm:$0xff]
    %v1884 = vld [vmem:[%s1866 + $0x88] sm:$0xff]
    %v1885 = vld [vmem:[%s1866 + $0x90] sm:$0xff]
    %v1886 = vld [vmem:[%s1866 + $0x98] sm:$0xff]
    %v1887 = vld [vmem:[%s1866 + $0xa0] sm:$0xff]
    %v1888 = vld [vmem:[%s1866 + $0xa8] sm:$0xff]
    %v1889 = vld [vmem:[%s1866 + $0xb0] sm:$0xff]
    %v1890 = vld [vmem:[%s1866 + $0xb8] sm:$0xff]
    %v1891 = vld [vmem:[%s1866 + $0xc0] sm:$0xff]
    %v1892 = vld [vmem:[%s1866 + $0xc8] sm:$0xff]
    %v1893 = vld [vmem:[%s1866 + $0xd0] sm:$0xff]
    %v1894 = vld [vmem:[%s1866 + $0xd8] sm:$0xff]
    %v1895 = vld [vmem:[%s1866 + $0xe0] sm:$0xff]
    %v1896 = vld [vmem:[%s1866 + $0xe8] sm:$0xff]
    %v1897 = vld [vmem:[%s1866 + $0xf0] sm:$0xff]
    %v1898 = vld [vmem:[%s1866 + $0xf8] sm:$0xff]
    %v1931 = vunpack.c.l.b16 %v1867
    %v1932 = vunpack.c.h.b16 %v1867
    %v1933 = vunpack.c.l.b16 %v1868
    %v1934 = vunpack.c.h.b16 %v1868
    %v1935 = vunpack.c.l.b16 %v1869
    %v1936 = vunpack.c.h.b16 %v1869
    %v1937 = vunpack.c.l.b16 %v1870
    %v1938 = vunpack.c.h.b16 %v1870
    %v1939 = vunpack.c.l.b16 %v1871
    %v1940 = vunpack.c.h.b16 %v1871
    %v1941 = vunpack.c.l.b16 %v1872
    %v1942 = vunpack.c.h.b16 %v1872
    %v1943 = vunpack.c.l.b16 %v1873
    %v1944 = vunpack.c.h.b16 %v1873
    %v1945 = vunpack.c.l.b16 %v1874
    %v1946 = vunpack.c.h.b16 %v1874
    %v1947 = vunpack.c.l.b16 %v1875
    %v1948 = vunpack.c.h.b16 %v1875
    %v1949 = vunpack.c.l.b16 %v1876
    %v1950 = vunpack.c.h.b16 %v1876
    %v1951 = vunpack.c.l.b16 %v1877
    %v1952 = vunpack.c.h.b16 %v1877
    %v1953 = vunpack.c.l.b16 %v1878
    %v1954 = vunpack.c.h.b16 %v1878
    %v1955 = vunpack.c.l.b16 %v1879
    %v1956 = vunpack.c.h.b16 %v1879
    %v1957 = vunpack.c.l.b16 %v1880
    %v1958 = vunpack.c.h.b16 %v1880
    %v1959 = vunpack.c.l.b16 %v1881
    %v1960 = vunpack.c.h.b16 %v1881
    %v1961 = vunpack.c.l.b16 %v1882
    %v1962 = vunpack.c.h.b16 %v1882
    %v1963 = vunpack.c.l.b16 %v1883
    %v1964 = vunpack.c.h.b16 %v1883
    %v1965 = vunpack.c.l.b16 %v1884
    %v1966 = vunpack.c.h.b16 %v1884
    %v1967 = vunpack.c.l.b16 %v1885
    %v1968 = vunpack.c.h.b16 %v1885
    %v1969 = vunpack.c.l.b16 %v1886
    %v1970 = vunpack.c.h.b16 %v1886
    %v1971 = vunpack.c.l.b16 %v1887
    %v1972 = vunpack.c.h.b16 %v1887
    %v1973 = vunpack.c.l.b16 %v1888
    %v1974 = vunpack.c.h.b16 %v1888
    %v1975 = vunpack.c.l.b16 %v1889
    %v1976 = vunpack.c.h.b16 %v1889
    %v1977 = vunpack.c.l.b16 %v1890
    %v1978 = vunpack.c.h.b16 %v1890
    %v1979 = vunpack.c.l.b16 %v1891
    %v1980 = vunpack.c.h.b16 %v1891
    %v1981 = vunpack.c.l.b16 %v1892
    %v1982 = vunpack.c.h.b16 %v1892
    %v1983 = vunpack.c.l.b16 %v1893
    %v1984 = vunpack.c.h.b16 %v1893
    %v1985 = vunpack.c.l.b16 %v1894
    %v1986 = vunpack.c.h.b16 %v1894
    %v1987 = vunpack.c.l.b16 %v1895
    %v1988 = vunpack.c.h.b16 %v1895
    %v1989 = vunpack.c.l.b16 %v1896
    %v1990 = vunpack.c.h.b16 %v1896
    %v1991 = vunpack.c.l.b16 %v1897
    %v1992 = vunpack.c.h.b16 %v1897
    %v1993 = vunpack.c.l.b16 %v1898
    %v1994 = vunpack.c.h.b16 %v1898
    %v1995 = vpack.c.b16 %v1935, %v1931
    %v1996 = vpack.c.b16 %v1936, %v1932
    %v1997 = vpack.c.b16 %v1937, %v1933
    %v1998 = vpack.c.b16 %v1938, %v1934
    %v1999 = vpack.c.b16 %v1943, %v1939
    %v2000 = vpack.c.b16 %v1944, %v1940
    %v2001 = vpack.c.b16 %v1945, %v1941
    %v2002 = vpack.c.b16 %v1946, %v1942
    %v2003 = vpack.c.b16 %v1951, %v1947
    %v2004 = vpack.c.b16 %v1952, %v1948
    %v2005 = vpack.c.b16 %v1953, %v1949
    %v2006 = vpack.c.b16 %v1954, %v1950
    %v2007 = vpack.c.b16 %v1959, %v1955
    %v2008 = vpack.c.b16 %v1960, %v1956
    %v2009 = vpack.c.b16 %v1961, %v1957
    %v2010 = vpack.c.b16 %v1962, %v1958
    %v2011 = vpack.c.b16 %v1967, %v1963
    %v2012 = vpack.c.b16 %v1968, %v1964
    %v2013 = vpack.c.b16 %v1969, %v1965
    %v2014 = vpack.c.b16 %v1970, %v1966
    %v2015 = vpack.c.b16 %v1975, %v1971
    %v2016 = vpack.c.b16 %v1976, %v1972
    %v2017 = vpack.c.b16 %v1977, %v1973
    %v2018 = vpack.c.b16 %v1978, %v1974
    %v2019 = vpack.c.b16 %v1983, %v1979
    %v2020 = vpack.c.b16 %v1984, %v1980
    %v2021 = vpack.c.b16 %v1985, %v1981
    %v2022 = vpack.c.b16 %v1986, %v1982
    %v2023 = vpack.c.b16 %v1991, %v1987
    %v2024 = vpack.c.b16 %v1992, %v1988
    %v2025 = vpack.c.b16 %v1993, %v1989
    %v2026 = vpack.c.b16 %v1994, %v1990
    %2059 = vmatprep.subr.bf16.mxu0 %v1996
    %2060 = vmatpush1.bf16.msra.mxu0 %v1995
    %2061 = vmatprep.subr.bf16.mxu0 %v2000
    %2062 = vmatpush1.bf16.msra.mxu0 %v1999
    %2063 = vmatprep.subr.bf16.mxu0 %v2004
    %2064 = vmatpush1.bf16.msra.mxu0 %v2003
    %2065 = vmatprep.subr.bf16.mxu0 %v2008
    %2066 = vmatpush1.bf16.msra.mxu0 %v2007
    %2067 = vmatprep.subr.bf16.mxu0 %v2012
    %2068 = vmatpush1.bf16.msra.mxu0 %v2011
    %2069 = vmatprep.subr.bf16.mxu0 %v2016
    %2070 = vmatpush1.bf16.msra.mxu0 %v2015
    %2071 = vmatprep.subr.bf16.mxu0 %v2020
    %2072 = vmatpush1.bf16.msra.mxu0 %v2019
    %2073 = vmatprep.subr.bf16.mxu0 %v2024
    %2074 = vmatpush1.bf16.msra.mxu0 %v2023
    %2075 = vmatprep.subr.bf16.mxu0 0
    %2076 = vmatpush1.bf16.msra.mxu0 0
    %2077 = vmatprep.subr.bf16.mxu0 0
    %2078 = vmatpush1.bf16.msra.mxu0 0
    %2079 = vmatprep.subr.bf16.mxu0 0
    %2080 = vmatpush1.bf16.msra.mxu0 0
    %2081 = vmatprep.subr.bf16.mxu0 0
    %2082 = vmatpush1.bf16.msra.mxu0 0
    %2083 = vmatprep.subr.bf16.mxu0 0
    %2084 = vmatpush1.bf16.msra.mxu0 0
    %2085 = vmatprep.subr.bf16.mxu0 0
    %2086 = vmatpush1.bf16.msra.mxu0 0
    %2087 = vmatprep.subr.bf16.mxu0 0
    %2088 = vmatpush1.bf16.msra.mxu0 0
    %2089 = vmatprep.subr.bf16.mxu0 0
    %2090 = vmatpush1.bf16.msra.mxu0 0
    %2091 = vmatprep.mubr.bf16.mxu0 0
    %2092 = vmatmul.mubr.bf16.gmra.mrb[0].mxu0 %v1865
    %v2093 = vpop.f32.mrb[0].mxu0
    %v2094 = vadd.f32 0.0, %v2093
    %v2095 = vpop.f32.mrb[0].mxu0
    %v2096 = vadd.f32 0.0, %v2095
    %v2097 = vpop.f32.mrb[0].mxu0
    %v2098 = vpop.f32.mrb[0].mxu0
    %2099 = vdwg.mxu0
    %2100 = vmatprep.subr.bf16.mxu0 %v1998
    %2101 = vmatpush1.bf16.msra.mxu0 %v1997
    %2102 = vmatprep.subr.bf16.mxu0 %v2002
    %2103 = vmatpush1.bf16.msra.mxu0 %v2001
    %2104 = vmatprep.subr.bf16.mxu0 %v2006
    %2105 = vmatpush1.bf16.msra.mxu0 %v2005
    %2106 = vmatprep.subr.bf16.mxu0 %v2010
    %2107 = vmatpush1.bf16.msra.mxu0 %v2009
    %2108 = vmatprep.subr.bf16.mxu0 %v2014
    %2109 = vmatpush1.bf16.msra.mxu0 %v2013
    %2110 = vmatprep.subr.bf16.mxu0 %v2018
    %2111 = vmatpush1.bf16.msra.mxu0 %v2017
    %2112 = vmatprep.subr.bf16.mxu0 %v2022
    %2113 = vmatpush1.bf16.msra.mxu0 %v2021
    %2114 = vmatprep.subr.bf16.mxu0 %v2026
    %2115 = vmatpush1.bf16.msra.mxu0 %v2025
    %2116 = vmatprep.subr.bf16.mxu0 0
    %2117 = vmatpush1.bf16.msra.mxu0 0
    %2118 = vmatprep.subr.bf16.mxu0 0
    %2119 = vmatpush1.bf16.msra.mxu0 0
    %2120 = vmatprep.subr.bf16.mxu0 0
    %2121 = vmatpush1.bf16.msra.mxu0 0
    %2122 = vmatprep.subr.bf16.mxu0 0
    %2123 = vmatpush1.bf16.msra.mxu0 0
    %2124 = vmatprep.subr.bf16.mxu0 0
    %2125 = vmatpush1.bf16.msra.mxu0 0
    %2126 = vmatprep.subr.bf16.mxu0 0
    %2127 = vmatpush1.bf16.msra.mxu0 0
    %2128 = vmatprep.subr.bf16.mxu0 0
    %2129 = vmatpush1.bf16.msra.mxu0 0
    %2130 = vmatprep.subr.bf16.mxu0 0
    %2131 = vmatpush1.bf16.msra.mxu0 0
    %2132 = vmatprep.mubr.bf16.mxu0 0
    %2133 = vmatmul.mubr.bf16.gmra.mrb[0].mxu0 %v1865
    %v2134 = vpop.f32.mrb[0].mxu0
    %v2135 = vadd.f32 0.0, %v2134
    %v2136 = vpop.f32.mrb[0].mxu0
    %v2137 = vadd.f32 0.0, %v2136
    %v2138 = vpop.f32.mrb[0].mxu0
    %v2139 = vpop.f32.mrb[0].mxu0
    %2140 = vdwg.mxu0
    %v2145 = vcombine.low %v2094, %v2096
    %v2146 = vcombine.low %v2135, %v2137
    %v2148 = vunpack.c.l.s4 1983009808
    %v2149 = vunpack.c.0.s8 %v2148
    %v2150 = vlaneseq
    %v2151 = vshrl.u32 %v2150, 7
    %v2152 = vsub.s32 %v2149, %v2151
    %v2153 = vrot.slane %v2145, %v2152
    %v2155 = vunpack.c.l.s4 1983009808
    %v2156 = vunpack.c.0.s8 %v2155
    %v2157 = vlaneseq
    %v2158 = vshrl.u32 %v2157, 7
    %v2159 = vsub.s32 %v2156, %v2158
    %v2160 = vrot.slane %v2146, %v2159
    %v2161 = vcombine.low %v2153, %v2160
    %v2163 = vadd.f32 %v1863, %v2161
    %s2164 = scalar_lea.vmem %s1, 3
    %v2165 = vld [vmem:[%s2164] sm:$0x1]
    %s2166 = scalar_lea.vmem %s3, 768
    %v2167 = vld [vmem:[%s2166] sm:$0xff]
    %v2168 = vld [vmem:[%s2166 + $0x8] sm:$0xff]
    %v2169 = vld [vmem:[%s2166 + $0x10] sm:$0xff]
    %v2170 = vld [vmem:[%s2166 + $0x18] sm:$0xff]
    %v2171 = vld [vmem:[%s2166 + $0x20] sm:$0xff]
    %v2172 = vld [vmem:[%s2166 + $0x28] sm:$0xff]
    %v2173 = vld [vmem:[%s2166 + $0x30] sm:$0xff]
    %v2174 = vld [vmem:[%s2166 + $0x38] sm:$0xff]
    %v2175 = vld [vmem:[%s2166 + $0x40] sm:$0xff]
    %v2176 = vld [vmem:[%s2166 + $0x48] sm:$0xff]
    %v2177 = vld [vmem:[%s2166 + $0x50] sm:$0xff]
    %v2178 = vld [vmem:[%s2166 + $0x58] sm:$0xff]
    %v2179 = vld [vmem:[%s2166 + $0x60] sm:$0xff]
    %v2180 = vld [vmem:[%s2166 + $0x68] sm:$0xff]
    %v2181 = vld [vmem:[%s2166 + $0x70] sm:$0xff]
    %v2182 = vld [vmem:[%s2166 + $0x78] sm:$0xff]
    %v2183 = vld [vmem:[%s2166 + $0x80] sm:$0xff]
    %v2184 = vld [vmem:[%s2166 + $0x88] sm:$0xff]
    %v2185 = vld [vmem:[%s2166 + $0x90] sm:$0xff]
    %v2186 = vld [vmem:[%s2166 + $0x98] sm:$0xff]
    %v2187 = vld [vmem:[%s2166 + $0xa0] sm:$0xff]
    %v2188 = vld [vmem:[%s2166 + $0xa8] sm:$0xff]
    %v2189 = vld [vmem:[%s2166 + $0xb0] sm:$0xff]
    %v2190 = vld [vmem:[%s2166 + $0xb8] sm:$0xff]
    %v2191 = vld [vmem:[%s2166 + $0xc0] sm:$0xff]
    %v2192 = vld [vmem:[%s2166 + $0xc8] sm:$0xff]
    %v2193 = vld [vmem:[%s2166 + $0xd0] sm:$0xff]
    %v2194 = vld [vmem:[%s2166 + $0xd8] sm:$0xff]
    %v2195 = vld [vmem:[%s2166 + $0xe0] sm:$0xff]
    %v2196 = vld [vmem:[%s2166 + $0xe8] sm:$0xff]
    %v2197 = vld [vmem:[%s2166 + $0xf0] sm:$0xff]
    %v2198 = vld [vmem:[%s2166 + $0xf8] sm:$0xff]
    %v2231 = vunpack.c.l.b16 %v2167
    %v2232 = vunpack.c.h.b16 %v2167
    %v2233 = vunpack.c.l.b16 %v2168
    %v2234 = vunpack.c.h.b16 %v2168
    %v2235 = vunpack.c.l.b16 %v2169
    %v2236 = vunpack.c.h.b16 %v2169
    %v2237 = vunpack.c.l.b16 %v2170
    %v2238 = vunpack.c.h.b16 %v2170
    %v2239 = vunpack.c.l.b16 %v2171
    %v2240 = vunpack.c.h.b16 %v2171
    %v2241 = vunpack.c.l.b16 %v2172
    %v2242 = vunpack.c.h.b16 %v2172
    %v2243 = vunpack.c.l.b16 %v2173
    %v2244 = vunpack.c.h.b16 %v2173
    %v2245 = vunpack.c.l.b16 %v2174
    %v2246 = vunpack.c.h.b16 %v2174
    %v2247 = vunpack.c.l.b16 %v2175
    %v2248 = vunpack.c.h.b16 %v2175
    %v2249 = vunpack.c.l.b16 %v2176
    %v2250 = vunpack.c.h.b16 %v2176
    %v2251 = vunpack.c.l.b16 %v2177
    %v2252 = vunpack.c.h.b16 %v2177
    %v2253 = vunpack.c.l.b16 %v2178
    %v2254 = vunpack.c.h.b16 %v2178
    %v2255 = vunpack.c.l.b16 %v2179
    %v2256 = vunpack.c.h.b16 %v2179
    %v2257 = vunpack.c.l.b16 %v2180
    %v2258 = vunpack.c.h.b16 %v2180
    %v2259 = vunpack.c.l.b16 %v2181
    %v2260 = vunpack.c.h.b16 %v2181
    %v2261 = vunpack.c.l.b16 %v2182
    %v2262 = vunpack.c.h.b16 %v2182
    %v2263 = vunpack.c.l.b16 %v2183
    %v2264 = vunpack.c.h.b16 %v2183
    %v2265 = vunpack.c.l.b16 %v2184
    %v2266 = vunpack.c.h.b16 %v2184
    %v2267 = vunpack.c.l.b16 %v2185
    %v2268 = vunpack.c.h.b16 %v2185
    %v2269 = vunpack.c.l.b16 %v2186
    %v2270 = vunpack.c.h.b16 %v2186
    %v2271 = vunpack.c.l.b16 %v2187
    %v2272 = vunpack.c.h.b16 %v2187
    %v2273 = vunpack.c.l.b16 %v2188
    %v2274 = vunpack.c.h.b16 %v2188
    %v2275 = vunpack.c.l.b16 %v2189
    %v2276 = vunpack.c.h.b16 %v2189
    %v2277 = vunpack.c.l.b16 %v2190
    %v2278 = vunpack.c.h.b16 %v2190
    %v2279 = vunpack.c.l.b16 %v2191
    %v2280 = vunpack.c.h.b16 %v2191
    %v2281 = vunpack.c.l.b16 %v2192
    %v2282 = vunpack.c.h.b16 %v2192
    %v2283 = vunpack.c.l.b16 %v2193
    %v2284 = vunpack.c.h.b16 %v2193
    %v2285 = vunpack.c.l.b16 %v2194
    %v2286 = vunpack.c.h.b16 %v2194
    %v2287 = vunpack.c.l.b16 %v2195
    %v2288 = vunpack.c.h.b16 %v2195
    %v2289 = vunpack.c.l.b16 %v2196
    %v2290 = vunpack.c.h.b16 %v2196
    %v2291 = vunpack.c.l.b16 %v2197
    %v2292 = vunpack.c.h.b16 %v2197
    %v2293 = vunpack.c.l.b16 %v2198
    %v2294 = vunpack.c.h.b16 %v2198
    %v2295 = vpack.c.b16 %v2235, %v2231
    %v2296 = vpack.c.b16 %v2236, %v2232
    %v2297 = vpack.c.b16 %v2237, %v2233
    %v2298 = vpack.c.b16 %v2238, %v2234
    %v2299 = vpack.c.b16 %v2243, %v2239
    %v2300 = vpack.c.b16 %v2244, %v2240
    %v2301 = vpack.c.b16 %v2245, %v2241
    %v2302 = vpack.c.b16 %v2246, %v2242
    %v2303 = vpack.c.b16 %v2251, %v2247
    %v2304 = vpack.c.b16 %v2252, %v2248
    %v2305 = vpack.c.b16 %v2253, %v2249
    %v2306 = vpack.c.b16 %v2254, %v2250
    %v2307 = vpack.c.b16 %v2259, %v2255
    %v2308 = vpack.c.b16 %v2260, %v2256
    %v2309 = vpack.c.b16 %v2261, %v2257
    %v2310 = vpack.c.b16 %v2262, %v2258
    %v2311 = vpack.c.b16 %v2267, %v2263
    %v2312 = vpack.c.b16 %v2268, %v2264
    %v2313 = vpack.c.b16 %v2269, %v2265
    %v2314 = vpack.c.b16 %v2270, %v2266
    %v2315 = vpack.c.b16 %v2275, %v2271
    %v2316 = vpack.c.b16 %v2276, %v2272
    %v2317 = vpack.c.b16 %v2277, %v2273
    %v2318 = vpack.c.b16 %v2278, %v2274
    %v2319 = vpack.c.b16 %v2283, %v2279
    %v2320 = vpack.c.b16 %v2284, %v2280
    %v2321 = vpack.c.b16 %v2285, %v2281
    %v2322 = vpack.c.b16 %v2286, %v2282
    %v2323 = vpack.c.b16 %v2291, %v2287
    %v2324 = vpack.c.b16 %v2292, %v2288
    %v2325 = vpack.c.b16 %v2293, %v2289
    %v2326 = vpack.c.b16 %v2294, %v2290
    %2359 = vmatprep.subr.bf16.mxu0 %v2296
    %2360 = vmatpush1.bf16.msra.mxu0 %v2295
    %2361 = vmatprep.subr.bf16.mxu0 %v2300
    %2362 = vmatpush1.bf16.msra.mxu0 %v2299
    %2363 = vmatprep.subr.bf16.mxu0 %v2304
    %2364 = vmatpush1.bf16.msra.mxu0 %v2303
    %2365 = vmatprep.subr.bf16.mxu0 %v2308
    %2366 = vmatpush1.bf16.msra.mxu0 %v2307
    %2367 = vmatprep.subr.bf16.mxu0 %v2312
    %2368 = vmatpush1.bf16.msra.mxu0 %v2311
    %2369 = vmatprep.subr.bf16.mxu0 %v2316
    %2370 = vmatpush1.bf16.msra.mxu0 %v2315
    %2371 = vmatprep.subr.bf16.mxu0 %v2320
    %2372 = vmatpush1.bf16.msra.mxu0 %v2319
    %2373 = vmatprep.subr.bf16.mxu0 %v2324
    %2374 = vmatpush1.bf16.msra.mxu0 %v2323
    %2375 = vmatprep.subr.bf16.mxu0 0
    %2376 = vmatpush1.bf16.msra.mxu0 0
    %2377 = vmatprep.subr.bf16.mxu0 0
    %2378 = vmatpush1.bf16.msra.mxu0 0
    %2379 = vmatprep.subr.bf16.mxu0 0
    %2380 = vmatpush1.bf16.msra.mxu0 0
    %2381 = vmatprep.subr.bf16.mxu0 0
    %2382 = vmatpush1.bf16.msra.mxu0 0
    %2383 = vmatprep.subr.bf16.mxu0 0
    %2384 = vmatpush1.bf16.msra.mxu0 0
    %2385 = vmatprep.subr.bf16.mxu0 0
    %2386 = vmatpush1.bf16.msra.mxu0 0
    %2387 = vmatprep.subr.bf16.mxu0 0
    %2388 = vmatpush1.bf16.msra.mxu0 0
    %2389 = vmatprep.subr.bf16.mxu0 0
    %2390 = vmatpush1.bf16.msra.mxu0 0
    %2391 = vmatprep.mubr.bf16.mxu0 0
    %2392 = vmatmul.mubr.bf16.gmra.mrb[0].mxu0 %v2165
    %v2393 = vpop.f32.mrb[0].mxu0
    %v2394 = vadd.f32 0.0, %v2393
    %v2395 = vpop.f32.mrb[0].mxu0
    %v2396 = vadd.f32 0.0, %v2395
    %v2397 = vpop.f32.mrb[0].mxu0
    %v2398 = vpop.f32.mrb[0].mxu0
    %2399 = vdwg.mxu0
    %2400 = vmatprep.subr.bf16.mxu0 %v2298
    %2401 = vmatpush1.bf16.msra.mxu0 %v2297
    %2402 = vmatprep.subr.bf16.mxu0 %v2302
    %2403 = vmatpush1.bf16.msra.mxu0 %v2301
    %2404 = vmatprep.subr.bf16.mxu0 %v2306
    %2405 = vmatpush1.bf16.msra.mxu0 %v2305
    %2406 = vmatprep.subr.bf16.mxu0 %v2310
    %2407 = vmatpush1.bf16.msra.mxu0 %v2309
    %2408 = vmatprep.subr.bf16.mxu0 %v2314
    %2409 = vmatpush1.bf16.msra.mxu0 %v2313
    %2410 = vmatprep.subr.bf16.mxu0 %v2318
    %2411 = vmatpush1.bf16.msra.mxu0 %v2317
    %2412 = vmatprep.subr.bf16.mxu0 %v2322
    %2413 = vmatpush1.bf16.msra.mxu0 %v2321
    %2414 = vmatprep.subr.bf16.mxu0 %v2326
    %2415 = vmatpush1.bf16.msra.mxu0 %v2325
    %2416 = vmatprep.subr.bf16.mxu0 0
    %2417 = vmatpush1.bf16.msra.mxu0 0
    %2418 = vmatprep.subr.bf16.mxu0 0
    %2419 = vmatpush1.bf16.msra.mxu0 0
    %2420 = vmatprep.subr.bf16.mxu0 0
    %2421 = vmatpush1.bf16.msra.mxu0 0
    %2422 = vmatprep.subr.bf16.mxu0 0
    %2423 = vmatpush1.bf16.msra.mxu0 0
    %2424 = vmatprep.subr.bf16.mxu0 0
    %2425 = vmatpush1.bf16.msra.mxu0 0
    %2426 = vmatprep.subr.bf16.mxu0 0
    %2427 = vmatpush1.bf16.msra.mxu0 0
    %2428 = vmatprep.subr.bf16.mxu0 0
    %2429 = vmatpush1.bf16.msra.mxu0 0
    %2430 = vmatprep.subr.bf16.mxu0 0
    %2431 = vmatpush1.bf16.msra.mxu0 0
    %2432 = vmatprep.mubr.bf16.mxu0 0
    %2433 = vmatmul.mubr.bf16.gmra.mrb[0].mxu0 %v2165
    %v2434 = vpop.f32.mrb[0].mxu0
    %v2435 = vadd.f32 0.0, %v2434
    %v2436 = vpop.f32.mrb[0].mxu0
    %v2437 = vadd.f32 0.0, %v2436
    %v2438 = vpop.f32.mrb[0].mxu0
    %v2439 = vpop.f32.mrb[0].mxu0
    %2440 = vdwg.mxu0
    %v2445 = vcombine.low %v2394, %v2396
    %v2446 = vcombine.low %v2435, %v2437
    %v2448 = vunpack.c.l.s4 1983009808
    %v2449 = vunpack.c.0.s8 %v2448
    %v2450 = vlaneseq
    %v2451 = vshrl.u32 %v2450, 7
    %v2452 = vsub.s32 %v2449, %v2451
    %v2453 = vrot.slane %v2445, %v2452
    %v2455 = vunpack.c.l.s4 1983009808
    %v2456 = vunpack.c.0.s8 %v2455
    %v2457 = vlaneseq
    %v2458 = vshrl.u32 %v2457, 7
    %v2459 = vsub.s32 %v2456, %v2458
    %v2460 = vrot.slane %v2446, %v2459
    %v2461 = vcombine.low %v2453, %v2460
    %v2463 = vadd.f32 %v2163, %v2461
    %s2464 = scalar_lea.vmem %s0, 4
    %v2465 = vld [vmem:[%s2464] sm:$0x1]
    %s2466 = scalar_lea.vmem %s2, 1024
    %v2467 = vld [vmem:[%s2466] sm:$0xff]
    %v2468 = vld [vmem:[%s2466 + $0x8] sm:$0xff]
    %v2469 = vld [vmem:[%s2466 + $0x10] sm:$0xff]
    %v2470 = vld [vmem:[%s2466 + $0x18] sm:$0xff]
    %v2471 = vld [vmem:[%s2466 + $0x20] sm:$0xff]
    %v2472 = vld [vmem:[%s2466 + $0x28] sm:$0xff]
    %v2473 = vld [vmem:[%s2466 + $0x30] sm:$0xff]
    %v2474 = vld [vmem:[%s2466 + $0x38] sm:$0xff]
    %v2475 = vld [vmem:[%s2466 + $0x40] sm:$0xff]
    %v2476 = vld [vmem:[%s2466 + $0x48] sm:$0xff]
    %v2477 = vld [vmem:[%s2466 + $0x50] sm:$0xff]
    %v2478 = vld [vmem:[%s2466 + $0x58] sm:$0xff]
    %v2479 = vld [vmem:[%s2466 + $0x60] sm:$0xff]
    %v2480 = vld [vmem:[%s2466 + $0x68] sm:$0xff]
    %v2481 = vld [vmem:[%s2466 + $0x70] sm:$0xff]
    %v2482 = vld [vmem:[%s2466 + $0x78] sm:$0xff]
    %v2483 = vld [vmem:[%s2466 + $0x80] sm:$0xff]
    %v2484 = vld [vmem:[%s2466 + $0x88] sm:$0xff]
    %v2485 = vld [vmem:[%s2466 + $0x90] sm:$0xff]
    %v2486 = vld [vmem:[%s2466 + $0x98] sm:$0xff]
    %v2487 = vld [vmem:[%s2466 + $0xa0] sm:$0xff]
    %v2488 = vld [vmem:[%s2466 + $0xa8] sm:$0xff]
    %v2489 = vld [vmem:[%s2466 + $0xb0] sm:$0xff]
    %v2490 = vld [vmem:[%s2466 + $0xb8] sm:$0xff]
    %v2491 = vld [vmem:[%s2466 + $0xc0] sm:$0xff]
    %v2492 = vld [vmem:[%s2466 + $0xc8] sm:$0xff]
    %v2493 = vld [vmem:[%s2466 + $0xd0] sm:$0xff]
    %v2494 = vld [vmem:[%s2466 + $0xd8] sm:$0xff]
    %v2495 = vld [vmem:[%s2466 + $0xe0] sm:$0xff]
    %v2496 = vld [vmem:[%s2466 + $0xe8] sm:$0xff]
    %v2497 = vld [vmem:[%s2466 + $0xf0] sm:$0xff]
    %v2498 = vld [vmem:[%s2466 + $0xf8] sm:$0xff]
    %v2531 = vunpack.c.l.b16 %v2467
    %v2532 = vunpack.c.h.b16 %v2467
    %v2533 = vunpack.c.l.b16 %v2468
    %v2534 = vunpack.c.h.b16 %v2468
    %v2535 = vunpack.c.l.b16 %v2469
    %v2536 = vunpack.c.h.b16 %v2469
    %v2537 = vunpack.c.l.b16 %v2470
    %v2538 = vunpack.c.h.b16 %v2470
    %v2539 = vunpack.c.l.b16 %v2471
    %v2540 = vunpack.c.h.b16 %v2471
    %v2541 = vunpack.c.l.b16 %v2472
    %v2542 = vunpack.c.h.b16 %v2472
    %v2543 = vunpack.c.l.b16 %v2473
    %v2544 = vunpack.c.h.b16 %v2473
    %v2545 = vunpack.c.l.b16 %v2474
    %v2546 = vunpack.c.h.b16 %v2474
    %v2547 = vunpack.c.l.b16 %v2475
    %v2548 = vunpack.c.h.b16 %v2475
    %v2549 = vunpack.c.l.b16 %v2476
    %v2550 = vunpack.c.h.b16 %v2476
    %v2551 = vunpack.c.l.b16 %v2477
    %v2552 = vunpack.c.h.b16 %v2477
    %v2553 = vunpack.c.l.b16 %v2478
    %v2554 = vunpack.c.h.b16 %v2478
    %v2555 = vunpack.c.l.b16 %v2479
    %v2556 = vunpack.c.h.b16 %v2479
    %v2557 = vunpack.c.l.b16 %v2480
    %v2558 = vunpack.c.h.b16 %v2480
    %v2559 = vunpack.c.l.b16 %v2481
    %v2560 = vunpack.c.h.b16 %v2481
    %v2561 = vunpack.c.l.b16 %v2482
    %v2562 = vunpack.c.h.b16 %v2482
    %v2563 = vunpack.c.l.b16 %v2483
    %v2564 = vunpack.c.h.b16 %v2483
    %v2565 = vunpack.c.l.b16 %v2484
    %v2566 = vunpack.c.h.b16 %v2484
    %v2567 = vunpack.c.l.b16 %v2485
    %v2568 = vunpack.c.h.b16 %v2485
    %v2569 = vunpack.c.l.b16 %v2486
    %v2570 = vunpack.c.h.b16 %v2486
    %v2571 = vunpack.c.l.b16 %v2487
    %v2572 = vunpack.c.h.b16 %v2487
    %v2573 = vunpack.c.l.b16 %v2488
    %v2574 = vunpack.c.h.b16 %v2488
    %v2575 = vunpack.c.l.b16 %v2489
    %v2576 = vunpack.c.h.b16 %v2489
    %v2577 = vunpack.c.l.b16 %v2490
    %v2578 = vunpack.c.h.b16 %v2490
    %v2579 = vunpack.c.l.b16 %v2491
    %v2580 = vunpack.c.h.b16 %v2491
    %v2581 = vunpack.c.l.b16 %v2492
    %v2582 = vunpack.c.h.b16 %v2492
    %v2583 = vunpack.c.l.b16 %v2493
    %v2584 = vunpack.c.h.b16 %v2493
    %v2585 = vunpack.c.l.b16 %v2494
    %v2586 = vunpack.c.h.b16 %v2494
    %v2587 = vunpack.c.l.b16 %v2495
    %v2588 = vunpack.c.h.b16 %v2495
    %v2589 = vunpack.c.l.b16 %v2496
    %v2590 = vunpack.c.h.b16 %v2496
    %v2591 = vunpack.c.l.b16 %v2497
    %v2592 = vunpack.c.h.b16 %v2497
    %v2593 = vunpack.c.l.b16 %v2498
    %v2594 = vunpack.c.h.b16 %v2498
    %v2595 = vpack.c.b16 %v2535, %v2531
    %v2596 = vpack.c.b16 %v2536, %v2532
    %v2597 = vpack.c.b16 %v2537, %v2533
    %v2598 = vpack.c.b16 %v2538, %v2534
    %v2599 = vpack.c.b16 %v2543, %v2539
    %v2600 = vpack.c.b16 %v2544, %v2540
    %v2601 = vpack.c.b16 %v2545, %v2541
    %v2602 = vpack.c.b16 %v2546, %v2542
    %v2603 = vpack.c.b16 %v2551, %v2547
    %v2604 = vpack.c.b16 %v2552, %v2548
    %v2605 = vpack.c.b16 %v2553, %v2549
    %v2606 = vpack.c.b16 %v2554, %v2550
    %v2607 = vpack.c.b16 %v2559, %v2555
    %v2608 = vpack.c.b16 %v2560, %v2556
    %v2609 = vpack.c.b16 %v2561, %v2557
    %v2610 = vpack.c.b16 %v2562, %v2558
    %v2611 = vpack.c.b16 %v2567, %v2563
    %v2612 = vpack.c.b16 %v2568, %v2564
    %v2613 = vpack.c.b16 %v2569, %v2565
    %v2614 = vpack.c.b16 %v2570, %v2566
    %v2615 = vpack.c.b16 %v2575, %v2571
    %v2616 = vpack.c.b16 %v2576, %v2572
    %v2617 = vpack.c.b16 %v2577, %v2573
    %v2618 = vpack.c.b16 %v2578, %v2574
    %v2619 = vpack.c.b16 %v2583, %v2579
    %v2620 = vpack.c.b16 %v2584, %v2580
    %v2621 = vpack.c.b16 %v2585, %v2581
    %v2622 = vpack.c.b16 %v2586, %v2582
    %v2623 = vpack.c.b16 %v2591, %v2587
    %v2624 = vpack.c.b16 %v2592, %v2588
    %v2625 = vpack.c.b16 %v2593, %v2589
    %v2626 = vpack.c.b16 %v2594, %v2590
    %2659 = vmatprep.subr.bf16.mxu0 %v2596
    %2660 = vmatpush1.bf16.msra.mxu0 %v2595
    %2661 = vmatprep.subr.bf16.mxu0 %v2600
    %2662 = vmatpush1.bf16.msra.mxu0 %v2599
    %2663 = vmatprep.subr.bf16.mxu0 %v2604
    %2664 = vmatpush1.bf16.msra.mxu0 %v2603
    %2665 = vmatprep.subr.bf16.mxu0 %v2608
    %2666 = vmatpush1.bf16.msra.mxu0 %v2607
    %2667 = vmatprep.subr.bf16.mxu0 %v2612
    %2668 = vmatpush1.bf16.msra.mxu0 %v2611
    %2669 = vmatprep.subr.bf16.mxu0 %v2616
    %2670 = vmatpush1.bf16.msra.mxu0 %v2615
    %2671 = vmatprep.subr.bf16.mxu0 %v2620
    %2672 = vmatpush1.bf16.msra.mxu0 %v2619
    %2673 = vmatprep.subr.bf16.mxu0 %v2624
    %2674 = vmatpush1.bf16.msra.mxu0 %v2623
    %2675 = vmatprep.subr.bf16.mxu0 0
    %2676 = vmatpush1.bf16.msra.mxu0 0
    %2677 = vmatprep.subr.bf16.mxu0 0
    %2678 = vmatpush1.bf16.msra.mxu0 0
    %2679 = vmatprep.subr.bf16.mxu0 0
    %2680 = vmatpush1.bf16.msra.mxu0 0
    %2681 = vmatprep.subr.bf16.mxu0 0
    %2682 = vmatpush1.bf16.msra.mxu0 0
    %2683 = vmatprep.subr.bf16.mxu0 0
    %2684 = vmatpush1.bf16.msra.mxu0 0
    %2685 = vmatprep.subr.bf16.mxu0 0
    %2686 = vmatpush1.bf16.msra.mxu0 0
    %2687 = vmatprep.subr.bf16.mxu0 0
    %2688 = vmatpush1.bf16.msra.mxu0 0
    %2689 = vmatprep.subr.bf16.mxu0 0
    %2690 = vmatpush1.bf16.msra.mxu0 0
    %2691 = vmatprep.mubr.bf16.mxu0 0
    %2692 = vmatmul.mubr.bf16.gmra.mrb[0].mxu0 %v2465
    %v2693 = vpop.f32.mrb[0].mxu0
    %v2694 = vadd.f32 0.0, %v2693
    %v2695 = vpop.f32.mrb[0].mxu0
    %v2696 = vadd.f32 0.0, %v2695
    %v2697 = vpop.f32.mrb[0].mxu0
    %v2698 = vpop.f32.mrb[0].mxu0
    %2699 = vdwg.mxu0
    %2700 = vmatprep.subr.bf16.mxu0 %v2598
    %2701 = vmatpush1.bf16.msra.mxu0 %v2597
    %2702 = vmatprep.subr.bf16.mxu0 %v2602
    %2703 = vmatpush1.bf16.msra.mxu0 %v2601
    %2704 = vmatprep.subr.bf16.mxu0 %v2606
    %2705 = vmatpush1.bf16.msra.mxu0 %v2605
    %2706 = vmatprep.subr.bf16.mxu0 %v2610
    %2707 = vmatpush1.bf16.msra.mxu0 %v2609
    %2708 = vmatprep.subr.bf16.mxu0 %v2614
    %2709 = vmatpush1.bf16.msra.mxu0 %v2613
    %2710 = vmatprep.subr.bf16.mxu0 %v2618
    %2711 = vmatpush1.bf16.msra.mxu0 %v2617
    %2712 = vmatprep.subr.bf16.mxu0 %v2622
    %2713 = vmatpush1.bf16.msra.mxu0 %v2621
    %2714 = vmatprep.subr.bf16.mxu0 %v2626
    %2715 = vmatpush1.bf16.msra.mxu0 %v2625
    %2716 = vmatprep.subr.bf16.mxu0 0
    %2717 = vmatpush1.bf16.msra.mxu0 0
    %2718 = vmatprep.subr.bf16.mxu0 0
    %2719 = vmatpush1.bf16.msra.mxu0 0
    %2720 = vmatprep.subr.bf16.mxu0 0
    %2721 = vmatpush1.bf16.msra.mxu0 0
    %2722 = vmatprep.subr.bf16.mxu0 0
    %2723 = vmatpush1.bf16.msra.mxu0 0
    %2724 = vmatprep.subr.bf16.mxu0 0
    %2725 = vmatpush1.bf16.msra.mxu0 0
    %2726 = vmatprep.subr.bf16.mxu0 0
    %2727 = vmatpush1.bf16.msra.mxu0 0
    %2728 = vmatprep.subr.bf16.mxu0 0
    %2729 = vmatpush1.bf16.msra.mxu0 0
    %2730 = vmatprep.subr.bf16.mxu0 0
    %2731 = vmatpush1.bf16.msra.mxu0 0
    %2732 = vmatprep.mubr.bf16.mxu0 0
    %2733 = vmatmul.mubr.bf16.gmra.mrb[0].mxu0 %v2465
    %v2734 = vpop.f32.mrb[0].mxu0
    %v2735 = vadd.f32 0.0, %v2734
    %v2736 = vpop.f32.mrb[0].mxu0
    %v2737 = vadd.f32 0.0, %v2736
    %v2738 = vpop.f32.mrb[0].mxu0
    %v2739 = vpop.f32.mrb[0].mxu0
    %2740 = vdwg.mxu0
    %v2745 = vcombine.low %v2694, %v2696
    %v2746 = vcombine.low %v2735, %v2737
    %v2748 = vunpack.c.l.s4 1983009808
    %v2749 = vunpack.c.0.s8 %v2748
    %v2750 = vlaneseq
    %v2751 = vshrl.u32 %v2750, 7
    %v2752 = vsub.s32 %v2749, %v2751
    %v2753 = vrot.slane %v2745, %v2752
    %v2755 = vunpack.c.l.s4 1983009808
    %v2756 = vunpack.c.0.s8 %v2755
    %v2757 = vlaneseq
    %v2758 = vshrl.u32 %v2757, 7
    %v2759 = vsub.s32 %v2756, %v2758
    %v2760 = vrot.slane %v2746, %v2759
    %v2761 = vcombine.low %v2753, %v2760
    %v2763 = vadd.f32 %v2463, %v2761
    %s2764 = scalar_lea.vmem %s1, 4
    %v2765 = vld [vmem:[%s2764] sm:$0x1]
    %s2766 = scalar_lea.vmem %s3, 1024
    %v2767 = vld [vmem:[%s2766] sm:$0xff]
    %v2768 = vld [vmem:[%s2766 + $0x8] sm:$0xff]
    %v2769 = vld [vmem:[%s2766 + $0x10] sm:$0xff]
    %v2770 = vld [vmem:[%s2766 + $0x18] sm:$0xff]
    %v2771 = vld [vmem:[%s2766 + $0x20] sm:$0xff]
    %v2772 = vld [vmem:[%s2766 + $0x28] sm:$0xff]
    %v2773 = vld [vmem:[%s2766 + $0x30] sm:$0xff]
    %v2774 = vld [vmem:[%s2766 + $0x38] sm:$0xff]
    %v2775 = vld [vmem:[%s2766 + $0x40] sm:$0xff]
    %v2776 = vld [vmem:[%s2766 + $0x48] sm:$0xff]
    %v2777 = vld [vmem:[%s2766 + $0x50] sm:$0xff]
    %v2778 = vld [vmem:[%s2766 + $0x58] sm:$0xff]
    %v2779 = vld [vmem:[%s2766 + $0x60] sm:$0xff]
    %v2780 = vld [vmem:[%s2766 + $0x68] sm:$0xff]
    %v2781 = vld [vmem:[%s2766 + $0x70] sm:$0xff]
    %v2782 = vld [vmem:[%s2766 + $0x78] sm:$0xff]
    %v2783 = vld [vmem:[%s2766 + $0x80] sm:$0xff]
    %v2784 = vld [vmem:[%s2766 + $0x88] sm:$0xff]
    %v2785 = vld [vmem:[%s2766 + $0x90] sm:$0xff]
    %v2786 = vld [vmem:[%s2766 + $0x98] sm:$0xff]
    %v2787 = vld [vmem:[%s2766 + $0xa0] sm:$0xff]
    %v2788 = vld [vmem:[%s2766 + $0xa8] sm:$0xff]
    %v2789 = vld [vmem:[%s2766 + $0xb0] sm:$0xff]
    %v2790 = vld [vmem:[%s2766 + $0xb8] sm:$0xff]
    %v2791 = vld [vmem:[%s2766 + $0xc0] sm:$0xff]
    %v2792 = vld [vmem:[%s2766 + $0xc8] sm:$0xff]
    %v2793 = vld [vmem:[%s2766 + $0xd0] sm:$0xff]
    %v2794 = vld [vmem:[%s2766 + $0xd8] sm:$0xff]
    %v2795 = vld [vmem:[%s2766 + $0xe0] sm:$0xff]
    %v2796 = vld [vmem:[%s2766 + $0xe8] sm:$0xff]
    %v2797 = vld [vmem:[%s2766 + $0xf0] sm:$0xff]
    %v2798 = vld [vmem:[%s2766 + $0xf8] sm:$0xff]
    %v2831 = vunpack.c.l.b16 %v2767
    %v2832 = vunpack.c.h.b16 %v2767
    %v2833 = vunpack.c.l.b16 %v2768
    %v2834 = vunpack.c.h.b16 %v2768
    %v2835 = vunpack.c.l.b16 %v2769
    %v2836 = vunpack.c.h.b16 %v2769
    %v2837 = vunpack.c.l.b16 %v2770
    %v2838 = vunpack.c.h.b16 %v2770
    %v2839 = vunpack.c.l.b16 %v2771
    %v2840 = vunpack.c.h.b16 %v2771
    %v2841 = vunpack.c.l.b16 %v2772
    %v2842 = vunpack.c.h.b16 %v2772
    %v2843 = vunpack.c.l.b16 %v2773
    %v2844 = vunpack.c.h.b16 %v2773
    %v2845 = vunpack.c.l.b16 %v2774
    %v2846 = vunpack.c.h.b16 %v2774
    %v2847 = vunpack.c.l.b16 %v2775
    %v2848 = vunpack.c.h.b16 %v2775
    %v2849 = vunpack.c.l.b16 %v2776
    %v2850 = vunpack.c.h.b16 %v2776
    %v2851 = vunpack.c.l.b16 %v2777
    %v2852 = vunpack.c.h.b16 %v2777
    %v2853 = vunpack.c.l.b16 %v2778
    %v2854 = vunpack.c.h.b16 %v2778
    %v2855 = vunpack.c.l.b16 %v2779
    %v2856 = vunpack.c.h.b16 %v2779
    %v2857 = vunpack.c.l.b16 %v2780
    %v2858 = vunpack.c.h.b16 %v2780
    %v2859 = vunpack.c.l.b16 %v2781
    %v2860 = vunpack.c.h.b16 %v2781
    %v2861 = vunpack.c.l.b16 %v2782
    %v2862 = vunpack.c.h.b16 %v2782
    %v2863 = vunpack.c.l.b16 %v2783
    %v2864 = vunpack.c.h.b16 %v2783
    %v2865 = vunpack.c.l.b16 %v2784
    %v2866 = vunpack.c.h.b16 %v2784
    %v2867 = vunpack.c.l.b16 %v2785
    %v2868 = vunpack.c.h.b16 %v2785
    %v2869 = vunpack.c.l.b16 %v2786
    %v2870 = vunpack.c.h.b16 %v2786
    %v2871 = vunpack.c.l.b16 %v2787
    %v2872 = vunpack.c.h.b16 %v2787
    %v2873 = vunpack.c.l.b16 %v2788
    %v2874 = vunpack.c.h.b16 %v2788
    %v2875 = vunpack.c.l.b16 %v2789
    %v2876 = vunpack.c.h.b16 %v2789
    %v2877 = vunpack.c.l.b16 %v2790
    %v2878 = vunpack.c.h.b16 %v2790
    %v2879 = vunpack.c.l.b16 %v2791
    %v2880 = vunpack.c.h.b16 %v2791
    %v2881 = vunpack.c.l.b16 %v2792
    %v2882 = vunpack.c.h.b16 %v2792
    %v2883 = vunpack.c.l.b16 %v2793
    %v2884 = vunpack.c.h.b16 %v2793
    %v2885 = vunpack.c.l.b16 %v2794
    %v2886 = vunpack.c.h.b16 %v2794
    %v2887 = vunpack.c.l.b16 %v2795
    %v2888 = vunpack.c.h.b16 %v2795
    %v2889 = vunpack.c.l.b16 %v2796
    %v2890 = vunpack.c.h.b16 %v2796
    %v2891 = vunpack.c.l.b16 %v2797
    %v2892 = vunpack.c.h.b16 %v2797
    %v2893 = vunpack.c.l.b16 %v2798
    %v2894 = vunpack.c.h.b16 %v2798
    %v2895 = vpack.c.b16 %v2835, %v2831
    %v2896 = vpack.c.b16 %v2836, %v2832
    %v2897 = vpack.c.b16 %v2837, %v2833
    %v2898 = vpack.c.b16 %v2838, %v2834
    %v2899 = vpack.c.b16 %v2843, %v2839
    %v2900 = vpack.c.b16 %v2844, %v2840
    %v2901 = vpack.c.b16 %v2845, %v2841
    %v2902 = vpack.c.b16 %v2846, %v2842
    %v2903 = vpack.c.b16 %v2851, %v2847
    %v2904 = vpack.c.b16 %v2852, %v2848
    %v2905 = vpack.c.b16 %v2853, %v2849
    %v2906 = vpack.c.b16 %v2854, %v2850
    %v2907 = vpack.c.b16 %v2859, %v2855
    %v2908 = vpack.c.b16 %v2860, %v2856
    %v2909 = vpack.c.b16 %v2861, %v2857
    %v2910 = vpack.c.b16 %v2862, %v2858
    %v2911 = vpack.c.b16 %v2867, %v2863
    %v2912 = vpack.c.b16 %v2868, %v2864
    %v2913 = vpack.c.b16 %v2869, %v2865
    %v2914 = vpack.c.b16 %v2870, %v2866
    %v2915 = vpack.c.b16 %v2875, %v2871
    %v2916 = vpack.c.b16 %v2876, %v2872
    %v2917 = vpack.c.b16 %v2877, %v2873
    %v2918 = vpack.c.b16 %v2878, %v2874
    %v2919 = vpack.c.b16 %v2883, %v2879
    %v2920 = vpack.c.b16 %v2884, %v2880
    %v2921 = vpack.c.b16 %v2885, %v2881
    %v2922 = vpack.c.b16 %v2886, %v2882
    %v2923 = vpack.c.b16 %v2891, %v2887
    %v2924 = vpack.c.b16 %v2892, %v2888
    %v2925 = vpack.c.b16 %v2893, %v2889
    %v2926 = vpack.c.b16 %v2894, %v2890
    %2959 = vmatprep.subr.bf16.mxu0 %v2896
    %2960 = vmatpush1.bf16.msra.mxu0 %v2895
    %2961 = vmatprep.subr.bf16.mxu0 %v2900
    %2962 = vmatpush1.bf16.msra.mxu0 %v2899
    %2963 = vmatprep.subr.bf16.mxu0 %v2904
    %2964 = vmatpush1.bf16.msra.mxu0 %v2903
    %2965 = vmatprep.subr.bf16.mxu0 %v2908
    %2966 = vmatpush1.bf16.msra.mxu0 %v2907
    %2967 = vmatprep.subr.bf16.mxu0 %v2912
    %2968 = vmatpush1.bf16.msra.mxu0 %v2911
    %2969 = vmatprep.subr.bf16.mxu0 %v2916
    %2970 = vmatpush1.bf16.msra.mxu0 %v2915
    %2971 = vmatprep.subr.bf16.mxu0 %v2920
    %2972 = vmatpush1.bf16.msra.mxu0 %v2919
    %2973 = vmatprep.subr.bf16.mxu0 %v2924
    %2974 = vmatpush1.bf16.msra.mxu0 %v2923
    %2975 = vmatprep.subr.bf16.mxu0 0
    %2976 = vmatpush1.bf16.msra.mxu0 0
    %2977 = vmatprep.subr.bf16.mxu0 0
    %2978 = vmatpush1.bf16.msra.mxu0 0
    %2979 = vmatprep.subr.bf16.mxu0 0
    %2980 = vmatpush1.bf16.msra.mxu0 0
    %2981 = vmatprep.subr.bf16.mxu0 0
    %2982 = vmatpush1.bf16.msra.mxu0 0
    %2983 = vmatprep.subr.bf16.mxu0 0
    %2984 = vmatpush1.bf16.msra.mxu0 0
    %2985 = vmatprep.subr.bf16.mxu0 0
    %2986 = vmatpush1.bf16.msra.mxu0 0
    %2987 = vmatprep.subr.bf16.mxu0 0
    %2988 = vmatpush1.bf16.msra.mxu0 0
    %2989 = vmatprep.subr.bf16.mxu0 0
    %2990 = vmatpush1.bf16.msra.mxu0 0
    %2991 = vmatprep.mubr.bf16.mxu0 0
    %2992 = vmatmul.mubr.bf16.gmra.mrb[0].mxu0 %v2765
    %v2993 = vpop.f32.mrb[0].mxu0
    %v2994 = vadd.f32 0.0, %v2993
    %v2995 = vpop.f32.mrb[0].mxu0
    %v2996 = vadd.f32 0.0, %v2995
    %v2997 = vpop.f32.mrb[0].mxu0
    %v2998 = vpop.f32.mrb[0].mxu0
    %2999 = vdwg.mxu0
    %3000 = vmatprep.subr.bf16.mxu0 %v2898
    %3001 = vmatpush1.bf16.msra.mxu0 %v2897
    %3002 = vmatprep.subr.bf16.mxu0 %v2902
    %3003 = vmatpush1.bf16.msra.mxu0 %v2901
    %3004 = vmatprep.subr.bf16.mxu0 %v2906
    %3005 = vmatpush1.bf16.msra.mxu0 %v2905
    %3006 = vmatprep.subr.bf16.mxu0 %v2910
    %3007 = vmatpush1.bf16.msra.mxu0 %v2909
    %3008 = vmatprep.subr.bf16.mxu0 %v2914
    %3009 = vmatpush1.bf16.msra.mxu0 %v2913
    %3010 = vmatprep.subr.bf16.mxu0 %v2918
    %3011 = vmatpush1.bf16.msra.mxu0 %v2917
    %3012 = vmatprep.subr.bf16.mxu0 %v2922
    %3013 = vmatpush1.bf16.msra.mxu0 %v2921
    %3014 = vmatprep.subr.bf16.mxu0 %v2926
    %3015 = vmatpush1.bf16.msra.mxu0 %v2925
    %3016 = vmatprep.subr.bf16.mxu0 0
    %3017 = vmatpush1.bf16.msra.mxu0 0
    %3018 = vmatprep.subr.bf16.mxu0 0
    %3019 = vmatpush1.bf16.msra.mxu0 0
    %3020 = vmatprep.subr.bf16.mxu0 0
    %3021 = vmatpush1.bf16.msra.mxu0 0
    %3022 = vmatprep.subr.bf16.mxu0 0
    %3023 = vmatpush1.bf16.msra.mxu0 0
    %3024 = vmatprep.subr.bf16.mxu0 0
    %3025 = vmatpush1.bf16.msra.mxu0 0
    %3026 = vmatprep.subr.bf16.mxu0 0
    %3027 = vmatpush1.bf16.msra.mxu0 0
    %3028 = vmatprep.subr.bf16.mxu0 0
    %3029 = vmatpush1.bf16.msra.mxu0 0
    %3030 = vmatprep.subr.bf16.mxu0 0
    %3031 = vmatpush1.bf16.msra.mxu0 0
    %3032 = vmatprep.mubr.bf16.mxu0 0
    %3033 = vmatmul.mubr.bf16.gmra.mrb[0].mxu0 %v2765
    %v3034 = vpop.f32.mrb[0].mxu0
    %v3035 = vadd.f32 0.0, %v3034
    %v3036 = vpop.f32.mrb[0].mxu0
    %v3037 = vadd.f32 0.0, %v3036
    %v3038 = vpop.f32.mrb[0].mxu0
    %v3039 = vpop.f32.mrb[0].mxu0
    %3040 = vdwg.mxu0
    %v3045 = vcombine.low %v2994, %v2996
    %v3046 = vcombine.low %v3035, %v3037
    %v3048 = vunpack.c.l.s4 1983009808
    %v3049 = vunpack.c.0.s8 %v3048
    %v3050 = vlaneseq
    %v3051 = vshrl.u32 %v3050, 7
    %v3052 = vsub.s32 %v3049, %v3051
    %v3053 = vrot.slane %v3045, %v3052
    %v3055 = vunpack.c.l.s4 1983009808
    %v3056 = vunpack.c.0.s8 %v3055
    %v3057 = vlaneseq
    %v3058 = vshrl.u32 %v3057, 7
    %v3059 = vsub.s32 %v3056, %v3058
    %v3060 = vrot.slane %v3046, %v3059
    %v3061 = vcombine.low %v3053, %v3060
    %v3063 = vadd.f32 %v2763, %v3061
    %s3064 = scalar_lea.vmem %s0, 5
    %v3065 = vld [vmem:[%s3064] sm:$0x1]
    %s3066 = scalar_lea.vmem %s2, 1280
    %v3067 = vld [vmem:[%s3066] sm:$0xff]
    %v3068 = vld [vmem:[%s3066 + $0x8] sm:$0xff]
    %v3069 = vld [vmem:[%s3066 + $0x10] sm:$0xff]
    %v3070 = vld [vmem:[%s3066 + $0x18] sm:$0xff]
    %v3071 = vld [vmem:[%s3066 + $0x20] sm:$0xff]
    %v3072 = vld [vmem:[%s3066 + $0x28] sm:$0xff]
    %v3073 = vld [vmem:[%s3066 + $0x30] sm:$0xff]
    %v3074 = vld [vmem:[%s3066 + $0x38] sm:$0xff]
    %v3075 = vld [vmem:[%s3066 + $0x40] sm:$0xff]
    %v3076 = vld [vmem:[%s3066 + $0x48] sm:$0xff]
    %v3077 = vld [vmem:[%s3066 + $0x50] sm:$0xff]
    %v3078 = vld [vmem:[%s3066 + $0x58] sm:$0xff]
    %v3079 = vld [vmem:[%s3066 + $0x60] sm:$0xff]
    %v3080 = vld [vmem:[%s3066 + $0x68] sm:$0xff]
    %v3081 = vld [vmem:[%s3066 + $0x70] sm:$0xff]
    %v3082 = vld [vmem:[%s3066 + $0x78] sm:$0xff]
    %v3083 = vld [vmem:[%s3066 + $0x80] sm:$0xff]
    %v3084 = vld [vmem:[%s3066 + $0x88] sm:$0xff]
    %v3085 = vld [vmem:[%s3066 + $0x90] sm:$0xff]
    %v3086 = vld [vmem:[%s3066 + $0x98] sm:$0xff]
    %v3087 = vld [vmem:[%s3066 + $0xa0] sm:$0xff]
    %v3088 = vld [vmem:[%s3066 + $0xa8] sm:$0xff]
    %v3089 = vld [vmem:[%s3066 + $0xb0] sm:$0xff]
    %v3090 = vld [vmem:[%s3066 + $0xb8] sm:$0xff]
    %v3091 = vld [vmem:[%s3066 + $0xc0] sm:$0xff]
    %v3092 = vld [vmem:[%s3066 + $0xc8] sm:$0xff]
    %v3093 = vld [vmem:[%s3066 + $0xd0] sm:$0xff]
    %v3094 = vld [vmem:[%s3066 + $0xd8] sm:$0xff]
    %v3095 = vld [vmem:[%s3066 + $0xe0] sm:$0xff]
    %v3096 = vld [vmem:[%s3066 + $0xe8] sm:$0xff]
    %v3097 = vld [vmem:[%s3066 + $0xf0] sm:$0xff]
    %v3098 = vld [vmem:[%s3066 + $0xf8] sm:$0xff]
    %v3131 = vunpack.c.l.b16 %v3067
    %v3132 = vunpack.c.h.b16 %v3067
    %v3133 = vunpack.c.l.b16 %v3068
    %v3134 = vunpack.c.h.b16 %v3068
    %v3135 = vunpack.c.l.b16 %v3069
    %v3136 = vunpack.c.h.b16 %v3069
    %v3137 = vunpack.c.l.b16 %v3070
    %v3138 = vunpack.c.h.b16 %v3070
    %v3139 = vunpack.c.l.b16 %v3071
    %v3140 = vunpack.c.h.b16 %v3071
    %v3141 = vunpack.c.l.b16 %v3072
    %v3142 = vunpack.c.h.b16 %v3072
    %v3143 = vunpack.c.l.b16 %v3073
    %v3144 = vunpack.c.h.b16 %v3073
    %v3145 = vunpack.c.l.b16 %v3074
    %v3146 = vunpack.c.h.b16 %v3074
    %v3147 = vunpack.c.l.b16 %v3075
    %v3148 = vunpack.c.h.b16 %v3075
    %v3149 = vunpack.c.l.b16 %v3076
    %v3150 = vunpack.c.h.b16 %v3076
    %v3151 = vunpack.c.l.b16 %v3077
    %v3152 = vunpack.c.h.b16 %v3077
    %v3153 = vunpack.c.l.b16 %v3078
    %v3154 = vunpack.c.h.b16 %v3078
    %v3155 = vunpack.c.l.b16 %v3079
    %v3156 = vunpack.c.h.b16 %v3079
    %v3157 = vunpack.c.l.b16 %v3080
    %v3158 = vunpack.c.h.b16 %v3080
    %v3159 = vunpack.c.l.b16 %v3081
    %v3160 = vunpack.c.h.b16 %v3081
    %v3161 = vunpack.c.l.b16 %v3082
    %v3162 = vunpack.c.h.b16 %v3082
    %v3163 = vunpack.c.l.b16 %v3083
    %v3164 = vunpack.c.h.b16 %v3083
    %v3165 = vunpack.c.l.b16 %v3084
    %v3166 = vunpack.c.h.b16 %v3084
    %v3167 = vunpack.c.l.b16 %v3085
    %v3168 = vunpack.c.h.b16 %v3085
    %v3169 = vunpack.c.l.b16 %v3086
    %v3170 = vunpack.c.h.b16 %v3086
    %v3171 = vunpack.c.l.b16 %v3087
    %v3172 = vunpack.c.h.b16 %v3087
    %v3173 = vunpack.c.l.b16 %v3088
    %v3174 = vunpack.c.h.b16 %v3088
    %v3175 = vunpack.c.l.b16 %v3089
    %v3176 = vunpack.c.h.b16 %v3089
    %v3177 = vunpack.c.l.b16 %v3090
    %v3178 = vunpack.c.h.b16 %v3090
    %v3179 = vunpack.c.l.b16 %v3091
    %v3180 = vunpack.c.h.b16 %v3091
    %v3181 = vunpack.c.l.b16 %v3092
    %v3182 = vunpack.c.h.b16 %v3092
    %v3183 = vunpack.c.l.b16 %v3093
    %v3184 = vunpack.c.h.b16 %v3093
    %v3185 = vunpack.c.l.b16 %v3094
    %v3186 = vunpack.c.h.b16 %v3094
    %v3187 = vunpack.c.l.b16 %v3095
    %v3188 = vunpack.c.h.b16 %v3095
    %v3189 = vunpack.c.l.b16 %v3096
    %v3190 = vunpack.c.h.b16 %v3096
    %v3191 = vunpack.c.l.b16 %v3097
    %v3192 = vunpack.c.h.b16 %v3097
    %v3193 = vunpack.c.l.b16 %v3098
    %v3194 = vunpack.c.h.b16 %v3098
    %v3195 = vpack.c.b16 %v3135, %v3131
    %v3196 = vpack.c.b16 %v3136, %v3132
    %v3197 = vpack.c.b16 %v3137, %v3133
    %v3198 = vpack.c.b16 %v3138, %v3134
    %v3199 = vpack.c.b16 %v3143, %v3139
    %v3200 = vpack.c.b16 %v3144, %v3140
    %v3201 = vpack.c.b16 %v3145, %v3141
    %v3202 = vpack.c.b16 %v3146, %v3142
    %v3203 = vpack.c.b16 %v3151, %v3147
    %v3204 = vpack.c.b16 %v3152, %v3148
    %v3205 = vpack.c.b16 %v3153, %v3149
    %v3206 = vpack.c.b16 %v3154, %v3150
    %v3207 = vpack.c.b16 %v3159, %v3155
    %v3208 = vpack.c.b16 %v3160, %v3156
    %v3209 = vpack.c.b16 %v3161, %v3157
    %v3210 = vpack.c.b16 %v3162, %v3158
    %v3211 = vpack.c.b16 %v3167, %v3163
    %v3212 = vpack.c.b16 %v3168, %v3164
    %v3213 = vpack.c.b16 %v3169, %v3165
    %v3214 = vpack.c.b16 %v3170, %v3166
    %v3215 = vpack.c.b16 %v3175, %v3171
    %v3216 = vpack.c.b16 %v3176, %v3172
    %v3217 = vpack.c.b16 %v3177, %v3173
    %v3218 = vpack.c.b16 %v3178, %v3174
    %v3219 = vpack.c.b16 %v3183, %v3179
    %v3220 = vpack.c.b16 %v3184, %v3180
    %v3221 = vpack.c.b16 %v3185, %v3181
    %v3222 = vpack.c.b16 %v3186, %v3182
    %v3223 = vpack.c.b16 %v3191, %v3187
    %v3224 = vpack.c.b16 %v3192, %v3188
    %v3225 = vpack.c.b16 %v3193, %v3189
    %v3226 = vpack.c.b16 %v3194, %v3190
    %3259 = vmatprep.subr.bf16.mxu0 %v3196
    %3260 = vmatpush1.bf16.msra.mxu0 %v3195
    %3261 = vmatprep.subr.bf16.mxu0 %v3200
    %3262 = vmatpush1.bf16.msra.mxu0 %v3199
    %3263 = vmatprep.subr.bf16.mxu0 %v3204
    %3264 = vmatpush1.bf16.msra.mxu0 %v3203
    %3265 = vmatprep.subr.bf16.mxu0 %v3208
    %3266 = vmatpush1.bf16.msra.mxu0 %v3207
    %3267 = vmatprep.subr.bf16.mxu0 %v3212
    %3268 = vmatpush1.bf16.msra.mxu0 %v3211
    %3269 = vmatprep.subr.bf16.mxu0 %v3216
    %3270 = vmatpush1.bf16.msra.mxu0 %v3215
    %3271 = vmatprep.subr.bf16.mxu0 %v3220
    %3272 = vmatpush1.bf16.msra.mxu0 %v3219
    %3273 = vmatprep.subr.bf16.mxu0 %v3224
    %3274 = vmatpush1.bf16.msra.mxu0 %v3223
    %3275 = vmatprep.subr.bf16.mxu0 0
    %3276 = vmatpush1.bf16.msra.mxu0 0
    %3277 = vmatprep.subr.bf16.mxu0 0
    %3278 = vmatpush1.bf16.msra.mxu0 0
    %3279 = vmatprep.subr.bf16.mxu0 0
    %3280 = vmatpush1.bf16.msra.mxu0 0
    %3281 = vmatprep.subr.bf16.mxu0 0
    %3282 = vmatpush1.bf16.msra.mxu0 0
    %3283 = vmatprep.subr.bf16.mxu0 0
    %3284 = vmatpush1.bf16.msra.mxu0 0
    %3285 = vmatprep.subr.bf16.mxu0 0
    %3286 = vmatpush1.bf16.msra.mxu0 0
    %3287 = vmatprep.subr.bf16.mxu0 0
    %3288 = vmatpush1.bf16.msra.mxu0 0
    %3289 = vmatprep.subr.bf16.mxu0 0
    %3290 = vmatpush1.bf16.msra.mxu0 0
    %3291 = vmatprep.mubr.bf16.mxu0 0
    %3292 = vmatmul.mubr.bf16.gmra.mrb[0].mxu0 %v3065
    %v3293 = vpop.f32.mrb[0].mxu0
    %v3294 = vadd.f32 0.0, %v3293
    %v3295 = vpop.f32.mrb[0].mxu0
    %v3296 = vadd.f32 0.0, %v3295
    %v3297 = vpop.f32.mrb[0].mxu0
    %v3298 = vpop.f32.mrb[0].mxu0
    %3299 = vdwg.mxu0
    %3300 = vmatprep.subr.bf16.mxu0 %v3198
    %3301 = vmatpush1.bf16.msra.mxu0 %v3197
    %3302 = vmatprep.subr.bf16.mxu0 %v3202
    %3303 = vmatpush1.bf16.msra.mxu0 %v3201
    %3304 = vmatprep.subr.bf16.mxu0 %v3206
    %3305 = vmatpush1.bf16.msra.mxu0 %v3205
    %3306 = vmatprep.subr.bf16.mxu0 %v3210
    %3307 = vmatpush1.bf16.msra.mxu0 %v3209
    %3308 = vmatprep.subr.bf16.mxu0 %v3214
    %3309 = vmatpush1.bf16.msra.mxu0 %v3213
    %3310 = vmatprep.subr.bf16.mxu0 %v3218
    %3311 = vmatpush1.bf16.msra.mxu0 %v3217
    %3312 = vmatprep.subr.bf16.mxu0 %v3222
    %3313 = vmatpush1.bf16.msra.mxu0 %v3221
    %3314 = vmatprep.subr.bf16.mxu0 %v3226
    %3315 = vmatpush1.bf16.msra.mxu0 %v3225
    %3316 = vmatprep.subr.bf16.mxu0 0
    %3317 = vmatpush1.bf16.msra.mxu0 0
    %3318 = vmatprep.subr.bf16.mxu0 0
    %3319 = vmatpush1.bf16.msra.mxu0 0
    %3320 = vmatprep.subr.bf16.mxu0 0
    %3321 = vmatpush1.bf16.msra.mxu0 0
    %3322 = vmatprep.subr.bf16.mxu0 0
    %3323 = vmatpush1.bf16.msra.mxu0 0
    %3324 = vmatprep.subr.bf16.mxu0 0
    %3325 = vmatpush1.bf16.msra.mxu0 0
    %3326 = vmatprep.subr.bf16.mxu0 0
    %3327 = vmatpush1.bf16.msra.mxu0 0
    %3328 = vmatprep.subr.bf16.mxu0 0
    %3329 = vmatpush1.bf16.msra.mxu0 0
    %3330 = vmatprep.subr.bf16.mxu0 0
    %3331 = vmatpush1.bf16.msra.mxu0 0
    %3332 = vmatprep.mubr.bf16.mxu0 0
    %3333 = vmatmul.mubr.bf16.gmra.mrb[0].mxu0 %v3065
    %v3334 = vpop.f32.mrb[0].mxu0
    %v3335 = vadd.f32 0.0, %v3334
    %v3336 = vpop.f32.mrb[0].mxu0
    %v3337 = vadd.f32 0.0, %v3336
    %v3338 = vpop.f32.mrb[0].mxu0
    %v3339 = vpop.f32.mrb[0].mxu0
    %3340 = vdwg.mxu0
    %v3345 = vcombine.low %v3294, %v3296
    %v3346 = vcombine.low %v3335, %v3337
    %v3348 = vunpack.c.l.s4 1983009808
    %v3349 = vunpack.c.0.s8 %v3348
    %v3350 = vlaneseq
    %v3351 = vshrl.u32 %v3350, 7
    %v3352 = vsub.s32 %v3349, %v3351
    %v3353 = vrot.slane %v3345, %v3352
    %v3355 = vunpack.c.l.s4 1983009808
    %v3356 = vunpack.c.0.s8 %v3355
    %v3357 = vlaneseq
    %v3358 = vshrl.u32 %v3357, 7
    %v3359 = vsub.s32 %v3356, %v3358
    %v3360 = vrot.slane %v3346, %v3359
    %v3361 = vcombine.low %v3353, %v3360
    %v3363 = vadd.f32 %v3063, %v3361
    %s3364 = scalar_lea.vmem %s1, 5
    %v3365 = vld [vmem:[%s3364] sm:$0x1]
    %s3366 = scalar_lea.vmem %s3, 1280
    %v3367 = vld [vmem:[%s3366] sm:$0xff]
    %v3368 = vld [vmem:[%s3366 + $0x8] sm:$0xff]
    %v3369 = vld [vmem:[%s3366 + $0x10] sm:$0xff]
    %v3370 = vld [vmem:[%s3366 + $0x18] sm:$0xff]
    %v3371 = vld [vmem:[%s3366 + $0x20] sm:$0xff]
    %v3372 = vld [vmem:[%s3366 + $0x28] sm:$0xff]
    %v3373 = vld [vmem:[%s3366 + $0x30] sm:$0xff]
    %v3374 = vld [vmem:[%s3366 + $0x38] sm:$0xff]
    %v3375 = vld [vmem:[%s3366 + $0x40] sm:$0xff]
    %v3376 = vld [vmem:[%s3366 + $0x48] sm:$0xff]
    %v3377 = vld [vmem:[%s3366 + $0x50] sm:$0xff]
    %v3378 = vld [vmem:[%s3366 + $0x58] sm:$0xff]
    %v3379 = vld [vmem:[%s3366 + $0x60] sm:$0xff]
    %v3380 = vld [vmem:[%s3366 + $0x68] sm:$0xff]
    %v3381 = vld [vmem:[%s3366 + $0x70] sm:$0xff]
    %v3382 = vld [vmem:[%s3366 + $0x78] sm:$0xff]
    %v3383 = vld [vmem:[%s3366 + $0x80] sm:$0xff]
    %v3384 = vld [vmem:[%s3366 + $0x88] sm:$0xff]
    %v3385 = vld [vmem:[%s3366 + $0x90] sm:$0xff]
    %v3386 = vld [vmem:[%s3366 + $0x98] sm:$0xff]
    %v3387 = vld [vmem:[%s3366 + $0xa0] sm:$0xff]
    %v3388 = vld [vmem:[%s3366 + $0xa8] sm:$0xff]
    %v3389 = vld [vmem:[%s3366 + $0xb0] sm:$0xff]
    %v3390 = vld [vmem:[%s3366 + $0xb8] sm:$0xff]
    %v3391 = vld [vmem:[%s3366 + $0xc0] sm:$0xff]
    %v3392 = vld [vmem:[%s3366 + $0xc8] sm:$0xff]
    %v3393 = vld [vmem:[%s3366 + $0xd0] sm:$0xff]
    %v3394 = vld [vmem:[%s3366 + $0xd8] sm:$0xff]
    %v3395 = vld [vmem:[%s3366 + $0xe0] sm:$0xff]
    %v3396 = vld [vmem:[%s3366 + $0xe8] sm:$0xff]
    %v3397 = vld [vmem:[%s3366 + $0xf0] sm:$0xff]
    %v3398 = vld [vmem:[%s3366 + $0xf8] sm:$0xff]
    %v3431 = vunpack.c.l.b16 %v3367
    %v3432 = vunpack.c.h.b16 %v3367
    %v3433 = vunpack.c.l.b16 %v3368
    %v3434 = vunpack.c.h.b16 %v3368
    %v3435 = vunpack.c.l.b16 %v3369
    %v3436 = vunpack.c.h.b16 %v3369
    %v3437 = vunpack.c.l.b16 %v3370
    %v3438 = vunpack.c.h.b16 %v3370
    %v3439 = vunpack.c.l.b16 %v3371
    %v3440 = vunpack.c.h.b16 %v3371
    %v3441 = vunpack.c.l.b16 %v3372
    %v3442 = vunpack.c.h.b16 %v3372
    %v3443 = vunpack.c.l.b16 %v3373
    %v3444 = vunpack.c.h.b16 %v3373
    %v3445 = vunpack.c.l.b16 %v3374
    %v3446 = vunpack.c.h.b16 %v3374
    %v3447 = vunpack.c.l.b16 %v3375
    %v3448 = vunpack.c.h.b16 %v3375
    %v3449 = vunpack.c.l.b16 %v3376
    %v3450 = vunpack.c.h.b16 %v3376
    %v3451 = vunpack.c.l.b16 %v3377
    %v3452 = vunpack.c.h.b16 %v3377
    %v3453 = vunpack.c.l.b16 %v3378
    %v3454 = vunpack.c.h.b16 %v3378
    %v3455 = vunpack.c.l.b16 %v3379
    %v3456 = vunpack.c.h.b16 %v3379
    %v3457 = vunpack.c.l.b16 %v3380
    %v3458 = vunpack.c.h.b16 %v3380
    %v3459 = vunpack.c.l.b16 %v3381
    %v3460 = vunpack.c.h.b16 %v3381
    %v3461 = vunpack.c.l.b16 %v3382
    %v3462 = vunpack.c.h.b16 %v3382
    %v3463 = vunpack.c.l.b16 %v3383
    %v3464 = vunpack.c.h.b16 %v3383
    %v3465 = vunpack.c.l.b16 %v3384
    %v3466 = vunpack.c.h.b16 %v3384
    %v3467 = vunpack.c.l.b16 %v3385
    %v3468 = vunpack.c.h.b16 %v3385
    %v3469 = vunpack.c.l.b16 %v3386
    %v3470 = vunpack.c.h.b16 %v3386
    %v3471 = vunpack.c.l.b16 %v3387
    %v3472 = vunpack.c.h.b16 %v3387
    %v3473 = vunpack.c.l.b16 %v3388
    %v3474 = vunpack.c.h.b16 %v3388
    %v3475 = vunpack.c.l.b16 %v3389
    %v3476 = vunpack.c.h.b16 %v3389
    %v3477 = vunpack.c.l.b16 %v3390
    %v3478 = vunpack.c.h.b16 %v3390
    %v3479 = vunpack.c.l.b16 %v3391
    %v3480 = vunpack.c.h.b16 %v3391
    %v3481 = vunpack.c.l.b16 %v3392
    %v3482 = vunpack.c.h.b16 %v3392
    %v3483 = vunpack.c.l.b16 %v3393
    %v3484 = vunpack.c.h.b16 %v3393
    %v3485 = vunpack.c.l.b16 %v3394
    %v3486 = vunpack.c.h.b16 %v3394
    %v3487 = vunpack.c.l.b16 %v3395
    %v3488 = vunpack.c.h.b16 %v3395
    %v3489 = vunpack.c.l.b16 %v3396
    %v3490 = vunpack.c.h.b16 %v3396
    %v3491 = vunpack.c.l.b16 %v3397
    %v3492 = vunpack.c.h.b16 %v3397
    %v3493 = vunpack.c.l.b16 %v3398
    %v3494 = vunpack.c.h.b16 %v3398
    %v3495 = vpack.c.b16 %v3435, %v3431
    %v3496 = vpack.c.b16 %v3436, %v3432
    %v3497 = vpack.c.b16 %v3437, %v3433
    %v3498 = vpack.c.b16 %v3438, %v3434
    %v3499 = vpack.c.b16 %v3443, %v3439
    %v3500 = vpack.c.b16 %v3444, %v3440
    %v3501 = vpack.c.b16 %v3445, %v3441
    %v3502 = vpack.c.b16 %v3446, %v3442
    %v3503 = vpack.c.b16 %v3451, %v3447
    %v3504 = vpack.c.b16 %v3452, %v3448
    %v3505 = vpack.c.b16 %v3453, %v3449
    %v3506 = vpack.c.b16 %v3454, %v3450
    %v3507 = vpack.c.b16 %v3459, %v3455
    %v3508 = vpack.c.b16 %v3460, %v3456
    %v3509 = vpack.c.b16 %v3461, %v3457
    %v3510 = vpack.c.b16 %v3462, %v3458
    %v3511 = vpack.c.b16 %v3467, %v3463
    %v3512 = vpack.c.b16 %v3468, %v3464
    %v3513 = vpack.c.b16 %v3469, %v3465
    %v3514 = vpack.c.b16 %v3470, %v3466
    %v3515 = vpack.c.b16 %v3475, %v3471
    %v3516 = vpack.c.b16 %v3476, %v3472
    %v3517 = vpack.c.b16 %v3477, %v3473
    %v3518 = vpack.c.b16 %v3478, %v3474
    %v3519 = vpack.c.b16 %v3483, %v3479
    %v3520 = vpack.c.b16 %v3484, %v3480
    %v3521 = vpack.c.b16 %v3485, %v3481
    %v3522 = vpack.c.b16 %v3486, %v3482
    %v3523 = vpack.c.b16 %v3491, %v3487
    %v3524 = vpack.c.b16 %v3492, %v3488
    %v3525 = vpack.c.b16 %v3493, %v3489
    %v3526 = vpack.c.b16 %v3494, %v3490
    %3559 = vmatprep.subr.bf16.mxu0 %v3496
    %3560 = vmatpush1.bf16.msra.mxu0 %v3495
    %3561 = vmatprep.subr.bf16.mxu0 %v3500
    %3562 = vmatpush1.bf16.msra.mxu0 %v3499
    %3563 = vmatprep.subr.bf16.mxu0 %v3504
    %3564 = vmatpush1.bf16.msra.mxu0 %v3503
    %3565 = vmatprep.subr.bf16.mxu0 %v3508
    %3566 = vmatpush1.bf16.msra.mxu0 %v3507
    %3567 = vmatprep.subr.bf16.mxu0 %v3512
    %3568 = vmatpush1.bf16.msra.mxu0 %v3511
    %3569 = vmatprep.subr.bf16.mxu0 %v3516
    %3570 = vmatpush1.bf16.msra.mxu0 %v3515
    %3571 = vmatprep.subr.bf16.mxu0 %v3520
    %3572 = vmatpush1.bf16.msra.mxu0 %v3519
    %3573 = vmatprep.subr.bf16.mxu0 %v3524
    %3574 = vmatpush1.bf16.msra.mxu0 %v3523
    %3575 = vmatprep.subr.bf16.mxu0 0
    %3576 = vmatpush1.bf16.msra.mxu0 0
    %3577 = vmatprep.subr.bf16.mxu0 0
    %3578 = vmatpush1.bf16.msra.mxu0 0
    %3579 = vmatprep.subr.bf16.mxu0 0
    %3580 = vmatpush1.bf16.msra.mxu0 0
    %3581 = vmatprep.subr.bf16.mxu0 0
    %3582 = vmatpush1.bf16.msra.mxu0 0
    %3583 = vmatprep.subr.bf16.mxu0 0
    %3584 = vmatpush1.bf16.msra.mxu0 0
    %3585 = vmatprep.subr.bf16.mxu0 0
    %3586 = vmatpush1.bf16.msra.mxu0 0
    %3587 = vmatprep.subr.bf16.mxu0 0
    %3588 = vmatpush1.bf16.msra.mxu0 0
    %3589 = vmatprep.subr.bf16.mxu0 0
    %3590 = vmatpush1.bf16.msra.mxu0 0
    %3591 = vmatprep.mubr.bf16.mxu0 0
    %3592 = vmatmul.mubr.bf16.gmra.mrb[0].mxu0 %v3365
    %v3593 = vpop.f32.mrb[0].mxu0
    %v3594 = vadd.f32 0.0, %v3593
    %v3595 = vpop.f32.mrb[0].mxu0
    %v3596 = vadd.f32 0.0, %v3595
    %v3597 = vpop.f32.mrb[0].mxu0
    %v3598 = vpop.f32.mrb[0].mxu0
    %3599 = vdwg.mxu0
    %3600 = vmatprep.subr.bf16.mxu0 %v3498
    %3601 = vmatpush1.bf16.msra.mxu0 %v3497
    %3602 = vmatprep.subr.bf16.mxu0 %v3502
    %3603 = vmatpush1.bf16.msra.mxu0 %v3501
    %3604 = vmatprep.subr.bf16.mxu0 %v3506
    %3605 = vmatpush1.bf16.msra.mxu0 %v3505
    %3606 = vmatprep.subr.bf16.mxu0 %v3510
    %3607 = vmatpush1.bf16.msra.mxu0 %v3509
    %3608 = vmatprep.subr.bf16.mxu0 %v3514
    %3609 = vmatpush1.bf16.msra.mxu0 %v3513
    %3610 = vmatprep.subr.bf16.mxu0 %v3518
    %3611 = vmatpush1.bf16.msra.mxu0 %v3517
    %3612 = vmatprep.subr.bf16.mxu0 %v3522
    %3613 = vmatpush1.bf16.msra.mxu0 %v3521
    %3614 = vmatprep.subr.bf16.mxu0 %v3526
    %3615 = vmatpush1.bf16.msra.mxu0 %v3525
    %3616 = vmatprep.subr.bf16.mxu0 0
    %3617 = vmatpush1.bf16.msra.mxu0 0
    %3618 = vmatprep.subr.bf16.mxu0 0
    %3619 = vmatpush1.bf16.msra.mxu0 0
    %3620 = vmatprep.subr.bf16.mxu0 0
    %3621 = vmatpush1.bf16.msra.mxu0 0
    %3622 = vmatprep.subr.bf16.mxu0 0
    %3623 = vmatpush1.bf16.msra.mxu0 0
    %3624 = vmatprep.subr.bf16.mxu0 0
    %3625 = vmatpush1.bf16.msra.mxu0 0
    %3626 = vmatprep.subr.bf16.mxu0 0
    %3627 = vmatpush1.bf16.msra.mxu0 0
    %3628 = vmatprep.subr.bf16.mxu0 0
    %3629 = vmatpush1.bf16.msra.mxu0 0
    %3630 = vmatprep.subr.bf16.mxu0 0
    %3631 = vmatpush1.bf16.msra.mxu0 0
    %3632 = vmatprep.mubr.bf16.mxu0 0
    %3633 = vmatmul.mubr.bf16.gmra.mrb[0].mxu0 %v3365
    %v3634 = vpop.f32.mrb[0].mxu0
    %v3635 = vadd.f32 0.0, %v3634
    %v3636 = vpop.f32.mrb[0].mxu0
    %v3637 = vadd.f32 0.0, %v3636
    %v3638 = vpop.f32.mrb[0].mxu0
    %v3639 = vpop.f32.mrb[0].mxu0
    %3640 = vdwg.mxu0
    %v3645 = vcombine.low %v3594, %v3596
    %v3646 = vcombine.low %v3635, %v3637
    %v3648 = vunpack.c.l.s4 1983009808
    %v3649 = vunpack.c.0.s8 %v3648
    %v3650 = vlaneseq
    %v3651 = vshrl.u32 %v3650, 7
    %v3652 = vsub.s32 %v3649, %v3651
    %v3653 = vrot.slane %v3645, %v3652
    %v3655 = vunpack.c.l.s4 1983009808
    %v3656 = vunpack.c.0.s8 %v3655
    %v3657 = vlaneseq
    %v3658 = vshrl.u32 %v3657, 7
    %v3659 = vsub.s32 %v3656, %v3658
    %v3660 = vrot.slane %v3646, %v3659
    %v3661 = vcombine.low %v3653, %v3660
    %v3663 = vadd.f32 %v3363, %v3661
    %s3664 = scalar_lea.vmem %s0, 6
    %v3665 = vld [vmem:[%s3664] sm:$0x1]
    %s3666 = scalar_lea.vmem %s2, 1536
    %v3667 = vld [vmem:[%s3666] sm:$0xff]
    %v3668 = vld [vmem:[%s3666 + $0x8] sm:$0xff]
    %v3669 = vld [vmem:[%s3666 + $0x10] sm:$0xff]
    %v3670 = vld [vmem:[%s3666 + $0x18] sm:$0xff]
    %v3671 = vld [vmem:[%s3666 + $0x20] sm:$0xff]
    %v3672 = vld [vmem:[%s3666 + $0x28] sm:$0xff]
    %v3673 = vld [vmem:[%s3666 + $0x30] sm:$0xff]
    %v3674 = vld [vmem:[%s3666 + $0x38] sm:$0xff]
    %v3675 = vld [vmem:[%s3666 + $0x40] sm:$0xff]
    %v3676 = vld [vmem:[%s3666 + $0x48] sm:$0xff]
    %v3677 = vld [vmem:[%s3666 + $0x50] sm:$0xff]
    %v3678 = vld [vmem:[%s3666 + $0x58] sm:$0xff]
    %v3679 = vld [vmem:[%s3666 + $0x60] sm:$0xff]
    %v3680 = vld [vmem:[%s3666 + $0x68] sm:$0xff]
    %v3681 = vld [vmem:[%s3666 + $0x70] sm:$0xff]
    %v3682 = vld [vmem:[%s3666 + $0x78] sm:$0xff]
    %v3683 = vld [vmem:[%s3666 + $0x80] sm:$0xff]
    %v3684 = vld [vmem:[%s3666 + $0x88] sm:$0xff]
    %v3685 = vld [vmem:[%s3666 + $0x90] sm:$0xff]
    %v3686 = vld [vmem:[%s3666 + $0x98] sm:$0xff]
    %v3687 = vld [vmem:[%s3666 + $0xa0] sm:$0xff]
    %v3688 = vld [vmem:[%s3666 + $0xa8] sm:$0xff]
    %v3689 = vld [vmem:[%s3666 + $0xb0] sm:$0xff]
    %v3690 = vld [vmem:[%s3666 + $0xb8] sm:$0xff]
    %v3691 = vld [vmem:[%s3666 + $0xc0] sm:$0xff]
    %v3692 = vld [vmem:[%s3666 + $0xc8] sm:$0xff]
    %v3693 = vld [vmem:[%s3666 + $0xd0] sm:$0xff]
    %v3694 = vld [vmem:[%s3666 + $0xd8] sm:$0xff]
    %v3695 = vld [vmem:[%s3666 + $0xe0] sm:$0xff]
    %v3696 = vld [vmem:[%s3666 + $0xe8] sm:$0xff]
    %v3697 = vld [vmem:[%s3666 + $0xf0] sm:$0xff]
    %v3698 = vld [vmem:[%s3666 + $0xf8] sm:$0xff]
    %v3731 = vunpack.c.l.b16 %v3667
    %v3732 = vunpack.c.h.b16 %v3667
    %v3733 = vunpack.c.l.b16 %v3668
    %v3734 = vunpack.c.h.b16 %v3668
    %v3735 = vunpack.c.l.b16 %v3669
    %v3736 = vunpack.c.h.b16 %v3669
    %v3737 = vunpack.c.l.b16 %v3670
    %v3738 = vunpack.c.h.b16 %v3670
    %v3739 = vunpack.c.l.b16 %v3671
    %v3740 = vunpack.c.h.b16 %v3671
    %v3741 = vunpack.c.l.b16 %v3672
    %v3742 = vunpack.c.h.b16 %v3672
    %v3743 = vunpack.c.l.b16 %v3673
    %v3744 = vunpack.c.h.b16 %v3673
    %v3745 = vunpack.c.l.b16 %v3674
    %v3746 = vunpack.c.h.b16 %v3674
    %v3747 = vunpack.c.l.b16 %v3675
    %v3748 = vunpack.c.h.b16 %v3675
    %v3749 = vunpack.c.l.b16 %v3676
    %v3750 = vunpack.c.h.b16 %v3676
    %v3751 = vunpack.c.l.b16 %v3677
    %v3752 = vunpack.c.h.b16 %v3677
    %v3753 = vunpack.c.l.b16 %v3678
    %v3754 = vunpack.c.h.b16 %v3678
    %v3755 = vunpack.c.l.b16 %v3679
    %v3756 = vunpack.c.h.b16 %v3679
    %v3757 = vunpack.c.l.b16 %v3680
    %v3758 = vunpack.c.h.b16 %v3680
    %v3759 = vunpack.c.l.b16 %v3681
    %v3760 = vunpack.c.h.b16 %v3681
    %v3761 = vunpack.c.l.b16 %v3682
    %v3762 = vunpack.c.h.b16 %v3682
    %v3763 = vunpack.c.l.b16 %v3683
    %v3764 = vunpack.c.h.b16 %v3683
    %v3765 = vunpack.c.l.b16 %v3684
    %v3766 = vunpack.c.h.b16 %v3684
    %v3767 = vunpack.c.l.b16 %v3685
    %v3768 = vunpack.c.h.b16 %v3685
    %v3769 = vunpack.c.l.b16 %v3686
    %v3770 = vunpack.c.h.b16 %v3686
    %v3771 = vunpack.c.l.b16 %v3687
    %v3772 = vunpack.c.h.b16 %v3687
    %v3773 = vunpack.c.l.b16 %v3688
    %v3774 = vunpack.c.h.b16 %v3688
    %v3775 = vunpack.c.l.b16 %v3689
    %v3776 = vunpack.c.h.b16 %v3689
    %v3777 = vunpack.c.l.b16 %v3690
    %v3778 = vunpack.c.h.b16 %v3690
    %v3779 = vunpack.c.l.b16 %v3691
    %v3780 = vunpack.c.h.b16 %v3691
    %v3781 = vunpack.c.l.b16 %v3692
    %v3782 = vunpack.c.h.b16 %v3692
    %v3783 = vunpack.c.l.b16 %v3693
    %v3784 = vunpack.c.h.b16 %v3693
    %v3785 = vunpack.c.l.b16 %v3694
    %v3786 = vunpack.c.h.b16 %v3694
    %v3787 = vunpack.c.l.b16 %v3695
    %v3788 = vunpack.c.h.b16 %v3695
    %v3789 = vunpack.c.l.b16 %v3696
    %v3790 = vunpack.c.h.b16 %v3696
    %v3791 = vunpack.c.l.b16 %v3697
    %v3792 = vunpack.c.h.b16 %v3697
    %v3793 = vunpack.c.l.b16 %v3698
    %v3794 = vunpack.c.h.b16 %v3698
    %v3795 = vpack.c.b16 %v3735, %v3731
    %v3796 = vpack.c.b16 %v3736, %v3732
    %v3797 = vpack.c.b16 %v3737, %v3733
    %v3798 = vpack.c.b16 %v3738, %v3734
    %v3799 = vpack.c.b16 %v3743, %v3739
    %v3800 = vpack.c.b16 %v3744, %v3740
    %v3801 = vpack.c.b16 %v3745, %v3741
    %v3802 = vpack.c.b16 %v3746, %v3742
    %v3803 = vpack.c.b16 %v3751, %v3747
    %v3804 = vpack.c.b16 %v3752, %v3748
    %v3805 = vpack.c.b16 %v3753, %v3749
    %v3806 = vpack.c.b16 %v3754, %v3750
    %v3807 = vpack.c.b16 %v3759, %v3755
    %v3808 = vpack.c.b16 %v3760, %v3756
    %v3809 = vpack.c.b16 %v3761, %v3757
    %v3810 = vpack.c.b16 %v3762, %v3758
    %v3811 = vpack.c.b16 %v3767, %v3763
    %v3812 = vpack.c.b16 %v3768, %v3764
    %v3813 = vpack.c.b16 %v3769, %v3765
    %v3814 = vpack.c.b16 %v3770, %v3766
    %v3815 = vpack.c.b16 %v3775, %v3771
    %v3816 = vpack.c.b16 %v3776, %v3772
    %v3817 = vpack.c.b16 %v3777, %v3773
    %v3818 = vpack.c.b16 %v3778, %v3774
    %v3819 = vpack.c.b16 %v3783, %v3779
    %v3820 = vpack.c.b16 %v3784, %v3780
    %v3821 = vpack.c.b16 %v3785, %v3781
    %v3822 = vpack.c.b16 %v3786, %v3782
    %v3823 = vpack.c.b16 %v3791, %v3787
    %v3824 = vpack.c.b16 %v3792, %v3788
    %v3825 = vpack.c.b16 %v3793, %v3789
    %v3826 = vpack.c.b16 %v3794, %v3790
    %3859 = vmatprep.subr.bf16.mxu0 %v3796
    %3860 = vmatpush1.bf16.msra.mxu0 %v3795
    %3861 = vmatprep.subr.bf16.mxu0 %v3800
    %3862 = vmatpush1.bf16.msra.mxu0 %v3799
    %3863 = vmatprep.subr.bf16.mxu0 %v3804
    %3864 = vmatpush1.bf16.msra.mxu0 %v3803
    %3865 = vmatprep.subr.bf16.mxu0 %v3808
    %3866 = vmatpush1.bf16.msra.mxu0 %v3807
    %3867 = vmatprep.subr.bf16.mxu0 %v3812
    %3868 = vmatpush1.bf16.msra.mxu0 %v3811
    %3869 = vmatprep.subr.bf16.mxu0 %v3816
    %3870 = vmatpush1.bf16.msra.mxu0 %v3815
    %3871 = vmatprep.subr.bf16.mxu0 %v3820
    %3872 = vmatpush1.bf16.msra.mxu0 %v3819
    %3873 = vmatprep.subr.bf16.mxu0 %v3824
    %3874 = vmatpush1.bf16.msra.mxu0 %v3823
    %3875 = vmatprep.subr.bf16.mxu0 0
    %3876 = vmatpush1.bf16.msra.mxu0 0
    %3877 = vmatprep.subr.bf16.mxu0 0
    %3878 = vmatpush1.bf16.msra.mxu0 0
    %3879 = vmatprep.subr.bf16.mxu0 0
    %3880 = vmatpush1.bf16.msra.mxu0 0
    %3881 = vmatprep.subr.bf16.mxu0 0
    %3882 = vmatpush1.bf16.msra.mxu0 0
    %3883 = vmatprep.subr.bf16.mxu0 0
    %3884 = vmatpush1.bf16.msra.mxu0 0
    %3885 = vmatprep.subr.bf16.mxu0 0
    %3886 = vmatpush1.bf16.msra.mxu0 0
    %3887 = vmatprep.subr.bf16.mxu0 0
    %3888 = vmatpush1.bf16.msra.mxu0 0
    %3889 = vmatprep.subr.bf16.mxu0 0
    %3890 = vmatpush1.bf16.msra.mxu0 0
    %3891 = vmatprep.mubr.bf16.mxu0 0
    %3892 = vmatmul.mubr.bf16.gmra.mrb[0].mxu0 %v3665
    %v3893 = vpop.f32.mrb[0].mxu0
    %v3894 = vadd.f32 0.0, %v3893
    %v3895 = vpop.f32.mrb[0].mxu0
    %v3896 = vadd.f32 0.0, %v3895
    %v3897 = vpop.f32.mrb[0].mxu0
    %v3898 = vpop.f32.mrb[0].mxu0
    %3899 = vdwg.mxu0
    %3900 = vmatprep.subr.bf16.mxu0 %v3798
    %3901 = vmatpush1.bf16.msra.mxu0 %v3797
    %3902 = vmatprep.subr.bf16.mxu0 %v3802
    %3903 = vmatpush1.bf16.msra.mxu0 %v3801
    %3904 = vmatprep.subr.bf16.mxu0 %v3806
    %3905 = vmatpush1.bf16.msra.mxu0 %v3805
    %3906 = vmatprep.subr.bf16.mxu0 %v3810
    %3907 = vmatpush1.bf16.msra.mxu0 %v3809
    %3908 = vmatprep.subr.bf16.mxu0 %v3814
    %3909 = vmatpush1.bf16.msra.mxu0 %v3813
    %3910 = vmatprep.subr.bf16.mxu0 %v3818
    %3911 = vmatpush1.bf16.msra.mxu0 %v3817
    %3912 = vmatprep.subr.bf16.mxu0 %v3822
    %3913 = vmatpush1.bf16.msra.mxu0 %v3821
    %3914 = vmatprep.subr.bf16.mxu0 %v3826
    %3915 = vmatpush1.bf16.msra.mxu0 %v3825
    %3916 = vmatprep.subr.bf16.mxu0 0
    %3917 = vmatpush1.bf16.msra.mxu0 0
    %3918 = vmatprep.subr.bf16.mxu0 0
    %3919 = vmatpush1.bf16.msra.mxu0 0
    %3920 = vmatprep.subr.bf16.mxu0 0
    %3921 = vmatpush1.bf16.msra.mxu0 0
    %3922 = vmatprep.subr.bf16.mxu0 0
    %3923 = vmatpush1.bf16.msra.mxu0 0
    %3924 = vmatprep.subr.bf16.mxu0 0
    %3925 = vmatpush1.bf16.msra.mxu0 0
    %3926 = vmatprep.subr.bf16.mxu0 0
    %3927 = vmatpush1.bf16.msra.mxu0 0
    %3928 = vmatprep.subr.bf16.mxu0 0
    %3929 = vmatpush1.bf16.msra.mxu0 0
    %3930 = vmatprep.subr.bf16.mxu0 0
    %3931 = vmatpush1.bf16.msra.mxu0 0
    %3932 = vmatprep.mubr.bf16.mxu0 0
    %3933 = vmatmul.mubr.bf16.gmra.mrb[0].mxu0 %v3665
    %v3934 = vpop.f32.mrb[0].mxu0
    %v3935 = vadd.f32 0.0, %v3934
    %v3936 = vpop.f32.mrb[0].mxu0
    %v3937 = vadd.f32 0.0, %v3936
    %v3938 = vpop.f32.mrb[0].mxu0
    %v3939 = vpop.f32.mrb[0].mxu0
    %3940 = vdwg.mxu0
    %v3945 = vcombine.low %v3894, %v3896
    %v3946 = vcombine.low %v3935, %v3937
    %v3948 = vunpack.c.l.s4 1983009808
    %v3949 = vunpack.c.0.s8 %v3948
    %v3950 = vlaneseq
    %v3951 = vshrl.u32 %v3950, 7
    %v3952 = vsub.s32 %v3949, %v3951
    %v3953 = vrot.slane %v3945, %v3952
    %v3955 = vunpack.c.l.s4 1983009808
    %v3956 = vunpack.c.0.s8 %v3955
    %v3957 = vlaneseq
    %v3958 = vshrl.u32 %v3957, 7
    %v3959 = vsub.s32 %v3956, %v3958
    %v3960 = vrot.slane %v3946, %v3959
    %v3961 = vcombine.low %v3953, %v3960
    %v3963 = vadd.f32 %v3663, %v3961
    %s3964 = scalar_lea.vmem %s1, 6
    %v3965 = vld [vmem:[%s3964] sm:$0x1]
    %s3966 = scalar_lea.vmem %s3, 1536
    %v3967 = vld [vmem:[%s3966] sm:$0xff]
    %v3968 = vld [vmem:[%s3966 + $0x8] sm:$0xff]
    %v3969 = vld [vmem:[%s3966 + $0x10] sm:$0xff]
    %v3970 = vld [vmem:[%s3966 + $0x18] sm:$0xff]
    %v3971 = vld [vmem:[%s3966 + $0x20] sm:$0xff]
    %v3972 = vld [vmem:[%s3966 + $0x28] sm:$0xff]
    %v3973 = vld [vmem:[%s3966 + $0x30] sm:$0xff]
    %v3974 = vld [vmem:[%s3966 + $0x38] sm:$0xff]
    %v3975 = vld [vmem:[%s3966 + $0x40] sm:$0xff]
    %v3976 = vld [vmem:[%s3966 + $0x48] sm:$0xff]
    %v3977 = vld [vmem:[%s3966 + $0x50] sm:$0xff]
    %v3978 = vld [vmem:[%s3966 + $0x58] sm:$0xff]
    %v3979 = vld [vmem:[%s3966 + $0x60] sm:$0xff]
    %v3980 = vld [vmem:[%s3966 + $0x68] sm:$0xff]
    %v3981 = vld [vmem:[%s3966 + $0x70] sm:$0xff]
    %v3982 = vld [vmem:[%s3966 + $0x78] sm:$0xff]
    %v3983 = vld [vmem:[%s3966 + $0x80] sm:$0xff]
    %v3984 = vld [vmem:[%s3966 + $0x88] sm:$0xff]
    %v3985 = vld [vmem:[%s3966 + $0x90] sm:$0xff]
    %v3986 = vld [vmem:[%s3966 + $0x98] sm:$0xff]
    %v3987 = vld [vmem:[%s3966 + $0xa0] sm:$0xff]
    %v3988 = vld [vmem:[%s3966 + $0xa8] sm:$0xff]
    %v3989 = vld [vmem:[%s3966 + $0xb0] sm:$0xff]
    %v3990 = vld [vmem:[%s3966 + $0xb8] sm:$0xff]
    %v3991 = vld [vmem:[%s3966 + $0xc0] sm:$0xff]
    %v3992 = vld [vmem:[%s3966 + $0xc8] sm:$0xff]
    %v3993 = vld [vmem:[%s3966 + $0xd0] sm:$0xff]
    %v3994 = vld [vmem:[%s3966 + $0xd8] sm:$0xff]
    %v3995 = vld [vmem:[%s3966 + $0xe0] sm:$0xff]
    %v3996 = vld [vmem:[%s3966 + $0xe8] sm:$0xff]
    %v3997 = vld [vmem:[%s3966 + $0xf0] sm:$0xff]
    %v3998 = vld [vmem:[%s3966 + $0xf8] sm:$0xff]
    %v4031 = vunpack.c.l.b16 %v3967
    %v4032 = vunpack.c.h.b16 %v3967
    %v4033 = vunpack.c.l.b16 %v3968
    %v4034 = vunpack.c.h.b16 %v3968
    %v4035 = vunpack.c.l.b16 %v3969
    %v4036 = vunpack.c.h.b16 %v3969
    %v4037 = vunpack.c.l.b16 %v3970
    %v4038 = vunpack.c.h.b16 %v3970
    %v4039 = vunpack.c.l.b16 %v3971
    %v4040 = vunpack.c.h.b16 %v3971
    %v4041 = vunpack.c.l.b16 %v3972
    %v4042 = vunpack.c.h.b16 %v3972
    %v4043 = vunpack.c.l.b16 %v3973
    %v4044 = vunpack.c.h.b16 %v3973
    %v4045 = vunpack.c.l.b16 %v3974
    %v4046 = vunpack.c.h.b16 %v3974
    %v4047 = vunpack.c.l.b16 %v3975
    %v4048 = vunpack.c.h.b16 %v3975
    %v4049 = vunpack.c.l.b16 %v3976
    %v4050 = vunpack.c.h.b16 %v3976
    %v4051 = vunpack.c.l.b16 %v3977
    %v4052 = vunpack.c.h.b16 %v3977
    %v4053 = vunpack.c.l.b16 %v3978
    %v4054 = vunpack.c.h.b16 %v3978
    %v4055 = vunpack.c.l.b16 %v3979
    %v4056 = vunpack.c.h.b16 %v3979
    %v4057 = vunpack.c.l.b16 %v3980
    %v4058 = vunpack.c.h.b16 %v3980
    %v4059 = vunpack.c.l.b16 %v3981
    %v4060 = vunpack.c.h.b16 %v3981
    %v4061 = vunpack.c.l.b16 %v3982
    %v4062 = vunpack.c.h.b16 %v3982
    %v4063 = vunpack.c.l.b16 %v3983
    %v4064 = vunpack.c.h.b16 %v3983
    %v4065 = vunpack.c.l.b16 %v3984
    %v4066 = vunpack.c.h.b16 %v3984
    %v4067 = vunpack.c.l.b16 %v3985
    %v4068 = vunpack.c.h.b16 %v3985
    %v4069 = vunpack.c.l.b16 %v3986
    %v4070 = vunpack.c.h.b16 %v3986
    %v4071 = vunpack.c.l.b16 %v3987
    %v4072 = vunpack.c.h.b16 %v3987
    %v4073 = vunpack.c.l.b16 %v3988
    %v4074 = vunpack.c.h.b16 %v3988
    %v4075 = vunpack.c.l.b16 %v3989
    %v4076 = vunpack.c.h.b16 %v3989
    %v4077 = vunpack.c.l.b16 %v3990
    %v4078 = vunpack.c.h.b16 %v3990
    %v4079 = vunpack.c.l.b16 %v3991
    %v4080 = vunpack.c.h.b16 %v3991
    %v4081 = vunpack.c.l.b16 %v3992
    %v4082 = vunpack.c.h.b16 %v3992
    %v4083 = vunpack.c.l.b16 %v3993
    %v4084 = vunpack.c.h.b16 %v3993
    %v4085 = vunpack.c.l.b16 %v3994
    %v4086 = vunpack.c.h.b16 %v3994
    %v4087 = vunpack.c.l.b16 %v3995
    %v4088 = vunpack.c.h.b16 %v3995
    %v4089 = vunpack.c.l.b16 %v3996
    %v4090 = vunpack.c.h.b16 %v3996
    %v4091 = vunpack.c.l.b16 %v3997
    %v4092 = vunpack.c.h.b16 %v3997
    %v4093 = vunpack.c.l.b16 %v3998
    %v4094 = vunpack.c.h.b16 %v3998
    %v4095 = vpack.c.b16 %v4035, %v4031
    %v4096 = vpack.c.b16 %v4036, %v4032
    %v4097 = vpack.c.b16 %v4037, %v4033
    %v4098 = vpack.c.b16 %v4038, %v4034
    %v4099 = vpack.c.b16 %v4043, %v4039
    %v4100 = vpack.c.b16 %v4044, %v4040
    %v4101 = vpack.c.b16 %v4045, %v4041
    %v4102 = vpack.c.b16 %v4046, %v4042
    %v4103 = vpack.c.b16 %v4051, %v4047
    %v4104 = vpack.c.b16 %v4052, %v4048
    %v4105 = vpack.c.b16 %v4053, %v4049
    %v4106 = vpack.c.b16 %v4054, %v4050
    %v4107 = vpack.c.b16 %v4059, %v4055
    %v4108 = vpack.c.b16 %v4060, %v4056
    %v4109 = vpack.c.b16 %v4061, %v4057
    %v4110 = vpack.c.b16 %v4062, %v4058
    %v4111 = vpack.c.b16 %v4067, %v4063
    %v4112 = vpack.c.b16 %v4068, %v4064
    %v4113 = vpack.c.b16 %v4069, %v4065
    %v4114 = vpack.c.b16 %v4070, %v4066
    %v4115 = vpack.c.b16 %v4075, %v4071
    %v4116 = vpack.c.b16 %v4076, %v4072
    %v4117 = vpack.c.b16 %v4077, %v4073
    %v4118 = vpack.c.b16 %v4078, %v4074
    %v4119 = vpack.c.b16 %v4083, %v4079
    %v4120 = vpack.c.b16 %v4084, %v4080
    %v4121 = vpack.c.b16 %v4085, %v4081
    %v4122 = vpack.c.b16 %v4086, %v4082
    %v4123 = vpack.c.b16 %v4091, %v4087
    %v4124 = vpack.c.b16 %v4092, %v4088
    %v4125 = vpack.c.b16 %v4093, %v4089
    %v4126 = vpack.c.b16 %v4094, %v4090
    %4159 = vmatprep.subr.bf16.mxu0 %v4096
    %4160 = vmatpush1.bf16.msra.mxu0 %v4095
    %4161 = vmatprep.subr.bf16.mxu0 %v4100
    %4162 = vmatpush1.bf16.msra.mxu0 %v4099
    %4163 = vmatprep.subr.bf16.mxu0 %v4104
    %4164 = vmatpush1.bf16.msra.mxu0 %v4103
    %4165 = vmatprep.subr.bf16.mxu0 %v4108
    %4166 = vmatpush1.bf16.msra.mxu0 %v4107
    %4167 = vmatprep.subr.bf16.mxu0 %v4112
    %4168 = vmatpush1.bf16.msra.mxu0 %v4111
    %4169 = vmatprep.subr.bf16.mxu0 %v4116
    %4170 = vmatpush1.bf16.msra.mxu0 %v4115
    %4171 = vmatprep.subr.bf16.mxu0 %v4120
    %4172 = vmatpush1.bf16.msra.mxu0 %v4119
    %4173 = vmatprep.subr.bf16.mxu0 %v4124
    %4174 = vmatpush1.bf16.msra.mxu0 %v4123
    %4175 = vmatprep.subr.bf16.mxu0 0
    %4176 = vmatpush1.bf16.msra.mxu0 0
    %4177 = vmatprep.subr.bf16.mxu0 0
    %4178 = vmatpush1.bf16.msra.mxu0 0
    %4179 = vmatprep.subr.bf16.mxu0 0
    %4180 = vmatpush1.bf16.msra.mxu0 0
    %4181 = vmatprep.subr.bf16.mxu0 0
    %4182 = vmatpush1.bf16.msra.mxu0 0
    %4183 = vmatprep.subr.bf16.mxu0 0
    %4184 = vmatpush1.bf16.msra.mxu0 0
    %4185 = vmatprep.subr.bf16.mxu0 0
    %4186 = vmatpush1.bf16.msra.mxu0 0
    %4187 = vmatprep.subr.bf16.mxu0 0
    %4188 = vmatpush1.bf16.msra.mxu0 0
    %4189 = vmatprep.subr.bf16.mxu0 0
    %4190 = vmatpush1.bf16.msra.mxu0 0
    %4191 = vmatprep.mubr.bf16.mxu0 0
    %4192 = vmatmul.mubr.bf16.gmra.mrb[0].mxu0 %v3965
    %v4193 = vpop.f32.mrb[0].mxu0
    %v4194 = vadd.f32 0.0, %v4193
    %v4195 = vpop.f32.mrb[0].mxu0
    %v4196 = vadd.f32 0.0, %v4195
    %v4197 = vpop.f32.mrb[0].mxu0
    %v4198 = vpop.f32.mrb[0].mxu0
    %4199 = vdwg.mxu0
    %4200 = vmatprep.subr.bf16.mxu0 %v4098
    %4201 = vmatpush1.bf16.msra.mxu0 %v4097
    %4202 = vmatprep.subr.bf16.mxu0 %v4102
    %4203 = vmatpush1.bf16.msra.mxu0 %v4101
    %4204 = vmatprep.subr.bf16.mxu0 %v4106
    %4205 = vmatpush1.bf16.msra.mxu0 %v4105
    %4206 = vmatprep.subr.bf16.mxu0 %v4110
    %4207 = vmatpush1.bf16.msra.mxu0 %v4109
    %4208 = vmatprep.subr.bf16.mxu0 %v4114
    %4209 = vmatpush1.bf16.msra.mxu0 %v4113
    %4210 = vmatprep.subr.bf16.mxu0 %v4118
    %4211 = vmatpush1.bf16.msra.mxu0 %v4117
    %4212 = vmatprep.subr.bf16.mxu0 %v4122
    %4213 = vmatpush1.bf16.msra.mxu0 %v4121
    %4214 = vmatprep.subr.bf16.mxu0 %v4126
    %4215 = vmatpush1.bf16.msra.mxu0 %v4125
    %4216 = vmatprep.subr.bf16.mxu0 0
    %4217 = vmatpush1.bf16.msra.mxu0 0
    %4218 = vmatprep.subr.bf16.mxu0 0
    %4219 = vmatpush1.bf16.msra.mxu0 0
    %4220 = vmatprep.subr.bf16.mxu0 0
    %4221 = vmatpush1.bf16.msra.mxu0 0
    %4222 = vmatprep.subr.bf16.mxu0 0
    %4223 = vmatpush1.bf16.msra.mxu0 0
    %4224 = vmatprep.subr.bf16.mxu0 0
    %4225 = vmatpush1.bf16.msra.mxu0 0
    %4226 = vmatprep.subr.bf16.mxu0 0
    %4227 = vmatpush1.bf16.msra.mxu0 0
    %4228 = vmatprep.subr.bf16.mxu0 0
    %4229 = vmatpush1.bf16.msra.mxu0 0
    %4230 = vmatprep.subr.bf16.mxu0 0
    %4231 = vmatpush1.bf16.msra.mxu0 0
    %4232 = vmatprep.mubr.bf16.mxu0 0
    %4233 = vmatmul.mubr.bf16.gmra.mrb[0].mxu0 %v3965
    %v4234 = vpop.f32.mrb[0].mxu0
    %v4235 = vadd.f32 0.0, %v4234
    %v4236 = vpop.f32.mrb[0].mxu0
    %v4237 = vadd.f32 0.0, %v4236
    %v4238 = vpop.f32.mrb[0].mxu0
    %v4239 = vpop.f32.mrb[0].mxu0
    %4240 = vdwg.mxu0
    %v4245 = vcombine.low %v4194, %v4196
    %v4246 = vcombine.low %v4235, %v4237
    %v4248 = vunpack.c.l.s4 1983009808
    %v4249 = vunpack.c.0.s8 %v4248
    %v4250 = vlaneseq
    %v4251 = vshrl.u32 %v4250, 7
    %v4252 = vsub.s32 %v4249, %v4251
    %v4253 = vrot.slane %v4245, %v4252
    %v4255 = vunpack.c.l.s4 1983009808
    %v4256 = vunpack.c.0.s8 %v4255
    %v4257 = vlaneseq
    %v4258 = vshrl.u32 %v4257, 7
    %v4259 = vsub.s32 %v4256, %v4258
    %v4260 = vrot.slane %v4246, %v4259
    %v4261 = vcombine.low %v4253, %v4260
    %v4263 = vadd.f32 %v3963, %v4261
    %s4264 = scalar_lea.vmem %s0, 7
    %v4265 = vld [vmem:[%s4264] sm:$0x1]
    %s4266 = scalar_lea.vmem %s2, 1792
    %v4267 = vld [vmem:[%s4266] sm:$0xff]
    %v4268 = vld [vmem:[%s4266 + $0x8] sm:$0xff]
    %v4269 = vld [vmem:[%s4266 + $0x10] sm:$0xff]
    %v4270 = vld [vmem:[%s4266 + $0x18] sm:$0xff]
    %v4271 = vld [vmem:[%s4266 + $0x20] sm:$0xff]
    %v4272 = vld [vmem:[%s4266 + $0x28] sm:$0xff]
    %v4273 = vld [vmem:[%s4266 + $0x30] sm:$0xff]
    %v4274 = vld [vmem:[%s4266 + $0x38] sm:$0xff]
    %v4275 = vld [vmem:[%s4266 + $0x40] sm:$0xff]
    %v4276 = vld [vmem:[%s4266 + $0x48] sm:$0xff]
    %v4277 = vld [vmem:[%s4266 + $0x50] sm:$0xff]
    %v4278 = vld [vmem:[%s4266 + $0x58] sm:$0xff]
    %v4279 = vld [vmem:[%s4266 + $0x60] sm:$0xff]
    %v4280 = vld [vmem:[%s4266 + $0x68] sm:$0xff]
    %v4281 = vld [vmem:[%s4266 + $0x70] sm:$0xff]
    %v4282 = vld [vmem:[%s4266 + $0x78] sm:$0xff]
    %v4283 = vld [vmem:[%s4266 + $0x80] sm:$0xff]
    %v4284 = vld [vmem:[%s4266 + $0x88] sm:$0xff]
    %v4285 = vld [vmem:[%s4266 + $0x90] sm:$0xff]
    %v4286 = vld [vmem:[%s4266 + $0x98] sm:$0xff]
    %v4287 = vld [vmem:[%s4266 + $0xa0] sm:$0xff]
    %v4288 = vld [vmem:[%s4266 + $0xa8] sm:$0xff]
    %v4289 = vld [vmem:[%s4266 + $0xb0] sm:$0xff]
    %v4290 = vld [vmem:[%s4266 + $0xb8] sm:$0xff]
    %v4291 = vld [vmem:[%s4266 + $0xc0] sm:$0xff]
    %v4292 = vld [vmem:[%s4266 + $0xc8] sm:$0xff]
    %v4293 = vld [vmem:[%s4266 + $0xd0] sm:$0xff]
    %v4294 = vld [vmem:[%s4266 + $0xd8] sm:$0xff]
    %v4295 = vld [vmem:[%s4266 + $0xe0] sm:$0xff]
    %v4296 = vld [vmem:[%s4266 + $0xe8] sm:$0xff]
    %v4297 = vld [vmem:[%s4266 + $0xf0] sm:$0xff]
    %v4298 = vld [vmem:[%s4266 + $0xf8] sm:$0xff]
    %v4331 = vunpack.c.l.b16 %v4267
    %v4332 = vunpack.c.h.b16 %v4267
    %v4333 = vunpack.c.l.b16 %v4268
    %v4334 = vunpack.c.h.b16 %v4268
    %v4335 = vunpack.c.l.b16 %v4269
    %v4336 = vunpack.c.h.b16 %v4269
    %v4337 = vunpack.c.l.b16 %v4270
    %v4338 = vunpack.c.h.b16 %v4270
    %v4339 = vunpack.c.l.b16 %v4271
    %v4340 = vunpack.c.h.b16 %v4271
    %v4341 = vunpack.c.l.b16 %v4272
    %v4342 = vunpack.c.h.b16 %v4272
    %v4343 = vunpack.c.l.b16 %v4273
    %v4344 = vunpack.c.h.b16 %v4273
    %v4345 = vunpack.c.l.b16 %v4274
    %v4346 = vunpack.c.h.b16 %v4274
    %v4347 = vunpack.c.l.b16 %v4275
    %v4348 = vunpack.c.h.b16 %v4275
    %v4349 = vunpack.c.l.b16 %v4276
    %v4350 = vunpack.c.h.b16 %v4276
    %v4351 = vunpack.c.l.b16 %v4277
    %v4352 = vunpack.c.h.b16 %v4277
    %v4353 = vunpack.c.l.b16 %v4278
    %v4354 = vunpack.c.h.b16 %v4278
    %v4355 = vunpack.c.l.b16 %v4279
    %v4356 = vunpack.c.h.b16 %v4279
    %v4357 = vunpack.c.l.b16 %v4280
    %v4358 = vunpack.c.h.b16 %v4280
    %v4359 = vunpack.c.l.b16 %v4281
    %v4360 = vunpack.c.h.b16 %v4281
    %v4361 = vunpack.c.l.b16 %v4282
    %v4362 = vunpack.c.h.b16 %v4282
    %v4363 = vunpack.c.l.b16 %v4283
    %v4364 = vunpack.c.h.b16 %v4283
    %v4365 = vunpack.c.l.b16 %v4284
    %v4366 = vunpack.c.h.b16 %v4284
    %v4367 = vunpack.c.l.b16 %v4285
    %v4368 = vunpack.c.h.b16 %v4285
    %v4369 = vunpack.c.l.b16 %v4286
    %v4370 = vunpack.c.h.b16 %v4286
    %v4371 = vunpack.c.l.b16 %v4287
    %v4372 = vunpack.c.h.b16 %v4287
    %v4373 = vunpack.c.l.b16 %v4288
    %v4374 = vunpack.c.h.b16 %v4288
    %v4375 = vunpack.c.l.b16 %v4289
    %v4376 = vunpack.c.h.b16 %v4289
    %v4377 = vunpack.c.l.b16 %v4290
    %v4378 = vunpack.c.h.b16 %v4290
    %v4379 = vunpack.c.l.b16 %v4291
    %v4380 = vunpack.c.h.b16 %v4291
    %v4381 = vunpack.c.l.b16 %v4292
    %v4382 = vunpack.c.h.b16 %v4292
    %v4383 = vunpack.c.l.b16 %v4293
    %v4384 = vunpack.c.h.b16 %v4293
    %v4385 = vunpack.c.l.b16 %v4294
    %v4386 = vunpack.c.h.b16 %v4294
    %v4387 = vunpack.c.l.b16 %v4295
    %v4388 = vunpack.c.h.b16 %v4295
    %v4389 = vunpack.c.l.b16 %v4296
    %v4390 = vunpack.c.h.b16 %v4296
    %v4391 = vunpack.c.l.b16 %v4297
    %v4392 = vunpack.c.h.b16 %v4297
    %v4393 = vunpack.c.l.b16 %v4298
    %v4394 = vunpack.c.h.b16 %v4298
    %v4395 = vpack.c.b16 %v4335, %v4331
    %v4396 = vpack.c.b16 %v4336, %v4332
    %v4397 = vpack.c.b16 %v4337, %v4333
    %v4398 = vpack.c.b16 %v4338, %v4334
    %v4399 = vpack.c.b16 %v4343, %v4339
    %v4400 = vpack.c.b16 %v4344, %v4340
    %v4401 = vpack.c.b16 %v4345, %v4341
    %v4402 = vpack.c.b16 %v4346, %v4342
    %v4403 = vpack.c.b16 %v4351, %v4347
    %v4404 = vpack.c.b16 %v4352, %v4348
    %v4405 = vpack.c.b16 %v4353, %v4349
    %v4406 = vpack.c.b16 %v4354, %v4350
    %v4407 = vpack.c.b16 %v4359, %v4355
    %v4408 = vpack.c.b16 %v4360, %v4356
    %v4409 = vpack.c.b16 %v4361, %v4357
    %v4410 = vpack.c.b16 %v4362, %v4358
    %v4411 = vpack.c.b16 %v4367, %v4363
    %v4412 = vpack.c.b16 %v4368, %v4364
    %v4413 = vpack.c.b16 %v4369, %v4365
    %v4414 = vpack.c.b16 %v4370, %v4366
    %v4415 = vpack.c.b16 %v4375, %v4371
    %v4416 = vpack.c.b16 %v4376, %v4372
    %v4417 = vpack.c.b16 %v4377, %v4373
    %v4418 = vpack.c.b16 %v4378, %v4374
    %v4419 = vpack.c.b16 %v4383, %v4379
    %v4420 = vpack.c.b16 %v4384, %v4380
    %v4421 = vpack.c.b16 %v4385, %v4381
    %v4422 = vpack.c.b16 %v4386, %v4382
    %v4423 = vpack.c.b16 %v4391, %v4387
    %v4424 = vpack.c.b16 %v4392, %v4388
    %v4425 = vpack.c.b16 %v4393, %v4389
    %v4426 = vpack.c.b16 %v4394, %v4390
    %4459 = vmatprep.subr.bf16.mxu0 %v4396
    %4460 = vmatpush1.bf16.msra.mxu0 %v4395
    %4461 = vmatprep.subr.bf16.mxu0 %v4400
    %4462 = vmatpush1.bf16.msra.mxu0 %v4399
    %4463 = vmatprep.subr.bf16.mxu0 %v4404
    %4464 = vmatpush1.bf16.msra.mxu0 %v4403
    %4465 = vmatprep.subr.bf16.mxu0 %v4408
    %4466 = vmatpush1.bf16.msra.mxu0 %v4407
    %4467 = vmatprep.subr.bf16.mxu0 %v4412
    %4468 = vmatpush1.bf16.msra.mxu0 %v4411
    %4469 = vmatprep.subr.bf16.mxu0 %v4416
    %4470 = vmatpush1.bf16.msra.mxu0 %v4415
    %4471 = vmatprep.subr.bf16.mxu0 %v4420
    %4472 = vmatpush1.bf16.msra.mxu0 %v4419
    %4473 = vmatprep.subr.bf16.mxu0 %v4424
    %4474 = vmatpush1.bf16.msra.mxu0 %v4423
    %4475 = vmatprep.subr.bf16.mxu0 0
    %4476 = vmatpush1.bf16.msra.mxu0 0
    %4477 = vmatprep.subr.bf16.mxu0 0
    %4478 = vmatpush1.bf16.msra.mxu0 0
    %4479 = vmatprep.subr.bf16.mxu0 0
    %4480 = vmatpush1.bf16.msra.mxu0 0
    %4481 = vmatprep.subr.bf16.mxu0 0
    %4482 = vmatpush1.bf16.msra.mxu0 0
    %4483 = vmatprep.subr.bf16.mxu0 0
    %4484 = vmatpush1.bf16.msra.mxu0 0
    %4485 = vmatprep.subr.bf16.mxu0 0
    %4486 = vmatpush1.bf16.msra.mxu0 0
    %4487 = vmatprep.subr.bf16.mxu0 0
    %4488 = vmatpush1.bf16.msra.mxu0 0
    %4489 = vmatprep.subr.bf16.mxu0 0
    %4490 = vmatpush1.bf16.msra.mxu0 0
    %4491 = vmatprep.mubr.bf16.mxu0 0
    %4492 = vmatmul.mubr.bf16.gmra.mrb[0].mxu0 %v4265
    %v4493 = vpop.f32.mrb[0].mxu0
    %v4494 = vadd.f32 0.0, %v4493
    %v4495 = vpop.f32.mrb[0].mxu0
    %v4496 = vadd.f32 0.0, %v4495
    %v4497 = vpop.f32.mrb[0].mxu0
    %v4498 = vpop.f32.mrb[0].mxu0
    %4499 = vdwg.mxu0
    %4500 = vmatprep.subr.bf16.mxu0 %v4398
    %4501 = vmatpush1.bf16.msra.mxu0 %v4397
    %4502 = vmatprep.subr.bf16.mxu0 %v4402
    %4503 = vmatpush1.bf16.msra.mxu0 %v4401
    %4504 = vmatprep.subr.bf16.mxu0 %v4406
    %4505 = vmatpush1.bf16.msra.mxu0 %v4405
    %4506 = vmatprep.subr.bf16.mxu0 %v4410
    %4507 = vmatpush1.bf16.msra.mxu0 %v4409
    %4508 = vmatprep.subr.bf16.mxu0 %v4414
    %4509 = vmatpush1.bf16.msra.mxu0 %v4413
    %4510 = vmatprep.subr.bf16.mxu0 %v4418
    %4511 = vmatpush1.bf16.msra.mxu0 %v4417
    %4512 = vmatprep.subr.bf16.mxu0 %v4422
    %4513 = vmatpush1.bf16.msra.mxu0 %v4421
    %4514 = vmatprep.subr.bf16.mxu0 %v4426
    %4515 = vmatpush1.bf16.msra.mxu0 %v4425
    %4516 = vmatprep.subr.bf16.mxu0 0
    %4517 = vmatpush1.bf16.msra.mxu0 0
    %4518 = vmatprep.subr.bf16.mxu0 0
    %4519 = vmatpush1.bf16.msra.mxu0 0
    %4520 = vmatprep.subr.bf16.mxu0 0
    %4521 = vmatpush1.bf16.msra.mxu0 0
    %4522 = vmatprep.subr.bf16.mxu0 0
    %4523 = vmatpush1.bf16.msra.mxu0 0
    %4524 = vmatprep.subr.bf16.mxu0 0
    %4525 = vmatpush1.bf16.msra.mxu0 0
    %4526 = vmatprep.subr.bf16.mxu0 0
    %4527 = vmatpush1.bf16.msra.mxu0 0
    %4528 = vmatprep.subr.bf16.mxu0 0
    %4529 = vmatpush1.bf16.msra.mxu0 0
    %4530 = vmatprep.subr.bf16.mxu0 0
    %4531 = vmatpush1.bf16.msra.mxu0 0
    %4532 = vmatprep.mubr.bf16.mxu0 0
    %4533 = vmatmul.mubr.bf16.gmra.mrb[0].mxu0 %v4265
    %v4534 = vpop.f32.mrb[0].mxu0
    %v4535 = vadd.f32 0.0, %v4534
    %v4536 = vpop.f32.mrb[0].mxu0
    %v4537 = vadd.f32 0.0, %v4536
    %v4538 = vpop.f32.mrb[0].mxu0
    %v4539 = vpop.f32.mrb[0].mxu0
    %4540 = vdwg.mxu0
    %v4545 = vcombine.low %v4494, %v4496
    %v4546 = vcombine.low %v4535, %v4537
    %v4548 = vunpack.c.l.s4 1983009808
    %v4549 = vunpack.c.0.s8 %v4548
    %v4550 = vlaneseq
    %v4551 = vshrl.u32 %v4550, 7
    %v4552 = vsub.s32 %v4549, %v4551
    %v4553 = vrot.slane %v4545, %v4552
    %v4555 = vunpack.c.l.s4 1983009808
    %v4556 = vunpack.c.0.s8 %v4555
    %v4557 = vlaneseq
    %v4558 = vshrl.u32 %v4557, 7
    %v4559 = vsub.s32 %v4556, %v4558
    %v4560 = vrot.slane %v4546, %v4559
    %v4561 = vcombine.low %v4553, %v4560
    %v4563 = vadd.f32 %v4263, %v4561
    %s4564 = scalar_lea.vmem %s1, 7
    %v4565 = vld [vmem:[%s4564] sm:$0x1]
    %s4566 = scalar_lea.vmem %s3, 1792
    %v4567 = vld [vmem:[%s4566] sm:$0xff]
    %v4568 = vld [vmem:[%s4566 + $0x8] sm:$0xff]
    %v4569 = vld [vmem:[%s4566 + $0x10] sm:$0xff]
    %v4570 = vld [vmem:[%s4566 + $0x18] sm:$0xff]
    %v4571 = vld [vmem:[%s4566 + $0x20] sm:$0xff]
    %v4572 = vld [vmem:[%s4566 + $0x28] sm:$0xff]
    %v4573 = vld [vmem:[%s4566 + $0x30] sm:$0xff]
    %v4574 = vld [vmem:[%s4566 + $0x38] sm:$0xff]
    %v4575 = vld [vmem:[%s4566 + $0x40] sm:$0xff]
    %v4576 = vld [vmem:[%s4566 + $0x48] sm:$0xff]
    %v4577 = vld [vmem:[%s4566 + $0x50] sm:$0xff]
    %v4578 = vld [vmem:[%s4566 + $0x58] sm:$0xff]
    %v4579 = vld [vmem:[%s4566 + $0x60] sm:$0xff]
    %v4580 = vld [vmem:[%s4566 + $0x68] sm:$0xff]
    %v4581 = vld [vmem:[%s4566 + $0x70] sm:$0xff]
    %v4582 = vld [vmem:[%s4566 + $0x78] sm:$0xff]
    %v4583 = vld [vmem:[%s4566 + $0x80] sm:$0xff]
    %v4584 = vld [vmem:[%s4566 + $0x88] sm:$0xff]
    %v4585 = vld [vmem:[%s4566 + $0x90] sm:$0xff]
    %v4586 = vld [vmem:[%s4566 + $0x98] sm:$0xff]
    %v4587 = vld [vmem:[%s4566 + $0xa0] sm:$0xff]
    %v4588 = vld [vmem:[%s4566 + $0xa8] sm:$0xff]
    %v4589 = vld [vmem:[%s4566 + $0xb0] sm:$0xff]
    %v4590 = vld [vmem:[%s4566 + $0xb8] sm:$0xff]
    %v4591 = vld [vmem:[%s4566 + $0xc0] sm:$0xff]
    %v4592 = vld [vmem:[%s4566 + $0xc8] sm:$0xff]
    %v4593 = vld [vmem:[%s4566 + $0xd0] sm:$0xff]
    %v4594 = vld [vmem:[%s4566 + $0xd8] sm:$0xff]
    %v4595 = vld [vmem:[%s4566 + $0xe0] sm:$0xff]
    %v4596 = vld [vmem:[%s4566 + $0xe8] sm:$0xff]
    %v4597 = vld [vmem:[%s4566 + $0xf0] sm:$0xff]
    %v4598 = vld [vmem:[%s4566 + $0xf8] sm:$0xff]
    %v4631 = vunpack.c.l.b16 %v4567
    %v4632 = vunpack.c.h.b16 %v4567
    %v4633 = vunpack.c.l.b16 %v4568
    %v4634 = vunpack.c.h.b16 %v4568
    %v4635 = vunpack.c.l.b16 %v4569
    %v4636 = vunpack.c.h.b16 %v4569
    %v4637 = vunpack.c.l.b16 %v4570
    %v4638 = vunpack.c.h.b16 %v4570
    %v4639 = vunpack.c.l.b16 %v4571
    %v4640 = vunpack.c.h.b16 %v4571
    %v4641 = vunpack.c.l.b16 %v4572
    %v4642 = vunpack.c.h.b16 %v4572
    %v4643 = vunpack.c.l.b16 %v4573
    %v4644 = vunpack.c.h.b16 %v4573
    %v4645 = vunpack.c.l.b16 %v4574
    %v4646 = vunpack.c.h.b16 %v4574
    %v4647 = vunpack.c.l.b16 %v4575
    %v4648 = vunpack.c.h.b16 %v4575
    %v4649 = vunpack.c.l.b16 %v4576
    %v4650 = vunpack.c.h.b16 %v4576
    %v4651 = vunpack.c.l.b16 %v4577
    %v4652 = vunpack.c.h.b16 %v4577
    %v4653 = vunpack.c.l.b16 %v4578
    %v4654 = vunpack.c.h.b16 %v4578
    %v4655 = vunpack.c.l.b16 %v4579
    %v4656 = vunpack.c.h.b16 %v4579
    %v4657 = vunpack.c.l.b16 %v4580
    %v4658 = vunpack.c.h.b16 %v4580
    %v4659 = vunpack.c.l.b16 %v4581
    %v4660 = vunpack.c.h.b16 %v4581
    %v4661 = vunpack.c.l.b16 %v4582
    %v4662 = vunpack.c.h.b16 %v4582
    %v4663 = vunpack.c.l.b16 %v4583
    %v4664 = vunpack.c.h.b16 %v4583
    %v4665 = vunpack.c.l.b16 %v4584
    %v4666 = vunpack.c.h.b16 %v4584
    %v4667 = vunpack.c.l.b16 %v4585
    %v4668 = vunpack.c.h.b16 %v4585
    %v4669 = vunpack.c.l.b16 %v4586
    %v4670 = vunpack.c.h.b16 %v4586
    %v4671 = vunpack.c.l.b16 %v4587
    %v4672 = vunpack.c.h.b16 %v4587
    %v4673 = vunpack.c.l.b16 %v4588
    %v4674 = vunpack.c.h.b16 %v4588
    %v4675 = vunpack.c.l.b16 %v4589
    %v4676 = vunpack.c.h.b16 %v4589
    %v4677 = vunpack.c.l.b16 %v4590
    %v4678 = vunpack.c.h.b16 %v4590
    %v4679 = vunpack.c.l.b16 %v4591
    %v4680 = vunpack.c.h.b16 %v4591
    %v4681 = vunpack.c.l.b16 %v4592
    %v4682 = vunpack.c.h.b16 %v4592
    %v4683 = vunpack.c.l.b16 %v4593
    %v4684 = vunpack.c.h.b16 %v4593
    %v4685 = vunpack.c.l.b16 %v4594
    %v4686 = vunpack.c.h.b16 %v4594
    %v4687 = vunpack.c.l.b16 %v4595
    %v4688 = vunpack.c.h.b16 %v4595
    %v4689 = vunpack.c.l.b16 %v4596
    %v4690 = vunpack.c.h.b16 %v4596
    %v4691 = vunpack.c.l.b16 %v4597
    %v4692 = vunpack.c.h.b16 %v4597
    %v4693 = vunpack.c.l.b16 %v4598
    %v4694 = vunpack.c.h.b16 %v4598
    %v4695 = vpack.c.b16 %v4635, %v4631
    %v4696 = vpack.c.b16 %v4636, %v4632
    %v4697 = vpack.c.b16 %v4637, %v4633
    %v4698 = vpack.c.b16 %v4638, %v4634
    %v4699 = vpack.c.b16 %v4643, %v4639
    %v4700 = vpack.c.b16 %v4644, %v4640
    %v4701 = vpack.c.b16 %v4645, %v4641
    %v4702 = vpack.c.b16 %v4646, %v4642
    %v4703 = vpack.c.b16 %v4651, %v4647
    %v4704 = vpack.c.b16 %v4652, %v4648
    %v4705 = vpack.c.b16 %v4653, %v4649
    %v4706 = vpack.c.b16 %v4654, %v4650
    %v4707 = vpack.c.b16 %v4659, %v4655
    %v4708 = vpack.c.b16 %v4660, %v4656
    %v4709 = vpack.c.b16 %v4661, %v4657
    %v4710 = vpack.c.b16 %v4662, %v4658
    %v4711 = vpack.c.b16 %v4667, %v4663
    %v4712 = vpack.c.b16 %v4668, %v4664
    %v4713 = vpack.c.b16 %v4669, %v4665
    %v4714 = vpack.c.b16 %v4670, %v4666
    %v4715 = vpack.c.b16 %v4675, %v4671
    %v4716 = vpack.c.b16 %v4676, %v4672
    %v4717 = vpack.c.b16 %v4677, %v4673
    %v4718 = vpack.c.b16 %v4678, %v4674
    %v4719 = vpack.c.b16 %v4683, %v4679
    %v4720 = vpack.c.b16 %v4684, %v4680
    %v4721 = vpack.c.b16 %v4685, %v4681
    %v4722 = vpack.c.b16 %v4686, %v4682
    %v4723 = vpack.c.b16 %v4691, %v4687
    %v4724 = vpack.c.b16 %v4692, %v4688
    %v4725 = vpack.c.b16 %v4693, %v4689
    %v4726 = vpack.c.b16 %v4694, %v4690
    %4759 = vmatprep.subr.bf16.mxu0 %v4696
    %4760 = vmatpush1.bf16.msra.mxu0 %v4695
    %4761 = vmatprep.subr.bf16.mxu0 %v4700
    %4762 = vmatpush1.bf16.msra.mxu0 %v4699
    %4763 = vmatprep.subr.bf16.mxu0 %v4704
    %4764 = vmatpush1.bf16.msra.mxu0 %v4703
    %4765 = vmatprep.subr.bf16.mxu0 %v4708
    %4766 = vmatpush1.bf16.msra.mxu0 %v4707
    %4767 = vmatprep.subr.bf16.mxu0 %v4712
    %4768 = vmatpush1.bf16.msra.mxu0 %v4711
    %4769 = vmatprep.subr.bf16.mxu0 %v4716
    %4770 = vmatpush1.bf16.msra.mxu0 %v4715
    %4771 = vmatprep.subr.bf16.mxu0 %v4720
    %4772 = vmatpush1.bf16.msra.mxu0 %v4719
    %4773 = vmatprep.subr.bf16.mxu0 %v4724
    %4774 = vmatpush1.bf16.msra.mxu0 %v4723
    %4775 = vmatprep.subr.bf16.mxu0 0
    %4776 = vmatpush1.bf16.msra.mxu0 0
    %4777 = vmatprep.subr.bf16.mxu0 0
    %4778 = vmatpush1.bf16.msra.mxu0 0
    %4779 = vmatprep.subr.bf16.mxu0 0
    %4780 = vmatpush1.bf16.msra.mxu0 0
    %4781 = vmatprep.subr.bf16.mxu0 0
    %4782 = vmatpush1.bf16.msra.mxu0 0
    %4783 = vmatprep.subr.bf16.mxu0 0
    %4784 = vmatpush1.bf16.msra.mxu0 0
    %4785 = vmatprep.subr.bf16.mxu0 0
    %4786 = vmatpush1.bf16.msra.mxu0 0
    %4787 = vmatprep.subr.bf16.mxu0 0
    %4788 = vmatpush1.bf16.msra.mxu0 0
    %4789 = vmatprep.subr.bf16.mxu0 0
    %4790 = vmatpush1.bf16.msra.mxu0 0
    %4791 = vmatprep.mubr.bf16.mxu0 0
    %4792 = vmatmul.mubr.bf16.gmra.mrb[0].mxu0 %v4565
    %v4793 = vpop.f32.mrb[0].mxu0
    %v4794 = vadd.f32 0.0, %v4793
    %v4795 = vpop.f32.mrb[0].mxu0
    %v4796 = vadd.f32 0.0, %v4795
    %v4797 = vpop.f32.mrb[0].mxu0
    %v4798 = vpop.f32.mrb[0].mxu0
    %4799 = vdwg.mxu0
    %4800 = vmatprep.subr.bf16.mxu0 %v4698
    %4801 = vmatpush1.bf16.msra.mxu0 %v4697
    %4802 = vmatprep.subr.bf16.mxu0 %v4702
    %4803 = vmatpush1.bf16.msra.mxu0 %v4701
    %4804 = vmatprep.subr.bf16.mxu0 %v4706
    %4805 = vmatpush1.bf16.msra.mxu0 %v4705
    %4806 = vmatprep.subr.bf16.mxu0 %v4710
    %4807 = vmatpush1.bf16.msra.mxu0 %v4709
    %4808 = vmatprep.subr.bf16.mxu0 %v4714
    %4809 = vmatpush1.bf16.msra.mxu0 %v4713
    %4810 = vmatprep.subr.bf16.mxu0 %v4718
    %4811 = vmatpush1.bf16.msra.mxu0 %v4717
    %4812 = vmatprep.subr.bf16.mxu0 %v4722
    %4813 = vmatpush1.bf16.msra.mxu0 %v4721
    %4814 = vmatprep.subr.bf16.mxu0 %v4726
    %4815 = vmatpush1.bf16.msra.mxu0 %v4725
    %4816 = vmatprep.subr.bf16.mxu0 0
    %4817 = vmatpush1.bf16.msra.mxu0 0
    %4818 = vmatprep.subr.bf16.mxu0 0
    %4819 = vmatpush1.bf16.msra.mxu0 0
    %4820 = vmatprep.subr.bf16.mxu0 0
    %4821 = vmatpush1.bf16.msra.mxu0 0
    %4822 = vmatprep.subr.bf16.mxu0 0
    %4823 = vmatpush1.bf16.msra.mxu0 0
    %4824 = vmatprep.subr.bf16.mxu0 0
    %4825 = vmatpush1.bf16.msra.mxu0 0
    %4826 = vmatprep.subr.bf16.mxu0 0
    %4827 = vmatpush1.bf16.msra.mxu0 0
    %4828 = vmatprep.subr.bf16.mxu0 0
    %4829 = vmatpush1.bf16.msra.mxu0 0
    %4830 = vmatprep.subr.bf16.mxu0 0
    %4831 = vmatpush1.bf16.msra.mxu0 0
    %4832 = vmatprep.mubr.bf16.mxu0 0
    %4833 = vmatmul.mubr.bf16.gmra.mrb[0].mxu0 %v4565
    %v4834 = vpop.f32.mrb[0].mxu0
    %v4835 = vadd.f32 0.0, %v4834
    %v4836 = vpop.f32.mrb[0].mxu0
    %v4837 = vadd.f32 0.0, %v4836
    %v4838 = vpop.f32.mrb[0].mxu0
    %v4839 = vpop.f32.mrb[0].mxu0
    %4840 = vdwg.mxu0
    %v4845 = vcombine.low %v4794, %v4796
    %v4846 = vcombine.low %v4835, %v4837
    %v4848 = vunpack.c.l.s4 1983009808
    %v4849 = vunpack.c.0.s8 %v4848
    %v4850 = vlaneseq
    %v4851 = vshrl.u32 %v4850, 7
    %v4852 = vsub.s32 %v4849, %v4851
    %v4853 = vrot.slane %v4845, %v4852
    %v4855 = vunpack.c.l.s4 1983009808
    %v4856 = vunpack.c.0.s8 %v4855
    %v4857 = vlaneseq
    %v4858 = vshrl.u32 %v4857, 7
    %v4859 = vsub.s32 %v4856, %v4858
    %v4860 = vrot.slane %v4846, %v4859
    %v4861 = vcombine.low %v4853, %v4860
    %v4863 = vadd.f32 %v4563, %v4861
    %4864 = vst [vmem:[#allocation2] sm:$0xff] %v4863
    // Predicated region
    $region50: #{crnn_forward.11} parent=1 // pred_check
      %p4865 = pneg %p62
    $region51: #{crnn_forward.11} parent=1 // pred_check_branch
      %4867 = sbr.rel (%p4865) target = $region53
    $region52: #{crnn_forward.11} parent=1 // pred_region
      %v4868 = vld [vmem:[#allocation2] sm:$0xff]
      %v4869 = vld [vmem:[%s4] sm:$0xf]
      %v4871 = vlaneseq
      %v4872 = vshrl.u32 %v4871, 7
      %v4873 = vsub.s32 0, %v4872
      %v4874 = vrot.slane %v4869, %v4873
      %v4875 = vlaneseq
      %v4876 = vshrl.u32 %v4875, 7
      %v4877 = vsub.s32 1, %v4876
      %v4878 = vrot.slane %v4869, %v4877
      %v4879 = vlaneseq
      %v4880 = vshrl.u32 %v4879, 7
      %v4881 = vsub.s32 2, %v4880
      %v4882 = vrot.slane %v4869, %v4881
      %v4883 = vlaneseq
      %v4884 = vshrl.u32 %v4883, 7
      %v4885 = vsub.s32 3, %v4884
      %v4886 = vrot.slane %v4869, %v4885
      %v4887 = vcombine.low %v4874, %v4878
      %v4888 = vcombine.low %v4882, %v4886
      %v4890 = vunpack.c.l.s4 1983009808
      %v4891 = vunpack.c.0.s8 %v4890
      %v4892 = vlaneseq
      %v4893 = vshrl.u32 %v4892, 7
      %v4894 = vsub.s32 %v4891, %v4893
      %v4895 = vrot.slane %v4887, %v4894
      %v4897 = vunpack.c.l.s4 1983009808
      %v4898 = vunpack.c.0.s8 %v4897
      %v4899 = vlaneseq
      %v4900 = vshrl.u32 %v4899, 7
      %v4901 = vsub.s32 %v4898, %v4900
      %v4902 = vrot.slane %v4888, %v4901
      %v4903 = vcombine.low %v4895, %v4902
      %v4905 = vadd.f32 %v4868, %v4903
      %v4906 = vmax.f32 %v4905, 0.0
      %v4908 = vcombine.high %v4906, %v4906
      %v4910 = vunpack.c.l.s4 1983009808
      %v4911 = vunpack.c.0.s8 %v4910
      %v4912 = vlaneseq
      %v4913 = vshrl.u32 %v4912, 7
      %v4914 = vsub.s32 %v4911, %v4913
      %v4915 = vrot.slane %v4906, %v4914
      %v4917 = vunpack.c.l.s4 1983009808
      %v4918 = vunpack.c.0.s8 %v4917
      %v4919 = vlaneseq
      %v4920 = vshrl.u32 %v4919, 7
      %v4921 = vsub.s32 %v4918, %v4920
      %v4922 = vrot.slane %v4908, %v4921
      %v4923 = vcombine.high %v4915, %v4915
      %v4924 = vcombine.high %v4922, %v4922
      %v4929 = vpack.c.bf16 %v4915, %v4915
      %v4930 = vpack.c.bf16 %v4923, %v4923
      %v4931 = vpack.c.bf16 %v4922, %v4922
      %v4932 = vpack.c.bf16 %v4924, %v4924
      %v4933 = vld [vmem:[#allocation3] sm:$0xff]
      %v4934 = vld [vmem:[#allocation3 + $0x8] sm:$0xff]
      %v4935 = vld [vmem:[#allocation3 + $0x10] sm:$0xff]
      %v4936 = vld [vmem:[#allocation3 + $0x18] sm:$0xff]
      %v4937 = vld [vmem:[#allocation3 + $0x20] sm:$0xff]
      %v4938 = vld [vmem:[#allocation3 + $0x28] sm:$0xff]
      %v4939 = vld [vmem:[#allocation3 + $0x30] sm:$0xff]
      %v4940 = vld [vmem:[#allocation3 + $0x38] sm:$0xff]
      %v4941 = vld [vmem:[#allocation3 + $0x40] sm:$0xff]
      %v4942 = vld [vmem:[#allocation3 + $0x48] sm:$0xff]
      %v4943 = vld [vmem:[#allocation3 + $0x50] sm:$0xff]
      %v4944 = vld [vmem:[#allocation3 + $0x58] sm:$0xff]
      %v4945 = vld [vmem:[#allocation3 + $0x60] sm:$0xff]
      %v4946 = vld [vmem:[#allocation3 + $0x68] sm:$0xff]
      %v4947 = vld [vmem:[#allocation3 + $0x70] sm:$0xff]
      %v4948 = vld [vmem:[#allocation3 + $0x78] sm:$0xff]
      %v4949 = vld [vmem:[#allocation3 + $0x80] sm:$0xff]
      %v4950 = vld [vmem:[#allocation3 + $0x88] sm:$0xff]
      %v4951 = vld [vmem:[#allocation3 + $0x90] sm:$0xff]
      %v4952 = vld [vmem:[#allocation3 + $0x98] sm:$0xff]
      %v4953 = vld [vmem:[#allocation3 + $0xa0] sm:$0xff]
      %v4954 = vld [vmem:[#allocation3 + $0xa8] sm:$0xff]
      %v4955 = vld [vmem:[#allocation3 + $0xb0] sm:$0xff]
      %v4956 = vld [vmem:[#allocation3 + $0xb8] sm:$0xff]
      %v4957 = vld [vmem:[#allocation3 + $0xc0] sm:$0xff]
      %v4958 = vld [vmem:[#allocation3 + $0xc8] sm:$0xff]
      %v4959 = vld [vmem:[#allocation3 + $0xd0] sm:$0xff]
      %v4960 = vld [vmem:[#allocation3 + $0xd8] sm:$0xff]
      %v4961 = vld [vmem:[#allocation3 + $0xe0] sm:$0xff]
      %v4962 = vld [vmem:[#allocation3 + $0xe8] sm:$0xff]
      %v4963 = vld [vmem:[#allocation3 + $0xf0] sm:$0xff]
      %v4964 = vld [vmem:[#allocation3 + $0xf8] sm:$0xff]
      %v4965 = vld [vmem:[#allocation3 + $0x100] sm:$0xff]
      %v4966 = vld [vmem:[#allocation3 + $0x108] sm:$0xff]
      %v4967 = vld [vmem:[#allocation3 + $0x110] sm:$0xff]
      %v4968 = vld [vmem:[#allocation3 + $0x118] sm:$0xff]
      %v4969 = vld [vmem:[#allocation3 + $0x120] sm:$0xff]
      %v4970 = vld [vmem:[#allocation3 + $0x128] sm:$0xff]
      %v4971 = vld [vmem:[#allocation3 + $0x130] sm:$0xff]
      %v4972 = vld [vmem:[#allocation3 + $0x138] sm:$0xff]
      %v4973 = vld [vmem:[#allocation3 + $0x140] sm:$0xff]
      %v4974 = vld [vmem:[#allocation3 + $0x148] sm:$0xff]
      %v4975 = vld [vmem:[#allocation3 + $0x150] sm:$0xff]
      %v4976 = vld [vmem:[#allocation3 + $0x158] sm:$0xff]
      %v4977 = vld [vmem:[#allocation3 + $0x160] sm:$0xff]
      %v4978 = vld [vmem:[#allocation3 + $0x168] sm:$0xff]
      %v4979 = vld [vmem:[#allocation3 + $0x170] sm:$0xff]
      %v4980 = vld [vmem:[#allocation3 + $0x178] sm:$0xff]
      %v4981 = vld [vmem:[#allocation3 + $0x180] sm:$0xff]
      %v4982 = vld [vmem:[#allocation3 + $0x188] sm:$0xff]
      %v4983 = vld [vmem:[#allocation3 + $0x190] sm:$0xff]
      %v4984 = vld [vmem:[#allocation3 + $0x198] sm:$0xff]
      %v4985 = vld [vmem:[#allocation3 + $0x1a0] sm:$0xff]
      %v4986 = vld [vmem:[#allocation3 + $0x1a8] sm:$0xff]
      %v4987 = vld [vmem:[#allocation3 + $0x1b0] sm:$0xff]
      %v4988 = vld [vmem:[#allocation3 + $0x1b8] sm:$0xff]
      %v4989 = vld [vmem:[#allocation3 + $0x1c0] sm:$0xff]
      %v4990 = vld [vmem:[#allocation3 + $0x1c8] sm:$0xff]
      %v4991 = vld [vmem:[#allocation3 + $0x1d0] sm:$0xff]
      %v4992 = vld [vmem:[#allocation3 + $0x1d8] sm:$0xff]
      %v4993 = vld [vmem:[#allocation3 + $0x1e0] sm:$0xff]
      %v4994 = vld [vmem:[#allocation3 + $0x1e8] sm:$0xff]
      %v4995 = vld [vmem:[#allocation3 + $0x1f0] sm:$0xff]
      %v4996 = vld [vmem:[#allocation3 + $0x1f8] sm:$0xff]
      %v4997 = vld [vmem:[%s6] sm:$0x3]
      %v4999 = vlaneseq
      %v5000 = vshrl.u32 %v4999, 7
      %v5001 = vsub.s32 0, %v5000
      %v5002 = vrot.slane %v4997, %v5001
      %v5003 = vlaneseq
      %v5004 = vshrl.u32 %v5003, 7
      %v5005 = vsub.s32 1, %v5004
      %v5006 = vrot.slane %v4997, %v5005
      %v5073 = vunpack.c.l.b16 %v4933
      %v5074 = vunpack.c.h.b16 %v4933
      %v5075 = vunpack.c.l.b16 %v4934
      %v5076 = vunpack.c.h.b16 %v4934
      %v5077 = vunpack.c.l.b16 %v4935
      %v5078 = vunpack.c.h.b16 %v4935
      %v5079 = vunpack.c.l.b16 %v4936
      %v5080 = vunpack.c.h.b16 %v4936
      %v5081 = vunpack.c.l.b16 %v4937
      %v5082 = vunpack.c.h.b16 %v4937
      %v5083 = vunpack.c.l.b16 %v4938
      %v5084 = vunpack.c.h.b16 %v4938
      %v5085 = vunpack.c.l.b16 %v4939
      %v5086 = vunpack.c.h.b16 %v4939
      %v5087 = vunpack.c.l.b16 %v4940
      %v5088 = vunpack.c.h.b16 %v4940
      %v5089 = vunpack.c.l.b16 %v4941
      %v5090 = vunpack.c.h.b16 %v4941
      %v5091 = vunpack.c.l.b16 %v4942
      %v5092 = vunpack.c.h.b16 %v4942
      %v5093 = vunpack.c.l.b16 %v4943
      %v5094 = vunpack.c.h.b16 %v4943
      %v5095 = vunpack.c.l.b16 %v4944
      %v5096 = vunpack.c.h.b16 %v4944
      %v5097 = vunpack.c.l.b16 %v4945
      %v5098 = vunpack.c.h.b16 %v4945
      %v5099 = vunpack.c.l.b16 %v4946
      %v5100 = vunpack.c.h.b16 %v4946
      %v5101 = vunpack.c.l.b16 %v4947
      %v5102 = vunpack.c.h.b16 %v4947
      %v5103 = vunpack.c.l.b16 %v4948
      %v5104 = vunpack.c.h.b16 %v4948
      %v5105 = vunpack.c.l.b16 %v4949
      %v5106 = vunpack.c.h.b16 %v4949
      %v5107 = vunpack.c.l.b16 %v4950
      %v5108 = vunpack.c.h.b16 %v4950
      %v5109 = vunpack.c.l.b16 %v4951
      %v5110 = vunpack.c.h.b16 %v4951
      %v5111 = vunpack.c.l.b16 %v4952
      %v5112 = vunpack.c.h.b16 %v4952
      %v5113 = vunpack.c.l.b16 %v4953
      %v5114 = vunpack.c.h.b16 %v4953
      %v5115 = vunpack.c.l.b16 %v4954
      %v5116 = vunpack.c.h.b16 %v4954
      %v5117 = vunpack.c.l.b16 %v4955
      %v5118 = vunpack.c.h.b16 %v4955
      %v5119 = vunpack.c.l.b16 %v4956
      %v5120 = vunpack.c.h.b16 %v4956
      %v5121 = vunpack.c.l.b16 %v4957
      %v5122 = vunpack.c.h.b16 %v4957
      %v5123 = vunpack.c.l.b16 %v4958
      %v5124 = vunpack.c.h.b16 %v4958
      %v5125 = vunpack.c.l.b16 %v4959
      %v5126 = vunpack.c.h.b16 %v4959
      %v5127 = vunpack.c.l.b16 %v4960
      %v5128 = vunpack.c.h.b16 %v4960
      %v5129 = vunpack.c.l.b16 %v4961
      %v5130 = vunpack.c.h.b16 %v4961
      %v5131 = vunpack.c.l.b16 %v4962
      %v5132 = vunpack.c.h.b16 %v4962
      %v5133 = vunpack.c.l.b16 %v4963
      %v5134 = vunpack.c.h.b16 %v4963
      %v5135 = vunpack.c.l.b16 %v4964
      %v5136 = vunpack.c.h.b16 %v4964
      %v5137 = vunpack.c.l.b16 %v4965
      %v5138 = vunpack.c.h.b16 %v4965
      %v5139 = vunpack.c.l.b16 %v4966
      %v5140 = vunpack.c.h.b16 %v4966
      %v5141 = vunpack.c.l.b16 %v4967
      %v5142 = vunpack.c.h.b16 %v4967
      %v5143 = vunpack.c.l.b16 %v4968
      %v5144 = vunpack.c.h.b16 %v4968
      %v5145 = vunpack.c.l.b16 %v4969
      %v5146 = vunpack.c.h.b16 %v4969
      %v5147 = vunpack.c.l.b16 %v4970
      %v5148 = vunpack.c.h.b16 %v4970
      %v5149 = vunpack.c.l.b16 %v4971
      %v5150 = vunpack.c.h.b16 %v4971
      %v5151 = vunpack.c.l.b16 %v4972
      %v5152 = vunpack.c.h.b16 %v4972
      %v5153 = vunpack.c.l.b16 %v4973
      %v5154 = vunpack.c.h.b16 %v4973
      %v5155 = vunpack.c.l.b16 %v4974
      %v5156 = vunpack.c.h.b16 %v4974
      %v5157 = vunpack.c.l.b16 %v4975
      %v5158 = vunpack.c.h.b16 %v4975
      %v5159 = vunpack.c.l.b16 %v4976
      %v5160 = vunpack.c.h.b16 %v4976
      %v5161 = vunpack.c.l.b16 %v4977
      %v5162 = vunpack.c.h.b16 %v4977
      %v5163 = vunpack.c.l.b16 %v4978
      %v5164 = vunpack.c.h.b16 %v4978
      %v5165 = vunpack.c.l.b16 %v4979
      %v5166 = vunpack.c.h.b16 %v4979
      %v5167 = vunpack.c.l.b16 %v4980
      %v5168 = vunpack.c.h.b16 %v4980
      %v5169 = vunpack.c.l.b16 %v4981
      %v5170 = vunpack.c.h.b16 %v4981
      %v5171 = vunpack.c.l.b16 %v4982
      %v5172 = vunpack.c.h.b16 %v4982
      %v5173 = vunpack.c.l.b16 %v4983
      %v5174 = vunpack.c.h.b16 %v4983
      %v5175 = vunpack.c.l.b16 %v4984
      %v5176 = vunpack.c.h.b16 %v4984
      %v5177 = vunpack.c.l.b16 %v4985
      %v5178 = vunpack.c.h.b16 %v4985
      %v5179 = vunpack.c.l.b16 %v4986
      %v5180 = vunpack.c.h.b16 %v4986
      %v5181 = vunpack.c.l.b16 %v4987
      %v5182 = vunpack.c.h.b16 %v4987
      %v5183 = vunpack.c.l.b16 %v4988
      %v5184 = vunpack.c.h.b16 %v4988
      %v5185 = vunpack.c.l.b16 %v4989
      %v5186 = vunpack.c.h.b16 %v4989
      %v5187 = vunpack.c.l.b16 %v4990
      %v5188 = vunpack.c.h.b16 %v4990
      %v5189 = vunpack.c.l.b16 %v4991
      %v5190 = vunpack.c.h.b16 %v4991
      %v5191 = vunpack.c.l.b16 %v4992
      %v5192 = vunpack.c.h.b16 %v4992
      %v5193 = vunpack.c.l.b16 %v4993
      %v5194 = vunpack.c.h.b16 %v4993
      %v5195 = vunpack.c.l.b16 %v4994
      %v5196 = vunpack.c.h.b16 %v4994
      %v5197 = vunpack.c.l.b16 %v4995
      %v5198 = vunpack.c.h.b16 %v4995
      %v5199 = vunpack.c.l.b16 %v4996
      %v5200 = vunpack.c.h.b16 %v4996
      %v5201 = vpack.c.b16 %v5075, %v5073
      %v5202 = vpack.c.b16 %v5076, %v5074
      %v5203 = vpack.c.b16 %v5079, %v5077
      %v5204 = vpack.c.b16 %v5080, %v5078
      %v5205 = vpack.c.b16 %v5083, %v5081
      %v5206 = vpack.c.b16 %v5084, %v5082
      %v5207 = vpack.c.b16 %v5087, %v5085
      %v5208 = vpack.c.b16 %v5088, %v5086
      %v5209 = vpack.c.b16 %v5091, %v5089
      %v5210 = vpack.c.b16 %v5092, %v5090
      %v5211 = vpack.c.b16 %v5095, %v5093
      %v5212 = vpack.c.b16 %v5096, %v5094
      %v5213 = vpack.c.b16 %v5099, %v5097
      %v5214 = vpack.c.b16 %v5100, %v5098
      %v5215 = vpack.c.b16 %v5103, %v5101
      %v5216 = vpack.c.b16 %v5104, %v5102
      %v5217 = vpack.c.b16 %v5107, %v5105
      %v5218 = vpack.c.b16 %v5108, %v5106
      %v5219 = vpack.c.b16 %v5111, %v5109
      %v5220 = vpack.c.b16 %v5112, %v5110
      %v5221 = vpack.c.b16 %v5115, %v5113
      %v5222 = vpack.c.b16 %v5116, %v5114
      %v5223 = vpack.c.b16 %v5119, %v5117
      %v5224 = vpack.c.b16 %v5120, %v5118
      %v5225 = vpack.c.b16 %v5123, %v5121
      %v5226 = vpack.c.b16 %v5124, %v5122
      %v5227 = vpack.c.b16 %v5127, %v5125
      %v5228 = vpack.c.b16 %v5128, %v5126
      %v5229 = vpack.c.b16 %v5131, %v5129
      %v5230 = vpack.c.b16 %v5132, %v5130
      %v5231 = vpack.c.b16 %v5135, %v5133
      %v5232 = vpack.c.b16 %v5136, %v5134
      %v5233 = vpack.c.b16 %v5139, %v5137
      %v5234 = vpack.c.b16 %v5140, %v5138
      %v5235 = vpack.c.b16 %v5143, %v5141
      %v5236 = vpack.c.b16 %v5144, %v5142
      %v5237 = vpack.c.b16 %v5147, %v5145
      %v5238 = vpack.c.b16 %v5148, %v5146
      %v5239 = vpack.c.b16 %v5151, %v5149
      %v5240 = vpack.c.b16 %v5152, %v5150
      %v5241 = vpack.c.b16 %v5155, %v5153
      %v5242 = vpack.c.b16 %v5156, %v5154
      %v5243 = vpack.c.b16 %v5159, %v5157
      %v5244 = vpack.c.b16 %v5160, %v5158
      %v5245 = vpack.c.b16 %v5163, %v5161
      %v5246 = vpack.c.b16 %v5164, %v5162
      %v5247 = vpack.c.b16 %v5167, %v5165
      %v5248 = vpack.c.b16 %v5168, %v5166
      %v5249 = vpack.c.b16 %v5171, %v5169
      %v5250 = vpack.c.b16 %v5172, %v5170
      %v5251 = vpack.c.b16 %v5175, %v5173
      %v5252 = vpack.c.b16 %v5176, %v5174
      %v5253 = vpack.c.b16 %v5179, %v5177
      %v5254 = vpack.c.b16 %v5180, %v5178
      %v5255 = vpack.c.b16 %v5183, %v5181
      %v5256 = vpack.c.b16 %v5184, %v5182
      %v5257 = vpack.c.b16 %v5187, %v5185
      %v5258 = vpack.c.b16 %v5188, %v5186
      %v5259 = vpack.c.b16 %v5191, %v5189
      %v5260 = vpack.c.b16 %v5192, %v5190
      %v5261 = vpack.c.b16 %v5195, %v5193
      %v5262 = vpack.c.b16 %v5196, %v5194
      %v5263 = vpack.c.b16 %v5199, %v5197
      %v5264 = vpack.c.b16 %v5200, %v5198
      %5329 = vmatprep.subr.bf16.mxu0 %v5202
      %5330 = vmatpush1.bf16.msra.mxu0 %v5201
      %5331 = vmatprep.subr.bf16.mxu0 %v5204
      %5332 = vmatpush1.bf16.msra.mxu0 %v5203
      %5333 = vmatprep.subr.bf16.mxu0 %v5206
      %5334 = vmatpush1.bf16.msra.mxu0 %v5205
      %5335 = vmatprep.subr.bf16.mxu0 %v5208
      %5336 = vmatpush1.bf16.msra.mxu0 %v5207
      %5337 = vmatprep.subr.bf16.mxu0 %v5210
      %5338 = vmatpush1.bf16.msra.mxu0 %v5209
      %5339 = vmatprep.subr.bf16.mxu0 %v5212
      %5340 = vmatpush1.bf16.msra.mxu0 %v5211
      %5341 = vmatprep.subr.bf16.mxu0 %v5214
      %5342 = vmatpush1.bf16.msra.mxu0 %v5213
      %5343 = vmatprep.subr.bf16.mxu0 %v5216
      %5344 = vmatpush1.bf16.msra.mxu0 %v5215
      %5345 = vmatprep.subr.bf16.mxu0 %v5218
      %5346 = vmatpush1.bf16.msra.mxu0 %v5217
      %5347 = vmatprep.subr.bf16.mxu0 %v5220
      %5348 = vmatpush1.bf16.msra.mxu0 %v5219
      %5349 = vmatprep.subr.bf16.mxu0 %v5222
      %5350 = vmatpush1.bf16.msra.mxu0 %v5221
      %5351 = vmatprep.subr.bf16.mxu0 %v5224
      %5352 = vmatpush1.bf16.msra.mxu0 %v5223
      %5353 = vmatprep.subr.bf16.mxu0 %v5226
      %5354 = vmatpush1.bf16.msra.mxu0 %v5225
      %5355 = vmatprep.subr.bf16.mxu0 %v5228
      %5356 = vmatpush1.bf16.msra.mxu0 %v5227
      %5357 = vmatprep.subr.bf16.mxu0 %v5230
      %5358 = vmatpush1.bf16.msra.mxu0 %v5229
      %5359 = vmatprep.subr.bf16.mxu0 %v5232
      %5360 = vmatpush1.bf16.msra.mxu0 %v5231
      %5361 = vmatprep.mubr.bf16.mxu0 %v4930
      %5362 = vmatmul.mubr.bf16.gmra.mrb[0].mxu0 %v4929
      %v5363 = vpop.f32.mrb[0].mxu0
      %v5364 = vadd.f32 %v5002, %v5363
      %v5365 = vpop.f32.mrb[0].mxu0
      %v5366 = vadd.f32 %v5006, %v5365
      %v5367 = vpop.f32.mrb[0].mxu0
      %v5368 = vpop.f32.mrb[0].mxu0
      %5369 = vdwg.mxu0
      %5370 = vmatprep.subr.bf16.mxu0 %v5234
      %5371 = vmatpush1.bf16.msra.mxu0 %v5233
      %5372 = vmatprep.subr.bf16.mxu0 %v5236
      %5373 = vmatpush1.bf16.msra.mxu0 %v5235
      %5374 = vmatprep.subr.bf16.mxu0 %v5238
      %5375 = vmatpush1.bf16.msra.mxu0 %v5237
      %5376 = vmatprep.subr.bf16.mxu0 %v5240
      %5377 = vmatpush1.bf16.msra.mxu0 %v5239
      %5378 = vmatprep.subr.bf16.mxu0 %v5242
      %5379 = vmatpush1.bf16.msra.mxu0 %v5241
      %5380 = vmatprep.subr.bf16.mxu0 %v5244
      %5381 = vmatpush1.bf16.msra.mxu0 %v5243
      %5382 = vmatprep.subr.bf16.mxu0 %v5246
      %5383 = vmatpush1.bf16.msra.mxu0 %v5245
      %5384 = vmatprep.subr.bf16.mxu0 %v5248
      %5385 = vmatpush1.bf16.msra.mxu0 %v5247
      %5386 = vmatprep.subr.bf16.mxu0 %v5250
      %5387 = vmatpush1.bf16.msra.mxu0 %v5249
      %5388 = vmatprep.subr.bf16.mxu0 %v5252
      %5389 = vmatpush1.bf16.msra.mxu0 %v5251
      %5390 = vmatprep.subr.bf16.mxu0 %v5254
      %5391 = vmatpush1.bf16.msra.mxu0 %v5253
      %5392 = vmatprep.subr.bf16.mxu0 %v5256
      %5393 = vmatpush1.bf16.msra.mxu0 %v5255
      %5394 = vmatprep.subr.bf16.mxu0 %v5258
      %5395 = vmatpush1.bf16.msra.mxu0 %v5257
      %5396 = vmatprep.subr.bf16.mxu0 %v5260
      %5397 = vmatpush1.bf16.msra.mxu0 %v5259
      %5398 = vmatprep.subr.bf16.mxu0 %v5262
      %5399 = vmatpush1.bf16.msra.mxu0 %v5261
      %5400 = vmatprep.subr.bf16.mxu0 %v5264
      %5401 = vmatpush1.bf16.msra.mxu0 %v5263
      %5402 = vmatprep.mubr.bf16.mxu0 %v4932
      %5403 = vmatmul.mubr.bf16.gmra.mrb[0].mxu0 %v4931
      %v5404 = vpop.f32.mrb[0].mxu0
      %v5405 = vadd.f32 %v5364, %v5404
      %v5406 = vpop.f32.mrb[0].mxu0
      %v5407 = vadd.f32 %v5366, %v5406
      %v5408 = vpop.f32.mrb[0].mxu0
      %v5409 = vpop.f32.mrb[0].mxu0
      %5410 = vdwg.mxu0
      %v5411 = vmax.f32 %v5405, 0.0
      %v5412 = vmax.f32 %v5407, 0.0
      %v5413 = vpack.c.bf16 %v5411, %v5411
      %v5414 = vpack.c.bf16 %v5412, %v5412
      %v5415 = vld [vmem:[#allocation6] sm:$0xf]
      %v5416 = vld [vmem:[#allocation6 + $0x4] sm:$0xf]
      %v5417 = vld [vmem:[#allocation6 + $0x8] sm:$0xf]
      %v5418 = vld [vmem:[#allocation6 + $0xc] sm:$0xf]
      %v5419 = vld [vmem:[#allocation6 + $0x10] sm:$0xf]
      %v5420 = vld [vmem:[#allocation6 + $0x14] sm:$0xf]
      %v5421 = vld [vmem:[#allocation6 + $0x18] sm:$0xf]
      %v5422 = vld [vmem:[#allocation6 + $0x1c] sm:$0xf]
      %v5423 = vld [vmem:[#allocation6 + $0x20] sm:$0xf]
      %v5424 = vld [vmem:[#allocation6 + $0x24] sm:$0xf]
      %v5425 = vld [vmem:[#allocation6 + $0x28] sm:$0xf]
      %v5426 = vld [vmem:[#allocation6 + $0x2c] sm:$0xf]
      %v5427 = vld [vmem:[#allocation6 + $0x30] sm:$0xf]
      %v5428 = vld [vmem:[#allocation6 + $0x34] sm:$0xf]
      %v5429 = vld [vmem:[#allocation6 + $0x38] sm:$0xf]
      %v5430 = vld [vmem:[#allocation6 + $0x3c] sm:$0xf]
      %v5431 = vld [vmem:[#allocation6 + $0x40] sm:$0xf]
      %v5432 = vld [vmem:[#allocation6 + $0x44] sm:$0xf]
      %v5433 = vld [vmem:[#allocation6 + $0x48] sm:$0xf]
      %v5434 = vld [vmem:[#allocation6 + $0x4c] sm:$0xf]
      %v5435 = vld [vmem:[#allocation6 + $0x50] sm:$0xf]
      %v5436 = vld [vmem:[#allocation6 + $0x54] sm:$0xf]
      %v5437 = vld [vmem:[#allocation6 + $0x58] sm:$0xf]
      %v5438 = vld [vmem:[#allocation6 + $0x5c] sm:$0xf]
      %v5439 = vld [vmem:[#allocation6 + $0x60] sm:$0xf]
      %v5440 = vld [vmem:[#allocation6 + $0x64] sm:$0xf]
      %v5441 = vld [vmem:[#allocation6 + $0x68] sm:$0xf]
      %v5442 = vld [vmem:[#allocation6 + $0x6c] sm:$0xf]
      %v5443 = vld [vmem:[#allocation6 + $0x70] sm:$0xf]
      %v5444 = vld [vmem:[#allocation6 + $0x74] sm:$0xf]
      %v5445 = vld [vmem:[#allocation6 + $0x78] sm:$0xf]
      %v5446 = vld [vmem:[#allocation6 + $0x7c] sm:$0xf]
      %v5447 = vld [vmem:[%s8] sm:$0x1]
      %v5449 = vlaneseq
      %v5450 = vshrl.u32 %v5449, 7
      %v5451 = vsub.s32 0, %v5450
      %v5452 = vrot.slane %v5447, %v5451
      %v5486 = vunpack.c.l.b16 %v5415
      %v5487 = vunpack.c.l.b16 %v5416
      %v5488 = vunpack.c.l.b16 %v5417
      %v5489 = vunpack.c.l.b16 %v5418
      %v5490 = vunpack.c.l.b16 %v5419
      %v5491 = vunpack.c.l.b16 %v5420
      %v5492 = vunpack.c.l.b16 %v5421
      %v5493 = vunpack.c.l.b16 %v5422
      %v5494 = vunpack.c.l.b16 %v5423
      %v5495 = vunpack.c.l.b16 %v5424
      %v5496 = vunpack.c.l.b16 %v5425
      %v5497 = vunpack.c.l.b16 %v5426
      %v5498 = vunpack.c.l.b16 %v5427
      %v5499 = vunpack.c.l.b16 %v5428
      %v5500 = vunpack.c.l.b16 %v5429
      %v5501 = vunpack.c.l.b16 %v5430
      %v5502 = vunpack.c.l.b16 %v5431
      %v5503 = vunpack.c.l.b16 %v5432
      %v5504 = vunpack.c.l.b16 %v5433
      %v5505 = vunpack.c.l.b16 %v5434
      %v5506 = vunpack.c.l.b16 %v5435
      %v5507 = vunpack.c.l.b16 %v5436
      %v5508 = vunpack.c.l.b16 %v5437
      %v5509 = vunpack.c.l.b16 %v5438
      %v5510 = vunpack.c.l.b16 %v5439
      %v5511 = vunpack.c.l.b16 %v5440
      %v5512 = vunpack.c.l.b16 %v5441
      %v5513 = vunpack.c.l.b16 %v5442
      %v5514 = vunpack.c.l.b16 %v5443
      %v5515 = vunpack.c.l.b16 %v5444
      %v5516 = vunpack.c.l.b16 %v5445
      %v5517 = vunpack.c.l.b16 %v5446
      %v5518 = vpack.c.b16 %v5487, %v5486
      %v5519 = vpack.c.b16 %v5489, %v5488
      %v5520 = vpack.c.b16 %v5491, %v5490
      %v5521 = vpack.c.b16 %v5493, %v5492
      %v5522 = vpack.c.b16 %v5495, %v5494
      %v5523 = vpack.c.b16 %v5497, %v5496
      %v5524 = vpack.c.b16 %v5499, %v5498
      %v5525 = vpack.c.b16 %v5501, %v5500
      %v5526 = vpack.c.b16 %v5503, %v5502
      %v5527 = vpack.c.b16 %v5505, %v5504
      %v5528 = vpack.c.b16 %v5507, %v5506
      %v5529 = vpack.c.b16 %v5509, %v5508
      %v5530 = vpack.c.b16 %v5511, %v5510
      %v5531 = vpack.c.b16 %v5513, %v5512
      %v5532 = vpack.c.b16 %v5515, %v5514
      %v5533 = vpack.c.b16 %v5517, %v5516
      %5550 = vmatprep.subr.bf16.mxu0 0
      %5551 = vmatpush1.bf16.msra.mxu0 %v5518
      %5552 = vmatprep.subr.bf16.mxu0 0
      %5553 = vmatpush1.bf16.msra.mxu0 %v5519
      %5554 = vmatprep.subr.bf16.mxu0 0
      %5555 = vmatpush1.bf16.msra.mxu0 %v5520
      %5556 = vmatprep.subr.bf16.mxu0 0
      %5557 = vmatpush1.bf16.msra.mxu0 %v5521
      %5558 = vmatprep.subr.bf16.mxu0 0
      %5559 = vmatpush1.bf16.msra.mxu0 %v5522
      %5560 = vmatprep.subr.bf16.mxu0 0
      %5561 = vmatpush1.bf16.msra.mxu0 %v5523
      %5562 = vmatprep.subr.bf16.mxu0 0
      %5563 = vmatpush1.bf16.msra.mxu0 %v5524
      %5564 = vmatprep.subr.bf16.mxu0 0
      %5565 = vmatpush1.bf16.msra.mxu0 %v5525
      %5566 = vmatprep.subr.bf16.mxu0 0
      %5567 = vmatpush1.bf16.msra.mxu0 %v5526
      %5568 = vmatprep.subr.bf16.mxu0 0
      %5569 = vmatpush1.bf16.msra.mxu0 %v5527
      %5570 = vmatprep.subr.bf16.mxu0 0
      %5571 = vmatpush1.bf16.msra.mxu0 %v5528
      %5572 = vmatprep.subr.bf16.mxu0 0
      %5573 = vmatpush1.bf16.msra.mxu0 %v5529
      %5574 = vmatprep.subr.bf16.mxu0 0
      %5575 = vmatpush1.bf16.msra.mxu0 %v5530
      %5576 = vmatprep.subr.bf16.mxu0 0
      %5577 = vmatpush1.bf16.msra.mxu0 %v5531
      %5578 = vmatprep.subr.bf16.mxu0 0
      %5579 = vmatpush1.bf16.msra.mxu0 %v5532
      %5580 = vmatprep.subr.bf16.mxu0 0
      %5581 = vmatpush1.bf16.msra.mxu0 %v5533
      %5582 = vmatprep.mubr.bf16.mxu0 %v5414
      %5583 = vmatmul.mubr.bf16.gmra.mrb[0].mxu0 %v5413
      %v5584 = vpop.f32.mrb[0].mxu0
      %v5585 = vadd.f32 %v5452, %v5584
      %v5586 = vpop.f32.mrb[0].mxu0
      %v5587 = vpop.f32.mrb[0].mxu0
      %v5588 = vpop.f32.mrb[0].mxu0
      %5589 = vdwg.mxu0
      %5590 = vst [vmem:[#allocation8] sm:$0x3] %v5585
    $region53: #{crnn_forward.11} parent=1 // pred_fallthru
      _
    // Predicated region
    $region54: #{crnn_forward.11} parent=1 // pred_check
      _
    $region55: #{crnn_forward.11} parent=1 // pred_check_branch
      %5592 = sbr.rel (0) target = $region57
    $region56: #{crnn_forward.11} parent=1 // pred_region
      %s5594 = ssub.s32 32, 32
      %5595 = vsyncadd [#allocation5], %s5594
      %s5597 = sshll.u32 [#allocation8], 4
      %s5598 = int_to_ptr.vmem [resolvable:$true] %s5597
      %5600 = dma.vmem_to_hbm [thread:$0]  %s5598, 32, %s9, [#allocation5]
    $region57: #{crnn_forward.11} parent=1 // pred_fallthru
      _
    // Predicated region
    $region58: #{crnn_forward.11} parent=1 // pred_check
      _
    $region59: #{crnn_forward.11} parent=1 // pred_check_branch
      %5602 = sbr.rel (0) target = $region61
    $region60: #{crnn_forward.11} parent=1 // pred_region
      %5603 = dma.done [#allocation5], 32
    $region61: #{crnn_forward.11} parent=1 // pred_fallthru
      _
    %5604 = vsyncpa [#allocation4], 1
    %5605 = vsyncpa [#allocation7], 1
    %5606 = vsyncpa [#allocation5], 1

</llo_original>
